<compile_context>
chip_gen: v5e
topology: v5e:2x2
jax: 0.10.0
libtpu: 0.0.40
codegen_flags: <defaults>
</compile_context>

<pallas_src>
import numpy as np
import jax
import jax.numpy as jnp
from jax.experimental import pallas as pl
from jax.experimental.pallas import tpu as pltpu


# ----------------------------------------------------------------------------
# Static shape pipeline derived from the PyTorch module (L_IN=1000 -> 509 -> 259 -> 131 features,
# matching nn.LSTM(131, 20, 2); the 6 conv3 output channels become the LSTM time axis).
# ----------------------------------------------------------------------------
L_IN = 1000
HIDDEN = 20
SEQ_LEN = 6

BATCH_BLOCK = 8            # samples per grid step (multiple of 8 keeps the output block aligned)
SEG = 132                  # uniform per-sample lane segment used by every stage buffer
LANES = BATCH_BLOCK * SEG  # 1056
PAD_LANES = LANES + 8      # spill room for shifted reads/stores past the last segment

_MARG1, _MARG2, _MARG3 = 3, 3, 2          # ceil(pad / P) per stage
_LEN1 = (128, 127, 127, 127)              # stage-2 input phase lengths (509 @ decim 4)
_LEN2 = (130, 129)                        # stage-3 input phase lengths (259 @ decim 2)
_PHASE_IN = L_IN // 8                     # 125 samples per decim-8 input phase

_M1 = tuple(range(-19, 8))                # conv1: m = rho + k - pad, 27 distinct values
_M2 = tuple(range(-9, 4))                 # conv2: 13 distinct values
_M3 = tuple(range(-4, 2))                 # conv3: 6 distinct values
_PATCH_ROWS = 40                          # >= max(27*1, 13*3, 6*6)


def _pool_out(l, k, pad):
    return (l + 2 * pad - k + 1) // 2


assert _pool_out(L_IN, 20, 19) == 509
assert _pool_out(509, 10, 9) == 259
assert _pool_out(259, 5, 4) == 131


def _sigmoid(z):
    # exact sigmoid via tanh (EUP slot, no divide, no exp overflow)
    return 0.5 * jnp.tanh(0.5 * z) + 0.5


# ----------------------------------------------------------------------------
# One Conv1d + bias + ReLU + MaxPool1d(2,2) stage, batched along the lane axis.
#
# The stage input lives in 132-lane per-sample segments: [marg zeros][phase data][zeros], so the
# superpatch row for shift m = r2 + P*q is ONE contiguous slice at lane offset marg+q covering all
# 8 samples.  W_stacked has the P output phases stacked on its M dim, so one MXU matmul produces
# every output phase; maxpool(relu(conv + b)) = relu(max(even, odd phase) + b).
# ----------------------------------------------------------------------------
def _conv_stage(read_row, patch_ref, w, b, *, P, cin, marg, m_list):
    for idx, m in enumerate(m_list):
        r2, q = m % P, m // P
        patch_ref[idx * cin:(idx + 1) * cin, :] = read_row(r2, marg + q)
    rows = len(m_list) * cin
    y = jnp.dot(w, patch_ref[0:rows, :], preferred_element_type=jnp.float32)   # (P*cout, LANES)
    cout = w.shape[0] // P
    return [jnp.maximum(jnp.maximum(y[(2 * r) * cout:(2 * r + 1) * cout, :],
                                    y[(2 * r + 1) * cout:(2 * r + 2) * cout, :]) + b, 0.0)
            for r in range(P // 2)]


# ----------------------------------------------------------------------------
# Fully fused kernel: one block of BATCH_BLOCK samples per grid step.
# ----------------------------------------------------------------------------
def _cnn_lstm_kernel(x_ref, pos_ref,
                     w1_ref, b1_ref, w2_ref, b2_ref, w3_ref, b3_ref,
                     wih0_ref, whh0_ref, bl0_ref, wih1_ref, whh1_ref, bl1_ref,
                     wfc_ref, bfc_ref,
                     o_ref,
                     s2, s3, patch, xw0):
    pos = pos_ref[...]                       # (1, LANES) int32: lane position within its segment

    # ---- stage 1: conv1 (1->3, K=20, pad=19) + relu + pool : decim 8 -> 4 ----
    read1 = lambda r, off: x_ref[0, r:r + 1, off:off + LANES]
    p1 = _conv_stage(read1, patch, w1_ref[...], b1_ref[...],
                     P=8, cin=1, marg=_MARG1, m_list=_M1)
    for r in range(4):
        s2[r, :, 0:_MARG2] = jnp.zeros((3, _MARG2), jnp.float32)
        mask = (pos < _LEN1[r]).astype(jnp.float32)
        s2[r, :, _MARG2:_MARG2 + LANES] = p1[r] * mask

    # ---- stage 2: conv2 (3->6, K=10, pad=9) + relu + pool : decim 4 -> 2 ----
    read2 = lambda r, off: s2[r, :, off:off + LANES]
    p2 = _conv_stage(read2, patch, w2_ref[...], b2_ref[...],
                     P=4, cin=3, marg=_MARG2, m_list=_M2)
    for r in range(2):
        s3[r, :, 0:_MARG3] = jnp.zeros((6, _MARG3), jnp.float32)
        mask = (pos < _LEN2[r]).astype(jnp.float32)
        s3[r, :, _MARG3:_MARG3 + LANES] = p2[r] * mask

    # ---- stage 3: conv3 (6->6, K=5, pad=4) + relu + pool : decim 2 -> 1 (normal order) ----
    read3 = lambda r, off: s3[r, :, off:off + LANES]
    feat = _conv_stage(read3, patch, w3_ref[...], b3_ref[...],
                       P=2, cin=6, marg=_MARG3, m_list=_M3)[0]           # (6, LANES)
    # Sample b's (seq=6, feature=131) block sits at lanes [b*SEG, b*SEG + 131).
    patch[0:6, :] = feat                                                 # reuse patch as feat buffer

    # ---- LSTM layer-0 input projection, hoisted out of the serial time loop ----
    wih0 = wih0_ref[...]
    bl0 = bl0_ref[...]
    for b in range(BATCH_BLOCK):
        xb = jnp.dot(patch[0:6, b * SEG:b * SEG + 131], wih0,
                     preferred_element_type=jnp.float32) + bl0           # (6, 4H)
        for t in range(SEQ_LEN):
            xw0[t, b:b + 1, :] = xb[t:t + 1, :]

    # ---- 2-layer LSTM with the batch block on the sublane/M dimension; gates [i|f|g|o] ----
    H = HIDDEN
    whh0 = whh0_ref[...]
    wih1 = wih1_ref[...]
    whh1 = whh1_ref[...]
    bl1 = bl1_ref[...]

    h0 = jnp.zeros((BATCH_BLOCK, H), jnp.float32)
    c0 = jnp.zeros((BATCH_BLOCK, H), jnp.float32)
    h1 = jnp.zeros((BATCH_BLOCK, H), jnp.float32)
    c1 = jnp.zeros((BATCH_BLOCK, H), jnp.float32)

    def lstm_step(z, c):
        i = _sigmoid(z[:, 0:H])
        f = _sigmoid(z[:, H:2 * H])
        g = jnp.tanh(z[:, 2 * H:3 * H])
        o = _sigmoid(z[:, 3 * H:4 * H])
        c_new = f * c + i * g
        return o * jnp.tanh(c_new), c_new

    for t in range(SEQ_LEN):
        z0 = xw0[t] + jnp.dot(h0, whh0, preferred_element_type=jnp.float32)
        h0, c0 = lstm_step(z0, c0)
        # TODO(synk): LSTM inter-layer dropout (p=0.3) and nn.Dropout(0.3) are identity (inference).
        z1 = (jnp.dot(h0, wih1, preferred_element_type=jnp.float32)
              + jnp.dot(h1, whh1, preferred_element_type=jnp.float32) + bl1)
        h1, c1 = lstm_step(z1, c1)

    # fc1 -> fc2 -> fc3 (no activations, inference dropout) pre-fused into one affine map.
    o_ref[...] = jnp.dot(h1, wfc_ref[...], preferred_element_type=jnp.float32) + bfc_ref[...]


def _full_spec(shape):
    nd = len(shape)
    return pl.BlockSpec(shape, lambda i, _nd=nd: (0,) * _nd)


def _pallas_forward(xph, seg_pos, p, n_blocks):
    weights = [p["w1"], p["b1"], p["w2"], p["b2"], p["w3"], p["b3"],
               p["wih0"], p["whh0"], p["bl0"], p["wih1"], p["whh1"], p["bl1"],
               p["fc_w"], p["fc_b"]]
    out = pl.pallas_call(
        _cnn_lstm_kernel,
        out_shape=jax.ShapeDtypeStruct((n_blocks * BATCH_BLOCK, 6), jnp.float32),
        grid=(n_blocks,),
        in_specs=[pl.BlockSpec((1, 8, PAD_LANES), lambda i: (i, 0, 0)),
                  _full_spec(seg_pos.shape)]
                 + [_full_spec(w.shape) for w in weights],
        out_specs=pl.BlockSpec((BATCH_BLOCK, 6), lambda i: (i, 0)),
        scratch_shapes=[
            pltpu.VMEM((4, 3, PAD_LANES), jnp.float32),        # stage-2 input phases
            pltpu.VMEM((2, 6, PAD_LANES), jnp.float32),        # stage-3 input phases
            pltpu.VMEM((_PATCH_ROWS, LANES), jnp.float32),     # shared superpatch / feature buffer
            pltpu.VMEM((SEQ_LEN, BATCH_BLOCK, 4 * HIDDEN), jnp.float32),   # hoisted x@Wih0 + b
        ],
        compiler_params=pltpu.CompilerParams(dimension_semantics=("parallel",)),
    )(xph, seg_pos, *weights)
    return out


@jax.jit
def cnn_lstm_forward(x, kernel_params):
    # x: (N, 1, 1000) -- PyTorch NCL layout for Conv1d.
    N, C, L = x.shape
    assert C == 1 and L == L_IN, (C, L)
    nb = -(-N // BATCH_BLOCK)
    npad = nb * BATCH_BLOCK
    xp = jnp.pad(x.astype(jnp.float32), ((0, npad - N), (0, 0), (0, 0)))
    # decim-8 polyphase split, with zero margins/tails baked in (single host reshuffle per call)
    ph = jnp.transpose(xp.reshape(npad, 1, _PHASE_IN, 8), (0, 1, 3, 2))[:, 0]     # (npad, 8, 125)
    ph = jnp.pad(ph, ((0, 0), (0, 0), (_MARG1, SEG - _MARG1 - _PHASE_IN)))        # (npad, 8, SEG)
    ph = ph.reshape(nb, BATCH_BLOCK, 8, SEG).transpose(0, 2, 1, 3).reshape(nb, 8, LANES)
    ph = jnp.pad(ph, ((0, 0), (0, 0), (0, PAD_LANES - LANES)))                    # (nb, 8, PAD_LANES)
    seg_pos = jnp.asarray(np.tile(np.arange(SEG, dtype=np.int32), BATCH_BLOCK)[None, :])
    out = _pallas_forward(ph, seg_pos, kernel_params, nb)
    return out[:N]


# ----------------------------------------------------------------------------
# Parameters: raw PyTorch-layout weights (deterministic, default-init shapes) plus a one-time
# preprocessing step (phase-stacked conv matrices, gate-concat LSTM weights, fused fc1/fc2/fc3).
# ----------------------------------------------------------------------------
def init_params(key):
    ks = jax.random.split(key, 20)

    def u(k, shape, fan_in):
        b = 1.0 / float(np.sqrt(fan_in))
        return jax.random.uniform(k, shape, jnp.float32, -b, b)

    H = HIDDEN
    return {
        "conv1_w": u(ks[0], (3, 1, 20), 1 * 20), "conv1_b": u(ks[1], (3,), 1 * 20),
        "conv2_w": u(ks[2], (6, 3, 10), 3 * 10), "conv2_b": u(ks[3], (6,), 3 * 10),
        "conv3_w": u(ks[4], (6, 6, 5), 6 * 5),   "conv3_b": u(ks[5], (6,), 6 * 5),
        "wih0": u(ks[6], (4 * H, 131), H), "whh0": u(ks[7], (4 * H, H), H),
        "bih0": u(ks[8], (4 * H,), H),     "bhh0": u(ks[9], (4 * H,), H),
        "wih1": u(ks[10], (4 * H, H), H),  "whh1": u(ks[11], (4 * H, H), H),
        "bih1": u(ks[12], (4 * H,), H),    "bhh1": u(ks[13], (4 * H,), H),
        "fc1_w": u(ks[14], (20, 20), 20), "fc1_b": u(ks[15], (20,), 20),
        "fc2_w": u(ks[16], (10, 20), 20), "fc2_b": u(ks[17], (10,), 20),
        "fc3_w": u(ks[18], (6, 10), 10),  "fc3_b": u(ks[19], (6,), 10),
    }


def _stack_conv(w, P, pad):
    # (Cout, Cin, K) -> (P*Cout, (P+K-1)*Cin): output phase rho stacked on rows, shift m = rho+k-pad
    # mapped to column block (m + pad).
    w = np.asarray(w, np.float32)
    cout, cin, K = w.shape
    Ws = np.zeros((P * cout, (P + K - 1) * cin), np.float32)
    for rho in range(P):
        for k in range(K):
            idx = rho + k
            Ws[rho * cout:(rho + 1) * cout, idx * cin:(idx + 1) * cin] = w[:, :, k]
    return jnp.asarray(Ws)


def prepare_kernel_params(p):
    # fc1 -> fc2 -> fc3 with no nonlinearity / inference dropout: fold into one affine map.
    fc_w = p["fc1_w"].T @ p["fc2_w"].T @ p["fc3_w"].T                     # (20, 6)
    fc_b = (p["fc1_b"] @ p["fc2_w"].T + p["fc2_b"]) @ p["fc3_w"].T + p["fc3_b"]
    return {
        "w1": _stack_conv(p["conv1_w"], 8, 19), "b1": p["conv1_b"][:, None],
        "w2": _stack_conv(p["conv2_w"], 4, 9),  "b2": p["conv2_b"][:, None],
        "w3": _stack_conv(p["conv3_w"], 2, 4),  "b3": p["conv3_b"][:, None],
        # PyTorch gate order [i, f, g, o]; (4H, In).T -> (In, 4H); fuse the two bias vectors.
        "wih0": p["wih0"].T, "whh0": p["whh0"].T, "bl0": (p["bih0"] + p["bhh0"])[None, :],
        "wih1": p["wih1"].T, "whh1": p["whh1"].T, "bl1": (p["bih1"] + p["bhh1"])[None, :],
        "fc_w": fc_w, "fc_b": fc_b[None, :],
    }


# ----------------------------------------------------------------------------
# Pure-JAX reference (mirrors the PyTorch forward, using the RAW per-layer weights).
# ----------------------------------------------------------------------------
def _reference_forward(x, p):
    hp = jax.lax.Precision.HIGHEST

    def conv_stage(h, w, b, pad):
        y = jax.lax.conv_general_dilated(
            h, w, window_strides=(1,), padding=[(pad, pad)],
            dimension_numbers=("NCH", "OIH", "NCH"), precision=hp)
        y = jnp.maximum(y + b[None, :, None], 0.0)
        L = y.shape[-1]
        return y[..., : 2 * (L // 2)].reshape(y.shape[0], y.shape[1], L // 2, 2).max(axis=-1)

    h = conv_stage(x, p["conv1_w"], p["conv1_b"], 19)
    h = conv_stage(h, p["conv2_w"], p["conv2_b"], 9)
    h = conv_stage(h, p["conv3_w"], p["conv3_b"], 4)          # (N, 6, 131)

    N = h.shape[0]
    H = HIDDEN
    dot = lambda a, b: jnp.dot(a, b, precision=hp)
    h0 = jnp.zeros((N, H)); c0 = jnp.zeros((N, H))
    h1 = jnp.zeros((N, H)); c1 = jnp.zeros((N, H))

    def step(z, c):
        i, f = _sigmoid(z[:, :H]), _sigmoid(z[:, H:2 * H])
        g, o = jnp.tanh(z[:, 2 * H:3 * H]), _sigmoid(z[:, 3 * H:])
        c = f * c + i * g
        return o * jnp.tanh(c), c

    for t in range(SEQ_LEN):
        z0 = dot(h[:, t, :], p["wih0"].T) + dot(h0, p["whh0"].T) + p["bih0"] + p["bhh0"]
        h0, c0 = step(z0, c0)
        z1 = dot(h0, p["wih1"].T) + dot(h1, p["whh1"].T) + p["bih1"] + p["bhh1"]
        h1, c1 = step(z1, c1)

    y = dot(h1, p["fc1_w"].T) + p["fc1_b"]
    y = dot(y, p["fc2_w"].T) + p["fc2_b"]
    return dot(y, p["fc3_w"].T) + p["fc3_b"]


if __name__ == "__main__":
    key = jax.random.PRNGKey(0)
    kx, kp = jax.random.split(key)
    N = 10                                   # 2 grid blocks of 8 (last block zero-padded)
    x = jax.random.normal(kx, (N, 1, L_IN), jnp.float32)
    raw_params = init_params(kp)
    kernel_params = prepare_kernel_params(raw_params)

    out = jax.block_until_ready(cnn_lstm_forward(x, kernel_params))
    assert out.shape == (N, 6), out.shape
    assert bool(jnp.all(jnp.isfinite(out)))

    ref = jax.block_until_ready(jax.jit(_reference_forward)(x, raw_params))
    np.testing.assert_allclose(np.asarray(out), np.asarray(ref), rtol=1e-2, atol=1e-2)

    print("KERNEL_OK")
</pallas_src>

<mosaic_0001>
module attributes {stable_mosaic.version = 11 : i64} {
  func.func @_cnn_lstm_kernel(%arg0: i32, %arg1: memref<1x8x1064xf32, #tpu.memory_space<vmem>>, %arg2: memref<1x1056xi32, #tpu.memory_space<vmem>>, %arg3: memref<24x27xf32, #tpu.memory_space<vmem>>, %arg4: memref<3x1xf32, #tpu.memory_space<vmem>>, %arg5: memref<24x39xf32, #tpu.memory_space<vmem>>, %arg6: memref<6x1xf32, #tpu.memory_space<vmem>>, %arg7: memref<12x36xf32, #tpu.memory_space<vmem>>, %arg8: memref<6x1xf32, #tpu.memory_space<vmem>>, %arg9: memref<131x80xf32, #tpu.memory_space<vmem>>, %arg10: memref<20x80xf32, #tpu.memory_space<vmem>>, %arg11: memref<1x80xf32, #tpu.memory_space<vmem>>, %arg12: memref<20x80xf32, #tpu.memory_space<vmem>>, %arg13: memref<20x80xf32, #tpu.memory_space<vmem>>, %arg14: memref<1x80xf32, #tpu.memory_space<vmem>>, %arg15: memref<20x6xf32, #tpu.memory_space<vmem>>, %arg16: memref<1x6xf32, #tpu.memory_space<vmem>>, %arg17: memref<8x6xf32, #tpu.memory_space<vmem>>, %arg18: memref<4x3x1064xf32, #tpu.memory_space<vmem>>, %arg19: memref<2x6x1064xf32, #tpu.memory_space<vmem>>, %arg20: memref<40x1056xf32, #tpu.memory_space<vmem>>, %arg21: memref<6x8x80xf32, #tpu.memory_space<vmem>>) attributes {dimension_semantics = [#tpu.dimension_semantics<parallel>], iteration_bounds = array<i64: 2>, scalar_prefetch = 0 : i64, scratch_operands = 4 : i64, tpu.core_type = #tpu.core_type<tc>, window_params = [{transform_indices = @transform_0, window_bounds = array<i64: 1, 8, 1064>}, {pipeline_mode = #tpu.pipeline_mode<synchronous>, transform_indices = @transform_1, window_bounds = array<i64: 1, 1056>}, {pipeline_mode = #tpu.pipeline_mode<synchronous>, transform_indices = @transform_2, window_bounds = array<i64: 24, 27>}, {pipeline_mode = #tpu.pipeline_mode<synchronous>, transform_indices = @transform_3, window_bounds = array<i64: 3, 1>}, {pipeline_mode = #tpu.pipeline_mode<synchronous>, transform_indices = @transform_4, window_bounds = array<i64: 24, 39>}, {pipeline_mode = #tpu.pipeline_mode<synchronous>, transform_indices = @transform_5, window_bounds = array<i64: 6, 1>}, {pipeline_mode = #tpu.pipeline_mode<synchronous>, transform_indices = @transform_6, window_bounds = array<i64: 12, 36>}, {pipeline_mode = #tpu.pipeline_mode<synchronous>, transform_indices = @transform_7, window_bounds = array<i64: 6, 1>}, {pipeline_mode = #tpu.pipeline_mode<synchronous>, transform_indices = @transform_8, window_bounds = array<i64: 131, 80>}, {pipeline_mode = #tpu.pipeline_mode<synchronous>, transform_indices = @transform_9, window_bounds = array<i64: 20, 80>}, {pipeline_mode = #tpu.pipeline_mode<synchronous>, transform_indices = @transform_10, window_bounds = array<i64: 1, 80>}, {pipeline_mode = #tpu.pipeline_mode<synchronous>, transform_indices = @transform_11, window_bounds = array<i64: 20, 80>}, {pipeline_mode = #tpu.pipeline_mode<synchronous>, transform_indices = @transform_12, window_bounds = array<i64: 20, 80>}, {pipeline_mode = #tpu.pipeline_mode<synchronous>, transform_indices = @transform_13, window_bounds = array<i64: 1, 80>}, {pipeline_mode = #tpu.pipeline_mode<synchronous>, transform_indices = @transform_14, window_bounds = array<i64: 20, 6>}, {pipeline_mode = #tpu.pipeline_mode<synchronous>, transform_indices = @transform_15, window_bounds = array<i64: 1, 6>}, {transform_indices = @transform_16, window_bounds = array<i64: 8, 6>}]} {
    %c0 = arith.constant 0 : index
    %c0_0 = arith.constant 0 : index
    %0 = vector.load %arg2[%c0, %c0_0] : memref<1x1056xi32, #tpu.memory_space<vmem>>, vector<1x1056xi32>
    %c0_1 = arith.constant 0 : index
    %c0_2 = arith.constant 0 : index
    %1 = vector.load %arg3[%c0_1, %c0_2] : memref<24x27xf32, #tpu.memory_space<vmem>>, vector<24x27xf32>
    %c0_3 = arith.constant 0 : index
    %c0_4 = arith.constant 0 : index
    %2 = vector.load %arg4[%c0_3, %c0_4] : memref<3x1xf32, #tpu.memory_space<vmem>>, vector<3x1xf32>
    %c0_5 = arith.constant 0 : index
    %c5 = arith.constant 5 : index
    %c0_6 = arith.constant 0 : index
    %3 = vector.load %arg1[%c0_5, %c5, %c0_6] : memref<1x8x1064xf32, #tpu.memory_space<vmem>>, vector<1x1x1056xf32>
    %4 = vector.shape_cast %3 : vector<1x1x1056xf32> to vector<1x1056xf32>
    %c0_7 = arith.constant 0 : index
    %c0_8 = arith.constant 0 : index
    %5 = vector.load %arg20[%c0_7, %c0_8] : memref<40x1056xf32, #tpu.memory_space<vmem>>, vector<1x1056xf32>
    tpu.vector_store %arg20[%c0_7, %c0_8], %4 {strides = array<i32>} : memref<40x1056xf32, #tpu.memory_space<vmem>>, vector<1x1056xf32>,
    %c0_9 = arith.constant 0 : index
    %c6 = arith.constant 6 : index
    %c0_10 = arith.constant 0 : index
    %6 = vector.load %arg1[%c0_9, %c6, %c0_10] : memref<1x8x1064xf32, #tpu.memory_space<vmem>>, vector<1x1x1056xf32>
    %7 = vector.shape_cast %6 : vector<1x1x1056xf32> to vector<1x1056xf32>
    %c1 = arith.constant 1 : index
    %c0_11 = arith.constant 0 : index
    %8 = vector.load %arg20[%c1, %c0_11] : memref<40x1056xf32, #tpu.memory_space<vmem>>, vector<1x1056xf32>
    tpu.vector_store %arg20[%c1, %c0_11], %7 {strides = array<i32>} : memref<40x1056xf32, #tpu.memory_space<vmem>>, vector<1x1056xf32>,
    %c0_12 = arith.constant 0 : index
    %c7 = arith.constant 7 : index
    %c0_13 = arith.constant 0 : index
    %9 = vector.load %arg1[%c0_12, %c7, %c0_13] : memref<1x8x1064xf32, #tpu.memory_space<vmem>>, vector<1x1x1056xf32>
    %10 = vector.shape_cast %9 : vector<1x1x1056xf32> to vector<1x1056xf32>
    %c2 = arith.constant 2 : index
    %c0_14 = arith.constant 0 : index
    %11 = vector.load %arg20[%c2, %c0_14] : memref<40x1056xf32, #tpu.memory_space<vmem>>, vector<1x1056xf32>
    tpu.vector_store %arg20[%c2, %c0_14], %10 {strides = array<i32>} : memref<40x1056xf32, #tpu.memory_space<vmem>>, vector<1x1056xf32>,
    %c0_15 = arith.constant 0 : index
    %c0_16 = arith.constant 0 : index
    %c1_17 = arith.constant 1 : index
    %12 = vector.load %arg1[%c0_15, %c0_16, %c1_17] : memref<1x8x1064xf32, #tpu.memory_space<vmem>>, vector<1x1x1056xf32>
    %13 = vector.shape_cast %12 : vector<1x1x1056xf32> to vector<1x1056xf32>
    %c3 = arith.constant 3 : index
    %c0_18 = arith.constant 0 : index
    %14 = vector.load %arg20[%c3, %c0_18] : memref<40x1056xf32, #tpu.memory_space<vmem>>, vector<1x1056xf32>
    tpu.vector_store %arg20[%c3, %c0_18], %13 {strides = array<i32>} : memref<40x1056xf32, #tpu.memory_space<vmem>>, vector<1x1056xf32>,
    %c0_19 = arith.constant 0 : index
    %c1_20 = arith.constant 1 : index
    %c1_21 = arith.constant 1 : index
    %15 = vector.load %arg1[%c0_19, %c1_20, %c1_21] : memref<1x8x1064xf32, #tpu.memory_space<vmem>>, vector<1x1x1056xf32>
    %16 = vector.shape_cast %15 : vector<1x1x1056xf32> to vector<1x1056xf32>
    %c4 = arith.constant 4 : index
    %c0_22 = arith.constant 0 : index
    %17 = vector.load %arg20[%c4, %c0_22] : memref<40x1056xf32, #tpu.memory_space<vmem>>, vector<1x1056xf32>
    tpu.vector_store %arg20[%c4, %c0_22], %16 {strides = array<i32>} : memref<40x1056xf32, #tpu.memory_space<vmem>>, vector<1x1056xf32>,
    %c0_23 = arith.constant 0 : index
    %c2_24 = arith.constant 2 : index
    %c1_25 = arith.constant 1 : index
    %18 = vector.load %arg1[%c0_23, %c2_24, %c1_25] : memref<1x8x1064xf32, #tpu.memory_space<vmem>>, vector<1x1x1056xf32>
    %19 = vector.shape_cast %18 : vector<1x1x1056xf32> to vector<1x1056xf32>
    %c5_26 = arith.constant 5 : index
    %c0_27 = arith.constant 0 : index
    %20 = vector.load %arg20[%c5_26, %c0_27] : memref<40x1056xf32, #tpu.memory_space<vmem>>, vector<1x1056xf32>
    tpu.vector_store %arg20[%c5_26, %c0_27], %19 {strides = array<i32>} : memref<40x1056xf32, #tpu.memory_space<vmem>>, vector<1x1056xf32>,
    %c0_28 = arith.constant 0 : index
    %c3_29 = arith.constant 3 : index
    %c1_30 = arith.constant 1 : index
    %21 = vector.load %arg1[%c0_28, %c3_29, %c1_30] : memref<1x8x1064xf32, #tpu.memory_space<vmem>>, vector<1x1x1056xf32>
    %22 = vector.shape_cast %21 : vector<1x1x1056xf32> to vector<1x1056xf32>
    %c6_31 = arith.constant 6 : index
    %c0_32 = arith.constant 0 : index
    %23 = vector.load %arg20[%c6_31, %c0_32] : memref<40x1056xf32, #tpu.memory_space<vmem>>, vector<1x1056xf32>
    tpu.vector_store %arg20[%c6_31, %c0_32], %22 {strides = array<i32>} : memref<40x1056xf32, #tpu.memory_space<vmem>>, vector<1x1056xf32>,
    %c0_33 = arith.constant 0 : index
    %c4_34 = arith.constant 4 : index
    %c1_35 = arith.constant 1 : index
    %24 = vector.load %arg1[%c0_33, %c4_34, %c1_35] : memref<1x8x1064xf32, #tpu.memory_space<vmem>>, vector<1x1x1056xf32>
    %25 = vector.shape_cast %24 : vector<1x1x1056xf32> to vector<1x1056xf32>
    %c7_36 = arith.constant 7 : index
    %c0_37 = arith.constant 0 : index
    %26 = vector.load %arg20[%c7_36, %c0_37] : memref<40x1056xf32, #tpu.memory_space<vmem>>, vector<1x1056xf32>
    tpu.vector_store %arg20[%c7_36, %c0_37], %25 {strides = array<i32>} : memref<40x1056xf32, #tpu.memory_space<vmem>>, vector<1x1056xf32>,
    %c0_38 = arith.constant 0 : index
    %c5_39 = arith.constant 5 : index
    %c1_40 = arith.constant 1 : index
    %27 = vector.load %arg1[%c0_38, %c5_39, %c1_40] : memref<1x8x1064xf32, #tpu.memory_space<vmem>>, vector<1x1x1056xf32>
    %28 = vector.shape_cast %27 : vector<1x1x1056xf32> to vector<1x1056xf32>
    %c8 = arith.constant 8 : index
    %c0_41 = arith.constant 0 : index
    %29 = vector.load %arg20[%c8, %c0_41] : memref<40x1056xf32, #tpu.memory_space<vmem>>, vector<1x1056xf32>
    tpu.vector_store %arg20[%c8, %c0_41], %28 {strides = array<i32>} : memref<40x1056xf32, #tpu.memory_space<vmem>>, vector<1x1056xf32>,
    %c0_42 = arith.constant 0 : index
    %c6_43 = arith.constant 6 : index
    %c1_44 = arith.constant 1 : index
    %30 = vector.load %arg1[%c0_42, %c6_43, %c1_44] : memref<1x8x1064xf32, #tpu.memory_space<vmem>>, vector<1x1x1056xf32>
    %31 = vector.shape_cast %30 : vector<1x1x1056xf32> to vector<1x1056xf32>
    %c9 = arith.constant 9 : index
    %c0_45 = arith.constant 0 : index
    %32 = vector.load %arg20[%c9, %c0_45] : memref<40x1056xf32, #tpu.memory_space<vmem>>, vector<1x1056xf32>
    tpu.vector_store %arg20[%c9, %c0_45], %31 {strides = array<i32>} : memref<40x1056xf32, #tpu.memory_space<vmem>>, vector<1x1056xf32>,
    %c0_46 = arith.constant 0 : index
    %c7_47 = arith.constant 7 : index
    %c1_48 = arith.constant 1 : index
    %33 = vector.load %arg1[%c0_46, %c7_47, %c1_48] : memref<1x8x1064xf32, #tpu.memory_space<vmem>>, vector<1x1x1056xf32>
    %34 = vector.shape_cast %33 : vector<1x1x1056xf32> to vector<1x1056xf32>
    %c10 = arith.constant 10 : index
    %c0_49 = arith.constant 0 : index
    %35 = vector.load %arg20[%c10, %c0_49] : memref<40x1056xf32, #tpu.memory_space<vmem>>, vector<1x1056xf32>
    tpu.vector_store %arg20[%c10, %c0_49], %34 {strides = array<i32>} : memref<40x1056xf32, #tpu.memory_space<vmem>>, vector<1x1056xf32>,
    %c0_50 = arith.constant 0 : index
    %c0_51 = arith.constant 0 : index
    %c2_52 = arith.constant 2 : index
    %36 = vector.load %arg1[%c0_50, %c0_51, %c2_52] : memref<1x8x1064xf32, #tpu.memory_space<vmem>>, vector<1x1x1056xf32>
    %37 = vector.shape_cast %36 : vector<1x1x1056xf32> to vector<1x1056xf32>
    %c11 = arith.constant 11 : index
    %c0_53 = arith.constant 0 : index
    %38 = vector.load %arg20[%c11, %c0_53] : memref<40x1056xf32, #tpu.memory_space<vmem>>, vector<1x1056xf32>
    tpu.vector_store %arg20[%c11, %c0_53], %37 {strides = array<i32>} : memref<40x1056xf32, #tpu.memory_space<vmem>>, vector<1x1056xf32>,
    %c0_54 = arith.constant 0 : index
    %c1_55 = arith.constant 1 : index
    %c2_56 = arith.constant 2 : index
    %39 = vector.load %arg1[%c0_54, %c1_55, %c2_56] : memref<1x8x1064xf32, #tpu.memory_space<vmem>>, vector<1x1x1056xf32>
    %40 = vector.shape_cast %39 : vector<1x1x1056xf32> to vector<1x1056xf32>
    %c12 = arith.constant 12 : index
    %c0_57 = arith.constant 0 : index
    %41 = vector.load %arg20[%c12, %c0_57] : memref<40x1056xf32, #tpu.memory_space<vmem>>, vector<1x1056xf32>
    tpu.vector_store %arg20[%c12, %c0_57], %40 {strides = array<i32>} : memref<40x1056xf32, #tpu.memory_space<vmem>>, vector<1x1056xf32>,
    %c0_58 = arith.constant 0 : index
    %c2_59 = arith.constant 2 : index
    %c2_60 = arith.constant 2 : index
    %42 = vector.load %arg1[%c0_58, %c2_59, %c2_60] : memref<1x8x1064xf32, #tpu.memory_space<vmem>>, vector<1x1x1056xf32>
    %43 = vector.shape_cast %42 : vector<1x1x1056xf32> to vector<1x1056xf32>
    %c13 = arith.constant 13 : index
    %c0_61 = arith.constant 0 : index
    %44 = vector.load %arg20[%c13, %c0_61] : memref<40x1056xf32, #tpu.memory_space<vmem>>, vector<1x1056xf32>
    tpu.vector_store %arg20[%c13, %c0_61], %43 {strides = array<i32>} : memref<40x1056xf32, #tpu.memory_space<vmem>>, vector<1x1056xf32>,
    %c0_62 = arith.constant 0 : index
    %c3_63 = arith.constant 3 : index
    %c2_64 = arith.constant 2 : index
    %45 = vector.load %arg1[%c0_62, %c3_63, %c2_64] : memref<1x8x1064xf32, #tpu.memory_space<vmem>>, vector<1x1x1056xf32>
    %46 = vector.shape_cast %45 : vector<1x1x1056xf32> to vector<1x1056xf32>
    %c14 = arith.constant 14 : index
    %c0_65 = arith.constant 0 : index
    %47 = vector.load %arg20[%c14, %c0_65] : memref<40x1056xf32, #tpu.memory_space<vmem>>, vector<1x1056xf32>
    tpu.vector_store %arg20[%c14, %c0_65], %46 {strides = array<i32>} : memref<40x1056xf32, #tpu.memory_space<vmem>>, vector<1x1056xf32>,
    %c0_66 = arith.constant 0 : index
    %c4_67 = arith.constant 4 : index
    %c2_68 = arith.constant 2 : index
    %48 = vector.load %arg1[%c0_66, %c4_67, %c2_68] : memref<1x8x1064xf32, #tpu.memory_space<vmem>>, vector<1x1x1056xf32>
    %49 = vector.shape_cast %48 : vector<1x1x1056xf32> to vector<1x1056xf32>
    %c15 = arith.constant 15 : index
    %c0_69 = arith.constant 0 : index
    %50 = vector.load %arg20[%c15, %c0_69] : memref<40x1056xf32, #tpu.memory_space<vmem>>, vector<1x1056xf32>
    tpu.vector_store %arg20[%c15, %c0_69], %49 {strides = array<i32>} : memref<40x1056xf32, #tpu.memory_space<vmem>>, vector<1x1056xf32>,
    %c0_70 = arith.constant 0 : index
    %c5_71 = arith.constant 5 : index
    %c2_72 = arith.constant 2 : index
    %51 = vector.load %arg1[%c0_70, %c5_71, %c2_72] : memref<1x8x1064xf32, #tpu.memory_space<vmem>>, vector<1x1x1056xf32>
    %52 = vector.shape_cast %51 : vector<1x1x1056xf32> to vector<1x1056xf32>
    %c16 = arith.constant 16 : index
    %c0_73 = arith.constant 0 : index
    %53 = vector.load %arg20[%c16, %c0_73] : memref<40x1056xf32, #tpu.memory_space<vmem>>, vector<1x1056xf32>
    tpu.vector_store %arg20[%c16, %c0_73], %52 {strides = array<i32>} : memref<40x1056xf32, #tpu.memory_space<vmem>>, vector<1x1056xf32>,
    %c0_74 = arith.constant 0 : index
    %c6_75 = arith.constant 6 : index
    %c2_76 = arith.constant 2 : index
    %54 = vector.load %arg1[%c0_74, %c6_75, %c2_76] : memref<1x8x1064xf32, #tpu.memory_space<vmem>>, vector<1x1x1056xf32>
    %55 = vector.shape_cast %54 : vector<1x1x1056xf32> to vector<1x1056xf32>
    %c17 = arith.constant 17 : index
    %c0_77 = arith.constant 0 : index
    %56 = vector.load %arg20[%c17, %c0_77] : memref<40x1056xf32, #tpu.memory_space<vmem>>, vector<1x1056xf32>
    tpu.vector_store %arg20[%c17, %c0_77], %55 {strides = array<i32>} : memref<40x1056xf32, #tpu.memory_space<vmem>>, vector<1x1056xf32>,
    %c0_78 = arith.constant 0 : index
    %c7_79 = arith.constant 7 : index
    %c2_80 = arith.constant 2 : index
    %57 = vector.load %arg1[%c0_78, %c7_79, %c2_80] : memref<1x8x1064xf32, #tpu.memory_space<vmem>>, vector<1x1x1056xf32>
    %58 = vector.shape_cast %57 : vector<1x1x1056xf32> to vector<1x1056xf32>
    %c18 = arith.constant 18 : index
    %c0_81 = arith.constant 0 : index
    %59 = vector.load %arg20[%c18, %c0_81] : memref<40x1056xf32, #tpu.memory_space<vmem>>, vector<1x1056xf32>
    tpu.vector_store %arg20[%c18, %c0_81], %58 {strides = array<i32>} : memref<40x1056xf32, #tpu.memory_space<vmem>>, vector<1x1056xf32>,
    %c0_82 = arith.constant 0 : index
    %c0_83 = arith.constant 0 : index
    %c3_84 = arith.constant 3 : index
    %60 = vector.load %arg1[%c0_82, %c0_83, %c3_84] : memref<1x8x1064xf32, #tpu.memory_space<vmem>>, vector<1x1x1056xf32>
    %61 = vector.shape_cast %60 : vector<1x1x1056xf32> to vector<1x1056xf32>
    %c19 = arith.constant 19 : index
    %c0_85 = arith.constant 0 : index
    %62 = vector.load %arg20[%c19, %c0_85] : memref<40x1056xf32, #tpu.memory_space<vmem>>, vector<1x1056xf32>
    tpu.vector_store %arg20[%c19, %c0_85], %61 {strides = array<i32>} : memref<40x1056xf32, #tpu.memory_space<vmem>>, vector<1x1056xf32>,
    %c0_86 = arith.constant 0 : index
    %c1_87 = arith.constant 1 : index
    %c3_88 = arith.constant 3 : index
    %63 = vector.load %arg1[%c0_86, %c1_87, %c3_88] : memref<1x8x1064xf32, #tpu.memory_space<vmem>>, vector<1x1x1056xf32>
    %64 = vector.shape_cast %63 : vector<1x1x1056xf32> to vector<1x1056xf32>
    %c20 = arith.constant 20 : index
    %c0_89 = arith.constant 0 : index
    %65 = vector.load %arg20[%c20, %c0_89] : memref<40x1056xf32, #tpu.memory_space<vmem>>, vector<1x1056xf32>
    tpu.vector_store %arg20[%c20, %c0_89], %64 {strides = array<i32>} : memref<40x1056xf32, #tpu.memory_space<vmem>>, vector<1x1056xf32>,
    %c0_90 = arith.constant 0 : index
    %c2_91 = arith.constant 2 : index
    %c3_92 = arith.constant 3 : index
    %66 = vector.load %arg1[%c0_90, %c2_91, %c3_92] : memref<1x8x1064xf32, #tpu.memory_space<vmem>>, vector<1x1x1056xf32>
    %67 = vector.shape_cast %66 : vector<1x1x1056xf32> to vector<1x1056xf32>
    %c21 = arith.constant 21 : index
    %c0_93 = arith.constant 0 : index
    %68 = vector.load %arg20[%c21, %c0_93] : memref<40x1056xf32, #tpu.memory_space<vmem>>, vector<1x1056xf32>
    tpu.vector_store %arg20[%c21, %c0_93], %67 {strides = array<i32>} : memref<40x1056xf32, #tpu.memory_space<vmem>>, vector<1x1056xf32>,
    %c0_94 = arith.constant 0 : index
    %c3_95 = arith.constant 3 : index
    %c3_96 = arith.constant 3 : index
    %69 = vector.load %arg1[%c0_94, %c3_95, %c3_96] : memref<1x8x1064xf32, #tpu.memory_space<vmem>>, vector<1x1x1056xf32>
    %70 = vector.shape_cast %69 : vector<1x1x1056xf32> to vector<1x1056xf32>
    %c22 = arith.constant 22 : index
    %c0_97 = arith.constant 0 : index
    %71 = vector.load %arg20[%c22, %c0_97] : memref<40x1056xf32, #tpu.memory_space<vmem>>, vector<1x1056xf32>
    tpu.vector_store %arg20[%c22, %c0_97], %70 {strides = array<i32>} : memref<40x1056xf32, #tpu.memory_space<vmem>>, vector<1x1056xf32>,
    %c0_98 = arith.constant 0 : index
    %c4_99 = arith.constant 4 : index
    %c3_100 = arith.constant 3 : index
    %72 = vector.load %arg1[%c0_98, %c4_99, %c3_100] : memref<1x8x1064xf32, #tpu.memory_space<vmem>>, vector<1x1x1056xf32>
    %73 = vector.shape_cast %72 : vector<1x1x1056xf32> to vector<1x1056xf32>
    %c23 = arith.constant 23 : index
    %c0_101 = arith.constant 0 : index
    %74 = vector.load %arg20[%c23, %c0_101] : memref<40x1056xf32, #tpu.memory_space<vmem>>, vector<1x1056xf32>
    tpu.vector_store %arg20[%c23, %c0_101], %73 {strides = array<i32>} : memref<40x1056xf32, #tpu.memory_space<vmem>>, vector<1x1056xf32>,
    %c0_102 = arith.constant 0 : index
    %c5_103 = arith.constant 5 : index
    %c3_104 = arith.constant 3 : index
    %75 = vector.load %arg1[%c0_102, %c5_103, %c3_104] : memref<1x8x1064xf32, #tpu.memory_space<vmem>>, vector<1x1x1056xf32>
    %76 = vector.shape_cast %75 : vector<1x1x1056xf32> to vector<1x1056xf32>
    %c24 = arith.constant 24 : index
    %c0_105 = arith.constant 0 : index
    %77 = vector.load %arg20[%c24, %c0_105] : memref<40x1056xf32, #tpu.memory_space<vmem>>, vector<1x1056xf32>
    tpu.vector_store %arg20[%c24, %c0_105], %76 {strides = array<i32>} : memref<40x1056xf32, #tpu.memory_space<vmem>>, vector<1x1056xf32>,
    %c0_106 = arith.constant 0 : index
    %c6_107 = arith.constant 6 : index
    %c3_108 = arith.constant 3 : index
    %78 = vector.load %arg1[%c0_106, %c6_107, %c3_108] : memref<1x8x1064xf32, #tpu.memory_space<vmem>>, vector<1x1x1056xf32>
    %79 = vector.shape_cast %78 : vector<1x1x1056xf32> to vector<1x1056xf32>
    %c25 = arith.constant 25 : index
    %c0_109 = arith.constant 0 : index
    %80 = vector.load %arg20[%c25, %c0_109] : memref<40x1056xf32, #tpu.memory_space<vmem>>, vector<1x1056xf32>
    tpu.vector_store %arg20[%c25, %c0_109], %79 {strides = array<i32>} : memref<40x1056xf32, #tpu.memory_space<vmem>>, vector<1x1056xf32>,
    %c0_110 = arith.constant 0 : index
    %c7_111 = arith.constant 7 : index
    %c3_112 = arith.constant 3 : index
    %81 = vector.load %arg1[%c0_110, %c7_111, %c3_112] : memref<1x8x1064xf32, #tpu.memory_space<vmem>>, vector<1x1x1056xf32>
    %82 = vector.shape_cast %81 : vector<1x1x1056xf32> to vector<1x1056xf32>
    %c26 = arith.constant 26 : index
    %c0_113 = arith.constant 0 : index
    %83 = vector.load %arg20[%c26, %c0_113] : memref<40x1056xf32, #tpu.memory_space<vmem>>, vector<1x1056xf32>
    tpu.vector_store %arg20[%c26, %c0_113], %82 {strides = array<i32>} : memref<40x1056xf32, #tpu.memory_space<vmem>>, vector<1x1056xf32>,
    %c0_114 = arith.constant 0 : index
    %c0_115 = arith.constant 0 : index
    %84 = vector.load %arg20[%c0_114, %c0_115] : memref<40x1056xf32, #tpu.memory_space<vmem>>, vector<27x1056xf32>
    %cst = arith.constant dense<0.000000e+00> : vector<24x1056xf32>
    %85 = tpu.matmul %1, %84, %cst {dimension_numbers = #tpu.dot_dimension_numbers<[1], [0], [0], [1], [0, 0, 1, 1], [], []>} : vector<24x27xf32>, vector<27x1056xf32>, vector<24x1056xf32> -> vector<24x1056xf32>
    %86 = vector.extract_strided_slice %85 {offsets = [0, 0], sizes = [3, 1056], strides = [1, 1]} : vector<24x1056xf32> to vector<3x1056xf32>
    %87 = vector.extract_strided_slice %85 {offsets = [3, 0], sizes = [3, 1056], strides = [1, 1]} : vector<24x1056xf32> to vector<3x1056xf32>
    %88 = arith.maximumf %86, %87 : vector<3x1056xf32>
    %89 = vector.broadcast %2 : vector<3x1xf32> to vector<3x1056xf32>
    %90 = arith.addf %88, %89 : vector<3x1056xf32>
    %cst_116 = arith.constant 0.000000e+00 : f32
    %91 = vector.broadcast %cst_116 : f32 to vector<3x1056xf32>
    %92 = arith.maximumf %90, %91 : vector<3x1056xf32>
    %93 = vector.extract_strided_slice %85 {offsets = [6, 0], sizes = [3, 1056], strides = [1, 1]} : vector<24x1056xf32> to vector<3x1056xf32>
    %94 = vector.extract_strided_slice %85 {offsets = [9, 0], sizes = [3, 1056], strides = [1, 1]} : vector<24x1056xf32> to vector<3x1056xf32>
    %95 = arith.maximumf %93, %94 : vector<3x1056xf32>
    %96 = vector.broadcast %2 : vector<3x1xf32> to vector<3x1056xf32>
    %97 = arith.addf %95, %96 : vector<3x1056xf32>
    %cst_117 = arith.constant 0.000000e+00 : f32
    %98 = vector.broadcast %cst_117 : f32 to vector<3x1056xf32>
    %99 = arith.maximumf %97, %98 : vector<3x1056xf32>
    %100 = vector.extract_strided_slice %85 {offsets = [12, 0], sizes = [3, 1056], strides = [1, 1]} : vector<24x1056xf32> to vector<3x1056xf32>
    %101 = vector.extract_strided_slice %85 {offsets = [15, 0], sizes = [3, 1056], strides = [1, 1]} : vector<24x1056xf32> to vector<3x1056xf32>
    %102 = arith.maximumf %100, %101 : vector<3x1056xf32>
    %103 = vector.broadcast %2 : vector<3x1xf32> to vector<3x1056xf32>
    %104 = arith.addf %102, %103 : vector<3x1056xf32>
    %cst_118 = arith.constant 0.000000e+00 : f32
    %105 = vector.broadcast %cst_118 : f32 to vector<3x1056xf32>
    %106 = arith.maximumf %104, %105 : vector<3x1056xf32>
    %107 = vector.extract_strided_slice %85 {offsets = [18, 0], sizes = [3, 1056], strides = [1, 1]} : vector<24x1056xf32> to vector<3x1056xf32>
    %108 = vector.extract_strided_slice %85 {offsets = [21, 0], sizes = [3, 1056], strides = [1, 1]} : vector<24x1056xf32> to vector<3x1056xf32>
    %109 = arith.maximumf %107, %108 : vector<3x1056xf32>
    %110 = vector.broadcast %2 : vector<3x1xf32> to vector<3x1056xf32>
    %111 = arith.addf %109, %110 : vector<3x1056xf32>
    %cst_119 = arith.constant 0.000000e+00 : f32
    %112 = vector.broadcast %cst_119 : f32 to vector<3x1056xf32>
    %113 = arith.maximumf %111, %112 : vector<3x1056xf32>
    %cst_120 = arith.constant 0.000000e+00 : f32
    %114 = vector.broadcast %cst_120 : f32 to vector<3x3xf32>
    %c0_121 = arith.constant 0 : index
    %c0_122 = arith.constant 0 : index
    %c0_123 = arith.constant 0 : index
    %115 = vector.load %arg18[%c0_121, %c0_122, %c0_123] : memref<4x3x1064xf32, #tpu.memory_space<vmem>>, vector<1x3x3xf32>
    %116 = vector.shape_cast %115 : vector<1x3x3xf32> to vector<3x3xf32>
    %117 = vector.shape_cast %114 : vector<3x3xf32> to vector<1x3x3xf32>
    tpu.vector_store %arg18[%c0_121, %c0_122, %c0_123], %117 {strides = array<i32>} : memref<4x3x1064xf32, #tpu.memory_space<vmem>>, vector<1x3x3xf32>,
    %c128_i32 = arith.constant 128 : i32
    %118 = vector.broadcast %c128_i32 : i32 to vector<1x1056xi32>
    %119 = arith.cmpi slt, %0, %118 : vector<1x1056xi32>
    %120 = arith.extui %119 : vector<1x1056xi1> to vector<1x1056xi32>
    %121 = arith.sitofp %120 : vector<1x1056xi32> to vector<1x1056xf32>
    %122 = vector.broadcast %121 : vector<1x1056xf32> to vector<3x1056xf32>
    %123 = arith.mulf %92, %122 : vector<3x1056xf32>
    %c0_124 = arith.constant 0 : index
    %c0_125 = arith.constant 0 : index
    %c3_126 = arith.constant 3 : index
    %124 = vector.load %arg18[%c0_124, %c0_125, %c3_126] : memref<4x3x1064xf32, #tpu.memory_space<vmem>>, vector<1x3x1056xf32>
    %125 = vector.shape_cast %124 : vector<1x3x1056xf32> to vector<3x1056xf32>
    %126 = vector.shape_cast %123 : vector<3x1056xf32> to vector<1x3x1056xf32>
    tpu.vector_store %arg18[%c0_124, %c0_125, %c3_126], %126 {strides = array<i32>} : memref<4x3x1064xf32, #tpu.memory_space<vmem>>, vector<1x3x1056xf32>,
    %cst_127 = arith.constant 0.000000e+00 : f32
    %127 = vector.broadcast %cst_127 : f32 to vector<3x3xf32>
    %c1_128 = arith.constant 1 : index
    %c0_129 = arith.constant 0 : index
    %c0_130 = arith.constant 0 : index
    %128 = vector.load %arg18[%c1_128, %c0_129, %c0_130] : memref<4x3x1064xf32, #tpu.memory_space<vmem>>, vector<1x3x3xf32>
    %129 = vector.shape_cast %128 : vector<1x3x3xf32> to vector<3x3xf32>
    %130 = vector.shape_cast %127 : vector<3x3xf32> to vector<1x3x3xf32>
    tpu.vector_store %arg18[%c1_128, %c0_129, %c0_130], %130 {strides = array<i32>} : memref<4x3x1064xf32, #tpu.memory_space<vmem>>, vector<1x3x3xf32>,
    %c127_i32 = arith.constant 127 : i32
    %131 = vector.broadcast %c127_i32 : i32 to vector<1x1056xi32>
    %132 = arith.cmpi slt, %0, %131 : vector<1x1056xi32>
    %133 = arith.extui %132 : vector<1x1056xi1> to vector<1x1056xi32>
    %134 = arith.sitofp %133 : vector<1x1056xi32> to vector<1x1056xf32>
    %135 = vector.broadcast %134 : vector<1x1056xf32> to vector<3x1056xf32>
    %136 = arith.mulf %99, %135 : vector<3x1056xf32>
    %c1_131 = arith.constant 1 : index
    %c0_132 = arith.constant 0 : index
    %c3_133 = arith.constant 3 : index
    %137 = vector.load %arg18[%c1_131, %c0_132, %c3_133] : memref<4x3x1064xf32, #tpu.memory_space<vmem>>, vector<1x3x1056xf32>
    %138 = vector.shape_cast %137 : vector<1x3x1056xf32> to vector<3x1056xf32>
    %139 = vector.shape_cast %136 : vector<3x1056xf32> to vector<1x3x1056xf32>
    tpu.vector_store %arg18[%c1_131, %c0_132, %c3_133], %139 {strides = array<i32>} : memref<4x3x1064xf32, #tpu.memory_space<vmem>>, vector<1x3x1056xf32>,
    %cst_134 = arith.constant 0.000000e+00 : f32
    %140 = vector.broadcast %cst_134 : f32 to vector<3x3xf32>
    %c2_135 = arith.constant 2 : index
    %c0_136 = arith.constant 0 : index
    %c0_137 = arith.constant 0 : index
    %141 = vector.load %arg18[%c2_135, %c0_136, %c0_137] : memref<4x3x1064xf32, #tpu.memory_space<vmem>>, vector<1x3x3xf32>
    %142 = vector.shape_cast %141 : vector<1x3x3xf32> to vector<3x3xf32>
    %143 = vector.shape_cast %140 : vector<3x3xf32> to vector<1x3x3xf32>
    tpu.vector_store %arg18[%c2_135, %c0_136, %c0_137], %143 {strides = array<i32>} : memref<4x3x1064xf32, #tpu.memory_space<vmem>>, vector<1x3x3xf32>,
    %c127_i32_138 = arith.constant 127 : i32
    %144 = vector.broadcast %c127_i32_138 : i32 to vector<1x1056xi32>
    %145 = arith.cmpi slt, %0, %144 : vector<1x1056xi32>
    %146 = arith.extui %145 : vector<1x1056xi1> to vector<1x1056xi32>
    %147 = arith.sitofp %146 : vector<1x1056xi32> to vector<1x1056xf32>
    %148 = vector.broadcast %147 : vector<1x1056xf32> to vector<3x1056xf32>
    %149 = arith.mulf %106, %148 : vector<3x1056xf32>
    %c2_139 = arith.constant 2 : index
    %c0_140 = arith.constant 0 : index
    %c3_141 = arith.constant 3 : index
    %150 = vector.load %arg18[%c2_139, %c0_140, %c3_141] : memref<4x3x1064xf32, #tpu.memory_space<vmem>>, vector<1x3x1056xf32>
    %151 = vector.shape_cast %150 : vector<1x3x1056xf32> to vector<3x1056xf32>
    %152 = vector.shape_cast %149 : vector<3x1056xf32> to vector<1x3x1056xf32>
    tpu.vector_store %arg18[%c2_139, %c0_140, %c3_141], %152 {strides = array<i32>} : memref<4x3x1064xf32, #tpu.memory_space<vmem>>, vector<1x3x1056xf32>,
    %cst_142 = arith.constant 0.000000e+00 : f32
    %153 = vector.broadcast %cst_142 : f32 to vector<3x3xf32>
    %c3_143 = arith.constant 3 : index
    %c0_144 = arith.constant 0 : index
    %c0_145 = arith.constant 0 : index
    %154 = vector.load %arg18[%c3_143, %c0_144, %c0_145] : memref<4x3x1064xf32, #tpu.memory_space<vmem>>, vector<1x3x3xf32>
    %155 = vector.shape_cast %154 : vector<1x3x3xf32> to vector<3x3xf32>
    %156 = vector.shape_cast %153 : vector<3x3xf32> to vector<1x3x3xf32>
    tpu.vector_store %arg18[%c3_143, %c0_144, %c0_145], %156 {strides = array<i32>} : memref<4x3x1064xf32, #tpu.memory_space<vmem>>, vector<1x3x3xf32>,
    %c127_i32_146 = arith.constant 127 : i32
    %157 = vector.broadcast %c127_i32_146 : i32 to vector<1x1056xi32>
    %158 = arith.cmpi slt, %0, %157 : vector<1x1056xi32>
    %159 = arith.extui %158 : vector<1x1056xi1> to vector<1x1056xi32>
    %160 = arith.sitofp %159 : vector<1x1056xi32> to vector<1x1056xf32>
    %161 = vector.broadcast %160 : vector<1x1056xf32> to vector<3x1056xf32>
    %162 = arith.mulf %113, %161 : vector<3x1056xf32>
    %c3_147 = arith.constant 3 : index
    %c0_148 = arith.constant 0 : index
    %c3_149 = arith.constant 3 : index
    %163 = vector.load %arg18[%c3_147, %c0_148, %c3_149] : memref<4x3x1064xf32, #tpu.memory_space<vmem>>, vector<1x3x1056xf32>
    %164 = vector.shape_cast %163 : vector<1x3x1056xf32> to vector<3x1056xf32>
    %165 = vector.shape_cast %162 : vector<3x1056xf32> to vector<1x3x1056xf32>
    tpu.vector_store %arg18[%c3_147, %c0_148, %c3_149], %165 {strides = array<i32>} : memref<4x3x1064xf32, #tpu.memory_space<vmem>>, vector<1x3x1056xf32>,
    %c0_150 = arith.constant 0 : index
    %c0_151 = arith.constant 0 : index
    %166 = vector.load %arg5[%c0_150, %c0_151] : memref<24x39xf32, #tpu.memory_space<vmem>>, vector<24x39xf32>
    %c0_152 = arith.constant 0 : index
    %c0_153 = arith.constant 0 : index
    %167 = vector.load %arg6[%c0_152, %c0_153] : memref<6x1xf32, #tpu.memory_space<vmem>>, vector<6x1xf32>
    %c3_154 = arith.constant 3 : index
    %c0_155 = arith.constant 0 : index
    %c0_156 = arith.constant 0 : index
    %168 = vector.load %arg18[%c3_154, %c0_155, %c0_156] : memref<4x3x1064xf32, #tpu.memory_space<vmem>>, vector<1x3x1056xf32>
    %169 = vector.shape_cast %168 : vector<1x3x1056xf32> to vector<3x1056xf32>
    %c0_157 = arith.constant 0 : index
    %c0_158 = arith.constant 0 : index
    %170 = vector.load %arg20[%c0_157, %c0_158] : memref<40x1056xf32, #tpu.memory_space<vmem>>, vector<3x1056xf32>
    tpu.vector_store %arg20[%c0_157, %c0_158], %169 {strides = array<i32>} : memref<40x1056xf32, #tpu.memory_space<vmem>>, vector<3x1056xf32>,
    %c0_159 = arith.constant 0 : index
    %c0_160 = arith.constant 0 : index
    %c1_161 = arith.constant 1 : index
    %171 = vector.load %arg18[%c0_159, %c0_160, %c1_161] : memref<4x3x1064xf32, #tpu.memory_space<vmem>>, vector<1x3x1056xf32>
    %172 = vector.shape_cast %171 : vector<1x3x1056xf32> to vector<3x1056xf32>
    %c3_162 = arith.constant 3 : index
    %c0_163 = arith.constant 0 : index
    %173 = vector.load %arg20[%c3_162, %c0_163] : memref<40x1056xf32, #tpu.memory_space<vmem>>, vector<3x1056xf32>
    tpu.vector_store %arg20[%c3_162, %c0_163], %172 {strides = array<i32>} : memref<40x1056xf32, #tpu.memory_space<vmem>>, vector<3x1056xf32>,
    %c1_164 = arith.constant 1 : index
    %c0_165 = arith.constant 0 : index
    %c1_166 = arith.constant 1 : index
    %174 = vector.load %arg18[%c1_164, %c0_165, %c1_166] : memref<4x3x1064xf32, #tpu.memory_space<vmem>>, vector<1x3x1056xf32>
    %175 = vector.shape_cast %174 : vector<1x3x1056xf32> to vector<3x1056xf32>
    %c6_167 = arith.constant 6 : index
    %c0_168 = arith.constant 0 : index
    %176 = vector.load %arg20[%c6_167, %c0_168] : memref<40x1056xf32, #tpu.memory_space<vmem>>, vector<3x1056xf32>
    tpu.vector_store %arg20[%c6_167, %c0_168], %175 {strides = array<i32>} : memref<40x1056xf32, #tpu.memory_space<vmem>>, vector<3x1056xf32>,
    %c2_169 = arith.constant 2 : index
    %c0_170 = arith.constant 0 : index
    %c1_171 = arith.constant 1 : index
    %177 = vector.load %arg18[%c2_169, %c0_170, %c1_171] : memref<4x3x1064xf32, #tpu.memory_space<vmem>>, vector<1x3x1056xf32>
    %178 = vector.shape_cast %177 : vector<1x3x1056xf32> to vector<3x1056xf32>
    %c9_172 = arith.constant 9 : index
    %c0_173 = arith.constant 0 : index
    %179 = vector.load %arg20[%c9_172, %c0_173] : memref<40x1056xf32, #tpu.memory_space<vmem>>, vector<3x1056xf32>
    tpu.vector_store %arg20[%c9_172, %c0_173], %178 {strides = array<i32>} : memref<40x1056xf32, #tpu.memory_space<vmem>>, vector<3x1056xf32>,
    %c3_174 = arith.constant 3 : index
    %c0_175 = arith.constant 0 : index
    %c1_176 = arith.constant 1 : index
    %180 = vector.load %arg18[%c3_174, %c0_175, %c1_176] : memref<4x3x1064xf32, #tpu.memory_space<vmem>>, vector<1x3x1056xf32>
    %181 = vector.shape_cast %180 : vector<1x3x1056xf32> to vector<3x1056xf32>
    %c12_177 = arith.constant 12 : index
    %c0_178 = arith.constant 0 : index
    %182 = vector.load %arg20[%c12_177, %c0_178] : memref<40x1056xf32, #tpu.memory_space<vmem>>, vector<3x1056xf32>
    tpu.vector_store %arg20[%c12_177, %c0_178], %181 {strides = array<i32>} : memref<40x1056xf32, #tpu.memory_space<vmem>>, vector<3x1056xf32>,
    %c0_179 = arith.constant 0 : index
    %c0_180 = arith.constant 0 : index
    %c2_181 = arith.constant 2 : index
    %183 = vector.load %arg18[%c0_179, %c0_180, %c2_181] : memref<4x3x1064xf32, #tpu.memory_space<vmem>>, vector<1x3x1056xf32>
    %184 = vector.shape_cast %183 : vector<1x3x1056xf32> to vector<3x1056xf32>
    %c15_182 = arith.constant 15 : index
    %c0_183 = arith.constant 0 : index
    %185 = vector.load %arg20[%c15_182, %c0_183] : memref<40x1056xf32, #tpu.memory_space<vmem>>, vector<3x1056xf32>
    tpu.vector_store %arg20[%c15_182, %c0_183], %184 {strides = array<i32>} : memref<40x1056xf32, #tpu.memory_space<vmem>>, vector<3x1056xf32>,
    %c1_184 = arith.constant 1 : index
    %c0_185 = arith.constant 0 : index
    %c2_186 = arith.constant 2 : index
    %186 = vector.load %arg18[%c1_184, %c0_185, %c2_186] : memref<4x3x1064xf32, #tpu.memory_space<vmem>>, vector<1x3x1056xf32>
    %187 = vector.shape_cast %186 : vector<1x3x1056xf32> to vector<3x1056xf32>
    %c18_187 = arith.constant 18 : index
    %c0_188 = arith.constant 0 : index
    %188 = vector.load %arg20[%c18_187, %c0_188] : memref<40x1056xf32, #tpu.memory_space<vmem>>, vector<3x1056xf32>
    tpu.vector_store %arg20[%c18_187, %c0_188], %187 {strides = array<i32>} : memref<40x1056xf32, #tpu.memory_space<vmem>>, vector<3x1056xf32>,
    %c2_189 = arith.constant 2 : index
    %c0_190 = arith.constant 0 : index
    %c2_191 = arith.constant 2 : index
    %189 = vector.load %arg18[%c2_189, %c0_190, %c2_191] : memref<4x3x1064xf32, #tpu.memory_space<vmem>>, vector<1x3x1056xf32>
    %190 = vector.shape_cast %189 : vector<1x3x1056xf32> to vector<3x1056xf32>
    %c21_192 = arith.constant 21 : index
    %c0_193 = arith.constant 0 : index
    %191 = vector.load %arg20[%c21_192, %c0_193] : memref<40x1056xf32, #tpu.memory_space<vmem>>, vector<3x1056xf32>
    tpu.vector_store %arg20[%c21_192, %c0_193], %190 {strides = array<i32>} : memref<40x1056xf32, #tpu.memory_space<vmem>>, vector<3x1056xf32>,
    %c3_194 = arith.constant 3 : index
    %c0_195 = arith.constant 0 : index
    %c2_196 = arith.constant 2 : index
    %192 = vector.load %arg18[%c3_194, %c0_195, %c2_196] : memref<4x3x1064xf32, #tpu.memory_space<vmem>>, vector<1x3x1056xf32>
    %193 = vector.shape_cast %192 : vector<1x3x1056xf32> to vector<3x1056xf32>
    %c24_197 = arith.constant 24 : index
    %c0_198 = arith.constant 0 : index
    %194 = vector.load %arg20[%c24_197, %c0_198] : memref<40x1056xf32, #tpu.memory_space<vmem>>, vector<3x1056xf32>
    tpu.vector_store %arg20[%c24_197, %c0_198], %193 {strides = array<i32>} : memref<40x1056xf32, #tpu.memory_space<vmem>>, vector<3x1056xf32>,
    %c0_199 = arith.constant 0 : index
    %c0_200 = arith.constant 0 : index
    %c3_201 = arith.constant 3 : index
    %195 = vector.load %arg18[%c0_199, %c0_200, %c3_201] : memref<4x3x1064xf32, #tpu.memory_space<vmem>>, vector<1x3x1056xf32>
    %196 = vector.shape_cast %195 : vector<1x3x1056xf32> to vector<3x1056xf32>
    %c27 = arith.constant 27 : index
    %c0_202 = arith.constant 0 : index
    %197 = vector.load %arg20[%c27, %c0_202] : memref<40x1056xf32, #tpu.memory_space<vmem>>, vector<3x1056xf32>
    tpu.vector_store %arg20[%c27, %c0_202], %196 {strides = array<i32>} : memref<40x1056xf32, #tpu.memory_space<vmem>>, vector<3x1056xf32>,
    %c1_203 = arith.constant 1 : index
    %c0_204 = arith.constant 0 : index
    %c3_205 = arith.constant 3 : index
    %198 = vector.load %arg18[%c1_203, %c0_204, %c3_205] : memref<4x3x1064xf32, #tpu.memory_space<vmem>>, vector<1x3x1056xf32>
    %199 = vector.shape_cast %198 : vector<1x3x1056xf32> to vector<3x1056xf32>
    %c30 = arith.constant 30 : index
    %c0_206 = arith.constant 0 : index
    %200 = vector.load %arg20[%c30, %c0_206] : memref<40x1056xf32, #tpu.memory_space<vmem>>, vector<3x1056xf32>
    tpu.vector_store %arg20[%c30, %c0_206], %199 {strides = array<i32>} : memref<40x1056xf32, #tpu.memory_space<vmem>>, vector<3x1056xf32>,
    %c2_207 = arith.constant 2 : index
    %c0_208 = arith.constant 0 : index
    %c3_209 = arith.constant 3 : index
    %201 = vector.load %arg18[%c2_207, %c0_208, %c3_209] : memref<4x3x1064xf32, #tpu.memory_space<vmem>>, vector<1x3x1056xf32>
    %202 = vector.shape_cast %201 : vector<1x3x1056xf32> to vector<3x1056xf32>
    %c33 = arith.constant 33 : index
    %c0_210 = arith.constant 0 : index
    %203 = vector.load %arg20[%c33, %c0_210] : memref<40x1056xf32, #tpu.memory_space<vmem>>, vector<3x1056xf32>
    tpu.vector_store %arg20[%c33, %c0_210], %202 {strides = array<i32>} : memref<40x1056xf32, #tpu.memory_space<vmem>>, vector<3x1056xf32>,
    %c3_211 = arith.constant 3 : index
    %c0_212 = arith.constant 0 : index
    %c3_213 = arith.constant 3 : index
    %204 = vector.load %arg18[%c3_211, %c0_212, %c3_213] : memref<4x3x1064xf32, #tpu.memory_space<vmem>>, vector<1x3x1056xf32>
    %205 = vector.shape_cast %204 : vector<1x3x1056xf32> to vector<3x1056xf32>
    %c36 = arith.constant 36 : index
    %c0_214 = arith.constant 0 : index
    %206 = vector.load %arg20[%c36, %c0_214] : memref<40x1056xf32, #tpu.memory_space<vmem>>, vector<3x1056xf32>
    tpu.vector_store %arg20[%c36, %c0_214], %205 {strides = array<i32>} : memref<40x1056xf32, #tpu.memory_space<vmem>>, vector<3x1056xf32>,
    %c0_215 = arith.constant 0 : index
    %c0_216 = arith.constant 0 : index
    %207 = vector.load %arg20[%c0_215, %c0_216] : memref<40x1056xf32, #tpu.memory_space<vmem>>, vector<39x1056xf32>
    %cst_217 = arith.constant dense<0.000000e+00> : vector<24x1056xf32>
    %208 = tpu.matmul %166, %207, %cst_217 {dimension_numbers = #tpu.dot_dimension_numbers<[1], [0], [0], [1], [0, 0, 1, 1], [], []>} : vector<24x39xf32>, vector<39x1056xf32>, vector<24x1056xf32> -> vector<24x1056xf32>
    %209 = vector.extract_strided_slice %208 {offsets = [0, 0], sizes = [6, 1056], strides = [1, 1]} : vector<24x1056xf32> to vector<6x1056xf32>
    %210 = vector.extract_strided_slice %208 {offsets = [6, 0], sizes = [6, 1056], strides = [1, 1]} : vector<24x1056xf32> to vector<6x1056xf32>
    %211 = arith.maximumf %209, %210 : vector<6x1056xf32>
    %212 = vector.broadcast %167 : vector<6x1xf32> to vector<6x1056xf32>
    %213 = arith.addf %211, %212 : vector<6x1056xf32>
    %cst_218 = arith.constant 0.000000e+00 : f32
    %214 = vector.broadcast %cst_218 : f32 to vector<6x1056xf32>
    %215 = arith.maximumf %213, %214 : vector<6x1056xf32>
    %216 = vector.extract_strided_slice %208 {offsets = [12, 0], sizes = [6, 1056], strides = [1, 1]} : vector<24x1056xf32> to vector<6x1056xf32>
    %217 = vector.extract_strided_slice %208 {offsets = [18, 0], sizes = [6, 1056], strides = [1, 1]} : vector<24x1056xf32> to vector<6x1056xf32>
    %218 = arith.maximumf %216, %217 : vector<6x1056xf32>
    %219 = vector.broadcast %167 : vector<6x1xf32> to vector<6x1056xf32>
    %220 = arith.addf %218, %219 : vector<6x1056xf32>
    %cst_219 = arith.constant 0.000000e+00 : f32
    %221 = vector.broadcast %cst_219 : f32 to vector<6x1056xf32>
    %222 = arith.maximumf %220, %221 : vector<6x1056xf32>
    %cst_220 = arith.constant 0.000000e+00 : f32
    %223 = vector.broadcast %cst_220 : f32 to vector<6x2xf32>
    %c0_221 = arith.constant 0 : index
    %c0_222 = arith.constant 0 : index
    %c0_223 = arith.constant 0 : index
    %224 = vector.load %arg19[%c0_221, %c0_222, %c0_223] : memref<2x6x1064xf32, #tpu.memory_space<vmem>>, vector<1x6x2xf32>
    %225 = vector.shape_cast %224 : vector<1x6x2xf32> to vector<6x2xf32>
    %226 = vector.shape_cast %223 : vector<6x2xf32> to vector<1x6x2xf32>
    tpu.vector_store %arg19[%c0_221, %c0_222, %c0_223], %226 {strides = array<i32>} : memref<2x6x1064xf32, #tpu.memory_space<vmem>>, vector<1x6x2xf32>,
    %c130_i32 = arith.constant 130 : i32
    %227 = vector.broadcast %c130_i32 : i32 to vector<1x1056xi32>
    %228 = arith.cmpi slt, %0, %227 : vector<1x1056xi32>
    %229 = arith.extui %228 : vector<1x1056xi1> to vector<1x1056xi32>
    %230 = arith.sitofp %229 : vector<1x1056xi32> to vector<1x1056xf32>
    %231 = vector.broadcast %230 : vector<1x1056xf32> to vector<6x1056xf32>
    %232 = arith.mulf %215, %231 : vector<6x1056xf32>
    %c0_224 = arith.constant 0 : index
    %c0_225 = arith.constant 0 : index
    %c2_226 = arith.constant 2 : index
    %233 = vector.load %arg19[%c0_224, %c0_225, %c2_226] : memref<2x6x1064xf32, #tpu.memory_space<vmem>>, vector<1x6x1056xf32>
    %234 = vector.shape_cast %233 : vector<1x6x1056xf32> to vector<6x1056xf32>
    %235 = vector.shape_cast %232 : vector<6x1056xf32> to vector<1x6x1056xf32>
    tpu.vector_store %arg19[%c0_224, %c0_225, %c2_226], %235 {strides = array<i32>} : memref<2x6x1064xf32, #tpu.memory_space<vmem>>, vector<1x6x1056xf32>,
    %cst_227 = arith.constant 0.000000e+00 : f32
    %236 = vector.broadcast %cst_227 : f32 to vector<6x2xf32>
    %c1_228 = arith.constant 1 : index
    %c0_229 = arith.constant 0 : index
    %c0_230 = arith.constant 0 : index
    %237 = vector.load %arg19[%c1_228, %c0_229, %c0_230] : memref<2x6x1064xf32, #tpu.memory_space<vmem>>, vector<1x6x2xf32>
    %238 = vector.shape_cast %237 : vector<1x6x2xf32> to vector<6x2xf32>
    %239 = vector.shape_cast %236 : vector<6x2xf32> to vector<1x6x2xf32>
    tpu.vector_store %arg19[%c1_228, %c0_229, %c0_230], %239 {strides = array<i32>} : memref<2x6x1064xf32, #tpu.memory_space<vmem>>, vector<1x6x2xf32>,
    %c129_i32 = arith.constant 129 : i32
    %240 = vector.broadcast %c129_i32 : i32 to vector<1x1056xi32>
    %241 = arith.cmpi slt, %0, %240 : vector<1x1056xi32>
    %242 = arith.extui %241 : vector<1x1056xi1> to vector<1x1056xi32>
    %243 = arith.sitofp %242 : vector<1x1056xi32> to vector<1x1056xf32>
    %244 = vector.broadcast %243 : vector<1x1056xf32> to vector<6x1056xf32>
    %245 = arith.mulf %222, %244 : vector<6x1056xf32>
    %c1_231 = arith.constant 1 : index
    %c0_232 = arith.constant 0 : index
    %c2_233 = arith.constant 2 : index
    %246 = vector.load %arg19[%c1_231, %c0_232, %c2_233] : memref<2x6x1064xf32, #tpu.memory_space<vmem>>, vector<1x6x1056xf32>
    %247 = vector.shape_cast %246 : vector<1x6x1056xf32> to vector<6x1056xf32>
    %248 = vector.shape_cast %245 : vector<6x1056xf32> to vector<1x6x1056xf32>
    tpu.vector_store %arg19[%c1_231, %c0_232, %c2_233], %248 {strides = array<i32>} : memref<2x6x1064xf32, #tpu.memory_space<vmem>>, vector<1x6x1056xf32>,
    %c0_234 = arith.constant 0 : index
    %c0_235 = arith.constant 0 : index
    %249 = vector.load %arg7[%c0_234, %c0_235] : memref<12x36xf32, #tpu.memory_space<vmem>>, vector<12x36xf32>
    %c0_236 = arith.constant 0 : index
    %c0_237 = arith.constant 0 : index
    %250 = vector.load %arg8[%c0_236, %c0_237] : memref<6x1xf32, #tpu.memory_space<vmem>>, vector<6x1xf32>
    %c0_238 = arith.constant 0 : index
    %c0_239 = arith.constant 0 : index
    %c0_240 = arith.constant 0 : index
    %251 = vector.load %arg19[%c0_238, %c0_239, %c0_240] : memref<2x6x1064xf32, #tpu.memory_space<vmem>>, vector<1x6x1056xf32>
    %252 = vector.shape_cast %251 : vector<1x6x1056xf32> to vector<6x1056xf32>
    %c0_241 = arith.constant 0 : index
    %c0_242 = arith.constant 0 : index
    %253 = vector.load %arg20[%c0_241, %c0_242] : memref<40x1056xf32, #tpu.memory_space<vmem>>, vector<6x1056xf32>
    tpu.vector_store %arg20[%c0_241, %c0_242], %252 {strides = array<i32>} : memref<40x1056xf32, #tpu.memory_space<vmem>>, vector<6x1056xf32>,
    %c1_243 = arith.constant 1 : index
    %c0_244 = arith.constant 0 : index
    %c0_245 = arith.constant 0 : index
    %254 = vector.load %arg19[%c1_243, %c0_244, %c0_245] : memref<2x6x1064xf32, #tpu.memory_space<vmem>>, vector<1x6x1056xf32>
    %255 = vector.shape_cast %254 : vector<1x6x1056xf32> to vector<6x1056xf32>
    %c6_246 = arith.constant 6 : index
    %c0_247 = arith.constant 0 : index
    %256 = vector.load %arg20[%c6_246, %c0_247] : memref<40x1056xf32, #tpu.memory_space<vmem>>, vector<6x1056xf32>
    tpu.vector_store %arg20[%c6_246, %c0_247], %255 {strides = array<i32>} : memref<40x1056xf32, #tpu.memory_space<vmem>>, vector<6x1056xf32>,
    %c0_248 = arith.constant 0 : index
    %c0_249 = arith.constant 0 : index
    %c1_250 = arith.constant 1 : index
    %257 = vector.load %arg19[%c0_248, %c0_249, %c1_250] : memref<2x6x1064xf32, #tpu.memory_space<vmem>>, vector<1x6x1056xf32>
    %258 = vector.shape_cast %257 : vector<1x6x1056xf32> to vector<6x1056xf32>
    %c12_251 = arith.constant 12 : index
    %c0_252 = arith.constant 0 : index
    %259 = vector.load %arg20[%c12_251, %c0_252] : memref<40x1056xf32, #tpu.memory_space<vmem>>, vector<6x1056xf32>
    tpu.vector_store %arg20[%c12_251, %c0_252], %258 {strides = array<i32>} : memref<40x1056xf32, #tpu.memory_space<vmem>>, vector<6x1056xf32>,
    %c1_253 = arith.constant 1 : index
    %c0_254 = arith.constant 0 : index
    %c1_255 = arith.constant 1 : index
    %260 = vector.load %arg19[%c1_253, %c0_254, %c1_255] : memref<2x6x1064xf32, #tpu.memory_space<vmem>>, vector<1x6x1056xf32>
    %261 = vector.shape_cast %260 : vector<1x6x1056xf32> to vector<6x1056xf32>
    %c18_256 = arith.constant 18 : index
    %c0_257 = arith.constant 0 : index
    %262 = vector.load %arg20[%c18_256, %c0_257] : memref<40x1056xf32, #tpu.memory_space<vmem>>, vector<6x1056xf32>
    tpu.vector_store %arg20[%c18_256, %c0_257], %261 {strides = array<i32>} : memref<40x1056xf32, #tpu.memory_space<vmem>>, vector<6x1056xf32>,
    %c0_258 = arith.constant 0 : index
    %c0_259 = arith.constant 0 : index
    %c2_260 = arith.constant 2 : index
    %263 = vector.load %arg19[%c0_258, %c0_259, %c2_260] : memref<2x6x1064xf32, #tpu.memory_space<vmem>>, vector<1x6x1056xf32>
    %264 = vector.shape_cast %263 : vector<1x6x1056xf32> to vector<6x1056xf32>
    %c24_261 = arith.constant 24 : index
    %c0_262 = arith.constant 0 : index
    %265 = vector.load %arg20[%c24_261, %c0_262] : memref<40x1056xf32, #tpu.memory_space<vmem>>, vector<6x1056xf32>
    tpu.vector_store %arg20[%c24_261, %c0_262], %264 {strides = array<i32>} : memref<40x1056xf32, #tpu.memory_space<vmem>>, vector<6x1056xf32>,
    %c1_263 = arith.constant 1 : index
    %c0_264 = arith.constant 0 : index
    %c2_265 = arith.constant 2 : index
    %266 = vector.load %arg19[%c1_263, %c0_264, %c2_265] : memref<2x6x1064xf32, #tpu.memory_space<vmem>>, vector<1x6x1056xf32>
    %267 = vector.shape_cast %266 : vector<1x6x1056xf32> to vector<6x1056xf32>
    %c30_266 = arith.constant 30 : index
    %c0_267 = arith.constant 0 : index
    %268 = vector.load %arg20[%c30_266, %c0_267] : memref<40x1056xf32, #tpu.memory_space<vmem>>, vector<6x1056xf32>
    tpu.vector_store %arg20[%c30_266, %c0_267], %267 {strides = array<i32>} : memref<40x1056xf32, #tpu.memory_space<vmem>>, vector<6x1056xf32>,
    %c0_268 = arith.constant 0 : index
    %c0_269 = arith.constant 0 : index
    %269 = vector.load %arg20[%c0_268, %c0_269] : memref<40x1056xf32, #tpu.memory_space<vmem>>, vector<36x1056xf32>
    %cst_270 = arith.constant dense<0.000000e+00> : vector<12x1056xf32>
    %270 = tpu.matmul %249, %269, %cst_270 {dimension_numbers = #tpu.dot_dimension_numbers<[1], [0], [0], [1], [0, 0, 1, 1], [], []>} : vector<12x36xf32>, vector<36x1056xf32>, vector<12x1056xf32> -> vector<12x1056xf32>
    %271 = vector.extract_strided_slice %270 {offsets = [0, 0], sizes = [6, 1056], strides = [1, 1]} : vector<12x1056xf32> to vector<6x1056xf32>
    %272 = vector.extract_strided_slice %270 {offsets = [6, 0], sizes = [6, 1056], strides = [1, 1]} : vector<12x1056xf32> to vector<6x1056xf32>
    %273 = arith.maximumf %271, %272 : vector<6x1056xf32>
    %274 = vector.broadcast %250 : vector<6x1xf32> to vector<6x1056xf32>
    %275 = arith.addf %273, %274 : vector<6x1056xf32>
    %cst_271 = arith.constant 0.000000e+00 : f32
    %276 = vector.broadcast %cst_271 : f32 to vector<6x1056xf32>
    %277 = arith.maximumf %275, %276 : vector<6x1056xf32>
    %c0_272 = arith.constant 0 : index
    %c0_273 = arith.constant 0 : index
    %278 = vector.load %arg20[%c0_272, %c0_273] : memref<40x1056xf32, #tpu.memory_space<vmem>>, vector<6x1056xf32>
    tpu.vector_store %arg20[%c0_272, %c0_273], %277 {strides = array<i32>} : memref<40x1056xf32, #tpu.memory_space<vmem>>, vector<6x1056xf32>,
    %c0_274 = arith.constant 0 : index
    %c0_275 = arith.constant 0 : index
    %279 = vector.load %arg9[%c0_274, %c0_275] : memref<131x80xf32, #tpu.memory_space<vmem>>, vector<131x80xf32>
    %c0_276 = arith.constant 0 : index
    %c0_277 = arith.constant 0 : index
    %280 = vector.load %arg11[%c0_276, %c0_277] : memref<1x80xf32, #tpu.memory_space<vmem>>, vector<1x80xf32>
    %c0_278 = arith.constant 0 : index
    %c0_279 = arith.constant 0 : index
    %281 = vector.load %arg20[%c0_278, %c0_279] : memref<40x1056xf32, #tpu.memory_space<vmem>>, vector<6x131xf32>
    %cst_280 = arith.constant dense<0.000000e+00> : vector<6x80xf32>
    %282 = tpu.matmul %281, %279, %cst_280 {dimension_numbers = #tpu.dot_dimension_numbers<[1], [0], [0], [1], [0, 0, 1, 1], [], []>} : vector<6x131xf32>, vector<131x80xf32>, vector<6x80xf32> -> vector<6x80xf32>
    %283 = vector.broadcast %280 : vector<1x80xf32> to vector<6x80xf32>
    %284 = arith.addf %282, %283 : vector<6x80xf32>
    %285 = vector.extract_strided_slice %284 {offsets = [0, 0], sizes = [1, 80], strides = [1, 1]} : vector<6x80xf32> to vector<1x80xf32>
    %c0_281 = arith.constant 0 : index
    %c0_282 = arith.constant 0 : index
    %c0_283 = arith.constant 0 : index
    %286 = vector.load %arg21[%c0_281, %c0_282, %c0_283] : memref<6x8x80xf32, #tpu.memory_space<vmem>>, vector<1x1x80xf32>
    %287 = vector.shape_cast %286 : vector<1x1x80xf32> to vector<1x80xf32>
    %288 = vector.shape_cast %285 : vector<1x80xf32> to vector<1x1x80xf32>
    tpu.vector_store %arg21[%c0_281, %c0_282, %c0_283], %288 {strides = array<i32>} : memref<6x8x80xf32, #tpu.memory_space<vmem>>, vector<1x1x80xf32>,
    %289 = vector.extract_strided_slice %284 {offsets = [1, 0], sizes = [1, 80], strides = [1, 1]} : vector<6x80xf32> to vector<1x80xf32>
    %c1_284 = arith.constant 1 : index
    %c0_285 = arith.constant 0 : index
    %c0_286 = arith.constant 0 : index
    %290 = vector.load %arg21[%c1_284, %c0_285, %c0_286] : memref<6x8x80xf32, #tpu.memory_space<vmem>>, vector<1x1x80xf32>
    %291 = vector.shape_cast %290 : vector<1x1x80xf32> to vector<1x80xf32>
    %292 = vector.shape_cast %289 : vector<1x80xf32> to vector<1x1x80xf32>
    tpu.vector_store %arg21[%c1_284, %c0_285, %c0_286], %292 {strides = array<i32>} : memref<6x8x80xf32, #tpu.memory_space<vmem>>, vector<1x1x80xf32>,
    %293 = vector.extract_strided_slice %284 {offsets = [2, 0], sizes = [1, 80], strides = [1, 1]} : vector<6x80xf32> to vector<1x80xf32>
    %c2_287 = arith.constant 2 : index
    %c0_288 = arith.constant 0 : index
    %c0_289 = arith.constant 0 : index
    %294 = vector.load %arg21[%c2_287, %c0_288, %c0_289] : memref<6x8x80xf32, #tpu.memory_space<vmem>>, vector<1x1x80xf32>
    %295 = vector.shape_cast %294 : vector<1x1x80xf32> to vector<1x80xf32>
    %296 = vector.shape_cast %293 : vector<1x80xf32> to vector<1x1x80xf32>
    tpu.vector_store %arg21[%c2_287, %c0_288, %c0_289], %296 {strides = array<i32>} : memref<6x8x80xf32, #tpu.memory_space<vmem>>, vector<1x1x80xf32>,
    %297 = vector.extract_strided_slice %284 {offsets = [3, 0], sizes = [1, 80], strides = [1, 1]} : vector<6x80xf32> to vector<1x80xf32>
    %c3_290 = arith.constant 3 : index
    %c0_291 = arith.constant 0 : index
    %c0_292 = arith.constant 0 : index
    %298 = vector.load %arg21[%c3_290, %c0_291, %c0_292] : memref<6x8x80xf32, #tpu.memory_space<vmem>>, vector<1x1x80xf32>
    %299 = vector.shape_cast %298 : vector<1x1x80xf32> to vector<1x80xf32>
    %300 = vector.shape_cast %297 : vector<1x80xf32> to vector<1x1x80xf32>
    tpu.vector_store %arg21[%c3_290, %c0_291, %c0_292], %300 {strides = array<i32>} : memref<6x8x80xf32, #tpu.memory_space<vmem>>, vector<1x1x80xf32>,
    %301 = vector.extract_strided_slice %284 {offsets = [4, 0], sizes = [1, 80], strides = [1, 1]} : vector<6x80xf32> to vector<1x80xf32>
    %c4_293 = arith.constant 4 : index
    %c0_294 = arith.constant 0 : index
    %c0_295 = arith.constant 0 : index
    %302 = vector.load %arg21[%c4_293, %c0_294, %c0_295] : memref<6x8x80xf32, #tpu.memory_space<vmem>>, vector<1x1x80xf32>
    %303 = vector.shape_cast %302 : vector<1x1x80xf32> to vector<1x80xf32>
    %304 = vector.shape_cast %301 : vector<1x80xf32> to vector<1x1x80xf32>
    tpu.vector_store %arg21[%c4_293, %c0_294, %c0_295], %304 {strides = array<i32>} : memref<6x8x80xf32, #tpu.memory_space<vmem>>, vector<1x1x80xf32>,
    %305 = vector.extract_strided_slice %284 {offsets = [5, 0], sizes = [1, 80], strides = [1, 1]} : vector<6x80xf32> to vector<1x80xf32>
    %c5_296 = arith.constant 5 : index
    %c0_297 = arith.constant 0 : index
    %c0_298 = arith.constant 0 : index
    %306 = vector.load %arg21[%c5_296, %c0_297, %c0_298] : memref<6x8x80xf32, #tpu.memory_space<vmem>>, vector<1x1x80xf32>
    %307 = vector.shape_cast %306 : vector<1x1x80xf32> to vector<1x80xf32>
    %308 = vector.shape_cast %305 : vector<1x80xf32> to vector<1x1x80xf32>
    tpu.vector_store %arg21[%c5_296, %c0_297, %c0_298], %308 {strides = array<i32>} : memref<6x8x80xf32, #tpu.memory_space<vmem>>, vector<1x1x80xf32>,
    %c0_299 = arith.constant 0 : index
    %c132 = arith.constant 132 : index
    %309 = vector.load %arg20[%c0_299, %c132] : memref<40x1056xf32, #tpu.memory_space<vmem>>, vector<6x131xf32>
    %cst_300 = arith.constant dense<0.000000e+00> : vector<6x80xf32>
    %310 = tpu.matmul %309, %279, %cst_300 {dimension_numbers = #tpu.dot_dimension_numbers<[1], [0], [0], [1], [0, 0, 1, 1], [], []>} : vector<6x131xf32>, vector<131x80xf32>, vector<6x80xf32> -> vector<6x80xf32>
    %311 = vector.broadcast %280 : vector<1x80xf32> to vector<6x80xf32>
    %312 = arith.addf %310, %311 : vector<6x80xf32>
    %313 = vector.extract_strided_slice %312 {offsets = [0, 0], sizes = [1, 80], strides = [1, 1]} : vector<6x80xf32> to vector<1x80xf32>
    %c0_301 = arith.constant 0 : index
    %c1_302 = arith.constant 1 : index
    %c0_303 = arith.constant 0 : index
    %314 = vector.load %arg21[%c0_301, %c1_302, %c0_303] : memref<6x8x80xf32, #tpu.memory_space<vmem>>, vector<1x1x80xf32>
    %315 = vector.shape_cast %314 : vector<1x1x80xf32> to vector<1x80xf32>
    %316 = vector.shape_cast %313 : vector<1x80xf32> to vector<1x1x80xf32>
    tpu.vector_store %arg21[%c0_301, %c1_302, %c0_303], %316 {strides = array<i32>} : memref<6x8x80xf32, #tpu.memory_space<vmem>>, vector<1x1x80xf32>,
    %317 = vector.extract_strided_slice %312 {offsets = [1, 0], sizes = [1, 80], strides = [1, 1]} : vector<6x80xf32> to vector<1x80xf32>
    %c1_304 = arith.constant 1 : index
    %c1_305 = arith.constant 1 : index
    %c0_306 = arith.constant 0 : index
    %318 = vector.load %arg21[%c1_304, %c1_305, %c0_306] : memref<6x8x80xf32, #tpu.memory_space<vmem>>, vector<1x1x80xf32>
    %319 = vector.shape_cast %318 : vector<1x1x80xf32> to vector<1x80xf32>
    %320 = vector.shape_cast %317 : vector<1x80xf32> to vector<1x1x80xf32>
    tpu.vector_store %arg21[%c1_304, %c1_305, %c0_306], %320 {strides = array<i32>} : memref<6x8x80xf32, #tpu.memory_space<vmem>>, vector<1x1x80xf32>,
    %321 = vector.extract_strided_slice %312 {offsets = [2, 0], sizes = [1, 80], strides = [1, 1]} : vector<6x80xf32> to vector<1x80xf32>
    %c2_307 = arith.constant 2 : index
    %c1_308 = arith.constant 1 : index
    %c0_309 = arith.constant 0 : index
    %322 = vector.load %arg21[%c2_307, %c1_308, %c0_309] : memref<6x8x80xf32, #tpu.memory_space<vmem>>, vector<1x1x80xf32>
    %323 = vector.shape_cast %322 : vector<1x1x80xf32> to vector<1x80xf32>
    %324 = vector.shape_cast %321 : vector<1x80xf32> to vector<1x1x80xf32>
    tpu.vector_store %arg21[%c2_307, %c1_308, %c0_309], %324 {strides = array<i32>} : memref<6x8x80xf32, #tpu.memory_space<vmem>>, vector<1x1x80xf32>,
    %325 = vector.extract_strided_slice %312 {offsets = [3, 0], sizes = [1, 80], strides = [1, 1]} : vector<6x80xf32> to vector<1x80xf32>
    %c3_310 = arith.constant 3 : index
    %c1_311 = arith.constant 1 : index
    %c0_312 = arith.constant 0 : index
    %326 = vector.load %arg21[%c3_310, %c1_311, %c0_312] : memref<6x8x80xf32, #tpu.memory_space<vmem>>, vector<1x1x80xf32>
    %327 = vector.shape_cast %326 : vector<1x1x80xf32> to vector<1x80xf32>
    %328 = vector.shape_cast %325 : vector<1x80xf32> to vector<1x1x80xf32>
    tpu.vector_store %arg21[%c3_310, %c1_311, %c0_312], %328 {strides = array<i32>} : memref<6x8x80xf32, #tpu.memory_space<vmem>>, vector<1x1x80xf32>,
    %329 = vector.extract_strided_slice %312 {offsets = [4, 0], sizes = [1, 80], strides = [1, 1]} : vector<6x80xf32> to vector<1x80xf32>
    %c4_313 = arith.constant 4 : index
    %c1_314 = arith.constant 1 : index
    %c0_315 = arith.constant 0 : index
    %330 = vector.load %arg21[%c4_313, %c1_314, %c0_315] : memref<6x8x80xf32, #tpu.memory_space<vmem>>, vector<1x1x80xf32>
    %331 = vector.shape_cast %330 : vector<1x1x80xf32> to vector<1x80xf32>
    %332 = vector.shape_cast %329 : vector<1x80xf32> to vector<1x1x80xf32>
    tpu.vector_store %arg21[%c4_313, %c1_314, %c0_315], %332 {strides = array<i32>} : memref<6x8x80xf32, #tpu.memory_space<vmem>>, vector<1x1x80xf32>,
    %333 = vector.extract_strided_slice %312 {offsets = [5, 0], sizes = [1, 80], strides = [1, 1]} : vector<6x80xf32> to vector<1x80xf32>
    %c5_316 = arith.constant 5 : index
    %c1_317 = arith.constant 1 : index
    %c0_318 = arith.constant 0 : index
    %334 = vector.load %arg21[%c5_316, %c1_317, %c0_318] : memref<6x8x80xf32, #tpu.memory_space<vmem>>, vector<1x1x80xf32>
    %335 = vector.shape_cast %334 : vector<1x1x80xf32> to vector<1x80xf32>
    %336 = vector.shape_cast %333 : vector<1x80xf32> to vector<1x1x80xf32>
    tpu.vector_store %arg21[%c5_316, %c1_317, %c0_318], %336 {strides = array<i32>} : memref<6x8x80xf32, #tpu.memory_space<vmem>>, vector<1x1x80xf32>,
    %c0_319 = arith.constant 0 : index
    %c264 = arith.constant 264 : index
    %337 = vector.load %arg20[%c0_319, %c264] : memref<40x1056xf32, #tpu.memory_space<vmem>>, vector<6x131xf32>
    %cst_320 = arith.constant dense<0.000000e+00> : vector<6x80xf32>
    %338 = tpu.matmul %337, %279, %cst_320 {dimension_numbers = #tpu.dot_dimension_numbers<[1], [0], [0], [1], [0, 0, 1, 1], [], []>} : vector<6x131xf32>, vector<131x80xf32>, vector<6x80xf32> -> vector<6x80xf32>
    %339 = vector.broadcast %280 : vector<1x80xf32> to vector<6x80xf32>
    %340 = arith.addf %338, %339 : vector<6x80xf32>
    %341 = vector.extract_strided_slice %340 {offsets = [0, 0], sizes = [1, 80], strides = [1, 1]} : vector<6x80xf32> to vector<1x80xf32>
    %c0_321 = arith.constant 0 : index
    %c2_322 = arith.constant 2 : index
    %c0_323 = arith.constant 0 : index
    %342 = vector.load %arg21[%c0_321, %c2_322, %c0_323] : memref<6x8x80xf32, #tpu.memory_space<vmem>>, vector<1x1x80xf32>
    %343 = vector.shape_cast %342 : vector<1x1x80xf32> to vector<1x80xf32>
    %344 = vector.shape_cast %341 : vector<1x80xf32> to vector<1x1x80xf32>
    tpu.vector_store %arg21[%c0_321, %c2_322, %c0_323], %344 {strides = array<i32>} : memref<6x8x80xf32, #tpu.memory_space<vmem>>, vector<1x1x80xf32>,
    %345 = vector.extract_strided_slice %340 {offsets = [1, 0], sizes = [1, 80], strides = [1, 1]} : vector<6x80xf32> to vector<1x80xf32>
    %c1_324 = arith.constant 1 : index
    %c2_325 = arith.constant 2 : index
    %c0_326 = arith.constant 0 : index
    %346 = vector.load %arg21[%c1_324, %c2_325, %c0_326] : memref<6x8x80xf32, #tpu.memory_space<vmem>>, vector<1x1x80xf32>
    %347 = vector.shape_cast %346 : vector<1x1x80xf32> to vector<1x80xf32>
    %348 = vector.shape_cast %345 : vector<1x80xf32> to vector<1x1x80xf32>
    tpu.vector_store %arg21[%c1_324, %c2_325, %c0_326], %348 {strides = array<i32>} : memref<6x8x80xf32, #tpu.memory_space<vmem>>, vector<1x1x80xf32>,
    %349 = vector.extract_strided_slice %340 {offsets = [2, 0], sizes = [1, 80], strides = [1, 1]} : vector<6x80xf32> to vector<1x80xf32>
    %c2_327 = arith.constant 2 : index
    %c2_328 = arith.constant 2 : index
    %c0_329 = arith.constant 0 : index
    %350 = vector.load %arg21[%c2_327, %c2_328, %c0_329] : memref<6x8x80xf32, #tpu.memory_space<vmem>>, vector<1x1x80xf32>
    %351 = vector.shape_cast %350 : vector<1x1x80xf32> to vector<1x80xf32>
    %352 = vector.shape_cast %349 : vector<1x80xf32> to vector<1x1x80xf32>
    tpu.vector_store %arg21[%c2_327, %c2_328, %c0_329], %352 {strides = array<i32>} : memref<6x8x80xf32, #tpu.memory_space<vmem>>, vector<1x1x80xf32>,
    %353 = vector.extract_strided_slice %340 {offsets = [3, 0], sizes = [1, 80], strides = [1, 1]} : vector<6x80xf32> to vector<1x80xf32>
    %c3_330 = arith.constant 3 : index
    %c2_331 = arith.constant 2 : index
    %c0_332 = arith.constant 0 : index
    %354 = vector.load %arg21[%c3_330, %c2_331, %c0_332] : memref<6x8x80xf32, #tpu.memory_space<vmem>>, vector<1x1x80xf32>
    %355 = vector.shape_cast %354 : vector<1x1x80xf32> to vector<1x80xf32>
    %356 = vector.shape_cast %353 : vector<1x80xf32> to vector<1x1x80xf32>
    tpu.vector_store %arg21[%c3_330, %c2_331, %c0_332], %356 {strides = array<i32>} : memref<6x8x80xf32, #tpu.memory_space<vmem>>, vector<1x1x80xf32>,
    %357 = vector.extract_strided_slice %340 {offsets = [4, 0], sizes = [1, 80], strides = [1, 1]} : vector<6x80xf32> to vector<1x80xf32>
    %c4_333 = arith.constant 4 : index
    %c2_334 = arith.constant 2 : index
    %c0_335 = arith.constant 0 : index
    %358 = vector.load %arg21[%c4_333, %c2_334, %c0_335] : memref<6x8x80xf32, #tpu.memory_space<vmem>>, vector<1x1x80xf32>
    %359 = vector.shape_cast %358 : vector<1x1x80xf32> to vector<1x80xf32>
    %360 = vector.shape_cast %357 : vector<1x80xf32> to vector<1x1x80xf32>
    tpu.vector_store %arg21[%c4_333, %c2_334, %c0_335], %360 {strides = array<i32>} : memref<6x8x80xf32, #tpu.memory_space<vmem>>, vector<1x1x80xf32>,
    %361 = vector.extract_strided_slice %340 {offsets = [5, 0], sizes = [1, 80], strides = [1, 1]} : vector<6x80xf32> to vector<1x80xf32>
    %c5_336 = arith.constant 5 : index
    %c2_337 = arith.constant 2 : index
    %c0_338 = arith.constant 0 : index
    %362 = vector.load %arg21[%c5_336, %c2_337, %c0_338] : memref<6x8x80xf32, #tpu.memory_space<vmem>>, vector<1x1x80xf32>
    %363 = vector.shape_cast %362 : vector<1x1x80xf32> to vector<1x80xf32>
    %364 = vector.shape_cast %361 : vector<1x80xf32> to vector<1x1x80xf32>
    tpu.vector_store %arg21[%c5_336, %c2_337, %c0_338], %364 {strides = array<i32>} : memref<6x8x80xf32, #tpu.memory_space<vmem>>, vector<1x1x80xf32>,
    %c0_339 = arith.constant 0 : index
    %c396 = arith.constant 396 : index
    %365 = vector.load %arg20[%c0_339, %c396] : memref<40x1056xf32, #tpu.memory_space<vmem>>, vector<6x131xf32>
    %cst_340 = arith.constant dense<0.000000e+00> : vector<6x80xf32>
    %366 = tpu.matmul %365, %279, %cst_340 {dimension_numbers = #tpu.dot_dimension_numbers<[1], [0], [0], [1], [0, 0, 1, 1], [], []>} : vector<6x131xf32>, vector<131x80xf32>, vector<6x80xf32> -> vector<6x80xf32>
    %367 = vector.broadcast %280 : vector<1x80xf32> to vector<6x80xf32>
    %368 = arith.addf %366, %367 : vector<6x80xf32>
    %369 = vector.extract_strided_slice %368 {offsets = [0, 0], sizes = [1, 80], strides = [1, 1]} : vector<6x80xf32> to vector<1x80xf32>
    %c0_341 = arith.constant 0 : index
    %c3_342 = arith.constant 3 : index
    %c0_343 = arith.constant 0 : index
    %370 = vector.load %arg21[%c0_341, %c3_342, %c0_343] : memref<6x8x80xf32, #tpu.memory_space<vmem>>, vector<1x1x80xf32>
    %371 = vector.shape_cast %370 : vector<1x1x80xf32> to vector<1x80xf32>
    %372 = vector.shape_cast %369 : vector<1x80xf32> to vector<1x1x80xf32>
    tpu.vector_store %arg21[%c0_341, %c3_342, %c0_343], %372 {strides = array<i32>} : memref<6x8x80xf32, #tpu.memory_space<vmem>>, vector<1x1x80xf32>,
    %373 = vector.extract_strided_slice %368 {offsets = [1, 0], sizes = [1, 80], strides = [1, 1]} : vector<6x80xf32> to vector<1x80xf32>
    %c1_344 = arith.constant 1 : index
    %c3_345 = arith.constant 3 : index
    %c0_346 = arith.constant 0 : index
    %374 = vector.load %arg21[%c1_344, %c3_345, %c0_346] : memref<6x8x80xf32, #tpu.memory_space<vmem>>, vector<1x1x80xf32>
    %375 = vector.shape_cast %374 : vector<1x1x80xf32> to vector<1x80xf32>
    %376 = vector.shape_cast %373 : vector<1x80xf32> to vector<1x1x80xf32>
    tpu.vector_store %arg21[%c1_344, %c3_345, %c0_346], %376 {strides = array<i32>} : memref<6x8x80xf32, #tpu.memory_space<vmem>>, vector<1x1x80xf32>,
    %377 = vector.extract_strided_slice %368 {offsets = [2, 0], sizes = [1, 80], strides = [1, 1]} : vector<6x80xf32> to vector<1x80xf32>
    %c2_347 = arith.constant 2 : index
    %c3_348 = arith.constant 3 : index
    %c0_349 = arith.constant 0 : index
    %378 = vector.load %arg21[%c2_347, %c3_348, %c0_349] : memref<6x8x80xf32, #tpu.memory_space<vmem>>, vector<1x1x80xf32>
    %379 = vector.shape_cast %378 : vector<1x1x80xf32> to vector<1x80xf32>
    %380 = vector.shape_cast %377 : vector<1x80xf32> to vector<1x1x80xf32>
    tpu.vector_store %arg21[%c2_347, %c3_348, %c0_349], %380 {strides = array<i32>} : memref<6x8x80xf32, #tpu.memory_space<vmem>>, vector<1x1x80xf32>,
    %381 = vector.extract_strided_slice %368 {offsets = [3, 0], sizes = [1, 80], strides = [1, 1]} : vector<6x80xf32> to vector<1x80xf32>
    %c3_350 = arith.constant 3 : index
    %c3_351 = arith.constant 3 : index
    %c0_352 = arith.constant 0 : index
    %382 = vector.load %arg21[%c3_350, %c3_351, %c0_352] : memref<6x8x80xf32, #tpu.memory_space<vmem>>, vector<1x1x80xf32>
    %383 = vector.shape_cast %382 : vector<1x1x80xf32> to vector<1x80xf32>
    %384 = vector.shape_cast %381 : vector<1x80xf32> to vector<1x1x80xf32>
    tpu.vector_store %arg21[%c3_350, %c3_351, %c0_352], %384 {strides = array<i32>} : memref<6x8x80xf32, #tpu.memory_space<vmem>>, vector<1x1x80xf32>,
    %385 = vector.extract_strided_slice %368 {offsets = [4, 0], sizes = [1, 80], strides = [1, 1]} : vector<6x80xf32> to vector<1x80xf32>
    %c4_353 = arith.constant 4 : index
    %c3_354 = arith.constant 3 : index
    %c0_355 = arith.constant 0 : index
    %386 = vector.load %arg21[%c4_353, %c3_354, %c0_355] : memref<6x8x80xf32, #tpu.memory_space<vmem>>, vector<1x1x80xf32>
    %387 = vector.shape_cast %386 : vector<1x1x80xf32> to vector<1x80xf32>
    %388 = vector.shape_cast %385 : vector<1x80xf32> to vector<1x1x80xf32>
    tpu.vector_store %arg21[%c4_353, %c3_354, %c0_355], %388 {strides = array<i32>} : memref<6x8x80xf32, #tpu.memory_space<vmem>>, vector<1x1x80xf32>,
    %389 = vector.extract_strided_slice %368 {offsets = [5, 0], sizes = [1, 80], strides = [1, 1]} : vector<6x80xf32> to vector<1x80xf32>
    %c5_356 = arith.constant 5 : index
    %c3_357 = arith.constant 3 : index
    %c0_358 = arith.constant 0 : index
    %390 = vector.load %arg21[%c5_356, %c3_357, %c0_358] : memref<6x8x80xf32, #tpu.memory_space<vmem>>, vector<1x1x80xf32>
    %391 = vector.shape_cast %390 : vector<1x1x80xf32> to vector<1x80xf32>
    %392 = vector.shape_cast %389 : vector<1x80xf32> to vector<1x1x80xf32>
    tpu.vector_store %arg21[%c5_356, %c3_357, %c0_358], %392 {strides = array<i32>} : memref<6x8x80xf32, #tpu.memory_space<vmem>>, vector<1x1x80xf32>,
    %c0_359 = arith.constant 0 : index
    %c528 = arith.constant 528 : index
    %393 = vector.load %arg20[%c0_359, %c528] : memref<40x1056xf32, #tpu.memory_space<vmem>>, vector<6x131xf32>
    %cst_360 = arith.constant dense<0.000000e+00> : vector<6x80xf32>
    %394 = tpu.matmul %393, %279, %cst_360 {dimension_numbers = #tpu.dot_dimension_numbers<[1], [0], [0], [1], [0, 0, 1, 1], [], []>} : vector<6x131xf32>, vector<131x80xf32>, vector<6x80xf32> -> vector<6x80xf32>
    %395 = vector.broadcast %280 : vector<1x80xf32> to vector<6x80xf32>
    %396 = arith.addf %394, %395 : vector<6x80xf32>
    %397 = vector.extract_strided_slice %396 {offsets = [0, 0], sizes = [1, 80], strides = [1, 1]} : vector<6x80xf32> to vector<1x80xf32>
    %c0_361 = arith.constant 0 : index
    %c4_362 = arith.constant 4 : index
    %c0_363 = arith.constant 0 : index
    %398 = vector.load %arg21[%c0_361, %c4_362, %c0_363] : memref<6x8x80xf32, #tpu.memory_space<vmem>>, vector<1x1x80xf32>
    %399 = vector.shape_cast %398 : vector<1x1x80xf32> to vector<1x80xf32>
    %400 = vector.shape_cast %397 : vector<1x80xf32> to vector<1x1x80xf32>
    tpu.vector_store %arg21[%c0_361, %c4_362, %c0_363], %400 {strides = array<i32>} : memref<6x8x80xf32, #tpu.memory_space<vmem>>, vector<1x1x80xf32>,
    %401 = vector.extract_strided_slice %396 {offsets = [1, 0], sizes = [1, 80], strides = [1, 1]} : vector<6x80xf32> to vector<1x80xf32>
    %c1_364 = arith.constant 1 : index
    %c4_365 = arith.constant 4 : index
    %c0_366 = arith.constant 0 : index
    %402 = vector.load %arg21[%c1_364, %c4_365, %c0_366] : memref<6x8x80xf32, #tpu.memory_space<vmem>>, vector<1x1x80xf32>
    %403 = vector.shape_cast %402 : vector<1x1x80xf32> to vector<1x80xf32>
    %404 = vector.shape_cast %401 : vector<1x80xf32> to vector<1x1x80xf32>
    tpu.vector_store %arg21[%c1_364, %c4_365, %c0_366], %404 {strides = array<i32>} : memref<6x8x80xf32, #tpu.memory_space<vmem>>, vector<1x1x80xf32>,
    %405 = vector.extract_strided_slice %396 {offsets = [2, 0], sizes = [1, 80], strides = [1, 1]} : vector<6x80xf32> to vector<1x80xf32>
    %c2_367 = arith.constant 2 : index
    %c4_368 = arith.constant 4 : index
    %c0_369 = arith.constant 0 : index
    %406 = vector.load %arg21[%c2_367, %c4_368, %c0_369] : memref<6x8x80xf32, #tpu.memory_space<vmem>>, vector<1x1x80xf32>
    %407 = vector.shape_cast %406 : vector<1x1x80xf32> to vector<1x80xf32>
    %408 = vector.shape_cast %405 : vector<1x80xf32> to vector<1x1x80xf32>
    tpu.vector_store %arg21[%c2_367, %c4_368, %c0_369], %408 {strides = array<i32>} : memref<6x8x80xf32, #tpu.memory_space<vmem>>, vector<1x1x80xf32>,
    %409 = vector.extract_strided_slice %396 {offsets = [3, 0], sizes = [1, 80], strides = [1, 1]} : vector<6x80xf32> to vector<1x80xf32>
    %c3_370 = arith.constant 3 : index
    %c4_371 = arith.constant 4 : index
    %c0_372 = arith.constant 0 : index
    %410 = vector.load %arg21[%c3_370, %c4_371, %c0_372] : memref<6x8x80xf32, #tpu.memory_space<vmem>>, vector<1x1x80xf32>
    %411 = vector.shape_cast %410 : vector<1x1x80xf32> to vector<1x80xf32>
    %412 = vector.shape_cast %409 : vector<1x80xf32> to vector<1x1x80xf32>
    tpu.vector_store %arg21[%c3_370, %c4_371, %c0_372], %412 {strides = array<i32>} : memref<6x8x80xf32, #tpu.memory_space<vmem>>, vector<1x1x80xf32>,
    %413 = vector.extract_strided_slice %396 {offsets = [4, 0], sizes = [1, 80], strides = [1, 1]} : vector<6x80xf32> to vector<1x80xf32>
    %c4_373 = arith.constant 4 : index
    %c4_374 = arith.constant 4 : index
    %c0_375 = arith.constant 0 : index
    %414 = vector.load %arg21[%c4_373, %c4_374, %c0_375] : memref<6x8x80xf32, #tpu.memory_space<vmem>>, vector<1x1x80xf32>
    %415 = vector.shape_cast %414 : vector<1x1x80xf32> to vector<1x80xf32>
    %416 = vector.shape_cast %413 : vector<1x80xf32> to vector<1x1x80xf32>
    tpu.vector_store %arg21[%c4_373, %c4_374, %c0_375], %416 {strides = array<i32>} : memref<6x8x80xf32, #tpu.memory_space<vmem>>, vector<1x1x80xf32>,
    %417 = vector.extract_strided_slice %396 {offsets = [5, 0], sizes = [1, 80], strides = [1, 1]} : vector<6x80xf32> to vector<1x80xf32>
    %c5_376 = arith.constant 5 : index
    %c4_377 = arith.constant 4 : index
    %c0_378 = arith.constant 0 : index
    %418 = vector.load %arg21[%c5_376, %c4_377, %c0_378] : memref<6x8x80xf32, #tpu.memory_space<vmem>>, vector<1x1x80xf32>
    %419 = vector.shape_cast %418 : vector<1x1x80xf32> to vector<1x80xf32>
    %420 = vector.shape_cast %417 : vector<1x80xf32> to vector<1x1x80xf32>
    tpu.vector_store %arg21[%c5_376, %c4_377, %c0_378], %420 {strides = array<i32>} : memref<6x8x80xf32, #tpu.memory_space<vmem>>, vector<1x1x80xf32>,
    %c0_379 = arith.constant 0 : index
    %c660 = arith.constant 660 : index
    %421 = vector.load %arg20[%c0_379, %c660] : memref<40x1056xf32, #tpu.memory_space<vmem>>, vector<6x131xf32>
    %cst_380 = arith.constant dense<0.000000e+00> : vector<6x80xf32>
    %422 = tpu.matmul %421, %279, %cst_380 {dimension_numbers = #tpu.dot_dimension_numbers<[1], [0], [0], [1], [0, 0, 1, 1], [], []>} : vector<6x131xf32>, vector<131x80xf32>, vector<6x80xf32> -> vector<6x80xf32>
    %423 = vector.broadcast %280 : vector<1x80xf32> to vector<6x80xf32>
    %424 = arith.addf %422, %423 : vector<6x80xf32>
    %425 = vector.extract_strided_slice %424 {offsets = [0, 0], sizes = [1, 80], strides = [1, 1]} : vector<6x80xf32> to vector<1x80xf32>
    %c0_381 = arith.constant 0 : index
    %c5_382 = arith.constant 5 : index
    %c0_383 = arith.constant 0 : index
    %426 = vector.load %arg21[%c0_381, %c5_382, %c0_383] : memref<6x8x80xf32, #tpu.memory_space<vmem>>, vector<1x1x80xf32>
    %427 = vector.shape_cast %426 : vector<1x1x80xf32> to vector<1x80xf32>
    %428 = vector.shape_cast %425 : vector<1x80xf32> to vector<1x1x80xf32>
    tpu.vector_store %arg21[%c0_381, %c5_382, %c0_383], %428 {strides = array<i32>} : memref<6x8x80xf32, #tpu.memory_space<vmem>>, vector<1x1x80xf32>,
    %429 = vector.extract_strided_slice %424 {offsets = [1, 0], sizes = [1, 80], strides = [1, 1]} : vector<6x80xf32> to vector<1x80xf32>
    %c1_384 = arith.constant 1 : index
    %c5_385 = arith.constant 5 : index
    %c0_386 = arith.constant 0 : index
    %430 = vector.load %arg21[%c1_384, %c5_385, %c0_386] : memref<6x8x80xf32, #tpu.memory_space<vmem>>, vector<1x1x80xf32>
    %431 = vector.shape_cast %430 : vector<1x1x80xf32> to vector<1x80xf32>
    %432 = vector.shape_cast %429 : vector<1x80xf32> to vector<1x1x80xf32>
    tpu.vector_store %arg21[%c1_384, %c5_385, %c0_386], %432 {strides = array<i32>} : memref<6x8x80xf32, #tpu.memory_space<vmem>>, vector<1x1x80xf32>,
    %433 = vector.extract_strided_slice %424 {offsets = [2, 0], sizes = [1, 80], strides = [1, 1]} : vector<6x80xf32> to vector<1x80xf32>
    %c2_387 = arith.constant 2 : index
    %c5_388 = arith.constant 5 : index
    %c0_389 = arith.constant 0 : index
    %434 = vector.load %arg21[%c2_387, %c5_388, %c0_389] : memref<6x8x80xf32, #tpu.memory_space<vmem>>, vector<1x1x80xf32>
    %435 = vector.shape_cast %434 : vector<1x1x80xf32> to vector<1x80xf32>
    %436 = vector.shape_cast %433 : vector<1x80xf32> to vector<1x1x80xf32>
    tpu.vector_store %arg21[%c2_387, %c5_388, %c0_389], %436 {strides = array<i32>} : memref<6x8x80xf32, #tpu.memory_space<vmem>>, vector<1x1x80xf32>,
    %437 = vector.extract_strided_slice %424 {offsets = [3, 0], sizes = [1, 80], strides = [1, 1]} : vector<6x80xf32> to vector<1x80xf32>
    %c3_390 = arith.constant 3 : index
    %c5_391 = arith.constant 5 : index
    %c0_392 = arith.constant 0 : index
    %438 = vector.load %arg21[%c3_390, %c5_391, %c0_392] : memref<6x8x80xf32, #tpu.memory_space<vmem>>, vector<1x1x80xf32>
    %439 = vector.shape_cast %438 : vector<1x1x80xf32> to vector<1x80xf32>
    %440 = vector.shape_cast %437 : vector<1x80xf32> to vector<1x1x80xf32>
    tpu.vector_store %arg21[%c3_390, %c5_391, %c0_392], %440 {strides = array<i32>} : memref<6x8x80xf32, #tpu.memory_space<vmem>>, vector<1x1x80xf32>,
    %441 = vector.extract_strided_slice %424 {offsets = [4, 0], sizes = [1, 80], strides = [1, 1]} : vector<6x80xf32> to vector<1x80xf32>
    %c4_393 = arith.constant 4 : index
    %c5_394 = arith.constant 5 : index
    %c0_395 = arith.constant 0 : index
    %442 = vector.load %arg21[%c4_393, %c5_394, %c0_395] : memref<6x8x80xf32, #tpu.memory_space<vmem>>, vector<1x1x80xf32>
    %443 = vector.shape_cast %442 : vector<1x1x80xf32> to vector<1x80xf32>
    %444 = vector.shape_cast %441 : vector<1x80xf32> to vector<1x1x80xf32>
    tpu.vector_store %arg21[%c4_393, %c5_394, %c0_395], %444 {strides = array<i32>} : memref<6x8x80xf32, #tpu.memory_space<vmem>>, vector<1x1x80xf32>,
    %445 = vector.extract_strided_slice %424 {offsets = [5, 0], sizes = [1, 80], strides = [1, 1]} : vector<6x80xf32> to vector<1x80xf32>
    %c5_396 = arith.constant 5 : index
    %c5_397 = arith.constant 5 : index
    %c0_398 = arith.constant 0 : index
    %446 = vector.load %arg21[%c5_396, %c5_397, %c0_398] : memref<6x8x80xf32, #tpu.memory_space<vmem>>, vector<1x1x80xf32>
    %447 = vector.shape_cast %446 : vector<1x1x80xf32> to vector<1x80xf32>
    %448 = vector.shape_cast %445 : vector<1x80xf32> to vector<1x1x80xf32>
    tpu.vector_store %arg21[%c5_396, %c5_397, %c0_398], %448 {strides = array<i32>} : memref<6x8x80xf32, #tpu.memory_space<vmem>>, vector<1x1x80xf32>,
    %c0_399 = arith.constant 0 : index
    %c792 = arith.constant 792 : index
    %449 = vector.load %arg20[%c0_399, %c792] : memref<40x1056xf32, #tpu.memory_space<vmem>>, vector<6x131xf32>
    %cst_400 = arith.constant dense<0.000000e+00> : vector<6x80xf32>
    %450 = tpu.matmul %449, %279, %cst_400 {dimension_numbers = #tpu.dot_dimension_numbers<[1], [0], [0], [1], [0, 0, 1, 1], [], []>} : vector<6x131xf32>, vector<131x80xf32>, vector<6x80xf32> -> vector<6x80xf32>
    %451 = vector.broadcast %280 : vector<1x80xf32> to vector<6x80xf32>
    %452 = arith.addf %450, %451 : vector<6x80xf32>
    %453 = vector.extract_strided_slice %452 {offsets = [0, 0], sizes = [1, 80], strides = [1, 1]} : vector<6x80xf32> to vector<1x80xf32>
    %c0_401 = arith.constant 0 : index
    %c6_402 = arith.constant 6 : index
    %c0_403 = arith.constant 0 : index
    %454 = vector.load %arg21[%c0_401, %c6_402, %c0_403] : memref<6x8x80xf32, #tpu.memory_space<vmem>>, vector<1x1x80xf32>
    %455 = vector.shape_cast %454 : vector<1x1x80xf32> to vector<1x80xf32>
    %456 = vector.shape_cast %453 : vector<1x80xf32> to vector<1x1x80xf32>
    tpu.vector_store %arg21[%c0_401, %c6_402, %c0_403], %456 {strides = array<i32>} : memref<6x8x80xf32, #tpu.memory_space<vmem>>, vector<1x1x80xf32>,
    %457 = vector.extract_strided_slice %452 {offsets = [1, 0], sizes = [1, 80], strides = [1, 1]} : vector<6x80xf32> to vector<1x80xf32>
    %c1_404 = arith.constant 1 : index
    %c6_405 = arith.constant 6 : index
    %c0_406 = arith.constant 0 : index
    %458 = vector.load %arg21[%c1_404, %c6_405, %c0_406] : memref<6x8x80xf32, #tpu.memory_space<vmem>>, vector<1x1x80xf32>
    %459 = vector.shape_cast %458 : vector<1x1x80xf32> to vector<1x80xf32>
    %460 = vector.shape_cast %457 : vector<1x80xf32> to vector<1x1x80xf32>
    tpu.vector_store %arg21[%c1_404, %c6_405, %c0_406], %460 {strides = array<i32>} : memref<6x8x80xf32, #tpu.memory_space<vmem>>, vector<1x1x80xf32>,
    %461 = vector.extract_strided_slice %452 {offsets = [2, 0], sizes = [1, 80], strides = [1, 1]} : vector<6x80xf32> to vector<1x80xf32>
    %c2_407 = arith.constant 2 : index
    %c6_408 = arith.constant 6 : index
    %c0_409 = arith.constant 0 : index
    %462 = vector.load %arg21[%c2_407, %c6_408, %c0_409] : memref<6x8x80xf32, #tpu.memory_space<vmem>>, vector<1x1x80xf32>
    %463 = vector.shape_cast %462 : vector<1x1x80xf32> to vector<1x80xf32>
    %464 = vector.shape_cast %461 : vector<1x80xf32> to vector<1x1x80xf32>
    tpu.vector_store %arg21[%c2_407, %c6_408, %c0_409], %464 {strides = array<i32>} : memref<6x8x80xf32, #tpu.memory_space<vmem>>, vector<1x1x80xf32>,
    %465 = vector.extract_strided_slice %452 {offsets = [3, 0], sizes = [1, 80], strides = [1, 1]} : vector<6x80xf32> to vector<1x80xf32>
    %c3_410 = arith.constant 3 : index
    %c6_411 = arith.constant 6 : index
    %c0_412 = arith.constant 0 : index
    %466 = vector.load %arg21[%c3_410, %c6_411, %c0_412] : memref<6x8x80xf32, #tpu.memory_space<vmem>>, vector<1x1x80xf32>
    %467 = vector.shape_cast %466 : vector<1x1x80xf32> to vector<1x80xf32>
    %468 = vector.shape_cast %465 : vector<1x80xf32> to vector<1x1x80xf32>
    tpu.vector_store %arg21[%c3_410, %c6_411, %c0_412], %468 {strides = array<i32>} : memref<6x8x80xf32, #tpu.memory_space<vmem>>, vector<1x1x80xf32>,
    %469 = vector.extract_strided_slice %452 {offsets = [4, 0], sizes = [1, 80], strides = [1, 1]} : vector<6x80xf32> to vector<1x80xf32>
    %c4_413 = arith.constant 4 : index
    %c6_414 = arith.constant 6 : index
    %c0_415 = arith.constant 0 : index
    %470 = vector.load %arg21[%c4_413, %c6_414, %c0_415] : memref<6x8x80xf32, #tpu.memory_space<vmem>>, vector<1x1x80xf32>
    %471 = vector.shape_cast %470 : vector<1x1x80xf32> to vector<1x80xf32>
    %472 = vector.shape_cast %469 : vector<1x80xf32> to vector<1x1x80xf32>
    tpu.vector_store %arg21[%c4_413, %c6_414, %c0_415], %472 {strides = array<i32>} : memref<6x8x80xf32, #tpu.memory_space<vmem>>, vector<1x1x80xf32>,
    %473 = vector.extract_strided_slice %452 {offsets = [5, 0], sizes = [1, 80], strides = [1, 1]} : vector<6x80xf32> to vector<1x80xf32>
    %c5_416 = arith.constant 5 : index
    %c6_417 = arith.constant 6 : index
    %c0_418 = arith.constant 0 : index
    %474 = vector.load %arg21[%c5_416, %c6_417, %c0_418] : memref<6x8x80xf32, #tpu.memory_space<vmem>>, vector<1x1x80xf32>
    %475 = vector.shape_cast %474 : vector<1x1x80xf32> to vector<1x80xf32>
    %476 = vector.shape_cast %473 : vector<1x80xf32> to vector<1x1x80xf32>
    tpu.vector_store %arg21[%c5_416, %c6_417, %c0_418], %476 {strides = array<i32>} : memref<6x8x80xf32, #tpu.memory_space<vmem>>, vector<1x1x80xf32>,
    %c0_419 = arith.constant 0 : index
    %c924 = arith.constant 924 : index
    %477 = vector.load %arg20[%c0_419, %c924] : memref<40x1056xf32, #tpu.memory_space<vmem>>, vector<6x131xf32>
    %cst_420 = arith.constant dense<0.000000e+00> : vector<6x80xf32>
    %478 = tpu.matmul %477, %279, %cst_420 {dimension_numbers = #tpu.dot_dimension_numbers<[1], [0], [0], [1], [0, 0, 1, 1], [], []>} : vector<6x131xf32>, vector<131x80xf32>, vector<6x80xf32> -> vector<6x80xf32>
    %479 = vector.broadcast %280 : vector<1x80xf32> to vector<6x80xf32>
    %480 = arith.addf %478, %479 : vector<6x80xf32>
    %481 = vector.extract_strided_slice %480 {offsets = [0, 0], sizes = [1, 80], strides = [1, 1]} : vector<6x80xf32> to vector<1x80xf32>
    %c0_421 = arith.constant 0 : index
    %c7_422 = arith.constant 7 : index
    %c0_423 = arith.constant 0 : index
    %482 = vector.load %arg21[%c0_421, %c7_422, %c0_423] : memref<6x8x80xf32, #tpu.memory_space<vmem>>, vector<1x1x80xf32>
    %483 = vector.shape_cast %482 : vector<1x1x80xf32> to vector<1x80xf32>
    %484 = vector.shape_cast %481 : vector<1x80xf32> to vector<1x1x80xf32>
    tpu.vector_store %arg21[%c0_421, %c7_422, %c0_423], %484 {strides = array<i32>} : memref<6x8x80xf32, #tpu.memory_space<vmem>>, vector<1x1x80xf32>,
    %485 = vector.extract_strided_slice %480 {offsets = [1, 0], sizes = [1, 80], strides = [1, 1]} : vector<6x80xf32> to vector<1x80xf32>
    %c1_424 = arith.constant 1 : index
    %c7_425 = arith.constant 7 : index
    %c0_426 = arith.constant 0 : index
    %486 = vector.load %arg21[%c1_424, %c7_425, %c0_426] : memref<6x8x80xf32, #tpu.memory_space<vmem>>, vector<1x1x80xf32>
    %487 = vector.shape_cast %486 : vector<1x1x80xf32> to vector<1x80xf32>
    %488 = vector.shape_cast %485 : vector<1x80xf32> to vector<1x1x80xf32>
    tpu.vector_store %arg21[%c1_424, %c7_425, %c0_426], %488 {strides = array<i32>} : memref<6x8x80xf32, #tpu.memory_space<vmem>>, vector<1x1x80xf32>,
    %489 = vector.extract_strided_slice %480 {offsets = [2, 0], sizes = [1, 80], strides = [1, 1]} : vector<6x80xf32> to vector<1x80xf32>
    %c2_427 = arith.constant 2 : index
    %c7_428 = arith.constant 7 : index
    %c0_429 = arith.constant 0 : index
    %490 = vector.load %arg21[%c2_427, %c7_428, %c0_429] : memref<6x8x80xf32, #tpu.memory_space<vmem>>, vector<1x1x80xf32>
    %491 = vector.shape_cast %490 : vector<1x1x80xf32> to vector<1x80xf32>
    %492 = vector.shape_cast %489 : vector<1x80xf32> to vector<1x1x80xf32>
    tpu.vector_store %arg21[%c2_427, %c7_428, %c0_429], %492 {strides = array<i32>} : memref<6x8x80xf32, #tpu.memory_space<vmem>>, vector<1x1x80xf32>,
    %493 = vector.extract_strided_slice %480 {offsets = [3, 0], sizes = [1, 80], strides = [1, 1]} : vector<6x80xf32> to vector<1x80xf32>
    %c3_430 = arith.constant 3 : index
    %c7_431 = arith.constant 7 : index
    %c0_432 = arith.constant 0 : index
    %494 = vector.load %arg21[%c3_430, %c7_431, %c0_432] : memref<6x8x80xf32, #tpu.memory_space<vmem>>, vector<1x1x80xf32>
    %495 = vector.shape_cast %494 : vector<1x1x80xf32> to vector<1x80xf32>
    %496 = vector.shape_cast %493 : vector<1x80xf32> to vector<1x1x80xf32>
    tpu.vector_store %arg21[%c3_430, %c7_431, %c0_432], %496 {strides = array<i32>} : memref<6x8x80xf32, #tpu.memory_space<vmem>>, vector<1x1x80xf32>,
    %497 = vector.extract_strided_slice %480 {offsets = [4, 0], sizes = [1, 80], strides = [1, 1]} : vector<6x80xf32> to vector<1x80xf32>
    %c4_433 = arith.constant 4 : index
    %c7_434 = arith.constant 7 : index
    %c0_435 = arith.constant 0 : index
    %498 = vector.load %arg21[%c4_433, %c7_434, %c0_435] : memref<6x8x80xf32, #tpu.memory_space<vmem>>, vector<1x1x80xf32>
    %499 = vector.shape_cast %498 : vector<1x1x80xf32> to vector<1x80xf32>
    %500 = vector.shape_cast %497 : vector<1x80xf32> to vector<1x1x80xf32>
    tpu.vector_store %arg21[%c4_433, %c7_434, %c0_435], %500 {strides = array<i32>} : memref<6x8x80xf32, #tpu.memory_space<vmem>>, vector<1x1x80xf32>,
    %501 = vector.extract_strided_slice %480 {offsets = [5, 0], sizes = [1, 80], strides = [1, 1]} : vector<6x80xf32> to vector<1x80xf32>
    %c5_436 = arith.constant 5 : index
    %c7_437 = arith.constant 7 : index
    %c0_438 = arith.constant 0 : index
    %502 = vector.load %arg21[%c5_436, %c7_437, %c0_438] : memref<6x8x80xf32, #tpu.memory_space<vmem>>, vector<1x1x80xf32>
    %503 = vector.shape_cast %502 : vector<1x1x80xf32> to vector<1x80xf32>
    %504 = vector.shape_cast %501 : vector<1x80xf32> to vector<1x1x80xf32>
    tpu.vector_store %arg21[%c5_436, %c7_437, %c0_438], %504 {strides = array<i32>} : memref<6x8x80xf32, #tpu.memory_space<vmem>>, vector<1x1x80xf32>,
    %c0_439 = arith.constant 0 : index
    %c0_440 = arith.constant 0 : index
    %505 = vector.load %arg10[%c0_439, %c0_440] : memref<20x80xf32, #tpu.memory_space<vmem>>, vector<20x80xf32>
    %c0_441 = arith.constant 0 : index
    %c0_442 = arith.constant 0 : index
    %506 = vector.load %arg12[%c0_441, %c0_442] : memref<20x80xf32, #tpu.memory_space<vmem>>, vector<20x80xf32>
    %c0_443 = arith.constant 0 : index
    %c0_444 = arith.constant 0 : index
    %507 = vector.load %arg13[%c0_443, %c0_444] : memref<20x80xf32, #tpu.memory_space<vmem>>, vector<20x80xf32>
    %c0_445 = arith.constant 0 : index
    %c0_446 = arith.constant 0 : index
    %508 = vector.load %arg14[%c0_445, %c0_446] : memref<1x80xf32, #tpu.memory_space<vmem>>, vector<1x80xf32>
    %cst_447 = arith.constant 0.000000e+00 : f32
    %509 = vector.broadcast %cst_447 : f32 to vector<8x20xf32>
    %cst_448 = arith.constant 0.000000e+00 : f32
    %510 = vector.broadcast %cst_448 : f32 to vector<8x20xf32>
    %cst_449 = arith.constant 0.000000e+00 : f32
    %511 = vector.broadcast %cst_449 : f32 to vector<8x20xf32>
    %cst_450 = arith.constant 0.000000e+00 : f32
    %512 = vector.broadcast %cst_450 : f32 to vector<8x20xf32>
    %c0_451 = arith.constant 0 : index
    %c0_452 = arith.constant 0 : index
    %c0_453 = arith.constant 0 : index
    %513 = vector.load %arg21[%c0_451, %c0_452, %c0_453] : memref<6x8x80xf32, #tpu.memory_space<vmem>>, vector<1x8x80xf32>
    %514 = vector.shape_cast %513 : vector<1x8x80xf32> to vector<8x80xf32>
    %cst_454 = arith.constant dense<0.000000e+00> : vector<8x80xf32>
    %515 = tpu.matmul %509, %505, %cst_454 {dimension_numbers = #tpu.dot_dimension_numbers<[1], [0], [0], [1], [0, 0, 1, 1], [], []>} : vector<8x20xf32>, vector<20x80xf32>, vector<8x80xf32> -> vector<8x80xf32>
    %516 = arith.addf %514, %515 : vector<8x80xf32>
    %517 = vector.extract_strided_slice %516 {offsets = [0, 0], sizes = [8, 20], strides = [1, 1]} : vector<8x80xf32> to vector<8x20xf32>
    %cst_455 = arith.constant 5.000000e-01 : f32
    %518 = vector.broadcast %cst_455 : f32 to vector<8x20xf32>
    %519 = arith.mulf %518, %517 : vector<8x20xf32>
    %520 = math.tanh %519 : vector<8x20xf32>
    %cst_456 = arith.constant 5.000000e-01 : f32
    %521 = vector.broadcast %cst_456 : f32 to vector<8x20xf32>
    %522 = arith.mulf %521, %520 : vector<8x20xf32>
    %cst_457 = arith.constant 5.000000e-01 : f32
    %523 = vector.broadcast %cst_457 : f32 to vector<8x20xf32>
    %524 = arith.addf %522, %523 : vector<8x20xf32>
    %525 = vector.extract_strided_slice %516 {offsets = [0, 20], sizes = [8, 20], strides = [1, 1]} : vector<8x80xf32> to vector<8x20xf32>
    %cst_458 = arith.constant 5.000000e-01 : f32
    %526 = vector.broadcast %cst_458 : f32 to vector<8x20xf32>
    %527 = arith.mulf %526, %525 : vector<8x20xf32>
    %528 = math.tanh %527 : vector<8x20xf32>
    %cst_459 = arith.constant 5.000000e-01 : f32
    %529 = vector.broadcast %cst_459 : f32 to vector<8x20xf32>
    %530 = arith.mulf %529, %528 : vector<8x20xf32>
    %cst_460 = arith.constant 5.000000e-01 : f32
    %531 = vector.broadcast %cst_460 : f32 to vector<8x20xf32>
    %532 = arith.addf %530, %531 : vector<8x20xf32>
    %533 = vector.extract_strided_slice %516 {offsets = [0, 40], sizes = [8, 20], strides = [1, 1]} : vector<8x80xf32> to vector<8x20xf32>
    %534 = math.tanh %533 : vector<8x20xf32>
    %535 = vector.extract_strided_slice %516 {offsets = [0, 60], sizes = [8, 20], strides = [1, 1]} : vector<8x80xf32> to vector<8x20xf32>
    %cst_461 = arith.constant 5.000000e-01 : f32
    %536 = vector.broadcast %cst_461 : f32 to vector<8x20xf32>
    %537 = arith.mulf %536, %535 : vector<8x20xf32>
    %538 = math.tanh %537 : vector<8x20xf32>
    %cst_462 = arith.constant 5.000000e-01 : f32
    %539 = vector.broadcast %cst_462 : f32 to vector<8x20xf32>
    %540 = arith.mulf %539, %538 : vector<8x20xf32>
    %cst_463 = arith.constant 5.000000e-01 : f32
    %541 = vector.broadcast %cst_463 : f32 to vector<8x20xf32>
    %542 = arith.addf %540, %541 : vector<8x20xf32>
    %543 = arith.mulf %532, %510 : vector<8x20xf32>
    %544 = arith.mulf %524, %534 : vector<8x20xf32>
    %545 = arith.addf %543, %544 : vector<8x20xf32>
    %546 = math.tanh %545 : vector<8x20xf32>
    %547 = arith.mulf %542, %546 : vector<8x20xf32>
    %cst_464 = arith.constant dense<0.000000e+00> : vector<8x80xf32>
    %548 = tpu.matmul %547, %506, %cst_464 {dimension_numbers = #tpu.dot_dimension_numbers<[1], [0], [0], [1], [0, 0, 1, 1], [], []>} : vector<8x20xf32>, vector<20x80xf32>, vector<8x80xf32> -> vector<8x80xf32>
    %cst_465 = arith.constant dense<0.000000e+00> : vector<8x80xf32>
    %549 = tpu.matmul %511, %507, %cst_465 {dimension_numbers = #tpu.dot_dimension_numbers<[1], [0], [0], [1], [0, 0, 1, 1], [], []>} : vector<8x20xf32>, vector<20x80xf32>, vector<8x80xf32> -> vector<8x80xf32>
    %550 = arith.addf %548, %549 : vector<8x80xf32>
    %551 = vector.broadcast %508 : vector<1x80xf32> to vector<8x80xf32>
    %552 = arith.addf %550, %551 : vector<8x80xf32>
    %553 = vector.extract_strided_slice %552 {offsets = [0, 0], sizes = [8, 20], strides = [1, 1]} : vector<8x80xf32> to vector<8x20xf32>
    %cst_466 = arith.constant 5.000000e-01 : f32
    %554 = vector.broadcast %cst_466 : f32 to vector<8x20xf32>
    %555 = arith.mulf %554, %553 : vector<8x20xf32>
    %556 = math.tanh %555 : vector<8x20xf32>
    %cst_467 = arith.constant 5.000000e-01 : f32
    %557 = vector.broadcast %cst_467 : f32 to vector<8x20xf32>
    %558 = arith.mulf %557, %556 : vector<8x20xf32>
    %cst_468 = arith.constant 5.000000e-01 : f32
    %559 = vector.broadcast %cst_468 : f32 to vector<8x20xf32>
    %560 = arith.addf %558, %559 : vector<8x20xf32>
    %561 = vector.extract_strided_slice %552 {offsets = [0, 20], sizes = [8, 20], strides = [1, 1]} : vector<8x80xf32> to vector<8x20xf32>
    %cst_469 = arith.constant 5.000000e-01 : f32
    %562 = vector.broadcast %cst_469 : f32 to vector<8x20xf32>
    %563 = arith.mulf %562, %561 : vector<8x20xf32>
    %564 = math.tanh %563 : vector<8x20xf32>
    %cst_470 = arith.constant 5.000000e-01 : f32
    %565 = vector.broadcast %cst_470 : f32 to vector<8x20xf32>
    %566 = arith.mulf %565, %564 : vector<8x20xf32>
    %cst_471 = arith.constant 5.000000e-01 : f32
    %567 = vector.broadcast %cst_471 : f32 to vector<8x20xf32>
    %568 = arith.addf %566, %567 : vector<8x20xf32>
    %569 = vector.extract_strided_slice %552 {offsets = [0, 40], sizes = [8, 20], strides = [1, 1]} : vector<8x80xf32> to vector<8x20xf32>
    %570 = math.tanh %569 : vector<8x20xf32>
    %571 = vector.extract_strided_slice %552 {offsets = [0, 60], sizes = [8, 20], strides = [1, 1]} : vector<8x80xf32> to vector<8x20xf32>
    %cst_472 = arith.constant 5.000000e-01 : f32
    %572 = vector.broadcast %cst_472 : f32 to vector<8x20xf32>
    %573 = arith.mulf %572, %571 : vector<8x20xf32>
    %574 = math.tanh %573 : vector<8x20xf32>
    %cst_473 = arith.constant 5.000000e-01 : f32
    %575 = vector.broadcast %cst_473 : f32 to vector<8x20xf32>
    %576 = arith.mulf %575, %574 : vector<8x20xf32>
    %cst_474 = arith.constant 5.000000e-01 : f32
    %577 = vector.broadcast %cst_474 : f32 to vector<8x20xf32>
    %578 = arith.addf %576, %577 : vector<8x20xf32>
    %579 = arith.mulf %568, %512 : vector<8x20xf32>
    %580 = arith.mulf %560, %570 : vector<8x20xf32>
    %581 = arith.addf %579, %580 : vector<8x20xf32>
    %582 = math.tanh %581 : vector<8x20xf32>
    %583 = arith.mulf %578, %582 : vector<8x20xf32>
    %c1_475 = arith.constant 1 : index
    %c0_476 = arith.constant 0 : index
    %c0_477 = arith.constant 0 : index
    %584 = vector.load %arg21[%c1_475, %c0_476, %c0_477] : memref<6x8x80xf32, #tpu.memory_space<vmem>>, vector<1x8x80xf32>
    %585 = vector.shape_cast %584 : vector<1x8x80xf32> to vector<8x80xf32>
    %cst_478 = arith.constant dense<0.000000e+00> : vector<8x80xf32>
    %586 = tpu.matmul %547, %505, %cst_478 {dimension_numbers = #tpu.dot_dimension_numbers<[1], [0], [0], [1], [0, 0, 1, 1], [], []>} : vector<8x20xf32>, vector<20x80xf32>, vector<8x80xf32> -> vector<8x80xf32>
    %587 = arith.addf %585, %586 : vector<8x80xf32>
    %588 = vector.extract_strided_slice %587 {offsets = [0, 0], sizes = [8, 20], strides = [1, 1]} : vector<8x80xf32> to vector<8x20xf32>
    %cst_479 = arith.constant 5.000000e-01 : f32
    %589 = vector.broadcast %cst_479 : f32 to vector<8x20xf32>
    %590 = arith.mulf %589, %588 : vector<8x20xf32>
    %591 = math.tanh %590 : vector<8x20xf32>
    %cst_480 = arith.constant 5.000000e-01 : f32
    %592 = vector.broadcast %cst_480 : f32 to vector<8x20xf32>
    %593 = arith.mulf %592, %591 : vector<8x20xf32>
    %cst_481 = arith.constant 5.000000e-01 : f32
    %594 = vector.broadcast %cst_481 : f32 to vector<8x20xf32>
    %595 = arith.addf %593, %594 : vector<8x20xf32>
    %596 = vector.extract_strided_slice %587 {offsets = [0, 20], sizes = [8, 20], strides = [1, 1]} : vector<8x80xf32> to vector<8x20xf32>
    %cst_482 = arith.constant 5.000000e-01 : f32
    %597 = vector.broadcast %cst_482 : f32 to vector<8x20xf32>
    %598 = arith.mulf %597, %596 : vector<8x20xf32>
    %599 = math.tanh %598 : vector<8x20xf32>
    %cst_483 = arith.constant 5.000000e-01 : f32
    %600 = vector.broadcast %cst_483 : f32 to vector<8x20xf32>
    %601 = arith.mulf %600, %599 : vector<8x20xf32>
    %cst_484 = arith.constant 5.000000e-01 : f32
    %602 = vector.broadcast %cst_484 : f32 to vector<8x20xf32>
    %603 = arith.addf %601, %602 : vector<8x20xf32>
    %604 = vector.extract_strided_slice %587 {offsets = [0, 40], sizes = [8, 20], strides = [1, 1]} : vector<8x80xf32> to vector<8x20xf32>
    %605 = math.tanh %604 : vector<8x20xf32>
    %606 = vector.extract_strided_slice %587 {offsets = [0, 60], sizes = [8, 20], strides = [1, 1]} : vector<8x80xf32> to vector<8x20xf32>
    %cst_485 = arith.constant 5.000000e-01 : f32
    %607 = vector.broadcast %cst_485 : f32 to vector<8x20xf32>
    %608 = arith.mulf %607, %606 : vector<8x20xf32>
    %609 = math.tanh %608 : vector<8x20xf32>
    %cst_486 = arith.constant 5.000000e-01 : f32
    %610 = vector.broadcast %cst_486 : f32 to vector<8x20xf32>
    %611 = arith.mulf %610, %609 : vector<8x20xf32>
    %cst_487 = arith.constant 5.000000e-01 : f32
    %612 = vector.broadcast %cst_487 : f32 to vector<8x20xf32>
    %613 = arith.addf %611, %612 : vector<8x20xf32>
    %614 = arith.mulf %603, %545 : vector<8x20xf32>
    %615 = arith.mulf %595, %605 : vector<8x20xf32>
    %616 = arith.addf %614, %615 : vector<8x20xf32>
    %617 = math.tanh %616 : vector<8x20xf32>
    %618 = arith.mulf %613, %617 : vector<8x20xf32>
    %cst_488 = arith.constant dense<0.000000e+00> : vector<8x80xf32>
    %619 = tpu.matmul %618, %506, %cst_488 {dimension_numbers = #tpu.dot_dimension_numbers<[1], [0], [0], [1], [0, 0, 1, 1], [], []>} : vector<8x20xf32>, vector<20x80xf32>, vector<8x80xf32> -> vector<8x80xf32>
    %cst_489 = arith.constant dense<0.000000e+00> : vector<8x80xf32>
    %620 = tpu.matmul %583, %507, %cst_489 {dimension_numbers = #tpu.dot_dimension_numbers<[1], [0], [0], [1], [0, 0, 1, 1], [], []>} : vector<8x20xf32>, vector<20x80xf32>, vector<8x80xf32> -> vector<8x80xf32>
    %621 = arith.addf %619, %620 : vector<8x80xf32>
    %622 = vector.broadcast %508 : vector<1x80xf32> to vector<8x80xf32>
    %623 = arith.addf %621, %622 : vector<8x80xf32>
    %624 = vector.extract_strided_slice %623 {offsets = [0, 0], sizes = [8, 20], strides = [1, 1]} : vector<8x80xf32> to vector<8x20xf32>
    %cst_490 = arith.constant 5.000000e-01 : f32
    %625 = vector.broadcast %cst_490 : f32 to vector<8x20xf32>
    %626 = arith.mulf %625, %624 : vector<8x20xf32>
    %627 = math.tanh %626 : vector<8x20xf32>
    %cst_491 = arith.constant 5.000000e-01 : f32
    %628 = vector.broadcast %cst_491 : f32 to vector<8x20xf32>
    %629 = arith.mulf %628, %627 : vector<8x20xf32>
    %cst_492 = arith.constant 5.000000e-01 : f32
    %630 = vector.broadcast %cst_492 : f32 to vector<8x20xf32>
    %631 = arith.addf %629, %630 : vector<8x20xf32>
    %632 = vector.extract_strided_slice %623 {offsets = [0, 20], sizes = [8, 20], strides = [1, 1]} : vector<8x80xf32> to vector<8x20xf32>
    %cst_493 = arith.constant 5.000000e-01 : f32
    %633 = vector.broadcast %cst_493 : f32 to vector<8x20xf32>
    %634 = arith.mulf %633, %632 : vector<8x20xf32>
    %635 = math.tanh %634 : vector<8x20xf32>
    %cst_494 = arith.constant 5.000000e-01 : f32
    %636 = vector.broadcast %cst_494 : f32 to vector<8x20xf32>
    %637 = arith.mulf %636, %635 : vector<8x20xf32>
    %cst_495 = arith.constant 5.000000e-01 : f32
    %638 = vector.broadcast %cst_495 : f32 to vector<8x20xf32>
    %639 = arith.addf %637, %638 : vector<8x20xf32>
    %640 = vector.extract_strided_slice %623 {offsets = [0, 40], sizes = [8, 20], strides = [1, 1]} : vector<8x80xf32> to vector<8x20xf32>
    %641 = math.tanh %640 : vector<8x20xf32>
    %642 = vector.extract_strided_slice %623 {offsets = [0, 60], sizes = [8, 20], strides = [1, 1]} : vector<8x80xf32> to vector<8x20xf32>
    %cst_496 = arith.constant 5.000000e-01 : f32
    %643 = vector.broadcast %cst_496 : f32 to vector<8x20xf32>
    %644 = arith.mulf %643, %642 : vector<8x20xf32>
    %645 = math.tanh %644 : vector<8x20xf32>
    %cst_497 = arith.constant 5.000000e-01 : f32
    %646 = vector.broadcast %cst_497 : f32 to vector<8x20xf32>
    %647 = arith.mulf %646, %645 : vector<8x20xf32>
    %cst_498 = arith.constant 5.000000e-01 : f32
    %648 = vector.broadcast %cst_498 : f32 to vector<8x20xf32>
    %649 = arith.addf %647, %648 : vector<8x20xf32>
    %650 = arith.mulf %639, %581 : vector<8x20xf32>
    %651 = arith.mulf %631, %641 : vector<8x20xf32>
    %652 = arith.addf %650, %651 : vector<8x20xf32>
    %653 = math.tanh %652 : vector<8x20xf32>
    %654 = arith.mulf %649, %653 : vector<8x20xf32>
    %c2_499 = arith.constant 2 : index
    %c0_500 = arith.constant 0 : index
    %c0_501 = arith.constant 0 : index
    %655 = vector.load %arg21[%c2_499, %c0_500, %c0_501] : memref<6x8x80xf32, #tpu.memory_space<vmem>>, vector<1x8x80xf32>
    %656 = vector.shape_cast %655 : vector<1x8x80xf32> to vector<8x80xf32>
    %cst_502 = arith.constant dense<0.000000e+00> : vector<8x80xf32>
    %657 = tpu.matmul %618, %505, %cst_502 {dimension_numbers = #tpu.dot_dimension_numbers<[1], [0], [0], [1], [0, 0, 1, 1], [], []>} : vector<8x20xf32>, vector<20x80xf32>, vector<8x80xf32> -> vector<8x80xf32>
    %658 = arith.addf %656, %657 : vector<8x80xf32>
    %659 = vector.extract_strided_slice %658 {offsets = [0, 0], sizes = [8, 20], strides = [1, 1]} : vector<8x80xf32> to vector<8x20xf32>
    %cst_503 = arith.constant 5.000000e-01 : f32
    %660 = vector.broadcast %cst_503 : f32 to vector<8x20xf32>
    %661 = arith.mulf %660, %659 : vector<8x20xf32>
    %662 = math.tanh %661 : vector<8x20xf32>
    %cst_504 = arith.constant 5.000000e-01 : f32
    %663 = vector.broadcast %cst_504 : f32 to vector<8x20xf32>
    %664 = arith.mulf %663, %662 : vector<8x20xf32>
    %cst_505 = arith.constant 5.000000e-01 : f32
    %665 = vector.broadcast %cst_505 : f32 to vector<8x20xf32>
    %666 = arith.addf %664, %665 : vector<8x20xf32>
    %667 = vector.extract_strided_slice %658 {offsets = [0, 20], sizes = [8, 20], strides = [1, 1]} : vector<8x80xf32> to vector<8x20xf32>
    %cst_506 = arith.constant 5.000000e-01 : f32
    %668 = vector.broadcast %cst_506 : f32 to vector<8x20xf32>
    %669 = arith.mulf %668, %667 : vector<8x20xf32>
    %670 = math.tanh %669 : vector<8x20xf32>
    %cst_507 = arith.constant 5.000000e-01 : f32
    %671 = vector.broadcast %cst_507 : f32 to vector<8x20xf32>
    %672 = arith.mulf %671, %670 : vector<8x20xf32>
    %cst_508 = arith.constant 5.000000e-01 : f32
    %673 = vector.broadcast %cst_508 : f32 to vector<8x20xf32>
    %674 = arith.addf %672, %673 : vector<8x20xf32>
    %675 = vector.extract_strided_slice %658 {offsets = [0, 40], sizes = [8, 20], strides = [1, 1]} : vector<8x80xf32> to vector<8x20xf32>
    %676 = math.tanh %675 : vector<8x20xf32>
    %677 = vector.extract_strided_slice %658 {offsets = [0, 60], sizes = [8, 20], strides = [1, 1]} : vector<8x80xf32> to vector<8x20xf32>
    %cst_509 = arith.constant 5.000000e-01 : f32
    %678 = vector.broadcast %cst_509 : f32 to vector<8x20xf32>
    %679 = arith.mulf %678, %677 : vector<8x20xf32>
    %680 = math.tanh %679 : vector<8x20xf32>
    %cst_510 = arith.constant 5.000000e-01 : f32
    %681 = vector.broadcast %cst_510 : f32 to vector<8x20xf32>
    %682 = arith.mulf %681, %680 : vector<8x20xf32>
    %cst_511 = arith.constant 5.000000e-01 : f32
    %683 = vector.broadcast %cst_511 : f32 to vector<8x20xf32>
    %684 = arith.addf %682, %683 : vector<8x20xf32>
    %685 = arith.mulf %674, %616 : vector<8x20xf32>
    %686 = arith.mulf %666, %676 : vector<8x20xf32>
    %687 = arith.addf %685, %686 : vector<8x20xf32>
    %688 = math.tanh %687 : vector<8x20xf32>
    %689 = arith.mulf %684, %688 : vector<8x20xf32>
    %cst_512 = arith.constant dense<0.000000e+00> : vector<8x80xf32>
    %690 = tpu.matmul %689, %506, %cst_512 {dimension_numbers = #tpu.dot_dimension_numbers<[1], [0], [0], [1], [0, 0, 1, 1], [], []>} : vector<8x20xf32>, vector<20x80xf32>, vector<8x80xf32> -> vector<8x80xf32>
    %cst_513 = arith.constant dense<0.000000e+00> : vector<8x80xf32>
    %691 = tpu.matmul %654, %507, %cst_513 {dimension_numbers = #tpu.dot_dimension_numbers<[1], [0], [0], [1], [0, 0, 1, 1], [], []>} : vector<8x20xf32>, vector<20x80xf32>, vector<8x80xf32> -> vector<8x80xf32>
    %692 = arith.addf %690, %691 : vector<8x80xf32>
    %693 = vector.broadcast %508 : vector<1x80xf32> to vector<8x80xf32>
    %694 = arith.addf %692, %693 : vector<8x80xf32>
    %695 = vector.extract_strided_slice %694 {offsets = [0, 0], sizes = [8, 20], strides = [1, 1]} : vector<8x80xf32> to vector<8x20xf32>
    %cst_514 = arith.constant 5.000000e-01 : f32
    %696 = vector.broadcast %cst_514 : f32 to vector<8x20xf32>
    %697 = arith.mulf %696, %695 : vector<8x20xf32>
    %698 = math.tanh %697 : vector<8x20xf32>
    %cst_515 = arith.constant 5.000000e-01 : f32
    %699 = vector.broadcast %cst_515 : f32 to vector<8x20xf32>
    %700 = arith.mulf %699, %698 : vector<8x20xf32>
    %cst_516 = arith.constant 5.000000e-01 : f32
    %701 = vector.broadcast %cst_516 : f32 to vector<8x20xf32>
    %702 = arith.addf %700, %701 : vector<8x20xf32>
    %703 = vector.extract_strided_slice %694 {offsets = [0, 20], sizes = [8, 20], strides = [1, 1]} : vector<8x80xf32> to vector<8x20xf32>
    %cst_517 = arith.constant 5.000000e-01 : f32
    %704 = vector.broadcast %cst_517 : f32 to vector<8x20xf32>
    %705 = arith.mulf %704, %703 : vector<8x20xf32>
    %706 = math.tanh %705 : vector<8x20xf32>
    %cst_518 = arith.constant 5.000000e-01 : f32
    %707 = vector.broadcast %cst_518 : f32 to vector<8x20xf32>
    %708 = arith.mulf %707, %706 : vector<8x20xf32>
    %cst_519 = arith.constant 5.000000e-01 : f32
    %709 = vector.broadcast %cst_519 : f32 to vector<8x20xf32>
    %710 = arith.addf %708, %709 : vector<8x20xf32>
    %711 = vector.extract_strided_slice %694 {offsets = [0, 40], sizes = [8, 20], strides = [1, 1]} : vector<8x80xf32> to vector<8x20xf32>
    %712 = math.tanh %711 : vector<8x20xf32>
    %713 = vector.extract_strided_slice %694 {offsets = [0, 60], sizes = [8, 20], strides = [1, 1]} : vector<8x80xf32> to vector<8x20xf32>
    %cst_520 = arith.constant 5.000000e-01 : f32
    %714 = vector.broadcast %cst_520 : f32 to vector<8x20xf32>
    %715 = arith.mulf %714, %713 : vector<8x20xf32>
    %716 = math.tanh %715 : vector<8x20xf32>
    %cst_521 = arith.constant 5.000000e-01 : f32
    %717 = vector.broadcast %cst_521 : f32 to vector<8x20xf32>
    %718 = arith.mulf %717, %716 : vector<8x20xf32>
    %cst_522 = arith.constant 5.000000e-01 : f32
    %719 = vector.broadcast %cst_522 : f32 to vector<8x20xf32>
    %720 = arith.addf %718, %719 : vector<8x20xf32>
    %721 = arith.mulf %710, %652 : vector<8x20xf32>
    %722 = arith.mulf %702, %712 : vector<8x20xf32>
    %723 = arith.addf %721, %722 : vector<8x20xf32>
    %724 = math.tanh %723 : vector<8x20xf32>
    %725 = arith.mulf %720, %724 : vector<8x20xf32>
    %c3_523 = arith.constant 3 : index
    %c0_524 = arith.constant 0 : index
    %c0_525 = arith.constant 0 : index
    %726 = vector.load %arg21[%c3_523, %c0_524, %c0_525] : memref<6x8x80xf32, #tpu.memory_space<vmem>>, vector<1x8x80xf32>
    %727 = vector.shape_cast %726 : vector<1x8x80xf32> to vector<8x80xf32>
    %cst_526 = arith.constant dense<0.000000e+00> : vector<8x80xf32>
    %728 = tpu.matmul %689, %505, %cst_526 {dimension_numbers = #tpu.dot_dimension_numbers<[1], [0], [0], [1], [0, 0, 1, 1], [], []>} : vector<8x20xf32>, vector<20x80xf32>, vector<8x80xf32> -> vector<8x80xf32>
    %729 = arith.addf %727, %728 : vector<8x80xf32>
    %730 = vector.extract_strided_slice %729 {offsets = [0, 0], sizes = [8, 20], strides = [1, 1]} : vector<8x80xf32> to vector<8x20xf32>
    %cst_527 = arith.constant 5.000000e-01 : f32
    %731 = vector.broadcast %cst_527 : f32 to vector<8x20xf32>
    %732 = arith.mulf %731, %730 : vector<8x20xf32>
    %733 = math.tanh %732 : vector<8x20xf32>
    %cst_528 = arith.constant 5.000000e-01 : f32
    %734 = vector.broadcast %cst_528 : f32 to vector<8x20xf32>
    %735 = arith.mulf %734, %733 : vector<8x20xf32>
    %cst_529 = arith.constant 5.000000e-01 : f32
    %736 = vector.broadcast %cst_529 : f32 to vector<8x20xf32>
    %737 = arith.addf %735, %736 : vector<8x20xf32>
    %738 = vector.extract_strided_slice %729 {offsets = [0, 20], sizes = [8, 20], strides = [1, 1]} : vector<8x80xf32> to vector<8x20xf32>
    %cst_530 = arith.constant 5.000000e-01 : f32
    %739 = vector.broadcast %cst_530 : f32 to vector<8x20xf32>
    %740 = arith.mulf %739, %738 : vector<8x20xf32>
    %741 = math.tanh %740 : vector<8x20xf32>
    %cst_531 = arith.constant 5.000000e-01 : f32
    %742 = vector.broadcast %cst_531 : f32 to vector<8x20xf32>
    %743 = arith.mulf %742, %741 : vector<8x20xf32>
    %cst_532 = arith.constant 5.000000e-01 : f32
    %744 = vector.broadcast %cst_532 : f32 to vector<8x20xf32>
    %745 = arith.addf %743, %744 : vector<8x20xf32>
    %746 = vector.extract_strided_slice %729 {offsets = [0, 40], sizes = [8, 20], strides = [1, 1]} : vector<8x80xf32> to vector<8x20xf32>
    %747 = math.tanh %746 : vector<8x20xf32>
    %748 = vector.extract_strided_slice %729 {offsets = [0, 60], sizes = [8, 20], strides = [1, 1]} : vector<8x80xf32> to vector<8x20xf32>
    %cst_533 = arith.constant 5.000000e-01 : f32
    %749 = vector.broadcast %cst_533 : f32 to vector<8x20xf32>
    %750 = arith.mulf %749, %748 : vector<8x20xf32>
    %751 = math.tanh %750 : vector<8x20xf32>
    %cst_534 = arith.constant 5.000000e-01 : f32
    %752 = vector.broadcast %cst_534 : f32 to vector<8x20xf32>
    %753 = arith.mulf %752, %751 : vector<8x20xf32>
    %cst_535 = arith.constant 5.000000e-01 : f32
    %754 = vector.broadcast %cst_535 : f32 to vector<8x20xf32>
    %755 = arith.addf %753, %754 : vector<8x20xf32>
    %756 = arith.mulf %745, %687 : vector<8x20xf32>
    %757 = arith.mulf %737, %747 : vector<8x20xf32>
    %758 = arith.addf %756, %757 : vector<8x20xf32>
    %759 = math.tanh %758 : vector<8x20xf32>
    %760 = arith.mulf %755, %759 : vector<8x20xf32>
    %cst_536 = arith.constant dense<0.000000e+00> : vector<8x80xf32>
    %761 = tpu.matmul %760, %506, %cst_536 {dimension_numbers = #tpu.dot_dimension_numbers<[1], [0], [0], [1], [0, 0, 1, 1], [], []>} : vector<8x20xf32>, vector<20x80xf32>, vector<8x80xf32> -> vector<8x80xf32>
    %cst_537 = arith.constant dense<0.000000e+00> : vector<8x80xf32>
    %762 = tpu.matmul %725, %507, %cst_537 {dimension_numbers = #tpu.dot_dimension_numbers<[1], [0], [0], [1], [0, 0, 1, 1], [], []>} : vector<8x20xf32>, vector<20x80xf32>, vector<8x80xf32> -> vector<8x80xf32>
    %763 = arith.addf %761, %762 : vector<8x80xf32>
    %764 = vector.broadcast %508 : vector<1x80xf32> to vector<8x80xf32>
    %765 = arith.addf %763, %764 : vector<8x80xf32>
    %766 = vector.extract_strided_slice %765 {offsets = [0, 0], sizes = [8, 20], strides = [1, 1]} : vector<8x80xf32> to vector<8x20xf32>
    %cst_538 = arith.constant 5.000000e-01 : f32
    %767 = vector.broadcast %cst_538 : f32 to vector<8x20xf32>
    %768 = arith.mulf %767, %766 : vector<8x20xf32>
    %769 = math.tanh %768 : vector<8x20xf32>
    %cst_539 = arith.constant 5.000000e-01 : f32
    %770 = vector.broadcast %cst_539 : f32 to vector<8x20xf32>
    %771 = arith.mulf %770, %769 : vector<8x20xf32>
    %cst_540 = arith.constant 5.000000e-01 : f32
    %772 = vector.broadcast %cst_540 : f32 to vector<8x20xf32>
    %773 = arith.addf %771, %772 : vector<8x20xf32>
    %774 = vector.extract_strided_slice %765 {offsets = [0, 20], sizes = [8, 20], strides = [1, 1]} : vector<8x80xf32> to vector<8x20xf32>
    %cst_541 = arith.constant 5.000000e-01 : f32
    %775 = vector.broadcast %cst_541 : f32 to vector<8x20xf32>
    %776 = arith.mulf %775, %774 : vector<8x20xf32>
    %777 = math.tanh %776 : vector<8x20xf32>
    %cst_542 = arith.constant 5.000000e-01 : f32
    %778 = vector.broadcast %cst_542 : f32 to vector<8x20xf32>
    %779 = arith.mulf %778, %777 : vector<8x20xf32>
    %cst_543 = arith.constant 5.000000e-01 : f32
    %780 = vector.broadcast %cst_543 : f32 to vector<8x20xf32>
    %781 = arith.addf %779, %780 : vector<8x20xf32>
    %782 = vector.extract_strided_slice %765 {offsets = [0, 40], sizes = [8, 20], strides = [1, 1]} : vector<8x80xf32> to vector<8x20xf32>
    %783 = math.tanh %782 : vector<8x20xf32>
    %784 = vector.extract_strided_slice %765 {offsets = [0, 60], sizes = [8, 20], strides = [1, 1]} : vector<8x80xf32> to vector<8x20xf32>
    %cst_544 = arith.constant 5.000000e-01 : f32
    %785 = vector.broadcast %cst_544 : f32 to vector<8x20xf32>
    %786 = arith.mulf %785, %784 : vector<8x20xf32>
    %787 = math.tanh %786 : vector<8x20xf32>
    %cst_545 = arith.constant 5.000000e-01 : f32
    %788 = vector.broadcast %cst_545 : f32 to vector<8x20xf32>
    %789 = arith.mulf %788, %787 : vector<8x20xf32>
    %cst_546 = arith.constant 5.000000e-01 : f32
    %790 = vector.broadcast %cst_546 : f32 to vector<8x20xf32>
    %791 = arith.addf %789, %790 : vector<8x20xf32>
    %792 = arith.mulf %781, %723 : vector<8x20xf32>
    %793 = arith.mulf %773, %783 : vector<8x20xf32>
    %794 = arith.addf %792, %793 : vector<8x20xf32>
    %795 = math.tanh %794 : vector<8x20xf32>
    %796 = arith.mulf %791, %795 : vector<8x20xf32>
    %c4_547 = arith.constant 4 : index
    %c0_548 = arith.constant 0 : index
    %c0_549 = arith.constant 0 : index
    %797 = vector.load %arg21[%c4_547, %c0_548, %c0_549] : memref<6x8x80xf32, #tpu.memory_space<vmem>>, vector<1x8x80xf32>
    %798 = vector.shape_cast %797 : vector<1x8x80xf32> to vector<8x80xf32>
    %cst_550 = arith.constant dense<0.000000e+00> : vector<8x80xf32>
    %799 = tpu.matmul %760, %505, %cst_550 {dimension_numbers = #tpu.dot_dimension_numbers<[1], [0], [0], [1], [0, 0, 1, 1], [], []>} : vector<8x20xf32>, vector<20x80xf32>, vector<8x80xf32> -> vector<8x80xf32>
    %800 = arith.addf %798, %799 : vector<8x80xf32>
    %801 = vector.extract_strided_slice %800 {offsets = [0, 0], sizes = [8, 20], strides = [1, 1]} : vector<8x80xf32> to vector<8x20xf32>
    %cst_551 = arith.constant 5.000000e-01 : f32
    %802 = vector.broadcast %cst_551 : f32 to vector<8x20xf32>
    %803 = arith.mulf %802, %801 : vector<8x20xf32>
    %804 = math.tanh %803 : vector<8x20xf32>
    %cst_552 = arith.constant 5.000000e-01 : f32
    %805 = vector.broadcast %cst_552 : f32 to vector<8x20xf32>
    %806 = arith.mulf %805, %804 : vector<8x20xf32>
    %cst_553 = arith.constant 5.000000e-01 : f32
    %807 = vector.broadcast %cst_553 : f32 to vector<8x20xf32>
    %808 = arith.addf %806, %807 : vector<8x20xf32>
    %809 = vector.extract_strided_slice %800 {offsets = [0, 20], sizes = [8, 20], strides = [1, 1]} : vector<8x80xf32> to vector<8x20xf32>
    %cst_554 = arith.constant 5.000000e-01 : f32
    %810 = vector.broadcast %cst_554 : f32 to vector<8x20xf32>
    %811 = arith.mulf %810, %809 : vector<8x20xf32>
    %812 = math.tanh %811 : vector<8x20xf32>
    %cst_555 = arith.constant 5.000000e-01 : f32
    %813 = vector.broadcast %cst_555 : f32 to vector<8x20xf32>
    %814 = arith.mulf %813, %812 : vector<8x20xf32>
    %cst_556 = arith.constant 5.000000e-01 : f32
    %815 = vector.broadcast %cst_556 : f32 to vector<8x20xf32>
    %816 = arith.addf %814, %815 : vector<8x20xf32>
    %817 = vector.extract_strided_slice %800 {offsets = [0, 40], sizes = [8, 20], strides = [1, 1]} : vector<8x80xf32> to vector<8x20xf32>
    %818 = math.tanh %817 : vector<8x20xf32>
    %819 = vector.extract_strided_slice %800 {offsets = [0, 60], sizes = [8, 20], strides = [1, 1]} : vector<8x80xf32> to vector<8x20xf32>
    %cst_557 = arith.constant 5.000000e-01 : f32
    %820 = vector.broadcast %cst_557 : f32 to vector<8x20xf32>
    %821 = arith.mulf %820, %819 : vector<8x20xf32>
    %822 = math.tanh %821 : vector<8x20xf32>
    %cst_558 = arith.constant 5.000000e-01 : f32
    %823 = vector.broadcast %cst_558 : f32 to vector<8x20xf32>
    %824 = arith.mulf %823, %822 : vector<8x20xf32>
    %cst_559 = arith.constant 5.000000e-01 : f32
    %825 = vector.broadcast %cst_559 : f32 to vector<8x20xf32>
    %826 = arith.addf %824, %825 : vector<8x20xf32>
    %827 = arith.mulf %816, %758 : vector<8x20xf32>
    %828 = arith.mulf %808, %818 : vector<8x20xf32>
    %829 = arith.addf %827, %828 : vector<8x20xf32>
    %830 = math.tanh %829 : vector<8x20xf32>
    %831 = arith.mulf %826, %830 : vector<8x20xf32>
    %cst_560 = arith.constant dense<0.000000e+00> : vector<8x80xf32>
    %832 = tpu.matmul %831, %506, %cst_560 {dimension_numbers = #tpu.dot_dimension_numbers<[1], [0], [0], [1], [0, 0, 1, 1], [], []>} : vector<8x20xf32>, vector<20x80xf32>, vector<8x80xf32> -> vector<8x80xf32>
    %cst_561 = arith.constant dense<0.000000e+00> : vector<8x80xf32>
    %833 = tpu.matmul %796, %507, %cst_561 {dimension_numbers = #tpu.dot_dimension_numbers<[1], [0], [0], [1], [0, 0, 1, 1], [], []>} : vector<8x20xf32>, vector<20x80xf32>, vector<8x80xf32> -> vector<8x80xf32>
    %834 = arith.addf %832, %833 : vector<8x80xf32>
    %835 = vector.broadcast %508 : vector<1x80xf32> to vector<8x80xf32>
    %836 = arith.addf %834, %835 : vector<8x80xf32>
    %837 = vector.extract_strided_slice %836 {offsets = [0, 0], sizes = [8, 20], strides = [1, 1]} : vector<8x80xf32> to vector<8x20xf32>
    %cst_562 = arith.constant 5.000000e-01 : f32
    %838 = vector.broadcast %cst_562 : f32 to vector<8x20xf32>
    %839 = arith.mulf %838, %837 : vector<8x20xf32>
    %840 = math.tanh %839 : vector<8x20xf32>
    %cst_563 = arith.constant 5.000000e-01 : f32
    %841 = vector.broadcast %cst_563 : f32 to vector<8x20xf32>
    %842 = arith.mulf %841, %840 : vector<8x20xf32>
    %cst_564 = arith.constant 5.000000e-01 : f32
    %843 = vector.broadcast %cst_564 : f32 to vector<8x20xf32>
    %844 = arith.addf %842, %843 : vector<8x20xf32>
    %845 = vector.extract_strided_slice %836 {offsets = [0, 20], sizes = [8, 20], strides = [1, 1]} : vector<8x80xf32> to vector<8x20xf32>
    %cst_565 = arith.constant 5.000000e-01 : f32
    %846 = vector.broadcast %cst_565 : f32 to vector<8x20xf32>
    %847 = arith.mulf %846, %845 : vector<8x20xf32>
    %848 = math.tanh %847 : vector<8x20xf32>
    %cst_566 = arith.constant 5.000000e-01 : f32
    %849 = vector.broadcast %cst_566 : f32 to vector<8x20xf32>
    %850 = arith.mulf %849, %848 : vector<8x20xf32>
    %cst_567 = arith.constant 5.000000e-01 : f32
    %851 = vector.broadcast %cst_567 : f32 to vector<8x20xf32>
    %852 = arith.addf %850, %851 : vector<8x20xf32>
    %853 = vector.extract_strided_slice %836 {offsets = [0, 40], sizes = [8, 20], strides = [1, 1]} : vector<8x80xf32> to vector<8x20xf32>
    %854 = math.tanh %853 : vector<8x20xf32>
    %855 = vector.extract_strided_slice %836 {offsets = [0, 60], sizes = [8, 20], strides = [1, 1]} : vector<8x80xf32> to vector<8x20xf32>
    %cst_568 = arith.constant 5.000000e-01 : f32
    %856 = vector.broadcast %cst_568 : f32 to vector<8x20xf32>
    %857 = arith.mulf %856, %855 : vector<8x20xf32>
    %858 = math.tanh %857 : vector<8x20xf32>
    %cst_569 = arith.constant 5.000000e-01 : f32
    %859 = vector.broadcast %cst_569 : f32 to vector<8x20xf32>
    %860 = arith.mulf %859, %858 : vector<8x20xf32>
    %cst_570 = arith.constant 5.000000e-01 : f32
    %861 = vector.broadcast %cst_570 : f32 to vector<8x20xf32>
    %862 = arith.addf %860, %861 : vector<8x20xf32>
    %863 = arith.mulf %852, %794 : vector<8x20xf32>
    %864 = arith.mulf %844, %854 : vector<8x20xf32>
    %865 = arith.addf %863, %864 : vector<8x20xf32>
    %866 = math.tanh %865 : vector<8x20xf32>
    %867 = arith.mulf %862, %866 : vector<8x20xf32>
    %c5_571 = arith.constant 5 : index
    %c0_572 = arith.constant 0 : index
    %c0_573 = arith.constant 0 : index
    %868 = vector.load %arg21[%c5_571, %c0_572, %c0_573] : memref<6x8x80xf32, #tpu.memory_space<vmem>>, vector<1x8x80xf32>
    %869 = vector.shape_cast %868 : vector<1x8x80xf32> to vector<8x80xf32>
    %cst_574 = arith.constant dense<0.000000e+00> : vector<8x80xf32>
    %870 = tpu.matmul %831, %505, %cst_574 {dimension_numbers = #tpu.dot_dimension_numbers<[1], [0], [0], [1], [0, 0, 1, 1], [], []>} : vector<8x20xf32>, vector<20x80xf32>, vector<8x80xf32> -> vector<8x80xf32>
    %871 = arith.addf %869, %870 : vector<8x80xf32>
    %872 = vector.extract_strided_slice %871 {offsets = [0, 0], sizes = [8, 20], strides = [1, 1]} : vector<8x80xf32> to vector<8x20xf32>
    %cst_575 = arith.constant 5.000000e-01 : f32
    %873 = vector.broadcast %cst_575 : f32 to vector<8x20xf32>
    %874 = arith.mulf %873, %872 : vector<8x20xf32>
    %875 = math.tanh %874 : vector<8x20xf32>
    %cst_576 = arith.constant 5.000000e-01 : f32
    %876 = vector.broadcast %cst_576 : f32 to vector<8x20xf32>
    %877 = arith.mulf %876, %875 : vector<8x20xf32>
    %cst_577 = arith.constant 5.000000e-01 : f32
    %878 = vector.broadcast %cst_577 : f32 to vector<8x20xf32>
    %879 = arith.addf %877, %878 : vector<8x20xf32>
    %880 = vector.extract_strided_slice %871 {offsets = [0, 20], sizes = [8, 20], strides = [1, 1]} : vector<8x80xf32> to vector<8x20xf32>
    %cst_578 = arith.constant 5.000000e-01 : f32
    %881 = vector.broadcast %cst_578 : f32 to vector<8x20xf32>
    %882 = arith.mulf %881, %880 : vector<8x20xf32>
    %883 = math.tanh %882 : vector<8x20xf32>
    %cst_579 = arith.constant 5.000000e-01 : f32
    %884 = vector.broadcast %cst_579 : f32 to vector<8x20xf32>
    %885 = arith.mulf %884, %883 : vector<8x20xf32>
    %cst_580 = arith.constant 5.000000e-01 : f32
    %886 = vector.broadcast %cst_580 : f32 to vector<8x20xf32>
    %887 = arith.addf %885, %886 : vector<8x20xf32>
    %888 = vector.extract_strided_slice %871 {offsets = [0, 40], sizes = [8, 20], strides = [1, 1]} : vector<8x80xf32> to vector<8x20xf32>
    %889 = math.tanh %888 : vector<8x20xf32>
    %890 = vector.extract_strided_slice %871 {offsets = [0, 60], sizes = [8, 20], strides = [1, 1]} : vector<8x80xf32> to vector<8x20xf32>
    %cst_581 = arith.constant 5.000000e-01 : f32
    %891 = vector.broadcast %cst_581 : f32 to vector<8x20xf32>
    %892 = arith.mulf %891, %890 : vector<8x20xf32>
    %893 = math.tanh %892 : vector<8x20xf32>
    %cst_582 = arith.constant 5.000000e-01 : f32
    %894 = vector.broadcast %cst_582 : f32 to vector<8x20xf32>
    %895 = arith.mulf %894, %893 : vector<8x20xf32>
    %cst_583 = arith.constant 5.000000e-01 : f32
    %896 = vector.broadcast %cst_583 : f32 to vector<8x20xf32>
    %897 = arith.addf %895, %896 : vector<8x20xf32>
    %898 = arith.mulf %887, %829 : vector<8x20xf32>
    %899 = arith.mulf %879, %889 : vector<8x20xf32>
    %900 = arith.addf %898, %899 : vector<8x20xf32>
    %901 = math.tanh %900 : vector<8x20xf32>
    %902 = arith.mulf %897, %901 : vector<8x20xf32>
    %cst_584 = arith.constant dense<0.000000e+00> : vector<8x80xf32>
    %903 = tpu.matmul %902, %506, %cst_584 {dimension_numbers = #tpu.dot_dimension_numbers<[1], [0], [0], [1], [0, 0, 1, 1], [], []>} : vector<8x20xf32>, vector<20x80xf32>, vector<8x80xf32> -> vector<8x80xf32>
    %cst_585 = arith.constant dense<0.000000e+00> : vector<8x80xf32>
    %904 = tpu.matmul %867, %507, %cst_585 {dimension_numbers = #tpu.dot_dimension_numbers<[1], [0], [0], [1], [0, 0, 1, 1], [], []>} : vector<8x20xf32>, vector<20x80xf32>, vector<8x80xf32> -> vector<8x80xf32>
    %905 = arith.addf %903, %904 : vector<8x80xf32>
    %906 = vector.broadcast %508 : vector<1x80xf32> to vector<8x80xf32>
    %907 = arith.addf %905, %906 : vector<8x80xf32>
    %908 = vector.extract_strided_slice %907 {offsets = [0, 0], sizes = [8, 20], strides = [1, 1]} : vector<8x80xf32> to vector<8x20xf32>
    %cst_586 = arith.constant 5.000000e-01 : f32
    %909 = vector.broadcast %cst_586 : f32 to vector<8x20xf32>
    %910 = arith.mulf %909, %908 : vector<8x20xf32>
    %911 = math.tanh %910 : vector<8x20xf32>
    %cst_587 = arith.constant 5.000000e-01 : f32
    %912 = vector.broadcast %cst_587 : f32 to vector<8x20xf32>
    %913 = arith.mulf %912, %911 : vector<8x20xf32>
    %cst_588 = arith.constant 5.000000e-01 : f32
    %914 = vector.broadcast %cst_588 : f32 to vector<8x20xf32>
    %915 = arith.addf %913, %914 : vector<8x20xf32>
    %916 = vector.extract_strided_slice %907 {offsets = [0, 20], sizes = [8, 20], strides = [1, 1]} : vector<8x80xf32> to vector<8x20xf32>
    %cst_589 = arith.constant 5.000000e-01 : f32
    %917 = vector.broadcast %cst_589 : f32 to vector<8x20xf32>
    %918 = arith.mulf %917, %916 : vector<8x20xf32>
    %919 = math.tanh %918 : vector<8x20xf32>
    %cst_590 = arith.constant 5.000000e-01 : f32
    %920 = vector.broadcast %cst_590 : f32 to vector<8x20xf32>
    %921 = arith.mulf %920, %919 : vector<8x20xf32>
    %cst_591 = arith.constant 5.000000e-01 : f32
    %922 = vector.broadcast %cst_591 : f32 to vector<8x20xf32>
    %923 = arith.addf %921, %922 : vector<8x20xf32>
    %924 = vector.extract_strided_slice %907 {offsets = [0, 40], sizes = [8, 20], strides = [1, 1]} : vector<8x80xf32> to vector<8x20xf32>
    %925 = math.tanh %924 : vector<8x20xf32>
    %926 = vector.extract_strided_slice %907 {offsets = [0, 60], sizes = [8, 20], strides = [1, 1]} : vector<8x80xf32> to vector<8x20xf32>
    %cst_592 = arith.constant 5.000000e-01 : f32
    %927 = vector.broadcast %cst_592 : f32 to vector<8x20xf32>
    %928 = arith.mulf %927, %926 : vector<8x20xf32>
    %929 = math.tanh %928 : vector<8x20xf32>
    %cst_593 = arith.constant 5.000000e-01 : f32
    %930 = vector.broadcast %cst_593 : f32 to vector<8x20xf32>
    %931 = arith.mulf %930, %929 : vector<8x20xf32>
    %cst_594 = arith.constant 5.000000e-01 : f32
    %932 = vector.broadcast %cst_594 : f32 to vector<8x20xf32>
    %933 = arith.addf %931, %932 : vector<8x20xf32>
    %934 = arith.mulf %923, %865 : vector<8x20xf32>
    %935 = arith.mulf %915, %925 : vector<8x20xf32>
    %936 = arith.addf %934, %935 : vector<8x20xf32>
    %937 = math.tanh %936 : vector<8x20xf32>
    %938 = arith.mulf %933, %937 : vector<8x20xf32>
    %c0_595 = arith.constant 0 : index
    %c0_596 = arith.constant 0 : index
    %939 = vector.load %arg15[%c0_595, %c0_596] : memref<20x6xf32, #tpu.memory_space<vmem>>, vector<20x6xf32>
    %cst_597 = arith.constant dense<0.000000e+00> : vector<8x6xf32>
    %940 = tpu.matmul %938, %939, %cst_597 {dimension_numbers = #tpu.dot_dimension_numbers<[1], [0], [0], [1], [0, 0, 1, 1], [], []>} : vector<8x20xf32>, vector<20x6xf32>, vector<8x6xf32> -> vector<8x6xf32>
    %c0_598 = arith.constant 0 : index
    %c0_599 = arith.constant 0 : index
    %941 = vector.load %arg16[%c0_598, %c0_599] : memref<1x6xf32, #tpu.memory_space<vmem>>, vector<1x6xf32>
    %942 = vector.broadcast %941 : vector<1x6xf32> to vector<8x6xf32>
    %943 = arith.addf %940, %942 : vector<8x6xf32>
    %c0_600 = arith.constant 0 : index
    %c0_601 = arith.constant 0 : index
    %944 = vector.load %arg17[%c0_600, %c0_601] : memref<8x6xf32, #tpu.memory_space<vmem>>, vector<8x6xf32>
    tpu.vector_store %arg17[%c0_600, %c0_601], %943 {strides = array<i32>} : memref<8x6xf32, #tpu.memory_space<vmem>>, vector<8x6xf32>,
    return
  }
  func.func @transform_0(%arg0: i32) -> (i32, i32, i32) {
    %c0_i32 = arith.constant 0 : i32
    %c0_i32_0 = arith.constant 0 : i32
    %c0_i32_1 = arith.constant 0 : i32
    return %arg0, %c0_i32, %c0_i32_0 : i32, i32, i32
  }
  func.func @transform_1(%arg0: i32) -> (i32, i32) {
    %c0_i32 = arith.constant 0 : i32
    %c0_i32_0 = arith.constant 0 : i32
    %c0_i32_1 = arith.constant 0 : i32
    return %c0_i32, %c0_i32_0 : i32, i32
  }
  func.func @transform_2(%arg0: i32) -> (i32, i32) {
    %c0_i32 = arith.constant 0 : i32
    %c0_i32_0 = arith.constant 0 : i32
    %c0_i32_1 = arith.constant 0 : i32
    return %c0_i32, %c0_i32_0 : i32, i32
  }
  func.func @transform_3(%arg0: i32) -> (i32, i32) {
    %c0_i32 = arith.constant 0 : i32
    %c0_i32_0 = arith.constant 0 : i32
    %c0_i32_1 = arith.constant 0 : i32
    return %c0_i32, %c0_i32_0 : i32, i32
  }
  func.func @transform_4(%arg0: i32) -> (i32, i32) {
    %c0_i32 = arith.constant 0 : i32
    %c0_i32_0 = arith.constant 0 : i32
    %c0_i32_1 = arith.constant 0 : i32
    return %c0_i32, %c0_i32_0 : i32, i32
  }
  func.func @transform_5(%arg0: i32) -> (i32, i32) {
    %c0_i32 = arith.constant 0 : i32
    %c0_i32_0 = arith.constant 0 : i32
    %c0_i32_1 = arith.constant 0 : i32
    return %c0_i32, %c0_i32_0 : i32, i32
  }
  func.func @transform_6(%arg0: i32) -> (i32, i32) {
    %c0_i32 = arith.constant 0 : i32
    %c0_i32_0 = arith.constant 0 : i32
    %c0_i32_1 = arith.constant 0 : i32
    return %c0_i32, %c0_i32_0 : i32, i32
  }
  func.func @transform_7(%arg0: i32) -> (i32, i32) {
    %c0_i32 = arith.constant 0 : i32
    %c0_i32_0 = arith.constant 0 : i32
    %c0_i32_1 = arith.constant 0 : i32
    return %c0_i32, %c0_i32_0 : i32, i32
  }
  func.func @transform_8(%arg0: i32) -> (i32, i32) {
    %c0_i32 = arith.constant 0 : i32
    %c0_i32_0 = arith.constant 0 : i32
    %c0_i32_1 = arith.constant 0 : i32
    return %c0_i32, %c0_i32_0 : i32, i32
  }
  func.func @transform_9(%arg0: i32) -> (i32, i32) {
    %c0_i32 = arith.constant 0 : i32
    %c0_i32_0 = arith.constant 0 : i32
    %c0_i32_1 = arith.constant 0 : i32
    return %c0_i32, %c0_i32_0 : i32, i32
  }
  func.func @transform_10(%arg0: i32) -> (i32, i32) {
    %c0_i32 = arith.constant 0 : i32
    %c0_i32_0 = arith.constant 0 : i32
    %c0_i32_1 = arith.constant 0 : i32
    return %c0_i32, %c0_i32_0 : i32, i32
  }
  func.func @transform_11(%arg0: i32) -> (i32, i32) {
    %c0_i32 = arith.constant 0 : i32
    %c0_i32_0 = arith.constant 0 : i32
    %c0_i32_1 = arith.constant 0 : i32
    return %c0_i32, %c0_i32_0 : i32, i32
  }
  func.func @transform_12(%arg0: i32) -> (i32, i32) {
    %c0_i32 = arith.constant 0 : i32
    %c0_i32_0 = arith.constant 0 : i32
    %c0_i32_1 = arith.constant 0 : i32
    return %c0_i32, %c0_i32_0 : i32, i32
  }
  func.func @transform_13(%arg0: i32) -> (i32, i32) {
    %c0_i32 = arith.constant 0 : i32
    %c0_i32_0 = arith.constant 0 : i32
    %c0_i32_1 = arith.constant 0 : i32
    return %c0_i32, %c0_i32_0 : i32, i32
  }
  func.func @transform_14(%arg0: i32) -> (i32, i32) {
    %c0_i32 = arith.constant 0 : i32
    %c0_i32_0 = arith.constant 0 : i32
    %c0_i32_1 = arith.constant 0 : i32
    return %c0_i32, %c0_i32_0 : i32, i32
  }
  func.func @transform_15(%arg0: i32) -> (i32, i32) {
    %c0_i32 = arith.constant 0 : i32
    %c0_i32_0 = arith.constant 0 : i32
    %c0_i32_1 = arith.constant 0 : i32
    return %c0_i32, %c0_i32_0 : i32, i32
  }
  func.func @transform_16(%arg0: i32) -> (i32, i32) {
    %c0_i32 = arith.constant 0 : i32
    %c0_i32_0 = arith.constant 0 : i32
    return %arg0, %c0_i32 : i32, i32
  }
}

</mosaic_0001>

<llo_original>
// kernel: cnn_lstm_forward.1
$region0: #{cnn_lstm_forward.1}
  #allocation0 [shape = 'u32[]', space=smem, size = 0x4, offset = 0x4, fixed_abs, tag = 'smem constant byte address 0x4 - core index']
  #allocation1 [shape = 'u32[72,128]{1,0:T(1,128)}', space=vmem, size = 0x9000, scoped, tag = 'internal scratch']
  #allocation2 [shape = 'f32[4,3,1064]{2,1,0:T(4,128)}', space=vmem, size = 0x12000, scoped, tag = 'scratch operand']
  #allocation3 [shape = 'f32[2,6,1064]{2,1,0:T(8,128)}', space=vmem, size = 0x12000, scoped, tag = 'scratch operand']
  #allocation4 [shape = 'f32[40,1056]{1,0:T(8,128)}', space=vmem, size = 0x2d000, scoped, tag = 'scratch operand']
  #allocation5 [shape = 'f32[6,8,80]{2,1,0:T(8,128)}', space=vmem, size = 0x6000, scoped, tag = 'scratch operand']
  %s0 = inlined_call_operand.vmem [shape: f32[2,8,1064], index: 0, kind: input, shape index: {}]
  %s1 = inlined_call_operand.vmem [shape: s32[1,1056], index: 1, kind: input, shape index: {}]
  %s2 = inlined_call_operand.vmem [shape: f32[24,27], index: 2, kind: input, shape index: {}]
  %s3 = inlined_call_operand.vmem [shape: f32[3,1], index: 3, kind: input, shape index: {}]
  %s4 = inlined_call_operand.vmem [shape: f32[24,39], index: 4, kind: input, shape index: {}]
  %s5 = inlined_call_operand.vmem [shape: f32[6,1], index: 5, kind: input, shape index: {}]
  %s6 = inlined_call_operand.vmem [shape: f32[12,36], index: 6, kind: input, shape index: {}]
  %s7 = inlined_call_operand.vmem [shape: f32[6,1], index: 7, kind: input, shape index: {}]
  %s8 = inlined_call_operand.vmem [shape: f32[131,80], index: 8, kind: input, shape index: {}]
  %s9 = inlined_call_operand.vmem [shape: f32[20,80], index: 9, kind: input, shape index: {}]
  %s10 = inlined_call_operand.vmem [shape: f32[1,80], index: 10, kind: input, shape index: {}]
  %s11 = inlined_call_operand.vmem [shape: f32[20,80], index: 11, kind: input, shape index: {}]
  %s12 = inlined_call_operand.vmem [shape: f32[20,80], index: 12, kind: input, shape index: {}]
  %s13 = inlined_call_operand.vmem [shape: f32[1,80], index: 13, kind: input, shape index: {}]
  %s14 = inlined_call_operand.vmem [shape: f32[20,6], index: 14, kind: input, shape index: {}]
  %s15 = inlined_call_operand.vmem [shape: f32[1,6], index: 15, kind: input, shape index: {}]
  %s16 = inlined_call_operand.vmem [shape: f32[16,6], index: 16, kind: output, shape index: {}]
  %s17 = sld [smem:[#allocation0]]
  $region97: #{cnn_lstm_forward.1} parent=0
    _
  %s19 = ssub.s32 1, %s17
  %s20 = scalar_select 0, %s19, %s17
  loop: start=0, step=1, limit=4
  $region2: #{cnn_lstm_forward.1} parent=0 // loop_pre_header
    _
  $region3: #{cnn_lstm_forward.1} parent=0 // loop_header
    %s22 = sphi 0, %s26
    %p23 = scmp.ge.s32.totalorder %s22, 4
    %s32 = sphi 0, %s34
    %s35 = sphi 0, %s32
    %s36 = sphi 0, %s35
    %s52 = sphi 0, %s36
    %s56 = sphi 0, %s56
    %s58 = sphi 0, %s56
    %s59 = sphi 0, %s58
    %s73 = sphi 0, %s59
    %s77 = sphi 0, %s77
    %s79 = sphi 0, %s77
    %s80 = sphi 0, %s79
    %s94 = sphi 0, %s80
    %s98 = sphi 0, %s98
    %s100 = sphi 0, %s98
    %s101 = sphi 0, %s100
    %s115 = sphi 0, %s101
    %s119 = sphi 0, %s119
    %s121 = sphi 0, %s119
    %s122 = sphi 0, %s121
    %s136 = sphi 0, %s122
    %s140 = sphi 0, %s140
    %s142 = sphi 0, %s140
    %s143 = sphi 0, %s142
    %s157 = sphi 0, %s143
    %s161 = sphi 0, %s161
    %s163 = sphi 0, %s161
    %s164 = sphi 0, %s163
    %s178 = sphi 0, %s164
    %s182 = sphi 0, %s182
    %s184 = sphi 0, %s182
    %s185 = sphi 0, %s184
    %s199 = sphi 0, %s185
    %s203 = sphi 0, %s203
    %s205 = sphi 0, %s203
    %s206 = sphi 0, %s205
    %s220 = sphi 0, %s206
    %s224 = sphi 0, %s224
    %s226 = sphi 0, %s224
    %s227 = sphi 0, %s226
    %s241 = sphi 0, %s227
    %s245 = sphi 0, %s245
    %s247 = sphi 0, %s245
    %s248 = sphi 0, %s247
    %s262 = sphi 0, %s248
    %s266 = sphi 0, %s266
    %s268 = sphi 0, %s266
    %s269 = sphi 0, %s268
    %s283 = sphi 0, %s269
    %s287 = sphi 0, %s287
    %s289 = sphi 0, %s287
    %s290 = sphi 0, %s289
    %s304 = sphi 0, %s290
    %s308 = sphi 0, %s308
    %s310 = sphi 0, %s308
    %s311 = sphi 0, %s310
    %s325 = sphi 0, %s311
    %s329 = sphi 0, %s329
    %s331 = sphi 0, %s329
    %s332 = sphi 0, %s331
    %s346 = sphi 0, %s332
    %s350 = sphi 0, %s350
    %s352 = sphi 0, %s350
    %s353 = sphi 0, %s352
    %s367 = sphi 0, %s353
    %s373 = sphi 0, %s375
    %s376 = sphi 0, %s373
    %s377 = sphi 0, %s376
    %s393 = sphi 0, %s377
  $region4: #{cnn_lstm_forward.1} parent=0 // loop_header_branch
    %25 = sbr.rel (%p23) target = $region8
  $region5: #{cnn_lstm_forward.1} parent=0 // loop_body
    %s27 = ssub.s32 %s22, 1
    %s28 = ssub.s32 %s22, 2
    %s29 = sadd.s32 %s22, 1
    %s30 = ssub.s32 %s22, %s29
    %p31 = scmp.eq.s32.totalorder %s30, 0
    %s33 = sadd.s32 %s32, 1
    %s34 = scalar_select %p31, %s32, %s33
    %p37 = pneg %p31
    %p38 = scmp.eq.s32.totalorder %s22, 1
    %p39 = por %p37, %p38
    %p40 = scmp.ne.s32.totalorder %s32, %s35
    %p41 = scmp.eq.s32.totalorder %s22, 0
    %p42 = por %p40, %p41
    %p43 = scmp.ne.s32.totalorder %s32, %s35
    %p44 = scmp.eq.s32.totalorder %s27, 1
    %p45 = por %p43, %p44
    %p46 = scmp.ne.s32.totalorder %s35, %s36
    %p47 = scmp.eq.s32.totalorder %s27, 0
    %p48 = por %p46, %p47
    %p49 = scmp.ne.s32.totalorder %s35, %s36
    %p50 = scmp.eq.s32.totalorder %s28, 1
    %p51 = por %p49, %p50
    %p53 = scmp.ne.s32.totalorder %s36, %s52
    %p54 = scmp.eq.s32.totalorder %s28, 0
    %p55 = por %p53, %p54
    %s57 = sadd.s32 %s56, 1
    %p60 = scmp.eq.s32.totalorder %s22, 1
    %p61 = scmp.ne.s32.totalorder %s56, %s58
    %p62 = scmp.eq.s32.totalorder %s22, 0
    %p63 = por %p61, %p62
    %p64 = scmp.ne.s32.totalorder %s56, %s58
    %p65 = scmp.eq.s32.totalorder %s27, 1
    %p66 = por %p64, %p65
    %p67 = scmp.ne.s32.totalorder %s58, %s59
    %p68 = scmp.eq.s32.totalorder %s27, 0
    %p69 = por %p67, %p68
    %p70 = scmp.ne.s32.totalorder %s58, %s59
    %p71 = scmp.eq.s32.totalorder %s28, 1
    %p72 = por %p70, %p71
    %p74 = scmp.ne.s32.totalorder %s59, %s73
    %p75 = scmp.eq.s32.totalorder %s28, 0
    %p76 = por %p74, %p75
    %s78 = sadd.s32 %s77, 1
    %p81 = scmp.eq.s32.totalorder %s22, 1
    %p82 = scmp.ne.s32.totalorder %s77, %s79
    %p83 = scmp.eq.s32.totalorder %s22, 0
    %p84 = por %p82, %p83
    %p85 = scmp.ne.s32.totalorder %s77, %s79
    %p86 = scmp.eq.s32.totalorder %s27, 1
    %p87 = por %p85, %p86
    %p88 = scmp.ne.s32.totalorder %s79, %s80
    %p89 = scmp.eq.s32.totalorder %s27, 0
    %p90 = por %p88, %p89
    %p91 = scmp.ne.s32.totalorder %s79, %s80
    %p92 = scmp.eq.s32.totalorder %s28, 1
    %p93 = por %p91, %p92
    %p95 = scmp.ne.s32.totalorder %s80, %s94
    %p96 = scmp.eq.s32.totalorder %s28, 0
    %p97 = por %p95, %p96
    %s99 = sadd.s32 %s98, 1
    %p102 = scmp.eq.s32.totalorder %s22, 1
    %p103 = scmp.ne.s32.totalorder %s98, %s100
    %p104 = scmp.eq.s32.totalorder %s22, 0
    %p105 = por %p103, %p104
    %p106 = scmp.ne.s32.totalorder %s98, %s100
    %p107 = scmp.eq.s32.totalorder %s27, 1
    %p108 = por %p106, %p107
    %p109 = scmp.ne.s32.totalorder %s100, %s101
    %p110 = scmp.eq.s32.totalorder %s27, 0
    %p111 = por %p109, %p110
    %p112 = scmp.ne.s32.totalorder %s100, %s101
    %p113 = scmp.eq.s32.totalorder %s28, 1
    %p114 = por %p112, %p113
    %p116 = scmp.ne.s32.totalorder %s101, %s115
    %p117 = scmp.eq.s32.totalorder %s28, 0
    %p118 = por %p116, %p117
    %s120 = sadd.s32 %s119, 1
    %p123 = scmp.eq.s32.totalorder %s22, 1
    %p124 = scmp.ne.s32.totalorder %s119, %s121
    %p125 = scmp.eq.s32.totalorder %s22, 0
    %p126 = por %p124, %p125
    %p127 = scmp.ne.s32.totalorder %s119, %s121
    %p128 = scmp.eq.s32.totalorder %s27, 1
    %p129 = por %p127, %p128
    %p130 = scmp.ne.s32.totalorder %s121, %s122
    %p131 = scmp.eq.s32.totalorder %s27, 0
    %p132 = por %p130, %p131
    %p133 = scmp.ne.s32.totalorder %s121, %s122
    %p134 = scmp.eq.s32.totalorder %s28, 1
    %p135 = por %p133, %p134
    %p137 = scmp.ne.s32.totalorder %s122, %s136
    %p138 = scmp.eq.s32.totalorder %s28, 0
    %p139 = por %p137, %p138
    %s141 = sadd.s32 %s140, 1
    %p144 = scmp.eq.s32.totalorder %s22, 1
    %p145 = scmp.ne.s32.totalorder %s140, %s142
    %p146 = scmp.eq.s32.totalorder %s22, 0
    %p147 = por %p145, %p146
    %p148 = scmp.ne.s32.totalorder %s140, %s142
    %p149 = scmp.eq.s32.totalorder %s27, 1
    %p150 = por %p148, %p149
    %p151 = scmp.ne.s32.totalorder %s142, %s143
    %p152 = scmp.eq.s32.totalorder %s27, 0
    %p153 = por %p151, %p152
    %p154 = scmp.ne.s32.totalorder %s142, %s143
    %p155 = scmp.eq.s32.totalorder %s28, 1
    %p156 = por %p154, %p155
    %p158 = scmp.ne.s32.totalorder %s143, %s157
    %p159 = scmp.eq.s32.totalorder %s28, 0
    %p160 = por %p158, %p159
    %s162 = sadd.s32 %s161, 1
    %p165 = scmp.eq.s32.totalorder %s22, 1
    %p166 = scmp.ne.s32.totalorder %s161, %s163
    %p167 = scmp.eq.s32.totalorder %s22, 0
    %p168 = por %p166, %p167
    %p169 = scmp.ne.s32.totalorder %s161, %s163
    %p170 = scmp.eq.s32.totalorder %s27, 1
    %p171 = por %p169, %p170
    %p172 = scmp.ne.s32.totalorder %s163, %s164
    %p173 = scmp.eq.s32.totalorder %s27, 0
    %p174 = por %p172, %p173
    %p175 = scmp.ne.s32.totalorder %s163, %s164
    %p176 = scmp.eq.s32.totalorder %s28, 1
    %p177 = por %p175, %p176
    %p179 = scmp.ne.s32.totalorder %s164, %s178
    %p180 = scmp.eq.s32.totalorder %s28, 0
    %p181 = por %p179, %p180
    %s183 = sadd.s32 %s182, 1
    %p186 = scmp.eq.s32.totalorder %s22, 1
    %p187 = scmp.ne.s32.totalorder %s182, %s184
    %p188 = scmp.eq.s32.totalorder %s22, 0
    %p189 = por %p187, %p188
    %p190 = scmp.ne.s32.totalorder %s182, %s184
    %p191 = scmp.eq.s32.totalorder %s27, 1
    %p192 = por %p190, %p191
    %p193 = scmp.ne.s32.totalorder %s184, %s185
    %p194 = scmp.eq.s32.totalorder %s27, 0
    %p195 = por %p193, %p194
    %p196 = scmp.ne.s32.totalorder %s184, %s185
    %p197 = scmp.eq.s32.totalorder %s28, 1
    %p198 = por %p196, %p197
    %p200 = scmp.ne.s32.totalorder %s185, %s199
    %p201 = scmp.eq.s32.totalorder %s28, 0
    %p202 = por %p200, %p201
    %s204 = sadd.s32 %s203, 1
    %p207 = scmp.eq.s32.totalorder %s22, 1
    %p208 = scmp.ne.s32.totalorder %s203, %s205
    %p209 = scmp.eq.s32.totalorder %s22, 0
    %p210 = por %p208, %p209
    %p211 = scmp.ne.s32.totalorder %s203, %s205
    %p212 = scmp.eq.s32.totalorder %s27, 1
    %p213 = por %p211, %p212
    %p214 = scmp.ne.s32.totalorder %s205, %s206
    %p215 = scmp.eq.s32.totalorder %s27, 0
    %p216 = por %p214, %p215
    %p217 = scmp.ne.s32.totalorder %s205, %s206
    %p218 = scmp.eq.s32.totalorder %s28, 1
    %p219 = por %p217, %p218
    %p221 = scmp.ne.s32.totalorder %s206, %s220
    %p222 = scmp.eq.s32.totalorder %s28, 0
    %p223 = por %p221, %p222
    %s225 = sadd.s32 %s224, 1
    %p228 = scmp.eq.s32.totalorder %s22, 1
    %p229 = scmp.ne.s32.totalorder %s224, %s226
    %p230 = scmp.eq.s32.totalorder %s22, 0
    %p231 = por %p229, %p230
    %p232 = scmp.ne.s32.totalorder %s224, %s226
    %p233 = scmp.eq.s32.totalorder %s27, 1
    %p234 = por %p232, %p233
    %p235 = scmp.ne.s32.totalorder %s226, %s227
    %p236 = scmp.eq.s32.totalorder %s27, 0
    %p237 = por %p235, %p236
    %p238 = scmp.ne.s32.totalorder %s226, %s227
    %p239 = scmp.eq.s32.totalorder %s28, 1
    %p240 = por %p238, %p239
    %p242 = scmp.ne.s32.totalorder %s227, %s241
    %p243 = scmp.eq.s32.totalorder %s28, 0
    %p244 = por %p242, %p243
    %s246 = sadd.s32 %s245, 1
    %p249 = scmp.eq.s32.totalorder %s22, 1
    %p250 = scmp.ne.s32.totalorder %s245, %s247
    %p251 = scmp.eq.s32.totalorder %s22, 0
    %p252 = por %p250, %p251
    %p253 = scmp.ne.s32.totalorder %s245, %s247
    %p254 = scmp.eq.s32.totalorder %s27, 1
    %p255 = por %p253, %p254
    %p256 = scmp.ne.s32.totalorder %s247, %s248
    %p257 = scmp.eq.s32.totalorder %s27, 0
    %p258 = por %p256, %p257
    %p259 = scmp.ne.s32.totalorder %s247, %s248
    %p260 = scmp.eq.s32.totalorder %s28, 1
    %p261 = por %p259, %p260
    %p263 = scmp.ne.s32.totalorder %s248, %s262
    %p264 = scmp.eq.s32.totalorder %s28, 0
    %p265 = por %p263, %p264
    %s267 = sadd.s32 %s266, 1
    %p270 = scmp.eq.s32.totalorder %s22, 1
    %p271 = scmp.ne.s32.totalorder %s266, %s268
    %p272 = scmp.eq.s32.totalorder %s22, 0
    %p273 = por %p271, %p272
    %p274 = scmp.ne.s32.totalorder %s266, %s268
    %p275 = scmp.eq.s32.totalorder %s27, 1
    %p276 = por %p274, %p275
    %p277 = scmp.ne.s32.totalorder %s268, %s269
    %p278 = scmp.eq.s32.totalorder %s27, 0
    %p279 = por %p277, %p278
    %p280 = scmp.ne.s32.totalorder %s268, %s269
    %p281 = scmp.eq.s32.totalorder %s28, 1
    %p282 = por %p280, %p281
    %p284 = scmp.ne.s32.totalorder %s269, %s283
    %p285 = scmp.eq.s32.totalorder %s28, 0
    %p286 = por %p284, %p285
    %s288 = sadd.s32 %s287, 1
    %p291 = scmp.eq.s32.totalorder %s22, 1
    %p292 = scmp.ne.s32.totalorder %s287, %s289
    %p293 = scmp.eq.s32.totalorder %s22, 0
    %p294 = por %p292, %p293
    %p295 = scmp.ne.s32.totalorder %s287, %s289
    %p296 = scmp.eq.s32.totalorder %s27, 1
    %p297 = por %p295, %p296
    %p298 = scmp.ne.s32.totalorder %s289, %s290
    %p299 = scmp.eq.s32.totalorder %s27, 0
    %p300 = por %p298, %p299
    %p301 = scmp.ne.s32.totalorder %s289, %s290
    %p302 = scmp.eq.s32.totalorder %s28, 1
    %p303 = por %p301, %p302
    %p305 = scmp.ne.s32.totalorder %s290, %s304
    %p306 = scmp.eq.s32.totalorder %s28, 0
    %p307 = por %p305, %p306
    %s309 = sadd.s32 %s308, 1
    %p312 = scmp.eq.s32.totalorder %s22, 1
    %p313 = scmp.ne.s32.totalorder %s308, %s310
    %p314 = scmp.eq.s32.totalorder %s22, 0
    %p315 = por %p313, %p314
    %p316 = scmp.ne.s32.totalorder %s308, %s310
    %p317 = scmp.eq.s32.totalorder %s27, 1
    %p318 = por %p316, %p317
    %p319 = scmp.ne.s32.totalorder %s310, %s311
    %p320 = scmp.eq.s32.totalorder %s27, 0
    %p321 = por %p319, %p320
    %p322 = scmp.ne.s32.totalorder %s310, %s311
    %p323 = scmp.eq.s32.totalorder %s28, 1
    %p324 = por %p322, %p323
    %p326 = scmp.ne.s32.totalorder %s311, %s325
    %p327 = scmp.eq.s32.totalorder %s28, 0
    %p328 = por %p326, %p327
    %s330 = sadd.s32 %s329, 1
    %p333 = scmp.eq.s32.totalorder %s22, 1
    %p334 = scmp.ne.s32.totalorder %s329, %s331
    %p335 = scmp.eq.s32.totalorder %s22, 0
    %p336 = por %p334, %p335
    %p337 = scmp.ne.s32.totalorder %s329, %s331
    %p338 = scmp.eq.s32.totalorder %s27, 1
    %p339 = por %p337, %p338
    %p340 = scmp.ne.s32.totalorder %s331, %s332
    %p341 = scmp.eq.s32.totalorder %s27, 0
    %p342 = por %p340, %p341
    %p343 = scmp.ne.s32.totalorder %s331, %s332
    %p344 = scmp.eq.s32.totalorder %s28, 1
    %p345 = por %p343, %p344
    %p347 = scmp.ne.s32.totalorder %s332, %s346
    %p348 = scmp.eq.s32.totalorder %s28, 0
    %p349 = por %p347, %p348
    %s351 = sadd.s32 %s350, 1
    %p354 = scmp.eq.s32.totalorder %s22, 1
    %p355 = scmp.ne.s32.totalorder %s350, %s352
    %p356 = scmp.eq.s32.totalorder %s22, 0
    %p357 = por %p355, %p356
    %p358 = scmp.ne.s32.totalorder %s350, %s352
    %p359 = scmp.eq.s32.totalorder %s27, 1
    %p360 = por %p358, %p359
    %p361 = scmp.ne.s32.totalorder %s352, %s353
    %p362 = scmp.eq.s32.totalorder %s27, 0
    %p363 = por %p361, %p362
    %p364 = scmp.ne.s32.totalorder %s352, %s353
    %p365 = scmp.eq.s32.totalorder %s28, 1
    %p366 = por %p364, %p365
    %p368 = scmp.ne.s32.totalorder %s353, %s367
    %p369 = scmp.eq.s32.totalorder %s28, 0
    %p370 = por %p368, %p369
    %s371 = ssub.s32 %s22, %s29
    %p372 = scmp.eq.s32.totalorder %s371, 0
    %s374 = sadd.s32 %s373, 1
    %s375 = scalar_select %p372, %s373, %s374
    %p378 = pneg %p372
    %p379 = scmp.eq.s32.totalorder %s22, 1
    %p380 = por %p378, %p379
    %p381 = scmp.ne.s32.totalorder %s373, %s376
    %p382 = scmp.eq.s32.totalorder %s22, 0
    %p383 = por %p381, %p382
    %p384 = scmp.ne.s32.totalorder %s373, %s376
    %p385 = scmp.eq.s32.totalorder %s27, 1
    %p386 = por %p384, %p385
    %p387 = scmp.ne.s32.totalorder %s376, %s377
    %p388 = scmp.eq.s32.totalorder %s27, 0
    %p389 = por %p387, %p388
    %p390 = scmp.ne.s32.totalorder %s376, %s377
    %p391 = scmp.eq.s32.totalorder %s28, 1
    %p392 = por %p390, %p391
    %p394 = scmp.ne.s32.totalorder %s377, %s393
    %p395 = scmp.eq.s32.totalorder %s28, 0
    %p396 = por %p394, %p395
    %p397 = scmp.le.s32.totalorder 1, %s22
    %p398 = scmp.lt.s32.totalorder %s22, 3
    %p399 = pnand %p397, %p398
    %p400 = pneg %p399
    // Predicated region
    $region9: #{cnn_lstm_forward.1} parent=5 // pred_check
      _
    $region10: #{cnn_lstm_forward.1} parent=5 // pred_check_branch
      %402 = sbr.rel (%p399) target = $region12
    $region11: #{cnn_lstm_forward.1} parent=5 // pred_region
      %s403 = ssub.s32 %s22, 1
      // Predicated region
      $region13: #{cnn_lstm_forward.1} parent=11 // pred_check
        %p404 = pneg %p69
      $region14: #{cnn_lstm_forward.1} parent=11 // pred_check_branch
        %406 = sbr.rel (%p404) target = $region16
      $region15: #{cnn_lstm_forward.1} parent=11 // pred_region
        _
      $region16: #{cnn_lstm_forward.1} parent=11 // pred_fallthru
        _
      // Predicated region
      $region17: #{cnn_lstm_forward.1} parent=11 // pred_check
        %p407 = pneg %p90
      $region18: #{cnn_lstm_forward.1} parent=11 // pred_check_branch
        %409 = sbr.rel (%p407) target = $region20
      $region19: #{cnn_lstm_forward.1} parent=11 // pred_region
        _
      $region20: #{cnn_lstm_forward.1} parent=11 // pred_fallthru
        _
      // Predicated region
      $region21: #{cnn_lstm_forward.1} parent=11 // pred_check
        %p410 = pneg %p111
      $region22: #{cnn_lstm_forward.1} parent=11 // pred_check_branch
        %412 = sbr.rel (%p410) target = $region24
      $region23: #{cnn_lstm_forward.1} parent=11 // pred_region
        _
      $region24: #{cnn_lstm_forward.1} parent=11 // pred_fallthru
        _
      // Predicated region
      $region25: #{cnn_lstm_forward.1} parent=11 // pred_check
        %p413 = pneg %p132
      $region26: #{cnn_lstm_forward.1} parent=11 // pred_check_branch
        %415 = sbr.rel (%p413) target = $region28
      $region27: #{cnn_lstm_forward.1} parent=11 // pred_region
        _
      $region28: #{cnn_lstm_forward.1} parent=11 // pred_fallthru
        _
      // Predicated region
      $region29: #{cnn_lstm_forward.1} parent=11 // pred_check
        %p416 = pneg %p153
      $region30: #{cnn_lstm_forward.1} parent=11 // pred_check_branch
        %418 = sbr.rel (%p416) target = $region32
      $region31: #{cnn_lstm_forward.1} parent=11 // pred_region
        _
      $region32: #{cnn_lstm_forward.1} parent=11 // pred_fallthru
        _
      // Predicated region
      $region33: #{cnn_lstm_forward.1} parent=11 // pred_check
        %p419 = pneg %p174
      $region34: #{cnn_lstm_forward.1} parent=11 // pred_check_branch
        %421 = sbr.rel (%p419) target = $region36
      $region35: #{cnn_lstm_forward.1} parent=11 // pred_region
        _
      $region36: #{cnn_lstm_forward.1} parent=11 // pred_fallthru
        _
      // Predicated region
      $region37: #{cnn_lstm_forward.1} parent=11 // pred_check
        %p422 = pneg %p195
      $region38: #{cnn_lstm_forward.1} parent=11 // pred_check_branch
        %424 = sbr.rel (%p422) target = $region40
      $region39: #{cnn_lstm_forward.1} parent=11 // pred_region
        _
      $region40: #{cnn_lstm_forward.1} parent=11 // pred_fallthru
        _
      // Predicated region
      $region41: #{cnn_lstm_forward.1} parent=11 // pred_check
        %p425 = pneg %p216
      $region42: #{cnn_lstm_forward.1} parent=11 // pred_check_branch
        %427 = sbr.rel (%p425) target = $region44
      $region43: #{cnn_lstm_forward.1} parent=11 // pred_region
        _
      $region44: #{cnn_lstm_forward.1} parent=11 // pred_fallthru
        _
      // Predicated region
      $region45: #{cnn_lstm_forward.1} parent=11 // pred_check
        %p428 = pneg %p237
      $region46: #{cnn_lstm_forward.1} parent=11 // pred_check_branch
        %430 = sbr.rel (%p428) target = $region48
      $region47: #{cnn_lstm_forward.1} parent=11 // pred_region
        _
      $region48: #{cnn_lstm_forward.1} parent=11 // pred_fallthru
        _
      // Predicated region
      $region49: #{cnn_lstm_forward.1} parent=11 // pred_check
        %p431 = pneg %p258
      $region50: #{cnn_lstm_forward.1} parent=11 // pred_check_branch
        %433 = sbr.rel (%p431) target = $region52
      $region51: #{cnn_lstm_forward.1} parent=11 // pred_region
        _
      $region52: #{cnn_lstm_forward.1} parent=11 // pred_fallthru
        _
      // Predicated region
      $region53: #{cnn_lstm_forward.1} parent=11 // pred_check
        %p434 = pneg %p279
      $region54: #{cnn_lstm_forward.1} parent=11 // pred_check_branch
        %436 = sbr.rel (%p434) target = $region56
      $region55: #{cnn_lstm_forward.1} parent=11 // pred_region
        _
      $region56: #{cnn_lstm_forward.1} parent=11 // pred_fallthru
        _
      // Predicated region
      $region57: #{cnn_lstm_forward.1} parent=11 // pred_check
        %p437 = pneg %p300
      $region58: #{cnn_lstm_forward.1} parent=11 // pred_check_branch
        %439 = sbr.rel (%p437) target = $region60
      $region59: #{cnn_lstm_forward.1} parent=11 // pred_region
        _
      $region60: #{cnn_lstm_forward.1} parent=11 // pred_fallthru
        _
      // Predicated region
      $region61: #{cnn_lstm_forward.1} parent=11 // pred_check
        %p440 = pneg %p321
      $region62: #{cnn_lstm_forward.1} parent=11 // pred_check_branch
        %442 = sbr.rel (%p440) target = $region64
      $region63: #{cnn_lstm_forward.1} parent=11 // pred_region
        _
      $region64: #{cnn_lstm_forward.1} parent=11 // pred_fallthru
        _
      // Predicated region
      $region65: #{cnn_lstm_forward.1} parent=11 // pred_check
        %p443 = pneg %p342
      $region66: #{cnn_lstm_forward.1} parent=11 // pred_check_branch
        %445 = sbr.rel (%p443) target = $region68
      $region67: #{cnn_lstm_forward.1} parent=11 // pred_region
        _
      $region68: #{cnn_lstm_forward.1} parent=11 // pred_fallthru
        _
      // Predicated region
      $region69: #{cnn_lstm_forward.1} parent=11 // pred_check
        %p446 = pneg %p363
      $region70: #{cnn_lstm_forward.1} parent=11 // pred_check_branch
        %448 = sbr.rel (%p446) target = $region72
      $region71: #{cnn_lstm_forward.1} parent=11 // pred_region
        _
      $region72: #{cnn_lstm_forward.1} parent=11 // pred_fallthru
        _
    $region12: #{cnn_lstm_forward.1} parent=5 // pred_fallthru
      _
    %p449 = scmp.lt.s32.totalorder %s22, 2
    // Predicated region
    $region73: #{cnn_lstm_forward.1} parent=5 // pred_check
      %p450 = pneg %p449
    $region74: #{cnn_lstm_forward.1} parent=5 // pred_check_branch
      %452 = sbr.rel (%p450) target = $region76
    $region75: #{cnn_lstm_forward.1} parent=5 // pred_region
      // Predicated region
      $region77: #{cnn_lstm_forward.1} parent=75 // pred_check
        %p453 = pneg %p42
      $region78: #{cnn_lstm_forward.1} parent=75 // pred_check_branch
        %455 = sbr.rel (%p453) target = $region80
      $region79: #{cnn_lstm_forward.1} parent=75 // pred_region
        %p456 = scmp.lt.s32.totalorder %s22, 1
        %s457 = scalar_select %p456, %s22, 1
        %s458 = smul.addr %s457, 9
        %s459 = smul.addr %s458, 8
        %s460 = scalar_lea.vmem %s0, %s459
      $region80: #{cnn_lstm_forward.1} parent=75 // pred_fallthru
        _
    $region76: #{cnn_lstm_forward.1} parent=5 // pred_fallthru
      _
    %p461 = scmp.le.s32.totalorder 1, %s22
    %p462 = scmp.lt.s32.totalorder %s22, 3
    %p463 = pnand %p461, %p462
    %p464 = pneg %p463
    // Predicated region
    $region81: #{cnn_lstm_forward.1} parent=5 // pred_check
      _
    $region82: #{cnn_lstm_forward.1} parent=5 // pred_check_branch
      %466 = sbr.rel (%p463) target = $region84
    $region83: #{cnn_lstm_forward.1} parent=5 // pred_region
      %s467 = ssub.s32 %s22, 1
      %p468 = scmp.lt.s32.totalorder %s27, 1
      %s469 = scalar_select %p468, %s27, 1
      %s470 = smul.addr %s469, 9
      %s471 = smul.addr %s470, 8
      %s472 = scalar_lea.vmem %s0, %s471
      %p473 = pneg %p48
      %p474 = pneg %p45
      %p475 = pneg %p69
      %p476 = pneg %p66
      %p477 = pneg %p90
      %p478 = pneg %p87
      %p479 = pneg %p111
      %p480 = pneg %p108
      %p481 = pneg %p132
      %p482 = pneg %p129
      %p483 = pneg %p153
      %p484 = pneg %p150
      %p485 = pneg %p174
      %p486 = pneg %p171
      %p487 = pneg %p195
      %p488 = pneg %p192
      %p489 = pneg %p216
      %p490 = pneg %p213
      %p491 = pneg %p237
      %p492 = pneg %p234
      %p493 = pneg %p258
      %p494 = pneg %p255
      %p495 = pneg %p279
      %p496 = pneg %p276
      %p497 = pneg %p300
      %p498 = pneg %p297
      %p499 = pneg %p321
      %p500 = pneg %p318
      %p501 = pneg %p342
      %p502 = pneg %p339
      %p503 = pneg %p363
      %p504 = pneg %p360
      %p505 = pneg %p389
      %p506 = pneg %p386
      %p507 = scmp.lt.s32.totalorder %s27, 1
      %s508 = scalar_select %p507, %s27, 1
      %s509 = smul.addr %s508, 8
      %s510 = scalar_lea.vmem %s16, %s509
      %p511 = scmp.lt.s32.totalorder %s27, 1
      %s512 = scalar_select %p511, %s27, 1
      %s513 = smul.addr %s512, 9
      %s514 = smul.addr %s513, 8
      %s515 = scalar_lea.vmem %s0, %s514
      %p516 = scmp.lt.s32.totalorder %s27, 1
      %s517 = scalar_select %p516, %s27, 1
      %s518 = smul.addr %s517, 8
      %s519 = scalar_lea.vmem %s16, %s518
      %v520 = vld [vmem:[%s1] sm:$0xff]
      %v521 = vld [vmem:[%s1 + $0x8] sm:$0x1]
      %v522 = vld [vmem:[%s2] sm:$0xff]
      %v523 = vld [vmem:[%s2 + $0x8] sm:$0xff]
      %v524 = vld [vmem:[%s2 + $0x10] sm:$0xff]
      %v525 = vld [vmem:[%s3] sm:$0x7]
      %s526 = scalar_lea.vmem %s515, 5
      %v527 = vld [vmem:[%s526] ss:$8 sm:$0xf]
      %v528 = vld [vmem:[%s526] ss:$8 sm:$0xf0]
      %v529 = vor.u32 %v527, %v528
      %s530 = scalar_lea.vmem %s515, 69
      %v531 = vld [vmem:[%s530] ss:$8 sm:$0x1]
      %532 = vst [vmem:[#allocation4] ss:$8 sm:$0xf] %v529
      %533 = vst [vmem:[#allocation4] ss:$8 sm:$0xf0] %v529
      %v534 = vlaneseq
      %vm535 = vcmp.ge.s32.totalorder %v534, 0
      %vm536 = vcmp.lt.s32.totalorder %v534, 32
      %vm537 = vmand %vm535, %vm536
      %s538 = scalar_lea.vmem [#allocation4], 64
      %539 = vst.msk [vmem:[%s538] ss:$8 sm:$0x1] %vm537, %v531
      %540 = vst.msk [vmem:[%s538] ss:$8 sm:$0x0] %vm537, %v531
      %s541 = scalar_lea.vmem %s515, 6
      %v542 = vld [vmem:[%s541] ss:$8 sm:$0xf]
      %v543 = vld [vmem:[%s541] ss:$8 sm:$0xf0]
      %v544 = vor.u32 %v542, %v543
      %s545 = scalar_lea.vmem %s515, 70
      %v546 = vld [vmem:[%s545] ss:$8 sm:$0x1]
      %s547 = scalar_lea.vmem [#allocation4], 1
      %548 = vst [vmem:[%s547] ss:$8 sm:$0xf] %v544
      %549 = vst [vmem:[%s547] ss:$8 sm:$0xf0] %v544
      %s550 = scalar_lea.vmem [#allocation4], 65
      %551 = vst.msk [vmem:[%s550] ss:$8 sm:$0x1] %vm537, %v546
      %552 = vst.msk [vmem:[%s550] ss:$8 sm:$0x0] %vm537, %v546
      %s553 = scalar_lea.vmem %s515, 7
      %v554 = vld [vmem:[%s553] ss:$8 sm:$0xf]
      %v555 = vld [vmem:[%s553] ss:$8 sm:$0xf0]
      %v556 = vor.u32 %v554, %v555
      %s557 = scalar_lea.vmem %s515, 71
      %v558 = vld [vmem:[%s557] ss:$8 sm:$0x1]
      %s559 = scalar_lea.vmem [#allocation4], 2
      %560 = vst [vmem:[%s559] ss:$8 sm:$0xf] %v556
      %561 = vst [vmem:[%s559] ss:$8 sm:$0xf0] %v556
      %s562 = scalar_lea.vmem [#allocation4], 66
      %563 = vst.msk [vmem:[%s562] ss:$8 sm:$0x1] %vm537, %v558
      %564 = vst.msk [vmem:[%s562] ss:$8 sm:$0x0] %vm537, %v558
      %v565 = vld [vmem:[%s515] ss:$8 sm:$0xf]
      %v566 = vld [vmem:[%s515] ss:$8 sm:$0xf0]
      %v567 = vor.u32 %v565, %v566
      %s568 = scalar_lea.vmem %s515, 64
      %v569 = vld [vmem:[%s568] ss:$8 sm:$0x1]
      %572 = vrot.lane.b32.xlu0 %v567, 127
      %v573 = vpop.permute.xlu0 %572
      %574 = vrot.lane.b32.xlu0 %v569, 127
      %v575 = vpop.permute.xlu0 %574
      %v576 = vrot.slane %v573, 1
      %v577 = vrot.slane %v575, 1
      %vm578 = vcmask 1046528
      %v579 = vsel %vm578, %v576, %v577
      %vm580 = vcmask 1039360
      %v581 = vsel %vm580, %v573, %v579
      %s584 = scalar_lea.vmem [#allocation4], 3
      %585 = vst [vmem:[%s584] ss:$8 sm:$0xf] %v581
      %586 = vst [vmem:[%s584] ss:$8 sm:$0xf0] %v581
      %s587 = scalar_lea.vmem [#allocation4], 67
      %588 = vst.msk [vmem:[%s587] ss:$8 sm:$0x1] %vm537, %v575
      %589 = vst.msk [vmem:[%s587] ss:$8 sm:$0x0] %vm537, %v575
      %s590 = scalar_lea.vmem %s515, 1
      %v591 = vld [vmem:[%s590] ss:$8 sm:$0xf]
      %v592 = vld [vmem:[%s590] ss:$8 sm:$0xf0]
      %v593 = vor.u32 %v591, %v592
      %s594 = scalar_lea.vmem %s515, 65
      %v595 = vld [vmem:[%s594] ss:$8 sm:$0x1]
      %598 = vrot.lane.b32.xlu0 %v593, 127
      %v599 = vpop.permute.xlu0 %598
      %600 = vrot.lane.b32.xlu0 %v595, 127
      %v601 = vpop.permute.xlu0 %600
      %v602 = vrot.slane %v599, 1
      %v603 = vrot.slane %v601, 1
      %v604 = vsel %vm578, %v602, %v603
      %v605 = vsel %vm580, %v599, %v604
      %s608 = scalar_lea.vmem [#allocation4], 4
      %609 = vst [vmem:[%s608] ss:$8 sm:$0xf] %v605
      %610 = vst [vmem:[%s608] ss:$8 sm:$0xf0] %v605
      %s611 = scalar_lea.vmem [#allocation4], 68
      %612 = vst.msk [vmem:[%s611] ss:$8 sm:$0x1] %vm537, %v601
      %613 = vst.msk [vmem:[%s611] ss:$8 sm:$0x0] %vm537, %v601
      %s614 = scalar_lea.vmem %s515, 2
      %v615 = vld [vmem:[%s614] ss:$8 sm:$0xf]
      %v616 = vld [vmem:[%s614] ss:$8 sm:$0xf0]
      %v617 = vor.u32 %v615, %v616
      %s618 = scalar_lea.vmem %s515, 66
      %v619 = vld [vmem:[%s618] ss:$8 sm:$0x1]
      %622 = vrot.lane.b32.xlu0 %v617, 127
      %v623 = vpop.permute.xlu0 %622
      %624 = vrot.lane.b32.xlu0 %v619, 127
      %v625 = vpop.permute.xlu0 %624
      %v626 = vrot.slane %v623, 1
      %v627 = vrot.slane %v625, 1
      %v628 = vsel %vm578, %v626, %v627
      %v629 = vsel %vm580, %v623, %v628
      %s632 = scalar_lea.vmem [#allocation4], 5
      %633 = vst [vmem:[%s632] ss:$8 sm:$0xf] %v629
      %634 = vst [vmem:[%s632] ss:$8 sm:$0xf0] %v629
      %s635 = scalar_lea.vmem [#allocation4], 69
      %636 = vst.msk [vmem:[%s635] ss:$8 sm:$0x1] %vm537, %v625
      %637 = vst.msk [vmem:[%s635] ss:$8 sm:$0x0] %vm537, %v625
      %s638 = scalar_lea.vmem %s515, 3
      %v639 = vld [vmem:[%s638] ss:$8 sm:$0xf]
      %v640 = vld [vmem:[%s638] ss:$8 sm:$0xf0]
      %v641 = vor.u32 %v639, %v640
      %s642 = scalar_lea.vmem %s515, 67
      %v643 = vld [vmem:[%s642] ss:$8 sm:$0x1]
      %646 = vrot.lane.b32.xlu0 %v641, 127
      %v647 = vpop.permute.xlu0 %646
      %648 = vrot.lane.b32.xlu0 %v643, 127
      %v649 = vpop.permute.xlu0 %648
      %v650 = vrot.slane %v647, 1
      %v651 = vrot.slane %v649, 1
      %v652 = vsel %vm578, %v650, %v651
      %v653 = vsel %vm580, %v647, %v652
      %s656 = scalar_lea.vmem [#allocation4], 6
      %657 = vst [vmem:[%s656] ss:$8 sm:$0xf] %v653
      %658 = vst [vmem:[%s656] ss:$8 sm:$0xf0] %v653
      %s659 = scalar_lea.vmem [#allocation4], 70
      %660 = vst.msk [vmem:[%s659] ss:$8 sm:$0x1] %vm537, %v649
      %661 = vst.msk [vmem:[%s659] ss:$8 sm:$0x0] %vm537, %v649
      %s662 = scalar_lea.vmem %s515, 4
      %v663 = vld [vmem:[%s662] ss:$8 sm:$0xf]
      %v664 = vld [vmem:[%s662] ss:$8 sm:$0xf0]
      %v665 = vor.u32 %v663, %v664
      %s666 = scalar_lea.vmem %s515, 68
      %v667 = vld [vmem:[%s666] ss:$8 sm:$0x1]
      %670 = vrot.lane.b32.xlu0 %v665, 127
      %v671 = vpop.permute.xlu0 %670
      %672 = vrot.lane.b32.xlu0 %v667, 127
      %v673 = vpop.permute.xlu0 %672
      %v674 = vrot.slane %v671, 1
      %v675 = vrot.slane %v673, 1
      %v676 = vsel %vm578, %v674, %v675
      %v677 = vsel %vm580, %v671, %v676
      %s680 = scalar_lea.vmem [#allocation4], 7
      %681 = vst [vmem:[%s680] ss:$8 sm:$0xf] %v677
      %682 = vst [vmem:[%s680] ss:$8 sm:$0xf0] %v677
      %s683 = scalar_lea.vmem [#allocation4], 71
      %684 = vst.msk [vmem:[%s683] ss:$8 sm:$0x1] %vm537, %v673
      %685 = vst.msk [vmem:[%s683] ss:$8 sm:$0x0] %vm537, %v673
      %v686 = vld [vmem:[%s526] ss:$8 sm:$0xf]
      %v687 = vld [vmem:[%s526] ss:$8 sm:$0xf0]
      %v688 = vor.u32 %v686, %v687
      %v689 = vld [vmem:[%s530] ss:$8 sm:$0x1]
      %692 = vrot.lane.b32.xlu0 %v688, 127
      %v693 = vpop.permute.xlu0 %692
      %694 = vrot.lane.b32.xlu0 %v689, 127
      %v695 = vpop.permute.xlu0 %694
      %v696 = vrot.slane %v693, 1
      %v697 = vrot.slane %v695, 1
      %v698 = vsel %vm578, %v696, %v697
      %v699 = vsel %vm580, %v693, %v698
      %s702 = scalar_lea.vmem [#allocation4], 72
      %703 = vst [vmem:[%s702] ss:$8 sm:$0xf] %v699
      %704 = vst [vmem:[%s702] ss:$8 sm:$0xf0] %v699
      %s705 = scalar_lea.vmem [#allocation4], 136
      %706 = vst.msk [vmem:[%s705] ss:$8 sm:$0x1] %vm537, %v695
      %707 = vst.msk [vmem:[%s705] ss:$8 sm:$0x0] %vm537, %v695
      %v708 = vld [vmem:[%s541] ss:$8 sm:$0xf]
      %v709 = vld [vmem:[%s541] ss:$8 sm:$0xf0]
      %v710 = vor.u32 %v708, %v709
      %v711 = vld [vmem:[%s545] ss:$8 sm:$0x1]
      %714 = vrot.lane.b32.xlu0 %v710, 127
      %v715 = vpop.permute.xlu0 %714
      %716 = vrot.lane.b32.xlu0 %v711, 127
      %v717 = vpop.permute.xlu0 %716
      %v718 = vrot.slane %v715, 1
      %v719 = vrot.slane %v717, 1
      %v720 = vsel %vm578, %v718, %v719
      %v721 = vsel %vm580, %v715, %v720
      %s724 = scalar_lea.vmem [#allocation4], 73
      %725 = vst [vmem:[%s724] ss:$8 sm:$0xf] %v721
      %726 = vst [vmem:[%s724] ss:$8 sm:$0xf0] %v721
      %s727 = scalar_lea.vmem [#allocation4], 137
      %728 = vst.msk [vmem:[%s727] ss:$8 sm:$0x1] %vm537, %v717
      %729 = vst.msk [vmem:[%s727] ss:$8 sm:$0x0] %vm537, %v717
      %v730 = vld [vmem:[%s553] ss:$8 sm:$0xf]
      %v731 = vld [vmem:[%s553] ss:$8 sm:$0xf0]
      %v732 = vor.u32 %v730, %v731
      %v733 = vld [vmem:[%s557] ss:$8 sm:$0x1]
      %736 = vrot.lane.b32.xlu0 %v732, 127
      %v737 = vpop.permute.xlu0 %736
      %738 = vrot.lane.b32.xlu0 %v733, 127
      %v739 = vpop.permute.xlu0 %738
      %v740 = vrot.slane %v737, 1
      %v741 = vrot.slane %v739, 1
      %v742 = vsel %vm578, %v740, %v741
      %v743 = vsel %vm580, %v737, %v742
      %s746 = scalar_lea.vmem [#allocation4], 74
      %747 = vst [vmem:[%s746] ss:$8 sm:$0xf] %v743
      %748 = vst [vmem:[%s746] ss:$8 sm:$0xf0] %v743
      %s749 = scalar_lea.vmem [#allocation4], 138
      %750 = vst.msk [vmem:[%s749] ss:$8 sm:$0x1] %vm537, %v739
      %751 = vst.msk [vmem:[%s749] ss:$8 sm:$0x0] %vm537, %v739
      %v752 = vld [vmem:[%s515] ss:$8 sm:$0xf]
      %v753 = vld [vmem:[%s515] ss:$8 sm:$0xf0]
      %v754 = vor.u32 %v752, %v753
      %v755 = vld [vmem:[%s568] ss:$8 sm:$0x1]
      %758 = vrot.lane.b32.xlu0 %v754, 126
      %v759 = vpop.permute.xlu0 %758
      %760 = vrot.lane.b32.xlu0 %v755, 126
      %v761 = vpop.permute.xlu0 %760
      %v762 = vrot.slane %v759, 1
      %v763 = vrot.slane %v761, 1
      %v764 = vsel %vm578, %v762, %v763
      %vm765 = vcmask 1031168
      %v766 = vsel %vm765, %v759, %v764
      %s769 = scalar_lea.vmem [#allocation4], 75
      %770 = vst [vmem:[%s769] ss:$8 sm:$0xf] %v766
      %771 = vst [vmem:[%s769] ss:$8 sm:$0xf0] %v766
      %s772 = scalar_lea.vmem [#allocation4], 139
      %773 = vst.msk [vmem:[%s772] ss:$8 sm:$0x1] %vm537, %v761
      %774 = vst.msk [vmem:[%s772] ss:$8 sm:$0x0] %vm537, %v761
      %v775 = vld [vmem:[%s590] ss:$8 sm:$0xf]
      %v776 = vld [vmem:[%s590] ss:$8 sm:$0xf0]
      %v777 = vor.u32 %v775, %v776
      %v778 = vld [vmem:[%s594] ss:$8 sm:$0x1]
      %781 = vrot.lane.b32.xlu0 %v777, 126
      %v782 = vpop.permute.xlu0 %781
      %783 = vrot.lane.b32.xlu0 %v778, 126
      %v784 = vpop.permute.xlu0 %783
      %v785 = vrot.slane %v782, 1
      %v786 = vrot.slane %v784, 1
      %v787 = vsel %vm578, %v785, %v786
      %v788 = vsel %vm765, %v782, %v787
      %s791 = scalar_lea.vmem [#allocation4], 76
      %792 = vst [vmem:[%s791] ss:$8 sm:$0xf] %v788
      %793 = vst [vmem:[%s791] ss:$8 sm:$0xf0] %v788
      %s794 = scalar_lea.vmem [#allocation4], 140
      %795 = vst.msk [vmem:[%s794] ss:$8 sm:$0x1] %vm537, %v784
      %796 = vst.msk [vmem:[%s794] ss:$8 sm:$0x0] %vm537, %v784
      %v797 = vld [vmem:[%s614] ss:$8 sm:$0xf]
      %v798 = vld [vmem:[%s614] ss:$8 sm:$0xf0]
      %v799 = vor.u32 %v797, %v798
      %v800 = vld [vmem:[%s618] ss:$8 sm:$0x1]
      %803 = vrot.lane.b32.xlu0 %v799, 126
      %v804 = vpop.permute.xlu0 %803
      %805 = vrot.lane.b32.xlu0 %v800, 126
      %v806 = vpop.permute.xlu0 %805
      %v807 = vrot.slane %v804, 1
      %v808 = vrot.slane %v806, 1
      %v809 = vsel %vm578, %v807, %v808
      %v810 = vsel %vm765, %v804, %v809
      %s813 = scalar_lea.vmem [#allocation4], 77
      %814 = vst [vmem:[%s813] ss:$8 sm:$0xf] %v810
      %815 = vst [vmem:[%s813] ss:$8 sm:$0xf0] %v810
      %s816 = scalar_lea.vmem [#allocation4], 141
      %817 = vst.msk [vmem:[%s816] ss:$8 sm:$0x1] %vm537, %v806
      %818 = vst.msk [vmem:[%s816] ss:$8 sm:$0x0] %vm537, %v806
      %v819 = vld [vmem:[%s638] ss:$8 sm:$0xf]
      %v820 = vld [vmem:[%s638] ss:$8 sm:$0xf0]
      %v821 = vor.u32 %v819, %v820
      %v822 = vld [vmem:[%s642] ss:$8 sm:$0x1]
      %825 = vrot.lane.b32.xlu0 %v821, 126
      %v826 = vpop.permute.xlu0 %825
      %827 = vrot.lane.b32.xlu0 %v822, 126
      %v828 = vpop.permute.xlu0 %827
      %v829 = vrot.slane %v826, 1
      %v830 = vrot.slane %v828, 1
      %v831 = vsel %vm578, %v829, %v830
      %v832 = vsel %vm765, %v826, %v831
      %s835 = scalar_lea.vmem [#allocation4], 78
      %836 = vst [vmem:[%s835] ss:$8 sm:$0xf] %v832
      %837 = vst [vmem:[%s835] ss:$8 sm:$0xf0] %v832
      %s838 = scalar_lea.vmem [#allocation4], 142
      %839 = vst.msk [vmem:[%s838] ss:$8 sm:$0x1] %vm537, %v828
      %840 = vst.msk [vmem:[%s838] ss:$8 sm:$0x0] %vm537, %v828
      %v841 = vld [vmem:[%s662] ss:$8 sm:$0xf]
      %v842 = vld [vmem:[%s662] ss:$8 sm:$0xf0]
      %v843 = vor.u32 %v841, %v842
      %v844 = vld [vmem:[%s666] ss:$8 sm:$0x1]
      %847 = vrot.lane.b32.xlu0 %v843, 126
      %v848 = vpop.permute.xlu0 %847
      %849 = vrot.lane.b32.xlu0 %v844, 126
      %v850 = vpop.permute.xlu0 %849
      %v851 = vrot.slane %v848, 1
      %v852 = vrot.slane %v850, 1
      %v853 = vsel %vm578, %v851, %v852
      %v854 = vsel %vm765, %v848, %v853
      %s857 = scalar_lea.vmem [#allocation4], 79
      %858 = vst [vmem:[%s857] ss:$8 sm:$0xf] %v854
      %859 = vst [vmem:[%s857] ss:$8 sm:$0xf0] %v854
      %s860 = scalar_lea.vmem [#allocation4], 143
      %861 = vst.msk [vmem:[%s860] ss:$8 sm:$0x1] %vm537, %v850
      %862 = vst.msk [vmem:[%s860] ss:$8 sm:$0x0] %vm537, %v850
      %v863 = vld [vmem:[%s526] ss:$8 sm:$0xf]
      %v864 = vld [vmem:[%s526] ss:$8 sm:$0xf0]
      %v865 = vor.u32 %v863, %v864
      %v866 = vld [vmem:[%s530] ss:$8 sm:$0x1]
      %869 = vrot.lane.b32.xlu0 %v865, 126
      %v870 = vpop.permute.xlu0 %869
      %871 = vrot.lane.b32.xlu0 %v866, 126
      %v872 = vpop.permute.xlu0 %871
      %v873 = vrot.slane %v870, 1
      %v874 = vrot.slane %v872, 1
      %v875 = vsel %vm578, %v873, %v874
      %v876 = vsel %vm765, %v870, %v875
      %s879 = scalar_lea.vmem [#allocation4], 144
      %880 = vst [vmem:[%s879] ss:$8 sm:$0xf] %v876
      %881 = vst [vmem:[%s879] ss:$8 sm:$0xf0] %v876
      %s882 = scalar_lea.vmem [#allocation4], 208
      %883 = vst.msk [vmem:[%s882] ss:$8 sm:$0x1] %vm537, %v872
      %884 = vst.msk [vmem:[%s882] ss:$8 sm:$0x0] %vm537, %v872
      %v885 = vld [vmem:[%s541] ss:$8 sm:$0xf]
      %v886 = vld [vmem:[%s541] ss:$8 sm:$0xf0]
      %v887 = vor.u32 %v885, %v886
      %v888 = vld [vmem:[%s545] ss:$8 sm:$0x1]
      %891 = vrot.lane.b32.xlu0 %v887, 126
      %v892 = vpop.permute.xlu0 %891
      %893 = vrot.lane.b32.xlu0 %v888, 126
      %v894 = vpop.permute.xlu0 %893
      %v895 = vrot.slane %v892, 1
      %v896 = vrot.slane %v894, 1
      %v897 = vsel %vm578, %v895, %v896
      %v898 = vsel %vm765, %v892, %v897
      %s901 = scalar_lea.vmem [#allocation4], 145
      %902 = vst [vmem:[%s901] ss:$8 sm:$0xf] %v898
      %903 = vst [vmem:[%s901] ss:$8 sm:$0xf0] %v898
      %s904 = scalar_lea.vmem [#allocation4], 209
      %905 = vst.msk [vmem:[%s904] ss:$8 sm:$0x1] %vm537, %v894
      %906 = vst.msk [vmem:[%s904] ss:$8 sm:$0x0] %vm537, %v894
      %v907 = vld [vmem:[%s553] ss:$8 sm:$0xf]
      %v908 = vld [vmem:[%s553] ss:$8 sm:$0xf0]
      %v909 = vor.u32 %v907, %v908
      %v910 = vld [vmem:[%s557] ss:$8 sm:$0x1]
      %913 = vrot.lane.b32.xlu0 %v909, 126
      %v914 = vpop.permute.xlu0 %913
      %915 = vrot.lane.b32.xlu0 %v910, 126
      %v916 = vpop.permute.xlu0 %915
      %v917 = vrot.slane %v914, 1
      %v918 = vrot.slane %v916, 1
      %v919 = vsel %vm578, %v917, %v918
      %v920 = vsel %vm765, %v914, %v919
      %s923 = scalar_lea.vmem [#allocation4], 146
      %924 = vst [vmem:[%s923] ss:$8 sm:$0xf] %v920
      %925 = vst [vmem:[%s923] ss:$8 sm:$0xf0] %v920
      %s926 = scalar_lea.vmem [#allocation4], 210
      %927 = vst.msk [vmem:[%s926] ss:$8 sm:$0x1] %vm537, %v916
      %928 = vst.msk [vmem:[%s926] ss:$8 sm:$0x0] %vm537, %v916
      %v929 = vld [vmem:[%s515] ss:$8 sm:$0xf]
      %v930 = vld [vmem:[%s515] ss:$8 sm:$0xf0]
      %v931 = vor.u32 %v929, %v930
      %v932 = vld [vmem:[%s568] ss:$8 sm:$0x1]
      %935 = vrot.lane.b32.xlu0 %v931, 125
      %v936 = vpop.permute.xlu0 %935
      %937 = vrot.lane.b32.xlu0 %v932, 125
      %v938 = vpop.permute.xlu0 %937
      %v939 = vrot.slane %v936, 1
      %v940 = vrot.slane %v938, 1
      %v941 = vsel %vm578, %v939, %v940
      %vm942 = vcmask 1022976
      %v943 = vsel %vm942, %v936, %v941
      %s946 = scalar_lea.vmem [#allocation4], 147
      %947 = vst [vmem:[%s946] ss:$8 sm:$0xf] %v943
      %948 = vst [vmem:[%s946] ss:$8 sm:$0xf0] %v943
      %s949 = scalar_lea.vmem [#allocation4], 211
      %950 = vst.msk [vmem:[%s949] ss:$8 sm:$0x1] %vm537, %v938
      %951 = vst.msk [vmem:[%s949] ss:$8 sm:$0x0] %vm537, %v938
      %v952 = vld [vmem:[%s590] ss:$8 sm:$0xf]
      %v953 = vld [vmem:[%s590] ss:$8 sm:$0xf0]
      %v954 = vor.u32 %v952, %v953
      %v955 = vld [vmem:[%s594] ss:$8 sm:$0x1]
      %958 = vrot.lane.b32.xlu0 %v954, 125
      %v959 = vpop.permute.xlu0 %958
      %960 = vrot.lane.b32.xlu0 %v955, 125
      %v961 = vpop.permute.xlu0 %960
      %v962 = vrot.slane %v959, 1
      %v963 = vrot.slane %v961, 1
      %v964 = vsel %vm578, %v962, %v963
      %v965 = vsel %vm942, %v959, %v964
      %s968 = scalar_lea.vmem [#allocation4], 148
      %969 = vst [vmem:[%s968] ss:$8 sm:$0xf] %v965
      %970 = vst [vmem:[%s968] ss:$8 sm:$0xf0] %v965
      %s971 = scalar_lea.vmem [#allocation4], 212
      %972 = vst.msk [vmem:[%s971] ss:$8 sm:$0x1] %vm537, %v961
      %973 = vst.msk [vmem:[%s971] ss:$8 sm:$0x0] %vm537, %v961
      %v974 = vld [vmem:[%s614] ss:$8 sm:$0xf]
      %v975 = vld [vmem:[%s614] ss:$8 sm:$0xf0]
      %v976 = vor.u32 %v974, %v975
      %v977 = vld [vmem:[%s618] ss:$8 sm:$0x1]
      %980 = vrot.lane.b32.xlu0 %v976, 125
      %v981 = vpop.permute.xlu0 %980
      %982 = vrot.lane.b32.xlu0 %v977, 125
      %v983 = vpop.permute.xlu0 %982
      %v984 = vrot.slane %v981, 1
      %v985 = vrot.slane %v983, 1
      %v986 = vsel %vm578, %v984, %v985
      %v987 = vsel %vm942, %v981, %v986
      %s990 = scalar_lea.vmem [#allocation4], 149
      %991 = vst [vmem:[%s990] ss:$8 sm:$0xf] %v987
      %992 = vst [vmem:[%s990] ss:$8 sm:$0xf0] %v987
      %s993 = scalar_lea.vmem [#allocation4], 213
      %994 = vst.msk [vmem:[%s993] ss:$8 sm:$0x1] %vm537, %v983
      %995 = vst.msk [vmem:[%s993] ss:$8 sm:$0x0] %vm537, %v983
      %v996 = vld [vmem:[%s638] ss:$8 sm:$0xf]
      %v997 = vld [vmem:[%s638] ss:$8 sm:$0xf0]
      %v998 = vor.u32 %v996, %v997
      %v999 = vld [vmem:[%s642] ss:$8 sm:$0x1]
      %1002 = vrot.lane.b32.xlu0 %v998, 125
      %v1003 = vpop.permute.xlu0 %1002
      %1004 = vrot.lane.b32.xlu0 %v999, 125
      %v1005 = vpop.permute.xlu0 %1004
      %v1006 = vrot.slane %v1003, 1
      %v1007 = vrot.slane %v1005, 1
      %v1008 = vsel %vm578, %v1006, %v1007
      %v1009 = vsel %vm942, %v1003, %v1008
      %s1012 = scalar_lea.vmem [#allocation4], 150
      %1013 = vst [vmem:[%s1012] ss:$8 sm:$0xf] %v1009
      %1014 = vst [vmem:[%s1012] ss:$8 sm:$0xf0] %v1009
      %s1015 = scalar_lea.vmem [#allocation4], 214
      %1016 = vst.msk [vmem:[%s1015] ss:$8 sm:$0x1] %vm537, %v1005
      %1017 = vst.msk [vmem:[%s1015] ss:$8 sm:$0x0] %vm537, %v1005
      %v1018 = vld [vmem:[%s662] ss:$8 sm:$0xf]
      %v1019 = vld [vmem:[%s662] ss:$8 sm:$0xf0]
      %v1020 = vor.u32 %v1018, %v1019
      %v1021 = vld [vmem:[%s666] ss:$8 sm:$0x1]
      %1024 = vrot.lane.b32.xlu0 %v1020, 125
      %v1025 = vpop.permute.xlu0 %1024
      %1026 = vrot.lane.b32.xlu0 %v1021, 125
      %v1027 = vpop.permute.xlu0 %1026
      %v1028 = vrot.slane %v1025, 1
      %v1029 = vrot.slane %v1027, 1
      %v1030 = vsel %vm578, %v1028, %v1029
      %v1031 = vsel %vm942, %v1025, %v1030
      %s1034 = scalar_lea.vmem [#allocation4], 151
      %1035 = vst [vmem:[%s1034] ss:$8 sm:$0xf] %v1031
      %1036 = vst [vmem:[%s1034] ss:$8 sm:$0xf0] %v1031
      %s1037 = scalar_lea.vmem [#allocation4], 215
      %1038 = vst.msk [vmem:[%s1037] ss:$8 sm:$0x1] %vm537, %v1027
      %1039 = vst.msk [vmem:[%s1037] ss:$8 sm:$0x0] %vm537, %v1027
      %v1040 = vld [vmem:[%s526] ss:$8 sm:$0xf]
      %v1041 = vld [vmem:[%s526] ss:$8 sm:$0xf0]
      %v1042 = vor.u32 %v1040, %v1041
      %v1043 = vld [vmem:[%s530] ss:$8 sm:$0x1]
      %1046 = vrot.lane.b32.xlu0 %v1042, 125
      %v1047 = vpop.permute.xlu0 %1046
      %1048 = vrot.lane.b32.xlu0 %v1043, 125
      %v1049 = vpop.permute.xlu0 %1048
      %v1050 = vrot.slane %v1047, 1
      %v1051 = vrot.slane %v1049, 1
      %v1052 = vsel %vm578, %v1050, %v1051
      %v1053 = vsel %vm942, %v1047, %v1052
      %s1056 = scalar_lea.vmem [#allocation4], 216
      %1057 = vst [vmem:[%s1056] ss:$8 sm:$0xf] %v1053
      %1058 = vst [vmem:[%s1056] ss:$8 sm:$0xf0] %v1053
      %s1059 = scalar_lea.vmem [#allocation4], 280
      %1060 = vst.msk [vmem:[%s1059] ss:$8 sm:$0x1] %vm537, %v1049
      %1061 = vst.msk [vmem:[%s1059] ss:$8 sm:$0x0] %vm537, %v1049
      %v1062 = vld [vmem:[%s541] ss:$8 sm:$0xf]
      %v1063 = vld [vmem:[%s541] ss:$8 sm:$0xf0]
      %v1064 = vor.u32 %v1062, %v1063
      %v1065 = vld [vmem:[%s545] ss:$8 sm:$0x1]
      %1068 = vrot.lane.b32.xlu0 %v1064, 125
      %v1069 = vpop.permute.xlu0 %1068
      %1070 = vrot.lane.b32.xlu0 %v1065, 125
      %v1071 = vpop.permute.xlu0 %1070
      %v1072 = vrot.slane %v1069, 1
      %v1073 = vrot.slane %v1071, 1
      %v1074 = vsel %vm578, %v1072, %v1073
      %v1075 = vsel %vm942, %v1069, %v1074
      %s1078 = scalar_lea.vmem [#allocation4], 217
      %1079 = vst [vmem:[%s1078] ss:$8 sm:$0xf] %v1075
      %1080 = vst [vmem:[%s1078] ss:$8 sm:$0xf0] %v1075
      %s1081 = scalar_lea.vmem [#allocation4], 281
      %1082 = vst.msk [vmem:[%s1081] ss:$8 sm:$0x1] %vm537, %v1071
      %1083 = vst.msk [vmem:[%s1081] ss:$8 sm:$0x0] %vm537, %v1071
      %v1084 = vld [vmem:[%s553] ss:$8 sm:$0xf]
      %v1085 = vld [vmem:[%s553] ss:$8 sm:$0xf0]
      %v1086 = vor.u32 %v1084, %v1085
      %v1087 = vld [vmem:[%s557] ss:$8 sm:$0x1]
      %1090 = vrot.lane.b32.xlu0 %v1086, 125
      %v1091 = vpop.permute.xlu0 %1090
      %1092 = vrot.lane.b32.xlu0 %v1087, 125
      %v1093 = vpop.permute.xlu0 %1092
      %v1094 = vrot.slane %v1091, 1
      %v1095 = vrot.slane %v1093, 1
      %v1096 = vsel %vm578, %v1094, %v1095
      %v1097 = vsel %vm942, %v1091, %v1096
      %s1100 = scalar_lea.vmem [#allocation4], 218
      %1101 = vst [vmem:[%s1100] ss:$8 sm:$0xf] %v1097
      %1102 = vst [vmem:[%s1100] ss:$8 sm:$0xf0] %v1097
      %s1103 = scalar_lea.vmem [#allocation4], 282
      %1104 = vst.msk [vmem:[%s1103] ss:$8 sm:$0x1] %vm537, %v1093
      %1105 = vst.msk [vmem:[%s1103] ss:$8 sm:$0x0] %vm537, %v1093
      %v1106 = vld [vmem:[#allocation4] sm:$0xff]
      %v1107 = vld [vmem:[#allocation4 + $0x8] sm:$0xff]
      %v1108 = vld [vmem:[#allocation4 + $0x10] sm:$0xff]
      %v1109 = vld [vmem:[#allocation4 + $0x18] sm:$0xff]
      %v1110 = vld [vmem:[#allocation4 + $0x20] sm:$0xff]
      %v1111 = vld [vmem:[#allocation4 + $0x28] sm:$0xff]
      %v1112 = vld [vmem:[#allocation4 + $0x30] sm:$0xff]
      %v1113 = vld [vmem:[#allocation4 + $0x38] sm:$0xff]
      %v1114 = vld [vmem:[#allocation4 + $0x40] sm:$0xff]
      %v1115 = vld [vmem:[#allocation4 + $0x48] sm:$0xff]
      %v1116 = vld [vmem:[#allocation4 + $0x50] sm:$0xff]
      %v1117 = vld [vmem:[#allocation4 + $0x58] sm:$0xff]
      %v1118 = vld [vmem:[#allocation4 + $0x60] sm:$0xff]
      %v1119 = vld [vmem:[#allocation4 + $0x68] sm:$0xff]
      %v1120 = vld [vmem:[#allocation4 + $0x70] sm:$0xff]
      %v1121 = vld [vmem:[#allocation4 + $0x78] sm:$0xff]
      %v1122 = vld [vmem:[#allocation4 + $0x80] sm:$0xff]
      %v1123 = vld [vmem:[#allocation4 + $0x88] sm:$0xff]
      %v1124 = vld [vmem:[#allocation4 + $0x90] sm:$0xff]
      %v1125 = vld [vmem:[#allocation4 + $0x98] sm:$0xff]
      %v1126 = vld [vmem:[#allocation4 + $0xa0] sm:$0xff]
      %v1127 = vld [vmem:[#allocation4 + $0xa8] sm:$0xff]
      %v1128 = vld [vmem:[#allocation4 + $0xb0] sm:$0xff]
      %v1129 = vld [vmem:[#allocation4 + $0xb8] sm:$0xff]
      %v1130 = vld [vmem:[#allocation4 + $0xc0] sm:$0xff]
      %v1131 = vld [vmem:[#allocation4 + $0xc8] sm:$0xff]
      %v1132 = vld [vmem:[#allocation4 + $0xd0] sm:$0xff]
      %v1133 = vld [vmem:[#allocation4 + $0xd8] sm:$0x7]
      %v1134 = vld [vmem:[#allocation4 + $0xe0] sm:$0x7]
      %v1135 = vld [vmem:[#allocation4 + $0xe8] sm:$0x7]
      %v1136 = vld [vmem:[#allocation4 + $0xf0] sm:$0x7]
      %v1137 = vld [vmem:[#allocation4 + $0xf8] sm:$0x7]
      %v1138 = vld [vmem:[#allocation4 + $0x100] sm:$0x7]
      %v1139 = vld [vmem:[#allocation4 + $0x108] sm:$0x7]
      %v1140 = vld [vmem:[#allocation4 + $0x110] sm:$0x7]
      %v1141 = vld [vmem:[#allocation4 + $0x118] sm:$0x7]
      %vm1142 = vcmask 220160
      %v1144 = vsel %vm1142, %v522, 0
      %v1147 = vsel %vm1142, %v523, 0
      %v1150 = vsel %vm1142, %v524, 0
      %vm1152 = vcmask 1042432
      %v1154 = vsel %vm1152, %v1133, 0
      %v1157 = vsel %vm1152, %v1134, 0
      %v1160 = vsel %vm1152, %v1135, 0
      %v1163 = vsel %vm1152, %v1136, 0
      %v1166 = vsel %vm1152, %v1137, 0
      %v1169 = vsel %vm1152, %v1138, 0
      %v1172 = vsel %vm1152, %v1139, 0
      %v1175 = vsel %vm1152, %v1140, 0
      %v1178 = vsel %vm1152, %v1141, 0
      %1180 = vmatpush.msra.mxu0 0.0
      %1181 = vmatpush.msra.mxu0 0.0
      %1182 = vmatpush.msra.mxu0 0.0
      %1183 = vmatpush.msra.mxu0 0.0
      %1184 = vmatpush.msra.mxu0 0.0
      %1185 = vmatpush.msra.mxu0 0.0
      %1186 = vmatpush.msra.mxu0 0.0
      %1187 = vmatpush.msra.mxu0 0.0
      %1188 = vmatpush.msra.mxu0 0.0
      %1189 = vmatpush.msra.mxu0 0.0
      %1190 = vmatpush.msra.mxu0 0.0
      %1191 = vmatpush.msra.mxu0 0.0
      %1192 = vmatpush.msra.mxu0 %v1154
      %1193 = vmatpush.msra.mxu0 %v1124
      %1194 = vmatpush.msra.mxu0 %v1115
      %1195 = vmatpush.msra.mxu0 %v1106
      %1196 = vmatmul.f32.gmra.mxu0 %v1144
      %v1197 = vpop.f32.mrf.mxu0
      %v1198 = vadd.f32 0.0, %v1197
      %1199 = vmatmul.f32.gmra.mxu0 %v1147
      %v1200 = vpop.f32.mrf.mxu0
      %v1201 = vadd.f32 0.0, %v1200
      %1202 = vmatmul.f32.gmra.mxu0 %v1150
      %v1203 = vpop.f32.mrf.mxu0
      %v1204 = vadd.f32 0.0, %v1203
      %1205 = vdwg.mxu0
      %1206 = vmatpush.msra.mxu0 0.0
      %1207 = vmatpush.msra.mxu0 0.0
      %1208 = vmatpush.msra.mxu0 0.0
      %1209 = vmatpush.msra.mxu0 0.0
      %1210 = vmatpush.msra.mxu0 0.0
      %1211 = vmatpush.msra.mxu0 0.0
      %1212 = vmatpush.msra.mxu0 0.0
      %1213 = vmatpush.msra.mxu0 0.0
      %1214 = vmatpush.msra.mxu0 0.0
      %1215 = vmatpush.msra.mxu0 0.0
      %1216 = vmatpush.msra.mxu0 0.0
      %1217 = vmatpush.msra.mxu0 0.0
      %1218 = vmatpush.msra.mxu0 %v1157
      %1219 = vmatpush.msra.mxu0 %v1125
      %1220 = vmatpush.msra.mxu0 %v1116
      %1221 = vmatpush.msra.mxu0 %v1107
      %1222 = vmatmul.f32.gmra.mxu0 %v1144
      %v1223 = vpop.f32.mrf.mxu0
      %v1224 = vadd.f32 0.0, %v1223
      %1225 = vmatmul.f32.gmra.mxu0 %v1147
      %v1226 = vpop.f32.mrf.mxu0
      %v1227 = vadd.f32 0.0, %v1226
      %1228 = vmatmul.f32.gmra.mxu0 %v1150
      %v1229 = vpop.f32.mrf.mxu0
      %v1230 = vadd.f32 0.0, %v1229
      %1231 = vdwg.mxu0
      %1232 = vmatpush.msra.mxu0 0.0
      %1233 = vmatpush.msra.mxu0 0.0
      %1234 = vmatpush.msra.mxu0 0.0
      %1235 = vmatpush.msra.mxu0 0.0
      %1236 = vmatpush.msra.mxu0 0.0
      %1237 = vmatpush.msra.mxu0 0.0
      %1238 = vmatpush.msra.mxu0 0.0
      %1239 = vmatpush.msra.mxu0 0.0
      %1240 = vmatpush.msra.mxu0 0.0
      %1241 = vmatpush.msra.mxu0 0.0
      %1242 = vmatpush.msra.mxu0 0.0
      %1243 = vmatpush.msra.mxu0 0.0
      %1244 = vmatpush.msra.mxu0 %v1160
      %1245 = vmatpush.msra.mxu0 %v1126
      %1246 = vmatpush.msra.mxu0 %v1117
      %1247 = vmatpush.msra.mxu0 %v1108
      %1248 = vmatmul.f32.gmra.mxu0 %v1144
      %v1249 = vpop.f32.mrf.mxu0
      %v1250 = vadd.f32 0.0, %v1249
      %1251 = vmatmul.f32.gmra.mxu0 %v1147
      %v1252 = vpop.f32.mrf.mxu0
      %v1253 = vadd.f32 0.0, %v1252
      %1254 = vmatmul.f32.gmra.mxu0 %v1150
      %v1255 = vpop.f32.mrf.mxu0
      %v1256 = vadd.f32 0.0, %v1255
      %1257 = vdwg.mxu0
      %1258 = vmatpush.msra.mxu0 0.0
      %1259 = vmatpush.msra.mxu0 0.0
      %1260 = vmatpush.msra.mxu0 0.0
      %1261 = vmatpush.msra.mxu0 0.0
      %1262 = vmatpush.msra.mxu0 0.0
      %1263 = vmatpush.msra.mxu0 0.0
      %1264 = vmatpush.msra.mxu0 0.0
      %1265 = vmatpush.msra.mxu0 0.0
      %1266 = vmatpush.msra.mxu0 0.0
      %1267 = vmatpush.msra.mxu0 0.0
      %1268 = vmatpush.msra.mxu0 0.0
      %1269 = vmatpush.msra.mxu0 0.0
      %1270 = vmatpush.msra.mxu0 %v1163
      %1271 = vmatpush.msra.mxu0 %v1127
      %1272 = vmatpush.msra.mxu0 %v1118
      %1273 = vmatpush.msra.mxu0 %v1109
      %1274 = vmatmul.f32.gmra.mxu0 %v1144
      %v1275 = vpop.f32.mrf.mxu0
      %v1276 = vadd.f32 0.0, %v1275
      %1277 = vmatmul.f32.gmra.mxu0 %v1147
      %v1278 = vpop.f32.mrf.mxu0
      %v1279 = vadd.f32 0.0, %v1278
      %1280 = vmatmul.f32.gmra.mxu0 %v1150
      %v1281 = vpop.f32.mrf.mxu0
      %v1282 = vadd.f32 0.0, %v1281
      %1283 = vdwg.mxu0
      %1284 = vmatpush.msra.mxu0 0.0
      %1285 = vmatpush.msra.mxu0 0.0
      %1286 = vmatpush.msra.mxu0 0.0
      %1287 = vmatpush.msra.mxu0 0.0
      %1288 = vmatpush.msra.mxu0 0.0
      %1289 = vmatpush.msra.mxu0 0.0
      %1290 = vmatpush.msra.mxu0 0.0
      %1291 = vmatpush.msra.mxu0 0.0
      %1292 = vmatpush.msra.mxu0 0.0
      %1293 = vmatpush.msra.mxu0 0.0
      %1294 = vmatpush.msra.mxu0 0.0
      %1295 = vmatpush.msra.mxu0 0.0
      %1296 = vmatpush.msra.mxu0 %v1166
      %1297 = vmatpush.msra.mxu0 %v1128
      %1298 = vmatpush.msra.mxu0 %v1119
      %1299 = vmatpush.msra.mxu0 %v1110
      %1300 = vmatmul.f32.gmra.mxu0 %v1144
      %v1301 = vpop.f32.mrf.mxu0
      %v1302 = vadd.f32 0.0, %v1301
      %1303 = vmatmul.f32.gmra.mxu0 %v1147
      %v1304 = vpop.f32.mrf.mxu0
      %v1305 = vadd.f32 0.0, %v1304
      %1306 = vmatmul.f32.gmra.mxu0 %v1150
      %v1307 = vpop.f32.mrf.mxu0
      %v1308 = vadd.f32 0.0, %v1307
      %1309 = vdwg.mxu0
      %1310 = vmatpush.msra.mxu0 0.0
      %1311 = vmatpush.msra.mxu0 0.0
      %1312 = vmatpush.msra.mxu0 0.0
      %1313 = vmatpush.msra.mxu0 0.0
      %1314 = vmatpush.msra.mxu0 0.0
      %1315 = vmatpush.msra.mxu0 0.0
      %1316 = vmatpush.msra.mxu0 0.0
      %1317 = vmatpush.msra.mxu0 0.0
      %1318 = vmatpush.msra.mxu0 0.0
      %1319 = vmatpush.msra.mxu0 0.0
      %1320 = vmatpush.msra.mxu0 0.0
      %1321 = vmatpush.msra.mxu0 0.0
      %1322 = vmatpush.msra.mxu0 %v1169
      %1323 = vmatpush.msra.mxu0 %v1129
      %1324 = vmatpush.msra.mxu0 %v1120
      %1325 = vmatpush.msra.mxu0 %v1111
      %1326 = vmatmul.f32.gmra.mxu0 %v1144
      %v1327 = vpop.f32.mrf.mxu0
      %v1328 = vadd.f32 0.0, %v1327
      %1329 = vmatmul.f32.gmra.mxu0 %v1147
      %v1330 = vpop.f32.mrf.mxu0
      %v1331 = vadd.f32 0.0, %v1330
      %1332 = vmatmul.f32.gmra.mxu0 %v1150
      %v1333 = vpop.f32.mrf.mxu0
      %v1334 = vadd.f32 0.0, %v1333
      %1335 = vdwg.mxu0
      %1336 = vmatpush.msra.mxu0 0.0
      %1337 = vmatpush.msra.mxu0 0.0
      %1338 = vmatpush.msra.mxu0 0.0
      %1339 = vmatpush.msra.mxu0 0.0
      %1340 = vmatpush.msra.mxu0 0.0
      %1341 = vmatpush.msra.mxu0 0.0
      %1342 = vmatpush.msra.mxu0 0.0
      %1343 = vmatpush.msra.mxu0 0.0
      %1344 = vmatpush.msra.mxu0 0.0
      %1345 = vmatpush.msra.mxu0 0.0
      %1346 = vmatpush.msra.mxu0 0.0
      %1347 = vmatpush.msra.mxu0 0.0
      %1348 = vmatpush.msra.mxu0 %v1172
      %1349 = vmatpush.msra.mxu0 %v1130
      %1350 = vmatpush.msra.mxu0 %v1121
      %1351 = vmatpush.msra.mxu0 %v1112
      %1352 = vmatmul.f32.gmra.mxu0 %v1144
      %v1353 = vpop.f32.mrf.mxu0
      %v1354 = vadd.f32 0.0, %v1353
      %1355 = vmatmul.f32.gmra.mxu0 %v1147
      %v1356 = vpop.f32.mrf.mxu0
      %v1357 = vadd.f32 0.0, %v1356
      %1358 = vmatmul.f32.gmra.mxu0 %v1150
      %v1359 = vpop.f32.mrf.mxu0
      %v1360 = vadd.f32 0.0, %v1359
      %1361 = vdwg.mxu0
      %1362 = vmatpush.msra.mxu0 0.0
      %1363 = vmatpush.msra.mxu0 0.0
      %1364 = vmatpush.msra.mxu0 0.0
      %1365 = vmatpush.msra.mxu0 0.0
      %1366 = vmatpush.msra.mxu0 0.0
      %1367 = vmatpush.msra.mxu0 0.0
      %1368 = vmatpush.msra.mxu0 0.0
      %1369 = vmatpush.msra.mxu0 0.0
      %1370 = vmatpush.msra.mxu0 0.0
      %1371 = vmatpush.msra.mxu0 0.0
      %1372 = vmatpush.msra.mxu0 0.0
      %1373 = vmatpush.msra.mxu0 0.0
      %1374 = vmatpush.msra.mxu0 %v1175
      %1375 = vmatpush.msra.mxu0 %v1131
      %1376 = vmatpush.msra.mxu0 %v1122
      %1377 = vmatpush.msra.mxu0 %v1113
      %1378 = vmatmul.f32.gmra.mxu0 %v1144
      %v1379 = vpop.f32.mrf.mxu0
      %v1380 = vadd.f32 0.0, %v1379
      %1381 = vmatmul.f32.gmra.mxu0 %v1147
      %v1382 = vpop.f32.mrf.mxu0
      %v1383 = vadd.f32 0.0, %v1382
      %1384 = vmatmul.f32.gmra.mxu0 %v1150
      %v1385 = vpop.f32.mrf.mxu0
      %v1386 = vadd.f32 0.0, %v1385
      %1387 = vdwg.mxu0
      %1388 = vmatpush.msra.mxu0 0.0
      %1389 = vmatpush.msra.mxu0 0.0
      %1390 = vmatpush.msra.mxu0 0.0
      %1391 = vmatpush.msra.mxu0 0.0
      %1392 = vmatpush.msra.mxu0 0.0
      %1393 = vmatpush.msra.mxu0 0.0
      %1394 = vmatpush.msra.mxu0 0.0
      %1395 = vmatpush.msra.mxu0 0.0
      %1396 = vmatpush.msra.mxu0 0.0
      %1397 = vmatpush.msra.mxu0 0.0
      %1398 = vmatpush.msra.mxu0 0.0
      %1399 = vmatpush.msra.mxu0 0.0
      %1400 = vmatpush.msra.mxu0 %v1178
      %1401 = vmatpush.msra.mxu0 %v1132
      %1402 = vmatpush.msra.mxu0 %v1123
      %1403 = vmatpush.msra.mxu0 %v1114
      %1404 = vmatmul.f32.gmra.mxu0 %v1144
      %v1405 = vpop.f32.mrf.mxu0
      %v1406 = vadd.f32 0.0, %v1405
      %1407 = vmatmul.f32.gmra.mxu0 %v1147
      %v1408 = vpop.f32.mrf.mxu0
      %v1409 = vadd.f32 0.0, %v1408
      %1410 = vmatmul.f32.gmra.mxu0 %v1150
      %v1411 = vpop.f32.mrf.mxu0
      %v1412 = vadd.f32 0.0, %v1411
      %1413 = vdwg.mxu0
      %v1423 = vrot.slane %v1198, 3
      %v1424 = vrot.slane %v1224, 3
      %v1425 = vrot.slane %v1250, 3
      %v1426 = vrot.slane %v1276, 3
      %v1427 = vrot.slane %v1302, 3
      %v1428 = vrot.slane %v1328, 3
      %v1429 = vrot.slane %v1354, 3
      %v1430 = vrot.slane %v1380, 3
      %v1431 = vrot.slane %v1406, 3
      %v1441 = vmax.f32 %v1198, %v1423
      %v1442 = vmax.f32 %v1224, %v1424
      %v1443 = vmax.f32 %v1250, %v1425
      %v1444 = vmax.f32 %v1276, %v1426
      %v1445 = vmax.f32 %v1302, %v1427
      %v1446 = vmax.f32 %v1328, %v1428
      %v1447 = vmax.f32 %v1354, %v1429
      %v1448 = vmax.f32 %v1380, %v1430
      %v1449 = vmax.f32 %v1406, %v1431
      %1451 = vset.pattern.permute.xlu0 0
      %1452 = vperm.xlu0 %1451, %v525
      %v1453 = vpop.permute.xlu0 %1452
      %v1455 = vadd.f32 %v1441, %v1453
      %v1456 = vadd.f32 %v1442, %v1453
      %v1457 = vadd.f32 %v1443, %v1453
      %v1458 = vadd.f32 %v1444, %v1453
      %v1459 = vadd.f32 %v1445, %v1453
      %v1460 = vadd.f32 %v1446, %v1453
      %v1461 = vadd.f32 %v1447, %v1453
      %v1462 = vadd.f32 %v1448, %v1453
      %v1463 = vadd.f32 %v1449, %v1453
      %v1464 = vmax.f32 %v1455, 0.0
      %v1465 = vmax.f32 %v1456, 0.0
      %v1466 = vmax.f32 %v1457, 0.0
      %v1467 = vmax.f32 %v1458, 0.0
      %v1468 = vmax.f32 %v1459, 0.0
      %v1469 = vmax.f32 %v1460, 0.0
      %v1470 = vmax.f32 %v1461, 0.0
      %v1471 = vmax.f32 %v1462, 0.0
      %v1472 = vmax.f32 %v1463, 0.0
      %v1482 = vrot.slane %v1201, 3
      %v1483 = vrot.slane %v1227, 3
      %v1484 = vrot.slane %v1253, 3
      %v1485 = vrot.slane %v1279, 3
      %v1486 = vrot.slane %v1305, 3
      %v1487 = vrot.slane %v1331, 3
      %v1488 = vrot.slane %v1357, 3
      %v1489 = vrot.slane %v1383, 3
      %v1490 = vrot.slane %v1409, 3
      %v1500 = vmax.f32 %v1198, %v1482
      %v1501 = vmax.f32 %v1224, %v1483
      %v1502 = vmax.f32 %v1250, %v1484
      %v1503 = vmax.f32 %v1276, %v1485
      %v1504 = vmax.f32 %v1302, %v1486
      %v1505 = vmax.f32 %v1328, %v1487
      %v1506 = vmax.f32 %v1354, %v1488
      %v1507 = vmax.f32 %v1380, %v1489
      %v1508 = vmax.f32 %v1406, %v1490
      %v1509 = vmax.f32 %v1201, %v1482
      %v1510 = vmax.f32 %v1227, %v1483
      %v1511 = vmax.f32 %v1253, %v1484
      %v1512 = vmax.f32 %v1279, %v1485
      %v1513 = vmax.f32 %v1305, %v1486
      %v1514 = vmax.f32 %v1331, %v1487
      %v1515 = vmax.f32 %v1357, %v1488
      %v1516 = vmax.f32 %v1383, %v1489
      %v1517 = vmax.f32 %v1409, %v1490
      %v1518 = vrot.slane %v1453, 2
      %v1520 = vadd.f32 %v1500, %v1518
      %v1521 = vadd.f32 %v1501, %v1518
      %v1522 = vadd.f32 %v1502, %v1518
      %v1523 = vadd.f32 %v1503, %v1518
      %v1524 = vadd.f32 %v1504, %v1518
      %v1525 = vadd.f32 %v1505, %v1518
      %v1526 = vadd.f32 %v1506, %v1518
      %v1527 = vadd.f32 %v1507, %v1518
      %v1528 = vadd.f32 %v1508, %v1518
      %v1529 = vadd.f32 %v1509, %v1518
      %v1530 = vadd.f32 %v1510, %v1518
      %v1531 = vadd.f32 %v1511, %v1518
      %v1532 = vadd.f32 %v1512, %v1518
      %v1533 = vadd.f32 %v1513, %v1518
      %v1534 = vadd.f32 %v1514, %v1518
      %v1535 = vadd.f32 %v1515, %v1518
      %v1536 = vadd.f32 %v1516, %v1518
      %v1537 = vadd.f32 %v1517, %v1518
      %v1538 = vmax.f32 %v1520, 0.0
      %v1539 = vmax.f32 %v1521, 0.0
      %v1540 = vmax.f32 %v1522, 0.0
      %v1541 = vmax.f32 %v1523, 0.0
      %v1542 = vmax.f32 %v1524, 0.0
      %v1543 = vmax.f32 %v1525, 0.0
      %v1544 = vmax.f32 %v1526, 0.0
      %v1545 = vmax.f32 %v1527, 0.0
      %v1546 = vmax.f32 %v1528, 0.0
      %v1547 = vmax.f32 %v1529, 0.0
      %v1548 = vmax.f32 %v1530, 0.0
      %v1549 = vmax.f32 %v1531, 0.0
      %v1550 = vmax.f32 %v1532, 0.0
      %v1551 = vmax.f32 %v1533, 0.0
      %v1552 = vmax.f32 %v1534, 0.0
      %v1553 = vmax.f32 %v1535, 0.0
      %v1554 = vmax.f32 %v1536, 0.0
      %v1555 = vmax.f32 %v1537, 0.0
      %vm1565 = vcmask 1044480
      %v1566 = vrot.slane %v1204, 3
      %v1567 = vsel %vm1565, %v1482, %v1566
      %v1568 = vrot.slane %v1230, 3
      %v1569 = vsel %vm1565, %v1483, %v1568
      %v1570 = vrot.slane %v1256, 3
      %v1571 = vsel %vm1565, %v1484, %v1570
      %v1572 = vrot.slane %v1282, 3
      %v1573 = vsel %vm1565, %v1485, %v1572
      %v1574 = vrot.slane %v1308, 3
      %v1575 = vsel %vm1565, %v1486, %v1574
      %v1576 = vrot.slane %v1334, 3
      %v1577 = vsel %vm1565, %v1487, %v1576
      %v1578 = vrot.slane %v1360, 3
      %v1579 = vsel %vm1565, %v1488, %v1578
      %v1580 = vrot.slane %v1386, 3
      %v1581 = vsel %vm1565, %v1489, %v1580
      %v1582 = vrot.slane %v1412, 3
      %v1583 = vsel %vm1565, %v1490, %v1582
      %v1593 = vmax.f32 %v1201, %v1567
      %v1594 = vmax.f32 %v1227, %v1569
      %v1595 = vmax.f32 %v1253, %v1571
      %v1596 = vmax.f32 %v1279, %v1573
      %v1597 = vmax.f32 %v1305, %v1575
      %v1598 = vmax.f32 %v1331, %v1577
      %v1599 = vmax.f32 %v1357, %v1579
      %v1600 = vmax.f32 %v1383, %v1581
      %v1601 = vmax.f32 %v1409, %v1583
      %v1602 = vrot.slane %v1453, 4
      %v1604 = vadd.f32 %v1593, %v1602
      %v1605 = vadd.f32 %v1594, %v1602
      %v1606 = vadd.f32 %v1595, %v1602
      %v1607 = vadd.f32 %v1596, %v1602
      %v1608 = vadd.f32 %v1597, %v1602
      %v1609 = vadd.f32 %v1598, %v1602
      %v1610 = vadd.f32 %v1599, %v1602
      %v1611 = vadd.f32 %v1600, %v1602
      %v1612 = vadd.f32 %v1601, %v1602
      %v1613 = vmax.f32 %v1604, 0.0
      %v1614 = vmax.f32 %v1605, 0.0
      %v1615 = vmax.f32 %v1606, 0.0
      %v1616 = vmax.f32 %v1607, 0.0
      %v1617 = vmax.f32 %v1608, 0.0
      %v1618 = vmax.f32 %v1609, 0.0
      %v1619 = vmax.f32 %v1610, 0.0
      %v1620 = vmax.f32 %v1611, 0.0
      %v1621 = vmax.f32 %v1612, 0.0
      %v1631 = vmax.f32 %v1204, %v1566
      %v1632 = vmax.f32 %v1230, %v1568
      %v1633 = vmax.f32 %v1256, %v1570
      %v1634 = vmax.f32 %v1282, %v1572
      %v1635 = vmax.f32 %v1308, %v1574
      %v1636 = vmax.f32 %v1334, %v1576
      %v1637 = vmax.f32 %v1360, %v1578
      %v1638 = vmax.f32 %v1386, %v1580
      %v1639 = vmax.f32 %v1412, %v1582
      %v1640 = vrot.slane %v1453, 6
      %v1642 = vadd.f32 %v1631, %v1640
      %v1643 = vadd.f32 %v1632, %v1640
      %v1644 = vadd.f32 %v1633, %v1640
      %v1645 = vadd.f32 %v1634, %v1640
      %v1646 = vadd.f32 %v1635, %v1640
      %v1647 = vadd.f32 %v1636, %v1640
      %v1648 = vadd.f32 %v1637, %v1640
      %v1649 = vadd.f32 %v1638, %v1640
      %v1650 = vadd.f32 %v1639, %v1640
      %v1651 = vmax.f32 %v1642, 0.0
      %v1652 = vmax.f32 %v1643, 0.0
      %v1653 = vmax.f32 %v1644, 0.0
      %v1654 = vmax.f32 %v1645, 0.0
      %v1655 = vmax.f32 %v1646, 0.0
      %v1656 = vmax.f32 %v1647, 0.0
      %v1657 = vmax.f32 %v1648, 0.0
      %v1658 = vmax.f32 %v1649, 0.0
      %v1659 = vmax.f32 %v1650, 0.0
      %vm1660 = vcmask 18432
      %1661 = vst.msk [vmem:[#allocation2] sm:$0x7] %vm1660, 0.0
      %vm1662 = vcmp.lt.s32.totalorder %v520, 128
      %vm1663 = vcmp.lt.s32.totalorder %v521, 128
      %v1664 = vsel %vm1662, 1, 0
      %v1665 = vsel %vm1663, 1, 0
      %v1666 = vcvt.s32.f32 %v1664
      %v1667 = vcvt.s32.f32 %v1665
      %v1670 = vperm.slane %v1666, 0
      %v1671 = vperm.slane %v1666, 1
      %v1672 = vperm.slane %v1666, 2
      %v1673 = vperm.slane %v1666, 3
      %v1674 = vperm.slane %v1666, 4
      %v1675 = vperm.slane %v1666, 5
      %v1676 = vperm.slane %v1666, 6
      %v1677 = vperm.slane %v1666, 7
      %v1678 = vperm.slane %v1667, 0
      %v1688 = vmul.f32 %v1464, %v1670
      %v1689 = vmul.f32 %v1465, %v1671
      %v1690 = vmul.f32 %v1466, %v1672
      %v1691 = vmul.f32 %v1467, %v1673
      %v1692 = vmul.f32 %v1468, %v1674
      %v1693 = vmul.f32 %v1469, %v1675
      %v1694 = vmul.f32 %v1470, %v1676
      %v1695 = vmul.f32 %v1471, %v1677
      %v1696 = vmul.f32 %v1472, %v1678
      %v1706 = vrot.slane %v1689, 4
      %v1707 = vrot.slane %v1691, 4
      %v1708 = vrot.slane %v1693, 4
      %v1709 = vrot.slane %v1695, 4
      %vm1710 = vcmask 1043456
      %v1711 = vsel %vm1710, %v1688, %v1706
      %v1712 = vsel %vm1710, %v1690, %v1707
      %v1713 = vsel %vm1710, %v1692, %v1708
      %v1714 = vsel %vm1710, %v1694, %v1709
      %1715 = vrot.lane.b32.xlu0 %v1711, 3
      %v1716 = vpop.permute.xlu0 %1715
      %1717 = vrot.lane.b32.xlu0 %v1712, 3
      %v1718 = vpop.permute.xlu0 %1717
      %1719 = vrot.lane.b32.xlu0 %v1713, 3
      %v1720 = vpop.permute.xlu0 %1719
      %1721 = vrot.lane.b32.xlu0 %v1714, 3
      %v1722 = vpop.permute.xlu0 %1721
      %1723 = vrot.lane.b32.xlu0 %v1696, 3
      %v1724 = vpop.permute.xlu0 %1723
      %v1725 = vrot.slane %v1716, 4
      %v1726 = vrot.slane %v1718, 4
      %v1727 = vrot.slane %v1720, 4
      %v1728 = vrot.slane %v1722, 4
      %vm1729 = vcmask 23552
      %v1730 = vsel %vm1729, %v1725, %v1716
      %v1731 = vsel %vm1710, %v1725, %v1726
      %v1732 = vsel %vm1729, %v1731, %v1718
      %v1733 = vsel %vm1710, %v1726, %v1727
      %v1734 = vsel %vm1729, %v1733, %v1720
      %v1735 = vsel %vm1710, %v1727, %v1728
      %v1736 = vsel %vm1729, %v1735, %v1722
      %v1737 = vsel %vm1729, %v1728, %v1724
      %vm1743 = vcmask 1042456
      %vm1744 = vcmask 1046532
      %vm1745 = vmor %vm1744, %vm1743
      %1746 = vst.msk [vmem:[#allocation2] sm:$0x77] %vm1745, %v1730
      %1747 = vst [vmem:[#allocation2 + $0x8] sm:$0x77] %v1732
      %1748 = vst [vmem:[#allocation2 + $0x10] sm:$0x77] %v1734
      %1749 = vst [vmem:[#allocation2 + $0x18] sm:$0x77] %v1736
      %vm1750 = vcmask 280576
      %1751 = vst.msk [vmem:[#allocation2 + $0x20] sm:$0x7] %vm1750, %v1737
      %s1752 = scalar_lea.vmem [#allocation2], 36
      %1753 = vst.msk [vmem:[%s1752] sm:$0x7] %vm1660, 0.0
      %vm1754 = vcmp.lt.s32.totalorder %v520, 127
      %vm1755 = vcmp.lt.s32.totalorder %v521, 127
      %v1756 = vsel %vm1754, 1, 0
      %v1757 = vsel %vm1755, 1, 0
      %v1758 = vcvt.s32.f32 %v1756
      %v1759 = vcvt.s32.f32 %v1757
      %v1762 = vperm.slane %v1758, 0
      %v1763 = vperm.slane %v1758, 1
      %v1764 = vperm.slane %v1758, 2
      %v1765 = vperm.slane %v1758, 3
      %v1766 = vperm.slane %v1758, 4
      %v1767 = vperm.slane %v1758, 5
      %v1768 = vperm.slane %v1758, 6
      %v1769 = vperm.slane %v1758, 7
      %v1770 = vperm.slane %v1759, 0
      %v1780 = vmul.f32 %v1538, %v1762
      %v1781 = vmul.f32 %v1539, %v1763
      %v1782 = vmul.f32 %v1540, %v1764
      %v1783 = vmul.f32 %v1541, %v1765
      %v1784 = vmul.f32 %v1542, %v1766
      %v1785 = vmul.f32 %v1543, %v1767
      %v1786 = vmul.f32 %v1544, %v1768
      %v1787 = vmul.f32 %v1545, %v1769
      %v1788 = vmul.f32 %v1546, %v1770
      %v1789 = vmul.f32 %v1547, %v1762
      %v1790 = vmul.f32 %v1548, %v1763
      %v1791 = vmul.f32 %v1549, %v1764
      %v1792 = vmul.f32 %v1550, %v1765
      %v1793 = vmul.f32 %v1551, %v1766
      %v1794 = vmul.f32 %v1552, %v1767
      %v1795 = vmul.f32 %v1553, %v1768
      %v1796 = vmul.f32 %v1554, %v1769
      %v1797 = vmul.f32 %v1555, %v1770
      %1816 = vst.sshfl [vmem:[#allocation1] sm:$0xff pattern:$0x75316420] %v1780
      %1817 = vst.sshfl [vmem:[#allocation1 + $0x8] sm:$0xff pattern:$0x75316420] %v1781
      %1818 = vst.sshfl [vmem:[#allocation1 + $0x10] sm:$0xff pattern:$0x75316420] %v1782
      %1819 = vst.sshfl [vmem:[#allocation1 + $0x18] sm:$0xff pattern:$0x75316420] %v1783
      %1820 = vst.sshfl [vmem:[#allocation1 + $0x20] sm:$0xff pattern:$0x75316420] %v1784
      %1821 = vst.sshfl [vmem:[#allocation1 + $0x28] sm:$0xff pattern:$0x75316420] %v1785
      %1822 = vst.sshfl [vmem:[#allocation1 + $0x30] sm:$0xff pattern:$0x75316420] %v1786
      %1823 = vst.sshfl [vmem:[#allocation1 + $0x38] sm:$0xff pattern:$0x75316420] %v1787
      %s1824 = scalar_lea.vmem [#allocation1], 1
      %v1825 = vld [vmem:[%s1824] ss:$2 sm:$0xff]
      %s1826 = scalar_lea.vmem [#allocation1], 17
      %v1827 = vld [vmem:[%s1826] ss:$2 sm:$0xff]
      %s1828 = scalar_lea.vmem [#allocation1], 33
      %v1829 = vld [vmem:[%s1828] ss:$2 sm:$0xff]
      %s1830 = scalar_lea.vmem [#allocation1], 49
      %v1831 = vld [vmem:[%s1830] ss:$2 sm:$0xff]
      %1832 = vst.sshfl [vmem:[#allocation1] sm:$0xff pattern:$0x75316420] %v1788
      %1833 = vst.sshfl [vmem:[#allocation1 + $0x10] sm:$0xff pattern:$0x75316420] %v1789
      %1834 = vst.sshfl [vmem:[#allocation1 + $0x18] sm:$0xff pattern:$0x75316420] %v1790
      %1835 = vst.sshfl [vmem:[#allocation1 + $0x20] sm:$0xff pattern:$0x75316420] %v1791
      %1836 = vst.sshfl [vmem:[#allocation1 + $0x28] sm:$0xff pattern:$0x75316420] %v1792
      %1837 = vst.sshfl [vmem:[#allocation1 + $0x30] sm:$0xff pattern:$0x75316420] %v1793
      %1838 = vst.sshfl [vmem:[#allocation1 + $0x38] sm:$0xff pattern:$0x75316420] %v1794
      %v1839 = vld [vmem:[%s1824] ss:$2 sm:$0xff]
      %s1840 = scalar_lea.vmem [#allocation1], 16
      %v1841 = vld [vmem:[%s1840] ss:$2 sm:$0xff]
      %s1842 = scalar_lea.vmem [#allocation1], 32
      %v1843 = vld [vmem:[%s1842] ss:$2 sm:$0xff]
      %s1844 = scalar_lea.vmem [#allocation1], 48
      %v1845 = vld [vmem:[%s1844] ss:$2 sm:$0xff]
      %1846 = vst.sshfl [vmem:[#allocation1] sm:$0xff pattern:$0x75316420] %v1795
      %1847 = vst.sshfl [vmem:[#allocation1 + $0x8] sm:$0xff pattern:$0x75316420] %v1796
      %1848 = vst.sshfl [vmem:[#allocation1 + $0x10] sm:$0xff pattern:$0x75316420] %v1797
      %v1849 = vld [vmem:[#allocation1] ss:$2 sm:$0xff]
      %v1850 = vld [vmem:[%s1840] ss:$2 sm:$0xff]
      %vm1851 = vcmask 1041408
      %vm1852 = vcmask 1045508
      %vm1853 = vmor %vm1851, %vm1852
      %v1854 = vrot.slane %v1825, 6
      %v1855 = vrot.slane %v1854, 4
      %v1856 = vrot.slane %v1841, 6
      %v1857 = vsel %vm1853, %v1855, %v1856
      %v1858 = vrot.slane %v1827, 6
      %v1859 = vrot.slane %v1858, 4
      %v1860 = vrot.slane %v1843, 6
      %v1861 = vsel %vm1853, %v1859, %v1860
      %v1862 = vrot.slane %v1829, 6
      %v1863 = vrot.slane %v1862, 4
      %v1864 = vrot.slane %v1845, 6
      %v1865 = vsel %vm1853, %v1863, %v1864
      %v1866 = vrot.slane %v1831, 6
      %v1867 = vrot.slane %v1866, 4
      %v1868 = vrot.slane %v1849, 6
      %v1869 = vsel %vm1853, %v1867, %v1868
      %v1870 = vrot.slane %v1839, 6
      %v1871 = vrot.slane %v1870, 4
      %v1872 = vrot.slane %v1850, 6
      %v1873 = vsel %vm1853, %v1871, %v1872
      %1874 = vrot.lane.b32.xlu0 %v1857, 3
      %v1875 = vpop.permute.xlu0 %1874
      %1876 = vrot.lane.b32.xlu0 %v1861, 3
      %v1877 = vpop.permute.xlu0 %1876
      %1878 = vrot.lane.b32.xlu0 %v1865, 3
      %v1879 = vpop.permute.xlu0 %1878
      %1880 = vrot.lane.b32.xlu0 %v1869, 3
      %v1881 = vpop.permute.xlu0 %1880
      %1882 = vrot.lane.b32.xlu0 %v1873, 3
      %v1883 = vpop.permute.xlu0 %1882
      %v1884 = vrot.slane %v1875, 4
      %v1885 = vrot.slane %v1877, 4
      %v1886 = vrot.slane %v1879, 4
      %v1887 = vrot.slane %v1881, 4
      %v1888 = vsel %vm1729, %v1884, %v1875
      %v1889 = vsel %vm1710, %v1884, %v1885
      %v1890 = vsel %vm1729, %v1889, %v1877
      %v1891 = vsel %vm1710, %v1885, %v1886
      %v1892 = vsel %vm1729, %v1891, %v1879
      %v1893 = vsel %vm1710, %v1886, %v1887
      %v1894 = vsel %vm1729, %v1893, %v1881
      %v1895 = vsel %vm1729, %v1887, %v1883
      %1901 = vst.msk [vmem:[%s1752] sm:$0x77] %vm1745, %v1888
      %1902 = vst [vmem:[%s1752 + $0x8] sm:$0x77] %v1890
      %1903 = vst [vmem:[%s1752 + $0x10] sm:$0x77] %v1892
      %1904 = vst [vmem:[%s1752 + $0x18] sm:$0x77] %v1894
      %1905 = vst.msk [vmem:[%s1752 + $0x20] sm:$0x7] %vm1750, %v1895
      %s1906 = scalar_lea.vmem [#allocation2], 72
      %1907 = vst.msk [vmem:[%s1906] sm:$0x7] %vm1660, 0.0
      %v1908 = vmul.f32 %v1613, %v1762
      %v1909 = vmul.f32 %v1614, %v1763
      %v1910 = vmul.f32 %v1615, %v1764
      %v1911 = vmul.f32 %v1616, %v1765
      %v1912 = vmul.f32 %v1617, %v1766
      %v1913 = vmul.f32 %v1618, %v1767
      %v1914 = vmul.f32 %v1619, %v1768
      %v1915 = vmul.f32 %v1620, %v1769
      %v1916 = vmul.f32 %v1621, %v1770
      %1926 = vst.sshfl [vmem:[#allocation1] sm:$0xff pattern:$0x75316420] %v1908
      %1927 = vst.sshfl [vmem:[#allocation1 + $0x8] sm:$0xff pattern:$0x75316420] %v1909
      %1928 = vst.sshfl [vmem:[#allocation1 + $0x10] sm:$0xff pattern:$0x75316420] %v1910
      %1929 = vst.sshfl [vmem:[#allocation1 + $0x18] sm:$0xff pattern:$0x75316420] %v1911
      %1930 = vst.sshfl [vmem:[#allocation1 + $0x20] sm:$0xff pattern:$0x75316420] %v1912
      %1931 = vst.sshfl [vmem:[#allocation1 + $0x28] sm:$0xff pattern:$0x75316420] %v1913
      %1932 = vst.sshfl [vmem:[#allocation1 + $0x30] sm:$0xff pattern:$0x75316420] %v1914
      %1933 = vst.sshfl [vmem:[#allocation1 + $0x38] sm:$0xff pattern:$0x75316420] %v1915
      %s1934 = scalar_lea.vmem [#allocation1], 1
      %v1935 = vld [vmem:[%s1934] ss:$2 sm:$0xff]
      %s1936 = scalar_lea.vmem [#allocation1], 17
      %v1937 = vld [vmem:[%s1936] ss:$2 sm:$0xff]
      %s1938 = scalar_lea.vmem [#allocation1], 33
      %v1939 = vld [vmem:[%s1938] ss:$2 sm:$0xff]
      %s1940 = scalar_lea.vmem [#allocation1], 49
      %v1941 = vld [vmem:[%s1940] ss:$2 sm:$0xff]
      %1942 = vst.sshfl [vmem:[#allocation1] sm:$0xff pattern:$0x75316420] %v1916
      %v1943 = vld [vmem:[%s1934] ss:$2 sm:$0xff]
      %1944 = vrot.lane.b32.xlu0 %v1935, 3
      %v1945 = vpop.permute.xlu0 %1944
      %1946 = vrot.lane.b32.xlu0 %v1937, 3
      %v1947 = vpop.permute.xlu0 %1946
      %1948 = vrot.lane.b32.xlu0 %v1939, 3
      %v1949 = vpop.permute.xlu0 %1948
      %1950 = vrot.lane.b32.xlu0 %v1941, 3
      %v1951 = vpop.permute.xlu0 %1950
      %1952 = vrot.lane.b32.xlu0 %v1943, 3
      %v1953 = vpop.permute.xlu0 %1952
      %v1954 = vrot.slane %v1945, 4
      %v1955 = vrot.slane %v1947, 4
      %v1956 = vrot.slane %v1949, 4
      %v1957 = vrot.slane %v1951, 4
      %v1958 = vsel %vm1729, %v1954, %v1945
      %v1959 = vsel %vm1710, %v1954, %v1955
      %v1960 = vsel %vm1729, %v1959, %v1947
      %v1961 = vsel %vm1710, %v1955, %v1956
      %v1962 = vsel %vm1729, %v1961, %v1949
      %v1963 = vsel %vm1710, %v1956, %v1957
      %v1964 = vsel %vm1729, %v1963, %v1951
      %v1965 = vsel %vm1729, %v1957, %v1953
      %1971 = vst.msk [vmem:[%s1906] sm:$0x77] %vm1745, %v1958
      %1972 = vst [vmem:[%s1906 + $0x8] sm:$0x77] %v1960
      %1973 = vst [vmem:[%s1906 + $0x10] sm:$0x77] %v1962
      %1974 = vst [vmem:[%s1906 + $0x18] sm:$0x77] %v1964
      %1975 = vst.msk [vmem:[%s1906 + $0x20] sm:$0x7] %vm1750, %v1965
      %s1976 = scalar_lea.vmem [#allocation2], 108
      %1977 = vst.msk [vmem:[%s1976] sm:$0x7] %vm1660, 0.0
      %v1978 = vmul.f32 %v1651, %v1762
      %v1979 = vmul.f32 %v1652, %v1763
      %v1980 = vmul.f32 %v1653, %v1764
      %v1981 = vmul.f32 %v1654, %v1765
      %v1982 = vmul.f32 %v1655, %v1766
      %v1983 = vmul.f32 %v1656, %v1767
      %v1984 = vmul.f32 %v1657, %v1768
      %v1985 = vmul.f32 %v1658, %v1769
      %v1986 = vmul.f32 %v1659, %v1770
      %v1996 = vrot.slane %v1979, 4
      %v1997 = vrot.slane %v1981, 4
      %v1998 = vrot.slane %v1983, 4
      %v1999 = vrot.slane %v1985, 4
      %v2000 = vsel %vm1710, %v1978, %v1996
      %v2001 = vsel %vm1710, %v1980, %v1997
      %v2002 = vsel %vm1710, %v1982, %v1998
      %v2003 = vsel %vm1710, %v1984, %v1999
      %v2004 = vsel %vm1710, %v1996, %v1978
      %v2005 = vrot.slane %v2004, 4
      %v2006 = vsel %vm1710, %v1997, %v1980
      %v2007 = vrot.slane %v2006, 4
      %v2008 = vsel %vm1710, %v1998, %v1982
      %v2009 = vrot.slane %v2008, 4
      %v2010 = vsel %vm1710, %v1999, %v1984
      %v2011 = vrot.slane %v2010, 4
      %v2012 = vrot.slane %v1986, 4
      %v2013 = vrot.slane %v2000, 6
      %v2014 = vrot.slane %v2013, 4
      %v2015 = vrot.slane %v2005, 6
      %v2016 = vsel %vm1853, %v2014, %v2015
      %v2017 = vrot.slane %v2001, 6
      %v2018 = vrot.slane %v2017, 4
      %v2019 = vrot.slane %v2007, 6
      %v2020 = vsel %vm1853, %v2018, %v2019
      %v2021 = vrot.slane %v2002, 6
      %v2022 = vrot.slane %v2021, 4
      %v2023 = vrot.slane %v2009, 6
      %v2024 = vsel %vm1853, %v2022, %v2023
      %v2025 = vrot.slane %v2003, 6
      %v2026 = vrot.slane %v2025, 4
      %v2027 = vrot.slane %v2011, 6
      %v2028 = vsel %vm1853, %v2026, %v2027
      %v2029 = vrot.slane %v1986, 6
      %v2030 = vrot.slane %v2029, 4
      %v2031 = vrot.slane %v2012, 6
      %v2032 = vsel %vm1853, %v2030, %v2031
      %2033 = vrot.lane.b32.xlu0 %v2016, 3
      %v2034 = vpop.permute.xlu0 %2033
      %2035 = vrot.lane.b32.xlu0 %v2020, 3
      %v2036 = vpop.permute.xlu0 %2035
      %2037 = vrot.lane.b32.xlu0 %v2024, 3
      %v2038 = vpop.permute.xlu0 %2037
      %2039 = vrot.lane.b32.xlu0 %v2028, 3
      %v2040 = vpop.permute.xlu0 %2039
      %2041 = vrot.lane.b32.xlu0 %v2032, 3
      %v2042 = vpop.permute.xlu0 %2041
      %v2043 = vrot.slane %v2034, 4
      %v2044 = vrot.slane %v2036, 4
      %v2045 = vrot.slane %v2038, 4
      %v2046 = vrot.slane %v2040, 4
      %v2047 = vsel %vm1729, %v2043, %v2034
      %v2048 = vsel %vm1710, %v2043, %v2044
      %v2049 = vsel %vm1729, %v2048, %v2036
      %v2050 = vsel %vm1710, %v2044, %v2045
      %v2051 = vsel %vm1729, %v2050, %v2038
      %v2052 = vsel %vm1710, %v2045, %v2046
      %v2053 = vsel %vm1729, %v2052, %v2040
      %v2054 = vsel %vm1729, %v2046, %v2042
      %2060 = vst.msk [vmem:[%s1976] sm:$0x77] %vm1745, %v2047
      %2061 = vst [vmem:[%s1976 + $0x8] sm:$0x77] %v2049
      %2062 = vst [vmem:[%s1976 + $0x10] sm:$0x77] %v2051
      %2063 = vst [vmem:[%s1976 + $0x18] sm:$0x77] %v2053
      %2064 = vst.msk [vmem:[%s1976 + $0x20] sm:$0x7] %vm1750, %v2054
      %v2065 = vld [vmem:[%s4] sm:$0xff]
      %v2066 = vld [vmem:[%s4 + $0x8] sm:$0xff]
      %v2067 = vld [vmem:[%s4 + $0x10] sm:$0xff]
      %v2068 = vld [vmem:[%s5] sm:$0x3f]
      %v2069 = vld [vmem:[%s1976] sm:$0x77]
      %v2070 = vld [vmem:[%s1976 + $0x8] sm:$0x77]
      %v2071 = vld [vmem:[%s1976 + $0x10] sm:$0x77]
      %v2072 = vld [vmem:[%s1976 + $0x18] sm:$0x77]
      %v2073 = vld [vmem:[%s1976 + $0x20] sm:$0x7]
      %2079 = vst [vmem:[#allocation1] ss:$2 sm:$0xff] %v2069
      %s2080 = scalar_lea.vmem [#allocation1], 16
      %2081 = vst [vmem:[%s2080] ss:$2 sm:$0xff] %v2070
      %s2082 = scalar_lea.vmem [#allocation1], 32
      %2083 = vst [vmem:[%s2082] ss:$2 sm:$0xff] %v2071
      %s2084 = scalar_lea.vmem [#allocation1], 48
      %2085 = vst [vmem:[%s2084] ss:$2 sm:$0xff] %v2072
      %v2086 = vld.sshfl [vmem:[#allocation1] sm:$0xff pattern:$0x75316420]
      %v2087 = vld.sshfl [vmem:[#allocation1 + $0x8] sm:$0xff pattern:$0x75316420]
      %v2088 = vld.sshfl [vmem:[#allocation1 + $0x10] sm:$0xff pattern:$0x75316420]
      %v2089 = vld.sshfl [vmem:[#allocation1 + $0x18] sm:$0xff pattern:$0x75316420]
      %v2090 = vld.sshfl [vmem:[#allocation1 + $0x20] sm:$0xff pattern:$0x75316420]
      %v2091 = vld.sshfl [vmem:[#allocation1 + $0x28] sm:$0xff pattern:$0x75316420]
      %v2092 = vld.sshfl [vmem:[#allocation1 + $0x30] sm:$0xff pattern:$0x75316420]
      %v2093 = vld.sshfl [vmem:[#allocation1 + $0x38] sm:$0xff pattern:$0x75316420]
      %2094 = vst [vmem:[#allocation1] ss:$2 sm:$0xff] %v2073
      %v2095 = vld.sshfl [vmem:[#allocation1] sm:$0xff pattern:$0x75316420]
      %2105 = vst [vmem:[#allocation4] sm:$0x7] %v2086
      %2106 = vst [vmem:[#allocation4 + $0x8] sm:$0x7] %v2087
      %2107 = vst [vmem:[#allocation4 + $0x10] sm:$0x7] %v2088
      %2108 = vst [vmem:[#allocation4 + $0x18] sm:$0x7] %v2089
      %2109 = vst [vmem:[#allocation4 + $0x20] sm:$0x7] %v2090
      %2110 = vst [vmem:[#allocation4 + $0x28] sm:$0x7] %v2091
      %2111 = vst [vmem:[#allocation4 + $0x30] sm:$0x7] %v2092
      %2112 = vst [vmem:[#allocation4 + $0x38] sm:$0x7] %v2093
      %vm2113 = vcmask 256000
      %2114 = vst.msk [vmem:[#allocation4 + $0x40] sm:$0x7] %vm2113, %v2095
      %v2115 = vld [vmem:[#allocation2] sm:$0x77]
      %v2116 = vld [vmem:[#allocation2 + $0x8] sm:$0x77]
      %v2117 = vld [vmem:[#allocation2 + $0x10] sm:$0x77]
      %v2118 = vld [vmem:[#allocation2 + $0x18] sm:$0x77]
      %v2119 = vld [vmem:[#allocation2 + $0x20] sm:$0x7]
      %2125 = vst [vmem:[#allocation1] ss:$2 sm:$0xff] %v2115
      %s2126 = scalar_lea.vmem [#allocation1], 16
      %2127 = vst [vmem:[%s2126] ss:$2 sm:$0xff] %v2116
      %s2128 = scalar_lea.vmem [#allocation1], 32
      %2129 = vst [vmem:[%s2128] ss:$2 sm:$0xff] %v2117
      %s2130 = scalar_lea.vmem [#allocation1], 48
      %2131 = vst [vmem:[%s2130] ss:$2 sm:$0xff] %v2118
      %v2132 = vld.sshfl [vmem:[#allocation1] sm:$0xff pattern:$0x75316420]
      %v2133 = vld.sshfl [vmem:[#allocation1 + $0x8] sm:$0xff pattern:$0x75316420]
      %v2134 = vld.sshfl [vmem:[#allocation1 + $0x10] sm:$0xff pattern:$0x75316420]
      %v2135 = vld.sshfl [vmem:[#allocation1 + $0x18] sm:$0xff pattern:$0x75316420]
      %v2136 = vld.sshfl [vmem:[#allocation1 + $0x20] sm:$0xff pattern:$0x75316420]
      %v2137 = vld.sshfl [vmem:[#allocation1 + $0x28] sm:$0xff pattern:$0x75316420]
      %v2138 = vld.sshfl [vmem:[#allocation1 + $0x30] sm:$0xff pattern:$0x75316420]
      %v2139 = vld.sshfl [vmem:[#allocation1 + $0x38] sm:$0xff pattern:$0x75316420]
      %2140 = vst [vmem:[#allocation1] ss:$2 sm:$0xff] %v2119
      %v2141 = vld.sshfl [vmem:[#allocation1] sm:$0xff pattern:$0x75316420]
      %v2142 = vrot.slane %v2132, 5
      %v2143 = vrot.slane %v2133, 5
      %v2144 = vrot.slane %v2134, 5
      %v2145 = vrot.slane %v2135, 5
      %v2146 = vrot.slane %v2136, 5
      %v2147 = vrot.slane %v2137, 5
      %v2148 = vrot.slane %v2138, 5
      %v2149 = vrot.slane %v2139, 5
      %v2150 = vrot.slane %v2141, 5
      %2151 = vrot.lane.b32.xlu0 %v2142, 127
      %v2152 = vpop.permute.xlu0 %2151
      %2153 = vrot.lane.b32.xlu0 %v2143, 127
      %v2154 = vpop.permute.xlu0 %2153
      %2155 = vrot.lane.b32.xlu0 %v2144, 127
      %v2156 = vpop.permute.xlu0 %2155
      %2157 = vrot.lane.b32.xlu0 %v2145, 127
      %v2158 = vpop.permute.xlu0 %2157
      %2159 = vrot.lane.b32.xlu0 %v2146, 127
      %v2160 = vpop.permute.xlu0 %2159
      %2161 = vrot.lane.b32.xlu0 %v2147, 127
      %v2162 = vpop.permute.xlu0 %2161
      %2163 = vrot.lane.b32.xlu0 %v2148, 127
      %v2164 = vpop.permute.xlu0 %2163
      %2165 = vrot.lane.b32.xlu0 %v2149, 127
      %v2166 = vpop.permute.xlu0 %2165
      %2167 = vrot.lane.b32.xlu0 %v2150, 127
      %v2168 = vpop.permute.xlu0 %2167
      %v2169 = vsel %vm580, %v2152, %v2154
      %v2170 = vsel %vm580, %v2154, %v2156
      %v2171 = vsel %vm580, %v2156, %v2158
      %v2172 = vsel %vm580, %v2158, %v2160
      %v2173 = vsel %vm580, %v2160, %v2162
      %v2174 = vsel %vm580, %v2162, %v2164
      %v2175 = vsel %vm580, %v2164, %v2166
      %v2176 = vsel %vm580, %v2166, %v2168
      %2186 = vst [vmem:[#allocation4] sm:$0x38] %v2169
      %2187 = vst [vmem:[#allocation4 + $0x8] sm:$0x38] %v2170
      %2188 = vst [vmem:[#allocation4 + $0x10] sm:$0x38] %v2171
      %2189 = vst [vmem:[#allocation4 + $0x18] sm:$0x38] %v2172
      %2190 = vst [vmem:[#allocation4 + $0x20] sm:$0x38] %v2173
      %2191 = vst [vmem:[#allocation4 + $0x28] sm:$0x38] %v2174
      %2192 = vst [vmem:[#allocation4 + $0x30] sm:$0x38] %v2175
      %2193 = vst [vmem:[#allocation4 + $0x38] sm:$0x38] %v2176
      %vm2194 = vcmask 259075
      %2195 = vst.msk [vmem:[#allocation4 + $0x40] sm:$0x38] %vm2194, %v2168
      %v2196 = vld [vmem:[%s1752] sm:$0x77]
      %v2197 = vld [vmem:[%s1752 + $0x8] sm:$0x77]
      %v2198 = vld [vmem:[%s1752 + $0x10] sm:$0x77]
      %v2199 = vld [vmem:[%s1752 + $0x18] sm:$0x77]
      %v2200 = vld [vmem:[%s1752 + $0x20] sm:$0x7]
      %2206 = vst [vmem:[#allocation1] ss:$2 sm:$0xff] %v2196
      %s2207 = scalar_lea.vmem [#allocation1], 16
      %2208 = vst [vmem:[%s2207] ss:$2 sm:$0xff] %v2197
      %s2209 = scalar_lea.vmem [#allocation1], 32
      %2210 = vst [vmem:[%s2209] ss:$2 sm:$0xff] %v2198
      %s2211 = scalar_lea.vmem [#allocation1], 48
      %2212 = vst [vmem:[%s2211] ss:$2 sm:$0xff] %v2199
      %v2213 = vld.sshfl [vmem:[#allocation1] sm:$0xff pattern:$0x75316420]
      %v2214 = vld.sshfl [vmem:[#allocation1 + $0x8] sm:$0xff pattern:$0x75316420]
      %v2215 = vld.sshfl [vmem:[#allocation1 + $0x10] sm:$0xff pattern:$0x75316420]
      %v2216 = vld.sshfl [vmem:[#allocation1 + $0x18] sm:$0xff pattern:$0x75316420]
      %v2217 = vld.sshfl [vmem:[#allocation1 + $0x20] sm:$0xff pattern:$0x75316420]
      %v2218 = vld.sshfl [vmem:[#allocation1 + $0x28] sm:$0xff pattern:$0x75316420]
      %v2219 = vld.sshfl [vmem:[#allocation1 + $0x30] sm:$0xff pattern:$0x75316420]
      %v2220 = vld.sshfl [vmem:[#allocation1 + $0x38] sm:$0xff pattern:$0x75316420]
      %2221 = vst [vmem:[#allocation1] ss:$2 sm:$0xff] %v2200
      %v2222 = vld.sshfl [vmem:[#allocation1] sm:$0xff pattern:$0x75316420]
      %v2223 = vrot.slane %v2213, 2
      %v2224 = vrot.slane %v2214, 2
      %v2225 = vrot.slane %v2215, 2
      %v2226 = vrot.slane %v2216, 2
      %v2227 = vrot.slane %v2217, 2
      %v2228 = vrot.slane %v2218, 2
      %v2229 = vrot.slane %v2219, 2
      %v2230 = vrot.slane %v2220, 2
      %v2231 = vrot.slane %v2222, 2
      %2232 = vrot.lane.b32.xlu0 %v2223, 127
      %v2233 = vpop.permute.xlu0 %2232
      %2234 = vrot.lane.b32.xlu0 %v2224, 127
      %v2235 = vpop.permute.xlu0 %2234
      %2236 = vrot.lane.b32.xlu0 %v2225, 127
      %v2237 = vpop.permute.xlu0 %2236
      %2238 = vrot.lane.b32.xlu0 %v2226, 127
      %v2239 = vpop.permute.xlu0 %2238
      %2240 = vrot.lane.b32.xlu0 %v2227, 127
      %v2241 = vpop.permute.xlu0 %2240
      %2242 = vrot.lane.b32.xlu0 %v2228, 127
      %v2243 = vpop.permute.xlu0 %2242
      %2244 = vrot.lane.b32.xlu0 %v2229, 127
      %v2245 = vpop.permute.xlu0 %2244
      %2246 = vrot.lane.b32.xlu0 %v2230, 127
      %v2247 = vpop.permute.xlu0 %2246
      %2248 = vrot.lane.b32.xlu0 %v2231, 127
      %v2249 = vpop.permute.xlu0 %2248
      %v2250 = vsel %vm580, %v2233, %v2235
      %v2251 = vsel %vm580, %v2235, %v2237
      %v2252 = vsel %vm580, %v2237, %v2239
      %v2253 = vsel %vm580, %v2239, %v2241
      %v2254 = vsel %vm580, %v2241, %v2243
      %v2255 = vsel %vm580, %v2243, %v2245
      %v2256 = vsel %vm580, %v2245, %v2247
      %v2257 = vsel %vm580, %v2247, %v2249
      %2267 = vst [vmem:[#allocation4] sm:$0xc0] %v2250
      %2268 = vst [vmem:[#allocation4 + $0x8] sm:$0xc0] %v2251
      %2269 = vst [vmem:[#allocation4 + $0x10] sm:$0xc0] %v2252
      %2270 = vst [vmem:[#allocation4 + $0x18] sm:$0xc0] %v2253
      %2271 = vst [vmem:[#allocation4 + $0x20] sm:$0xc0] %v2254
      %2272 = vst [vmem:[#allocation4 + $0x28] sm:$0xc0] %v2255
      %2273 = vst [vmem:[#allocation4 + $0x30] sm:$0xc0] %v2256
      %2274 = vst [vmem:[#allocation4 + $0x38] sm:$0xc0] %v2257
      %vm2275 = vcmask 261126
      %2276 = vst.msk [vmem:[#allocation4 + $0x40] sm:$0xc0] %vm2275, %v2249
      %2277 = vst [vmem:[#allocation4 + $0x48] sm:$0x1] %v2250
      %2278 = vst [vmem:[#allocation4 + $0x50] sm:$0x1] %v2251
      %2279 = vst [vmem:[#allocation4 + $0x58] sm:$0x1] %v2252
      %2280 = vst [vmem:[#allocation4 + $0x60] sm:$0x1] %v2253
      %2281 = vst [vmem:[#allocation4 + $0x68] sm:$0x1] %v2254
      %2282 = vst [vmem:[#allocation4 + $0x70] sm:$0x1] %v2255
      %2283 = vst [vmem:[#allocation4 + $0x78] sm:$0x1] %v2256
      %2284 = vst [vmem:[#allocation4 + $0x80] sm:$0x1] %v2257
      %vm2285 = vcmask 253952
      %2286 = vst.msk [vmem:[#allocation4 + $0x88] sm:$0x1] %vm2285, %v2249
      %v2287 = vld [vmem:[%s1906] sm:$0x77]
      %v2288 = vld [vmem:[%s1906 + $0x8] sm:$0x77]
      %v2289 = vld [vmem:[%s1906 + $0x10] sm:$0x77]
      %v2290 = vld [vmem:[%s1906 + $0x18] sm:$0x77]
      %v2291 = vld [vmem:[%s1906 + $0x20] sm:$0x7]
      %2297 = vst [vmem:[#allocation1] ss:$2 sm:$0xff] %v2287
      %s2298 = scalar_lea.vmem [#allocation1], 16
      %2299 = vst [vmem:[%s2298] ss:$2 sm:$0xff] %v2288
      %s2300 = scalar_lea.vmem [#allocation1], 32
      %2301 = vst [vmem:[%s2300] ss:$2 sm:$0xff] %v2289
      %s2302 = scalar_lea.vmem [#allocation1], 48
      %2303 = vst [vmem:[%s2302] ss:$2 sm:$0xff] %v2290
      %v2304 = vld.sshfl [vmem:[#allocation1] sm:$0xff pattern:$0x75316420]
      %v2305 = vld.sshfl [vmem:[#allocation1 + $0x8] sm:$0xff pattern:$0x75316420]
      %v2306 = vld.sshfl [vmem:[#allocation1 + $0x10] sm:$0xff pattern:$0x75316420]
      %v2307 = vld.sshfl [vmem:[#allocation1 + $0x18] sm:$0xff pattern:$0x75316420]
      %v2308 = vld.sshfl [vmem:[#allocation1 + $0x20] sm:$0xff pattern:$0x75316420]
      %v2309 = vld.sshfl [vmem:[#allocation1 + $0x28] sm:$0xff pattern:$0x75316420]
      %v2310 = vld.sshfl [vmem:[#allocation1 + $0x30] sm:$0xff pattern:$0x75316420]
      %v2311 = vld.sshfl [vmem:[#allocation1 + $0x38] sm:$0xff pattern:$0x75316420]
      %2312 = vst [vmem:[#allocation1] ss:$2 sm:$0xff] %v2291
      %v2313 = vld.sshfl [vmem:[#allocation1] sm:$0xff pattern:$0x75316420]
      %v2314 = vrot.slane %v2304, 7
      %v2315 = vrot.slane %v2305, 7
      %v2316 = vrot.slane %v2306, 7
      %v2317 = vrot.slane %v2307, 7
      %v2318 = vrot.slane %v2308, 7
      %v2319 = vrot.slane %v2309, 7
      %v2320 = vrot.slane %v2310, 7
      %v2321 = vrot.slane %v2311, 7
      %v2322 = vrot.slane %v2313, 7
      %2323 = vrot.lane.b32.xlu0 %v2314, 127
      %v2324 = vpop.permute.xlu0 %2323
      %2325 = vrot.lane.b32.xlu0 %v2315, 127
      %v2326 = vpop.permute.xlu0 %2325
      %2327 = vrot.lane.b32.xlu0 %v2316, 127
      %v2328 = vpop.permute.xlu0 %2327
      %2329 = vrot.lane.b32.xlu0 %v2317, 127
      %v2330 = vpop.permute.xlu0 %2329
      %2331 = vrot.lane.b32.xlu0 %v2318, 127
      %v2332 = vpop.permute.xlu0 %2331
      %2333 = vrot.lane.b32.xlu0 %v2319, 127
      %v2334 = vpop.permute.xlu0 %2333
      %2335 = vrot.lane.b32.xlu0 %v2320, 127
      %v2336 = vpop.permute.xlu0 %2335
      %2337 = vrot.lane.b32.xlu0 %v2321, 127
      %v2338 = vpop.permute.xlu0 %2337
      %2339 = vrot.lane.b32.xlu0 %v2322, 127
      %v2340 = vpop.permute.xlu0 %2339
      %v2341 = vsel %vm580, %v2324, %v2326
      %v2342 = vsel %vm580, %v2326, %v2328
      %v2343 = vsel %vm580, %v2328, %v2330
      %v2344 = vsel %vm580, %v2330, %v2332
      %v2345 = vsel %vm580, %v2332, %v2334
      %v2346 = vsel %vm580, %v2334, %v2336
      %v2347 = vsel %vm580, %v2336, %v2338
      %v2348 = vsel %vm580, %v2338, %v2340
      %2358 = vst [vmem:[#allocation4 + $0x48] sm:$0xe] %v2341
      %2359 = vst [vmem:[#allocation4 + $0x50] sm:$0xe] %v2342
      %2360 = vst [vmem:[#allocation4 + $0x58] sm:$0xe] %v2343
      %2361 = vst [vmem:[#allocation4 + $0x60] sm:$0xe] %v2344
      %2362 = vst [vmem:[#allocation4 + $0x68] sm:$0xe] %v2345
      %2363 = vst [vmem:[#allocation4 + $0x70] sm:$0xe] %v2346
      %2364 = vst [vmem:[#allocation4 + $0x78] sm:$0xe] %v2347
      %2365 = vst [vmem:[#allocation4 + $0x80] sm:$0xe] %v2348
      %vm2366 = vcmask 257025
      %2367 = vst.msk [vmem:[#allocation4 + $0x88] sm:$0xe] %vm2366, %v2340
      %v2368 = vld [vmem:[%s1976] sm:$0x77]
      %v2369 = vld [vmem:[%s1976 + $0x8] sm:$0x77]
      %v2370 = vld [vmem:[%s1976 + $0x10] sm:$0x77]
      %v2371 = vld [vmem:[%s1976 + $0x18] sm:$0x77]
      %v2372 = vld [vmem:[%s1976 + $0x20] sm:$0x7]
      %s2378 = scalar_lea.vmem [#allocation1], 1
      %2379 = vst [vmem:[%s2378] ss:$2 sm:$0xff] %v2368
      %s2380 = scalar_lea.vmem [#allocation1], 17
      %2381 = vst [vmem:[%s2380] ss:$2 sm:$0xff] %v2369
      %s2382 = scalar_lea.vmem [#allocation1], 33
      %2383 = vst [vmem:[%s2382] ss:$2 sm:$0xff] %v2370
      %s2384 = scalar_lea.vmem [#allocation1], 49
      %2385 = vst [vmem:[%s2384] ss:$2 sm:$0xff] %v2371
      %v2386 = vld.sshfl [vmem:[#allocation1] sm:$0xff pattern:$0x75316420]
      %v2387 = vld.sshfl [vmem:[#allocation1 + $0x8] sm:$0xff pattern:$0x75316420]
      %v2388 = vld.sshfl [vmem:[#allocation1 + $0x10] sm:$0xff pattern:$0x75316420]
      %v2389 = vld.sshfl [vmem:[#allocation1 + $0x18] sm:$0xff pattern:$0x75316420]
      %v2390 = vld.sshfl [vmem:[#allocation1 + $0x20] sm:$0xff pattern:$0x75316420]
      %v2391 = vld.sshfl [vmem:[#allocation1 + $0x28] sm:$0xff pattern:$0x75316420]
      %v2392 = vld.sshfl [vmem:[#allocation1 + $0x30] sm:$0xff pattern:$0x75316420]
      %v2393 = vld.sshfl [vmem:[#allocation1 + $0x38] sm:$0xff pattern:$0x75316420]
      %2394 = vst [vmem:[%s2378] ss:$2 sm:$0xff] %v2372
      %v2395 = vld.sshfl [vmem:[#allocation1] sm:$0xff pattern:$0x75316420]
      %2396 = vrot.lane.b32.xlu0 %v2386, 127
      %v2397 = vpop.permute.xlu0 %2396
      %2398 = vrot.lane.b32.xlu0 %v2387, 127
      %v2399 = vpop.permute.xlu0 %2398
      %2400 = vrot.lane.b32.xlu0 %v2388, 127
      %v2401 = vpop.permute.xlu0 %2400
      %2402 = vrot.lane.b32.xlu0 %v2389, 127
      %v2403 = vpop.permute.xlu0 %2402
      %2404 = vrot.lane.b32.xlu0 %v2390, 127
      %v2405 = vpop.permute.xlu0 %2404
      %2406 = vrot.lane.b32.xlu0 %v2391, 127
      %v2407 = vpop.permute.xlu0 %2406
      %2408 = vrot.lane.b32.xlu0 %v2392, 127
      %v2409 = vpop.permute.xlu0 %2408
      %2410 = vrot.lane.b32.xlu0 %v2393, 127
      %v2411 = vpop.permute.xlu0 %2410
      %2412 = vrot.lane.b32.xlu0 %v2395, 127
      %v2413 = vpop.permute.xlu0 %2412
      %v2414 = vsel %vm580, %v2397, %v2399
      %v2415 = vsel %vm580, %v2399, %v2401
      %v2416 = vsel %vm580, %v2401, %v2403
      %v2417 = vsel %vm580, %v2403, %v2405
      %v2418 = vsel %vm580, %v2405, %v2407
      %v2419 = vsel %vm580, %v2407, %v2409
      %v2420 = vsel %vm580, %v2409, %v2411
      %v2421 = vsel %vm580, %v2411, %v2413
      %2431 = vst [vmem:[#allocation4 + $0x48] sm:$0x70] %v2414
      %2432 = vst [vmem:[#allocation4 + $0x50] sm:$0x70] %v2415
      %2433 = vst [vmem:[#allocation4 + $0x58] sm:$0x70] %v2416
      %2434 = vst [vmem:[#allocation4 + $0x60] sm:$0x70] %v2417
      %2435 = vst [vmem:[#allocation4 + $0x68] sm:$0x70] %v2418
      %2436 = vst [vmem:[#allocation4 + $0x70] sm:$0x70] %v2419
      %2437 = vst [vmem:[#allocation4 + $0x78] sm:$0x70] %v2420
      %2438 = vst [vmem:[#allocation4 + $0x80] sm:$0x70] %v2421
      %vm2439 = vcmask 260100
      %2440 = vst.msk [vmem:[#allocation4 + $0x88] sm:$0x70] %vm2439, %v2413
      %v2441 = vld [vmem:[#allocation2] sm:$0x77]
      %v2442 = vld [vmem:[#allocation2 + $0x8] sm:$0x77]
      %v2443 = vld [vmem:[#allocation2 + $0x10] sm:$0x77]
      %v2444 = vld [vmem:[#allocation2 + $0x18] sm:$0x77]
      %v2445 = vld [vmem:[#allocation2 + $0x20] sm:$0x7]
      %2451 = vst [vmem:[#allocation1] ss:$2 sm:$0xff] %v2441
      %s2452 = scalar_lea.vmem [#allocation1], 16
      %2453 = vst [vmem:[%s2452] ss:$2 sm:$0xff] %v2442
      %s2454 = scalar_lea.vmem [#allocation1], 32
      %2455 = vst [vmem:[%s2454] ss:$2 sm:$0xff] %v2443
      %s2456 = scalar_lea.vmem [#allocation1], 48
      %2457 = vst [vmem:[%s2456] ss:$2 sm:$0xff] %v2444
      %v2458 = vld.sshfl [vmem:[#allocation1] sm:$0xff pattern:$0x75316420]
      %v2459 = vld.sshfl [vmem:[#allocation1 + $0x8] sm:$0xff pattern:$0x75316420]
      %v2460 = vld.sshfl [vmem:[#allocation1 + $0x10] sm:$0xff pattern:$0x75316420]
      %v2461 = vld.sshfl [vmem:[#allocation1 + $0x18] sm:$0xff pattern:$0x75316420]
      %v2462 = vld.sshfl [vmem:[#allocation1 + $0x20] sm:$0xff pattern:$0x75316420]
      %v2463 = vld.sshfl [vmem:[#allocation1 + $0x28] sm:$0xff pattern:$0x75316420]
      %v2464 = vld.sshfl [vmem:[#allocation1 + $0x30] sm:$0xff pattern:$0x75316420]
      %v2465 = vld.sshfl [vmem:[#allocation1 + $0x38] sm:$0xff pattern:$0x75316420]
      %2466 = vst [vmem:[#allocation1] ss:$2 sm:$0xff] %v2445
      %v2467 = vld.sshfl [vmem:[#allocation1] sm:$0xff pattern:$0x75316420]
      %v2468 = vrot.slane %v2458, 1
      %v2469 = vrot.slane %v2459, 1
      %v2470 = vrot.slane %v2460, 1
      %v2471 = vrot.slane %v2461, 1
      %v2472 = vrot.slane %v2462, 1
      %v2473 = vrot.slane %v2463, 1
      %v2474 = vrot.slane %v2464, 1
      %v2475 = vrot.slane %v2465, 1
      %v2476 = vrot.slane %v2467, 1
      %2477 = vrot.lane.b32.xlu0 %v2468, 126
      %v2478 = vpop.permute.xlu0 %2477
      %2479 = vrot.lane.b32.xlu0 %v2469, 126
      %v2480 = vpop.permute.xlu0 %2479
      %2481 = vrot.lane.b32.xlu0 %v2470, 126
      %v2482 = vpop.permute.xlu0 %2481
      %2483 = vrot.lane.b32.xlu0 %v2471, 126
      %v2484 = vpop.permute.xlu0 %2483
      %2485 = vrot.lane.b32.xlu0 %v2472, 126
      %v2486 = vpop.permute.xlu0 %2485
      %2487 = vrot.lane.b32.xlu0 %v2473, 126
      %v2488 = vpop.permute.xlu0 %2487
      %2489 = vrot.lane.b32.xlu0 %v2474, 126
      %v2490 = vpop.permute.xlu0 %2489
      %2491 = vrot.lane.b32.xlu0 %v2475, 126
      %v2492 = vpop.permute.xlu0 %2491
      %2493 = vrot.lane.b32.xlu0 %v2476, 126
      %v2494 = vpop.permute.xlu0 %2493
      %v2495 = vsel %vm765, %v2478, %v2480
      %v2496 = vsel %vm765, %v2480, %v2482
      %v2497 = vsel %vm765, %v2482, %v2484
      %v2498 = vsel %vm765, %v2484, %v2486
      %v2499 = vsel %vm765, %v2486, %v2488
      %v2500 = vsel %vm765, %v2488, %v2490
      %v2501 = vsel %vm765, %v2490, %v2492
      %v2502 = vsel %vm765, %v2492, %v2494
      %2512 = vst [vmem:[#allocation4 + $0x48] sm:$0x80] %v2495
      %2513 = vst [vmem:[#allocation4 + $0x50] sm:$0x80] %v2496
      %2514 = vst [vmem:[#allocation4 + $0x58] sm:$0x80] %v2497
      %2515 = vst [vmem:[#allocation4 + $0x60] sm:$0x80] %v2498
      %2516 = vst [vmem:[#allocation4 + $0x68] sm:$0x80] %v2499
      %2517 = vst [vmem:[#allocation4 + $0x70] sm:$0x80] %v2500
      %2518 = vst [vmem:[#allocation4 + $0x78] sm:$0x80] %v2501
      %2519 = vst [vmem:[#allocation4 + $0x80] sm:$0x80] %v2502
      %vm2520 = vcmask 261127
      %2521 = vst.msk [vmem:[#allocation4 + $0x88] sm:$0x80] %vm2520, %v2494
      %2522 = vst [vmem:[#allocation4 + $0x90] sm:$0x3] %v2495
      %2523 = vst [vmem:[#allocation4 + $0x98] sm:$0x3] %v2496
      %2524 = vst [vmem:[#allocation4 + $0xa0] sm:$0x3] %v2497
      %2525 = vst [vmem:[#allocation4 + $0xa8] sm:$0x3] %v2498
      %2526 = vst [vmem:[#allocation4 + $0xb0] sm:$0x3] %v2499
      %2527 = vst [vmem:[#allocation4 + $0xb8] sm:$0x3] %v2500
      %2528 = vst [vmem:[#allocation4 + $0xc0] sm:$0x3] %v2501
      %2529 = vst [vmem:[#allocation4 + $0xc8] sm:$0x3] %v2502
      %vm2530 = vcmask 254976
      %2531 = vst.msk [vmem:[#allocation4 + $0xd0] sm:$0x3] %vm2530, %v2494
      %v2532 = vld [vmem:[%s1752] sm:$0x77]
      %v2533 = vld [vmem:[%s1752 + $0x8] sm:$0x77]
      %v2534 = vld [vmem:[%s1752 + $0x10] sm:$0x77]
      %v2535 = vld [vmem:[%s1752 + $0x18] sm:$0x77]
      %v2536 = vld [vmem:[%s1752 + $0x20] sm:$0x7]
      %2542 = vst [vmem:[#allocation1] ss:$2 sm:$0xff] %v2532
      %s2543 = scalar_lea.vmem [#allocation1], 16
      %2544 = vst [vmem:[%s2543] ss:$2 sm:$0xff] %v2533
      %s2545 = scalar_lea.vmem [#allocation1], 32
      %2546 = vst [vmem:[%s2545] ss:$2 sm:$0xff] %v2534
      %s2547 = scalar_lea.vmem [#allocation1], 48
      %2548 = vst [vmem:[%s2547] ss:$2 sm:$0xff] %v2535
      %v2549 = vld.sshfl [vmem:[#allocation1] sm:$0xff pattern:$0x75316420]
      %v2550 = vld.sshfl [vmem:[#allocation1 + $0x8] sm:$0xff pattern:$0x75316420]
      %v2551 = vld.sshfl [vmem:[#allocation1 + $0x10] sm:$0xff pattern:$0x75316420]
      %v2552 = vld.sshfl [vmem:[#allocation1 + $0x18] sm:$0xff pattern:$0x75316420]
      %v2553 = vld.sshfl [vmem:[#allocation1 + $0x20] sm:$0xff pattern:$0x75316420]
      %v2554 = vld.sshfl [vmem:[#allocation1 + $0x28] sm:$0xff pattern:$0x75316420]
      %v2555 = vld.sshfl [vmem:[#allocation1 + $0x30] sm:$0xff pattern:$0x75316420]
      %v2556 = vld.sshfl [vmem:[#allocation1 + $0x38] sm:$0xff pattern:$0x75316420]
      %2557 = vst [vmem:[#allocation1] ss:$2 sm:$0xff] %v2536
      %v2558 = vld.sshfl [vmem:[#allocation1] sm:$0xff pattern:$0x75316420]
      %v2559 = vrot.slane %v2549, 6
      %v2560 = vrot.slane %v2550, 6
      %v2561 = vrot.slane %v2551, 6
      %v2562 = vrot.slane %v2552, 6
      %v2563 = vrot.slane %v2553, 6
      %v2564 = vrot.slane %v2554, 6
      %v2565 = vrot.slane %v2555, 6
      %v2566 = vrot.slane %v2556, 6
      %v2567 = vrot.slane %v2558, 6
      %2568 = vrot.lane.b32.xlu0 %v2559, 126
      %v2569 = vpop.permute.xlu0 %2568
      %2570 = vrot.lane.b32.xlu0 %v2560, 126
      %v2571 = vpop.permute.xlu0 %2570
      %2572 = vrot.lane.b32.xlu0 %v2561, 126
      %v2573 = vpop.permute.xlu0 %2572
      %2574 = vrot.lane.b32.xlu0 %v2562, 126
      %v2575 = vpop.permute.xlu0 %2574
      %2576 = vrot.lane.b32.xlu0 %v2563, 126
      %v2577 = vpop.permute.xlu0 %2576
      %2578 = vrot.lane.b32.xlu0 %v2564, 126
      %v2579 = vpop.permute.xlu0 %2578
      %2580 = vrot.lane.b32.xlu0 %v2565, 126
      %v2581 = vpop.permute.xlu0 %2580
      %2582 = vrot.lane.b32.xlu0 %v2566, 126
      %v2583 = vpop.permute.xlu0 %2582
      %2584 = vrot.lane.b32.xlu0 %v2567, 126
      %v2585 = vpop.permute.xlu0 %2584
      %v2586 = vsel %vm765, %v2569, %v2571
      %v2587 = vsel %vm765, %v2571, %v2573
      %v2588 = vsel %vm765, %v2573, %v2575
      %v2589 = vsel %vm765, %v2575, %v2577
      %v2590 = vsel %vm765, %v2577, %v2579
      %v2591 = vsel %vm765, %v2579, %v2581
      %v2592 = vsel %vm765, %v2581, %v2583
      %v2593 = vsel %vm765, %v2583, %v2585
      %2603 = vst [vmem:[#allocation4 + $0x90] sm:$0x1c] %v2586
      %2604 = vst [vmem:[#allocation4 + $0x98] sm:$0x1c] %v2587
      %2605 = vst [vmem:[#allocation4 + $0xa0] sm:$0x1c] %v2588
      %2606 = vst [vmem:[#allocation4 + $0xa8] sm:$0x1c] %v2589
      %2607 = vst [vmem:[#allocation4 + $0xb0] sm:$0x1c] %v2590
      %2608 = vst [vmem:[#allocation4 + $0xb8] sm:$0x1c] %v2591
      %2609 = vst [vmem:[#allocation4 + $0xc0] sm:$0x1c] %v2592
      %2610 = vst [vmem:[#allocation4 + $0xc8] sm:$0x1c] %v2593
      %vm2611 = vcmask 258050
      %2612 = vst.msk [vmem:[#allocation4 + $0xd0] sm:$0x1c] %vm2611, %v2585
      %v2613 = vld [vmem:[%s1906] sm:$0x77]
      %v2614 = vld [vmem:[%s1906 + $0x8] sm:$0x77]
      %v2615 = vld [vmem:[%s1906 + $0x10] sm:$0x77]
      %v2616 = vld [vmem:[%s1906 + $0x18] sm:$0x77]
      %v2617 = vld [vmem:[%s1906 + $0x20] sm:$0x7]
      %2623 = vst [vmem:[#allocation1] ss:$2 sm:$0xff] %v2613
      %s2624 = scalar_lea.vmem [#allocation1], 16
      %2625 = vst [vmem:[%s2624] ss:$2 sm:$0xff] %v2614
      %s2626 = scalar_lea.vmem [#allocation1], 32
      %2627 = vst [vmem:[%s2626] ss:$2 sm:$0xff] %v2615
      %s2628 = scalar_lea.vmem [#allocation1], 48
      %2629 = vst [vmem:[%s2628] ss:$2 sm:$0xff] %v2616
      %v2630 = vld.sshfl [vmem:[#allocation1] sm:$0xff pattern:$0x75316420]
      %v2631 = vld.sshfl [vmem:[#allocation1 + $0x8] sm:$0xff pattern:$0x75316420]
      %v2632 = vld.sshfl [vmem:[#allocation1 + $0x10] sm:$0xff pattern:$0x75316420]
      %v2633 = vld.sshfl [vmem:[#allocation1 + $0x18] sm:$0xff pattern:$0x75316420]
      %v2634 = vld.sshfl [vmem:[#allocation1 + $0x20] sm:$0xff pattern:$0x75316420]
      %v2635 = vld.sshfl [vmem:[#allocation1 + $0x28] sm:$0xff pattern:$0x75316420]
      %v2636 = vld.sshfl [vmem:[#allocation1 + $0x30] sm:$0xff pattern:$0x75316420]
      %v2637 = vld.sshfl [vmem:[#allocation1 + $0x38] sm:$0xff pattern:$0x75316420]
      %2638 = vst [vmem:[#allocation1] ss:$2 sm:$0xff] %v2617
      %v2639 = vld.sshfl [vmem:[#allocation1] sm:$0xff pattern:$0x75316420]
      %v2640 = vrot.slane %v2630, 3
      %v2641 = vrot.slane %v2631, 3
      %v2642 = vrot.slane %v2632, 3
      %v2643 = vrot.slane %v2633, 3
      %v2644 = vrot.slane %v2634, 3
      %v2645 = vrot.slane %v2635, 3
      %v2646 = vrot.slane %v2636, 3
      %v2647 = vrot.slane %v2637, 3
      %v2648 = vrot.slane %v2639, 3
      %2649 = vrot.lane.b32.xlu0 %v2640, 126
      %v2650 = vpop.permute.xlu0 %2649
      %2651 = vrot.lane.b32.xlu0 %v2641, 126
      %v2652 = vpop.permute.xlu0 %2651
      %2653 = vrot.lane.b32.xlu0 %v2642, 126
      %v2654 = vpop.permute.xlu0 %2653
      %2655 = vrot.lane.b32.xlu0 %v2643, 126
      %v2656 = vpop.permute.xlu0 %2655
      %2657 = vrot.lane.b32.xlu0 %v2644, 126
      %v2658 = vpop.permute.xlu0 %2657
      %2659 = vrot.lane.b32.xlu0 %v2645, 126
      %v2660 = vpop.permute.xlu0 %2659
      %2661 = vrot.lane.b32.xlu0 %v2646, 126
      %v2662 = vpop.permute.xlu0 %2661
      %2663 = vrot.lane.b32.xlu0 %v2647, 126
      %v2664 = vpop.permute.xlu0 %2663
      %2665 = vrot.lane.b32.xlu0 %v2648, 126
      %v2666 = vpop.permute.xlu0 %2665
      %v2667 = vsel %vm765, %v2650, %v2652
      %v2668 = vsel %vm765, %v2652, %v2654
      %v2669 = vsel %vm765, %v2654, %v2656
      %v2670 = vsel %vm765, %v2656, %v2658
      %v2671 = vsel %vm765, %v2658, %v2660
      %v2672 = vsel %vm765, %v2660, %v2662
      %v2673 = vsel %vm765, %v2662, %v2664
      %v2674 = vsel %vm765, %v2664, %v2666
      %2684 = vst [vmem:[#allocation4 + $0x90] sm:$0xe0] %v2667
      %2685 = vst [vmem:[#allocation4 + $0x98] sm:$0xe0] %v2668
      %2686 = vst [vmem:[#allocation4 + $0xa0] sm:$0xe0] %v2669
      %2687 = vst [vmem:[#allocation4 + $0xa8] sm:$0xe0] %v2670
      %2688 = vst [vmem:[#allocation4 + $0xb0] sm:$0xe0] %v2671
      %2689 = vst [vmem:[#allocation4 + $0xb8] sm:$0xe0] %v2672
      %2690 = vst [vmem:[#allocation4 + $0xc0] sm:$0xe0] %v2673
      %2691 = vst [vmem:[#allocation4 + $0xc8] sm:$0xe0] %v2674
      %vm2692 = vcmask 261125
      %2693 = vst.msk [vmem:[#allocation4 + $0xd0] sm:$0xe0] %vm2692, %v2666
      %v2694 = vld [vmem:[%s1976] sm:$0x77]
      %v2695 = vld [vmem:[%s1976 + $0x8] sm:$0x77]
      %v2696 = vld [vmem:[%s1976 + $0x10] sm:$0x77]
      %v2697 = vld [vmem:[%s1976 + $0x18] sm:$0x77]
      %v2698 = vld [vmem:[%s1976 + $0x20] sm:$0x7]
      %2704 = vst [vmem:[#allocation1] ss:$2 sm:$0xff] %v2694
      %s2705 = scalar_lea.vmem [#allocation1], 16
      %2706 = vst [vmem:[%s2705] ss:$2 sm:$0xff] %v2695
      %s2707 = scalar_lea.vmem [#allocation1], 32
      %2708 = vst [vmem:[%s2707] ss:$2 sm:$0xff] %v2696
      %s2709 = scalar_lea.vmem [#allocation1], 48
      %2710 = vst [vmem:[%s2709] ss:$2 sm:$0xff] %v2697
      %v2711 = vld.sshfl [vmem:[#allocation1] sm:$0xff pattern:$0x75316420]
      %v2712 = vld.sshfl [vmem:[#allocation1 + $0x8] sm:$0xff pattern:$0x75316420]
      %v2713 = vld.sshfl [vmem:[#allocation1 + $0x10] sm:$0xff pattern:$0x75316420]
      %v2714 = vld.sshfl [vmem:[#allocation1 + $0x18] sm:$0xff pattern:$0x75316420]
      %v2715 = vld.sshfl [vmem:[#allocation1 + $0x20] sm:$0xff pattern:$0x75316420]
      %v2716 = vld.sshfl [vmem:[#allocation1 + $0x28] sm:$0xff pattern:$0x75316420]
      %v2717 = vld.sshfl [vmem:[#allocation1 + $0x30] sm:$0xff pattern:$0x75316420]
      %v2718 = vld.sshfl [vmem:[#allocation1 + $0x38] sm:$0xff pattern:$0x75316420]
      %2719 = vst [vmem:[#allocation1] ss:$2 sm:$0xff] %v2698
      %v2720 = vld.sshfl [vmem:[#allocation1] sm:$0xff pattern:$0x75316420]
      %2721 = vrot.lane.b32.xlu0 %v2711, 126
      %v2722 = vpop.permute.xlu0 %2721
      %2723 = vrot.lane.b32.xlu0 %v2712, 126
      %v2724 = vpop.permute.xlu0 %2723
      %2725 = vrot.lane.b32.xlu0 %v2713, 126
      %v2726 = vpop.permute.xlu0 %2725
      %2727 = vrot.lane.b32.xlu0 %v2714, 126
      %v2728 = vpop.permute.xlu0 %2727
      %2729 = vrot.lane.b32.xlu0 %v2715, 126
      %v2730 = vpop.permute.xlu0 %2729
      %2731 = vrot.lane.b32.xlu0 %v2716, 126
      %v2732 = vpop.permute.xlu0 %2731
      %2733 = vrot.lane.b32.xlu0 %v2717, 126
      %v2734 = vpop.permute.xlu0 %2733
      %2735 = vrot.lane.b32.xlu0 %v2718, 126
      %v2736 = vpop.permute.xlu0 %2735
      %2737 = vrot.lane.b32.xlu0 %v2720, 126
      %v2738 = vpop.permute.xlu0 %2737
      %v2739 = vsel %vm765, %v2722, %v2724
      %v2740 = vsel %vm765, %v2724, %v2726
      %v2741 = vsel %vm765, %v2726, %v2728
      %v2742 = vsel %vm765, %v2728, %v2730
      %v2743 = vsel %vm765, %v2730, %v2732
      %v2744 = vsel %vm765, %v2732, %v2734
      %v2745 = vsel %vm765, %v2734, %v2736
      %v2746 = vsel %vm765, %v2736, %v2738
      %2756 = vst [vmem:[#allocation4 + $0xd8] sm:$0x7] %v2739
      %2757 = vst [vmem:[#allocation4 + $0xe0] sm:$0x7] %v2740
      %2758 = vst [vmem:[#allocation4 + $0xe8] sm:$0x7] %v2741
      %2759 = vst [vmem:[#allocation4 + $0xf0] sm:$0x7] %v2742
      %2760 = vst [vmem:[#allocation4 + $0xf8] sm:$0x7] %v2743
      %2761 = vst [vmem:[#allocation4 + $0x100] sm:$0x7] %v2744
      %2762 = vst [vmem:[#allocation4 + $0x108] sm:$0x7] %v2745
      %2763 = vst [vmem:[#allocation4 + $0x110] sm:$0x7] %v2746
      %2764 = vst.msk [vmem:[#allocation4 + $0x118] sm:$0x7] %vm2113, %v2738
      %v2765 = vld [vmem:[#allocation2] sm:$0x77]
      %v2766 = vld [vmem:[#allocation2 + $0x8] sm:$0x77]
      %v2767 = vld [vmem:[#allocation2 + $0x10] sm:$0x77]
      %v2768 = vld [vmem:[#allocation2 + $0x18] sm:$0x77]
      %v2769 = vld [vmem:[#allocation2 + $0x20] sm:$0x7]
      %2775 = vst [vmem:[#allocation1] ss:$2 sm:$0xff] %v2765
      %s2776 = scalar_lea.vmem [#allocation1], 16
      %2777 = vst [vmem:[%s2776] ss:$2 sm:$0xff] %v2766
      %s2778 = scalar_lea.vmem [#allocation1], 32
      %2779 = vst [vmem:[%s2778] ss:$2 sm:$0xff] %v2767
      %s2780 = scalar_lea.vmem [#allocation1], 48
      %2781 = vst [vmem:[%s2780] ss:$2 sm:$0xff] %v2768
      %v2782 = vld.sshfl [vmem:[#allocation1] sm:$0xff pattern:$0x75316420]
      %v2783 = vld.sshfl [vmem:[#allocation1 + $0x8] sm:$0xff pattern:$0x75316420]
      %v2784 = vld.sshfl [vmem:[#allocation1 + $0x10] sm:$0xff pattern:$0x75316420]
      %v2785 = vld.sshfl [vmem:[#allocation1 + $0x18] sm:$0xff pattern:$0x75316420]
      %v2786 = vld.sshfl [vmem:[#allocation1 + $0x20] sm:$0xff pattern:$0x75316420]
      %v2787 = vld.sshfl [vmem:[#allocation1 + $0x28] sm:$0xff pattern:$0x75316420]
      %v2788 = vld.sshfl [vmem:[#allocation1 + $0x30] sm:$0xff pattern:$0x75316420]
      %v2789 = vld.sshfl [vmem:[#allocation1 + $0x38] sm:$0xff pattern:$0x75316420]
      %2790 = vst [vmem:[#allocation1] ss:$2 sm:$0xff] %v2769
      %v2791 = vld.sshfl [vmem:[#allocation1] sm:$0xff pattern:$0x75316420]
      %v2792 = vrot.slane %v2782, 5
      %v2793 = vrot.slane %v2783, 5
      %v2794 = vrot.slane %v2784, 5
      %v2795 = vrot.slane %v2785, 5
      %v2796 = vrot.slane %v2786, 5
      %v2797 = vrot.slane %v2787, 5
      %v2798 = vrot.slane %v2788, 5
      %v2799 = vrot.slane %v2789, 5
      %v2800 = vrot.slane %v2791, 5
      %2801 = vrot.lane.b32.xlu0 %v2792, 125
      %v2802 = vpop.permute.xlu0 %2801
      %2803 = vrot.lane.b32.xlu0 %v2793, 125
      %v2804 = vpop.permute.xlu0 %2803
      %2805 = vrot.lane.b32.xlu0 %v2794, 125
      %v2806 = vpop.permute.xlu0 %2805
      %2807 = vrot.lane.b32.xlu0 %v2795, 125
      %v2808 = vpop.permute.xlu0 %2807
      %2809 = vrot.lane.b32.xlu0 %v2796, 125
      %v2810 = vpop.permute.xlu0 %2809
      %2811 = vrot.lane.b32.xlu0 %v2797, 125
      %v2812 = vpop.permute.xlu0 %2811
      %2813 = vrot.lane.b32.xlu0 %v2798, 125
      %v2814 = vpop.permute.xlu0 %2813
      %2815 = vrot.lane.b32.xlu0 %v2799, 125
      %v2816 = vpop.permute.xlu0 %2815
      %2817 = vrot.lane.b32.xlu0 %v2800, 125
      %v2818 = vpop.permute.xlu0 %2817
      %v2819 = vsel %vm942, %v2802, %v2804
      %v2820 = vsel %vm942, %v2804, %v2806
      %v2821 = vsel %vm942, %v2806, %v2808
      %v2822 = vsel %vm942, %v2808, %v2810
      %v2823 = vsel %vm942, %v2810, %v2812
      %v2824 = vsel %vm942, %v2812, %v2814
      %v2825 = vsel %vm942, %v2814, %v2816
      %v2826 = vsel %vm942, %v2816, %v2818
      %2836 = vst [vmem:[#allocation4 + $0xd8] sm:$0x38] %v2819
      %2837 = vst [vmem:[#allocation4 + $0xe0] sm:$0x38] %v2820
      %2838 = vst [vmem:[#allocation4 + $0xe8] sm:$0x38] %v2821
      %2839 = vst [vmem:[#allocation4 + $0xf0] sm:$0x38] %v2822
      %2840 = vst [vmem:[#allocation4 + $0xf8] sm:$0x38] %v2823
      %2841 = vst [vmem:[#allocation4 + $0x100] sm:$0x38] %v2824
      %2842 = vst [vmem:[#allocation4 + $0x108] sm:$0x38] %v2825
      %2843 = vst [vmem:[#allocation4 + $0x110] sm:$0x38] %v2826
      %2844 = vst.msk [vmem:[#allocation4 + $0x118] sm:$0x38] %vm2194, %v2818
      %v2845 = vld [vmem:[%s1752] sm:$0x77]
      %v2846 = vld [vmem:[%s1752 + $0x8] sm:$0x77]
      %v2847 = vld [vmem:[%s1752 + $0x10] sm:$0x77]
      %v2848 = vld [vmem:[%s1752 + $0x18] sm:$0x77]
      %v2849 = vld [vmem:[%s1752 + $0x20] sm:$0x7]
      %2855 = vst [vmem:[#allocation1] ss:$2 sm:$0xff] %v2845
      %s2856 = scalar_lea.vmem [#allocation1], 16
      %2857 = vst [vmem:[%s2856] ss:$2 sm:$0xff] %v2846
      %s2858 = scalar_lea.vmem [#allocation1], 32
      %2859 = vst [vmem:[%s2858] ss:$2 sm:$0xff] %v2847
      %s2860 = scalar_lea.vmem [#allocation1], 48
      %2861 = vst [vmem:[%s2860] ss:$2 sm:$0xff] %v2848
      %v2862 = vld.sshfl [vmem:[#allocation1] sm:$0xff pattern:$0x75316420]
      %v2863 = vld.sshfl [vmem:[#allocation1 + $0x8] sm:$0xff pattern:$0x75316420]
      %v2864 = vld.sshfl [vmem:[#allocation1 + $0x10] sm:$0xff pattern:$0x75316420]
      %v2865 = vld.sshfl [vmem:[#allocation1 + $0x18] sm:$0xff pattern:$0x75316420]
      %v2866 = vld.sshfl [vmem:[#allocation1 + $0x20] sm:$0xff pattern:$0x75316420]
      %v2867 = vld.sshfl [vmem:[#allocation1 + $0x28] sm:$0xff pattern:$0x75316420]
      %v2868 = vld.sshfl [vmem:[#allocation1 + $0x30] sm:$0xff pattern:$0x75316420]
      %v2869 = vld.sshfl [vmem:[#allocation1 + $0x38] sm:$0xff pattern:$0x75316420]
      %2870 = vst [vmem:[#allocation1] ss:$2 sm:$0xff] %v2849
      %v2871 = vld.sshfl [vmem:[#allocation1] sm:$0xff pattern:$0x75316420]
      %v2872 = vrot.slane %v2862, 2
      %v2873 = vrot.slane %v2863, 2
      %v2874 = vrot.slane %v2864, 2
      %v2875 = vrot.slane %v2865, 2
      %v2876 = vrot.slane %v2866, 2
      %v2877 = vrot.slane %v2867, 2
      %v2878 = vrot.slane %v2868, 2
      %v2879 = vrot.slane %v2869, 2
      %v2880 = vrot.slane %v2871, 2
      %2881 = vrot.lane.b32.xlu0 %v2872, 125
      %v2882 = vpop.permute.xlu0 %2881
      %2883 = vrot.lane.b32.xlu0 %v2873, 125
      %v2884 = vpop.permute.xlu0 %2883
      %2885 = vrot.lane.b32.xlu0 %v2874, 125
      %v2886 = vpop.permute.xlu0 %2885
      %2887 = vrot.lane.b32.xlu0 %v2875, 125
      %v2888 = vpop.permute.xlu0 %2887
      %2889 = vrot.lane.b32.xlu0 %v2876, 125
      %v2890 = vpop.permute.xlu0 %2889
      %2891 = vrot.lane.b32.xlu0 %v2877, 125
      %v2892 = vpop.permute.xlu0 %2891
      %2893 = vrot.lane.b32.xlu0 %v2878, 125
      %v2894 = vpop.permute.xlu0 %2893
      %2895 = vrot.lane.b32.xlu0 %v2879, 125
      %v2896 = vpop.permute.xlu0 %2895
      %2897 = vrot.lane.b32.xlu0 %v2880, 125
      %v2898 = vpop.permute.xlu0 %2897
      %v2899 = vsel %vm942, %v2882, %v2884
      %v2900 = vsel %vm942, %v2884, %v2886
      %v2901 = vsel %vm942, %v2886, %v2888
      %v2902 = vsel %vm942, %v2888, %v2890
      %v2903 = vsel %vm942, %v2890, %v2892
      %v2904 = vsel %vm942, %v2892, %v2894
      %v2905 = vsel %vm942, %v2894, %v2896
      %v2906 = vsel %vm942, %v2896, %v2898
      %2916 = vst [vmem:[#allocation4 + $0xd8] sm:$0xc0] %v2899
      %2917 = vst [vmem:[#allocation4 + $0xe0] sm:$0xc0] %v2900
      %2918 = vst [vmem:[#allocation4 + $0xe8] sm:$0xc0] %v2901
      %2919 = vst [vmem:[#allocation4 + $0xf0] sm:$0xc0] %v2902
      %2920 = vst [vmem:[#allocation4 + $0xf8] sm:$0xc0] %v2903
      %2921 = vst [vmem:[#allocation4 + $0x100] sm:$0xc0] %v2904
      %2922 = vst [vmem:[#allocation4 + $0x108] sm:$0xc0] %v2905
      %2923 = vst [vmem:[#allocation4 + $0x110] sm:$0xc0] %v2906
      %2924 = vst.msk [vmem:[#allocation4 + $0x118] sm:$0xc0] %vm2275, %v2898
      %2925 = vst [vmem:[#allocation4 + $0x120] sm:$0x1] %v2899
      %2926 = vst [vmem:[#allocation4 + $0x128] sm:$0x1] %v2900
      %2927 = vst [vmem:[#allocation4 + $0x130] sm:$0x1] %v2901
      %2928 = vst [vmem:[#allocation4 + $0x138] sm:$0x1] %v2902
      %2929 = vst [vmem:[#allocation4 + $0x140] sm:$0x1] %v2903
      %2930 = vst [vmem:[#allocation4 + $0x148] sm:$0x1] %v2904
      %2931 = vst [vmem:[#allocation4 + $0x150] sm:$0x1] %v2905
      %2932 = vst [vmem:[#allocation4 + $0x158] sm:$0x1] %v2906
      %2933 = vst.msk [vmem:[#allocation4 + $0x160] sm:$0x1] %vm2285, %v2898
      %v2934 = vld [vmem:[%s1906] sm:$0x77]
      %v2935 = vld [vmem:[%s1906 + $0x8] sm:$0x77]
      %v2936 = vld [vmem:[%s1906 + $0x10] sm:$0x77]
      %v2937 = vld [vmem:[%s1906 + $0x18] sm:$0x77]
      %v2938 = vld [vmem:[%s1906 + $0x20] sm:$0x7]
      %2944 = vst [vmem:[#allocation1] ss:$2 sm:$0xff] %v2934
      %s2945 = scalar_lea.vmem [#allocation1], 16
      %2946 = vst [vmem:[%s2945] ss:$2 sm:$0xff] %v2935
      %s2947 = scalar_lea.vmem [#allocation1], 32
      %2948 = vst [vmem:[%s2947] ss:$2 sm:$0xff] %v2936
      %s2949 = scalar_lea.vmem [#allocation1], 48
      %2950 = vst [vmem:[%s2949] ss:$2 sm:$0xff] %v2937
      %v2951 = vld.sshfl [vmem:[#allocation1] sm:$0xff pattern:$0x75316420]
      %v2952 = vld.sshfl [vmem:[#allocation1 + $0x8] sm:$0xff pattern:$0x75316420]
      %v2953 = vld.sshfl [vmem:[#allocation1 + $0x10] sm:$0xff pattern:$0x75316420]
      %v2954 = vld.sshfl [vmem:[#allocation1 + $0x18] sm:$0xff pattern:$0x75316420]
      %v2955 = vld.sshfl [vmem:[#allocation1 + $0x20] sm:$0xff pattern:$0x75316420]
      %v2956 = vld.sshfl [vmem:[#allocation1 + $0x28] sm:$0xff pattern:$0x75316420]
      %v2957 = vld.sshfl [vmem:[#allocation1 + $0x30] sm:$0xff pattern:$0x75316420]
      %v2958 = vld.sshfl [vmem:[#allocation1 + $0x38] sm:$0xff pattern:$0x75316420]
      %2959 = vst [vmem:[#allocation1] ss:$2 sm:$0xff] %v2938
      %v2960 = vld.sshfl [vmem:[#allocation1] sm:$0xff pattern:$0x75316420]
      %v2961 = vrot.slane %v2951, 7
      %v2962 = vrot.slane %v2952, 7
      %v2963 = vrot.slane %v2953, 7
      %v2964 = vrot.slane %v2954, 7
      %v2965 = vrot.slane %v2955, 7
      %v2966 = vrot.slane %v2956, 7
      %v2967 = vrot.slane %v2957, 7
      %v2968 = vrot.slane %v2958, 7
      %v2969 = vrot.slane %v2960, 7
      %2970 = vrot.lane.b32.xlu0 %v2961, 125
      %v2971 = vpop.permute.xlu0 %2970
      %2972 = vrot.lane.b32.xlu0 %v2962, 125
      %v2973 = vpop.permute.xlu0 %2972
      %2974 = vrot.lane.b32.xlu0 %v2963, 125
      %v2975 = vpop.permute.xlu0 %2974
      %2976 = vrot.lane.b32.xlu0 %v2964, 125
      %v2977 = vpop.permute.xlu0 %2976
      %2978 = vrot.lane.b32.xlu0 %v2965, 125
      %v2979 = vpop.permute.xlu0 %2978
      %2980 = vrot.lane.b32.xlu0 %v2966, 125
      %v2981 = vpop.permute.xlu0 %2980
      %2982 = vrot.lane.b32.xlu0 %v2967, 125
      %v2983 = vpop.permute.xlu0 %2982
      %2984 = vrot.lane.b32.xlu0 %v2968, 125
      %v2985 = vpop.permute.xlu0 %2984
      %2986 = vrot.lane.b32.xlu0 %v2969, 125
      %v2987 = vpop.permute.xlu0 %2986
      %v2988 = vsel %vm942, %v2971, %v2973
      %v2989 = vsel %vm942, %v2973, %v2975
      %v2990 = vsel %vm942, %v2975, %v2977
      %v2991 = vsel %vm942, %v2977, %v2979
      %v2992 = vsel %vm942, %v2979, %v2981
      %v2993 = vsel %vm942, %v2981, %v2983
      %v2994 = vsel %vm942, %v2983, %v2985
      %v2995 = vsel %vm942, %v2985, %v2987
      %3005 = vst [vmem:[#allocation4 + $0x120] sm:$0xe] %v2988
      %3006 = vst [vmem:[#allocation4 + $0x128] sm:$0xe] %v2989
      %3007 = vst [vmem:[#allocation4 + $0x130] sm:$0xe] %v2990
      %3008 = vst [vmem:[#allocation4 + $0x138] sm:$0xe] %v2991
      %3009 = vst [vmem:[#allocation4 + $0x140] sm:$0xe] %v2992
      %3010 = vst [vmem:[#allocation4 + $0x148] sm:$0xe] %v2993
      %3011 = vst [vmem:[#allocation4 + $0x150] sm:$0xe] %v2994
      %3012 = vst [vmem:[#allocation4 + $0x158] sm:$0xe] %v2995
      %3013 = vst.msk [vmem:[#allocation4 + $0x160] sm:$0xe] %vm2366, %v2987
      %v3014 = vld [vmem:[%s1976] sm:$0x77]
      %v3015 = vld [vmem:[%s1976 + $0x8] sm:$0x77]
      %v3016 = vld [vmem:[%s1976 + $0x10] sm:$0x77]
      %v3017 = vld [vmem:[%s1976 + $0x18] sm:$0x77]
      %v3018 = vld [vmem:[%s1976 + $0x20] sm:$0x7]
      %s3024 = scalar_lea.vmem [#allocation1], 1
      %3025 = vst [vmem:[%s3024] ss:$2 sm:$0xff] %v3014
      %s3026 = scalar_lea.vmem [#allocation1], 17
      %3027 = vst [vmem:[%s3026] ss:$2 sm:$0xff] %v3015
      %s3028 = scalar_lea.vmem [#allocation1], 33
      %3029 = vst [vmem:[%s3028] ss:$2 sm:$0xff] %v3016
      %s3030 = scalar_lea.vmem [#allocation1], 49
      %3031 = vst [vmem:[%s3030] ss:$2 sm:$0xff] %v3017
      %v3032 = vld.sshfl [vmem:[#allocation1] sm:$0xff pattern:$0x75316420]
      %v3033 = vld.sshfl [vmem:[#allocation1 + $0x8] sm:$0xff pattern:$0x75316420]
      %v3034 = vld.sshfl [vmem:[#allocation1 + $0x10] sm:$0xff pattern:$0x75316420]
      %v3035 = vld.sshfl [vmem:[#allocation1 + $0x18] sm:$0xff pattern:$0x75316420]
      %v3036 = vld.sshfl [vmem:[#allocation1 + $0x20] sm:$0xff pattern:$0x75316420]
      %v3037 = vld.sshfl [vmem:[#allocation1 + $0x28] sm:$0xff pattern:$0x75316420]
      %v3038 = vld.sshfl [vmem:[#allocation1 + $0x30] sm:$0xff pattern:$0x75316420]
      %v3039 = vld.sshfl [vmem:[#allocation1 + $0x38] sm:$0xff pattern:$0x75316420]
      %3040 = vst [vmem:[%s3024] ss:$2 sm:$0xff] %v3018
      %v3041 = vld.sshfl [vmem:[#allocation1] sm:$0xff pattern:$0x75316420]
      %3042 = vrot.lane.b32.xlu0 %v3032, 125
      %v3043 = vpop.permute.xlu0 %3042
      %3044 = vrot.lane.b32.xlu0 %v3033, 125
      %v3045 = vpop.permute.xlu0 %3044
      %3046 = vrot.lane.b32.xlu0 %v3034, 125
      %v3047 = vpop.permute.xlu0 %3046
      %3048 = vrot.lane.b32.xlu0 %v3035, 125
      %v3049 = vpop.permute.xlu0 %3048
      %3050 = vrot.lane.b32.xlu0 %v3036, 125
      %v3051 = vpop.permute.xlu0 %3050
      %3052 = vrot.lane.b32.xlu0 %v3037, 125
      %v3053 = vpop.permute.xlu0 %3052
      %3054 = vrot.lane.b32.xlu0 %v3038, 125
      %v3055 = vpop.permute.xlu0 %3054
      %3056 = vrot.lane.b32.xlu0 %v3039, 125
      %v3057 = vpop.permute.xlu0 %3056
      %3058 = vrot.lane.b32.xlu0 %v3041, 125
      %v3059 = vpop.permute.xlu0 %3058
      %v3060 = vsel %vm942, %v3043, %v3045
      %v3061 = vsel %vm942, %v3045, %v3047
      %v3062 = vsel %vm942, %v3047, %v3049
      %v3063 = vsel %vm942, %v3049, %v3051
      %v3064 = vsel %vm942, %v3051, %v3053
      %v3065 = vsel %vm942, %v3053, %v3055
      %v3066 = vsel %vm942, %v3055, %v3057
      %v3067 = vsel %vm942, %v3057, %v3059
      %3077 = vst [vmem:[#allocation4 + $0x120] sm:$0x70] %v3060
      %3078 = vst [vmem:[#allocation4 + $0x128] sm:$0x70] %v3061
      %3079 = vst [vmem:[#allocation4 + $0x130] sm:$0x70] %v3062
      %3080 = vst [vmem:[#allocation4 + $0x138] sm:$0x70] %v3063
      %3081 = vst [vmem:[#allocation4 + $0x140] sm:$0x70] %v3064
      %3082 = vst [vmem:[#allocation4 + $0x148] sm:$0x70] %v3065
      %3083 = vst [vmem:[#allocation4 + $0x150] sm:$0x70] %v3066
      %3084 = vst [vmem:[#allocation4 + $0x158] sm:$0x70] %v3067
      %3085 = vst.msk [vmem:[#allocation4 + $0x160] sm:$0x70] %vm2439, %v3059
      %v3086 = vld [vmem:[#allocation4] sm:$0xff]
      %v3087 = vld [vmem:[#allocation4 + $0x8] sm:$0xff]
      %v3088 = vld [vmem:[#allocation4 + $0x10] sm:$0xff]
      %v3089 = vld [vmem:[#allocation4 + $0x18] sm:$0xff]
      %v3090 = vld [vmem:[#allocation4 + $0x20] sm:$0xff]
      %v3091 = vld [vmem:[#allocation4 + $0x28] sm:$0xff]
      %v3092 = vld [vmem:[#allocation4 + $0x30] sm:$0xff]
      %v3093 = vld [vmem:[#allocation4 + $0x38] sm:$0xff]
      %v3094 = vld [vmem:[#allocation4 + $0x40] sm:$0xff]
      %v3095 = vld [vmem:[#allocation4 + $0x48] sm:$0xff]
      %v3096 = vld [vmem:[#allocation4 + $0x50] sm:$0xff]
      %v3097 = vld [vmem:[#allocation4 + $0x58] sm:$0xff]
      %v3098 = vld [vmem:[#allocation4 + $0x60] sm:$0xff]
      %v3099 = vld [vmem:[#allocation4 + $0x68] sm:$0xff]
      %v3100 = vld [vmem:[#allocation4 + $0x70] sm:$0xff]
      %v3101 = vld [vmem:[#allocation4 + $0x78] sm:$0xff]
      %v3102 = vld [vmem:[#allocation4 + $0x80] sm:$0xff]
      %v3103 = vld [vmem:[#allocation4 + $0x88] sm:$0xff]
      %v3104 = vld [vmem:[#allocation4 + $0x90] sm:$0xff]
      %v3105 = vld [vmem:[#allocation4 + $0x98] sm:$0xff]
      %v3106 = vld [vmem:[#allocation4 + $0xa0] sm:$0xff]
      %v3107 = vld [vmem:[#allocation4 + $0xa8] sm:$0xff]
      %v3108 = vld [vmem:[#allocation4 + $0xb0] sm:$0xff]
      %v3109 = vld [vmem:[#allocation4 + $0xb8] sm:$0xff]
      %v3110 = vld [vmem:[#allocation4 + $0xc0] sm:$0xff]
      %v3111 = vld [vmem:[#allocation4 + $0xc8] sm:$0xff]
      %v3112 = vld [vmem:[#allocation4 + $0xd0] sm:$0xff]
      %v3113 = vld [vmem:[#allocation4 + $0xd8] sm:$0xff]
      %v3114 = vld [vmem:[#allocation4 + $0xe0] sm:$0xff]
      %v3115 = vld [vmem:[#allocation4 + $0xe8] sm:$0xff]
      %v3116 = vld [vmem:[#allocation4 + $0xf0] sm:$0xff]
      %v3117 = vld [vmem:[#allocation4 + $0xf8] sm:$0xff]
      %v3118 = vld [vmem:[#allocation4 + $0x100] sm:$0xff]
      %v3119 = vld [vmem:[#allocation4 + $0x108] sm:$0xff]
      %v3120 = vld [vmem:[#allocation4 + $0x110] sm:$0xff]
      %v3121 = vld [vmem:[#allocation4 + $0x118] sm:$0xff]
      %v3122 = vld [vmem:[#allocation4 + $0x120] sm:$0x7f]
      %v3123 = vld [vmem:[#allocation4 + $0x128] sm:$0x7f]
      %v3124 = vld [vmem:[#allocation4 + $0x130] sm:$0x7f]
      %v3125 = vld [vmem:[#allocation4 + $0x138] sm:$0x7f]
      %v3126 = vld [vmem:[#allocation4 + $0x140] sm:$0x7f]
      %v3127 = vld [vmem:[#allocation4 + $0x148] sm:$0x7f]
      %v3128 = vld [vmem:[#allocation4 + $0x150] sm:$0x7f]
      %v3129 = vld [vmem:[#allocation4 + $0x158] sm:$0x7f]
      %v3130 = vld [vmem:[#allocation4 + $0x160] sm:$0x7f]
      %vm3131 = vcmask 318464
      %v3133 = vsel %vm3131, %v2065, 0
      %v3136 = vsel %vm3131, %v2066, 0
      %v3139 = vsel %vm3131, %v2067, 0
      %v3142 = vsel %vm578, %v3122, 0
      %v3145 = vsel %vm578, %v3123, 0
      %v3148 = vsel %vm578, %v3124, 0
      %v3151 = vsel %vm578, %v3125, 0
      %v3154 = vsel %vm578, %v3126, 0
      %v3157 = vsel %vm578, %v3127, 0
      %v3160 = vsel %vm578, %v3128, 0
      %v3163 = vsel %vm578, %v3129, 0
      %v3166 = vsel %vm578, %v3130, 0
      %3168 = vmatpush.msra.mxu0 0.0
      %3169 = vmatpush.msra.mxu0 0.0
      %3170 = vmatpush.msra.mxu0 0.0
      %3171 = vmatpush.msra.mxu0 0.0
      %3172 = vmatpush.msra.mxu0 0.0
      %3173 = vmatpush.msra.mxu0 0.0
      %3174 = vmatpush.msra.mxu0 0.0
      %3175 = vmatpush.msra.mxu0 0.0
      %3176 = vmatpush.msra.mxu0 0.0
      %3177 = vmatpush.msra.mxu0 0.0
      %3178 = vmatpush.msra.mxu0 0.0
      %3179 = vmatpush.msra.mxu0 %v3142
      %3180 = vmatpush.msra.mxu0 %v3113
      %3181 = vmatpush.msra.mxu0 %v3104
      %3182 = vmatpush.msra.mxu0 %v3095
      %3183 = vmatpush.msra.mxu0 %v3086
      %3184 = vmatmul.f32.gmra.mxu0 %v3133
      %v3185 = vpop.f32.mrf.mxu0
      %v3186 = vadd.f32 0.0, %v3185
      %3187 = vmatmul.f32.gmra.mxu0 %v3136
      %v3188 = vpop.f32.mrf.mxu0
      %v3189 = vadd.f32 0.0, %v3188
      %3190 = vmatmul.f32.gmra.mxu0 %v3139
      %v3191 = vpop.f32.mrf.mxu0
      %v3192 = vadd.f32 0.0, %v3191
      %3193 = vdwg.mxu0
      %3194 = vmatpush.msra.mxu0 0.0
      %3195 = vmatpush.msra.mxu0 0.0
      %3196 = vmatpush.msra.mxu0 0.0
      %3197 = vmatpush.msra.mxu0 0.0
      %3198 = vmatpush.msra.mxu0 0.0
      %3199 = vmatpush.msra.mxu0 0.0
      %3200 = vmatpush.msra.mxu0 0.0
      %3201 = vmatpush.msra.mxu0 0.0
      %3202 = vmatpush.msra.mxu0 0.0
      %3203 = vmatpush.msra.mxu0 0.0
      %3204 = vmatpush.msra.mxu0 0.0
      %3205 = vmatpush.msra.mxu0 %v3145
      %3206 = vmatpush.msra.mxu0 %v3114
      %3207 = vmatpush.msra.mxu0 %v3105
      %3208 = vmatpush.msra.mxu0 %v3096
      %3209 = vmatpush.msra.mxu0 %v3087
      %3210 = vmatmul.f32.gmra.mxu0 %v3133
      %v3211 = vpop.f32.mrf.mxu0
      %v3212 = vadd.f32 0.0, %v3211
      %3213 = vmatmul.f32.gmra.mxu0 %v3136
      %v3214 = vpop.f32.mrf.mxu0
      %v3215 = vadd.f32 0.0, %v3214
      %3216 = vmatmul.f32.gmra.mxu0 %v3139
      %v3217 = vpop.f32.mrf.mxu0
      %v3218 = vadd.f32 0.0, %v3217
      %3219 = vdwg.mxu0
      %3220 = vmatpush.msra.mxu0 0.0
      %3221 = vmatpush.msra.mxu0 0.0
      %3222 = vmatpush.msra.mxu0 0.0
      %3223 = vmatpush.msra.mxu0 0.0
      %3224 = vmatpush.msra.mxu0 0.0
      %3225 = vmatpush.msra.mxu0 0.0
      %3226 = vmatpush.msra.mxu0 0.0
      %3227 = vmatpush.msra.mxu0 0.0
      %3228 = vmatpush.msra.mxu0 0.0
      %3229 = vmatpush.msra.mxu0 0.0
      %3230 = vmatpush.msra.mxu0 0.0
      %3231 = vmatpush.msra.mxu0 %v3148
      %3232 = vmatpush.msra.mxu0 %v3115
      %3233 = vmatpush.msra.mxu0 %v3106
      %3234 = vmatpush.msra.mxu0 %v3097
      %3235 = vmatpush.msra.mxu0 %v3088
      %3236 = vmatmul.f32.gmra.mxu0 %v3133
      %v3237 = vpop.f32.mrf.mxu0
      %v3238 = vadd.f32 0.0, %v3237
      %3239 = vmatmul.f32.gmra.mxu0 %v3136
      %v3240 = vpop.f32.mrf.mxu0
      %v3241 = vadd.f32 0.0, %v3240
      %3242 = vmatmul.f32.gmra.mxu0 %v3139
      %v3243 = vpop.f32.mrf.mxu0
      %v3244 = vadd.f32 0.0, %v3243
      %3245 = vdwg.mxu0
      %3246 = vmatpush.msra.mxu0 0.0
      %3247 = vmatpush.msra.mxu0 0.0
      %3248 = vmatpush.msra.mxu0 0.0
      %3249 = vmatpush.msra.mxu0 0.0
      %3250 = vmatpush.msra.mxu0 0.0
      %3251 = vmatpush.msra.mxu0 0.0
      %3252 = vmatpush.msra.mxu0 0.0
      %3253 = vmatpush.msra.mxu0 0.0
      %3254 = vmatpush.msra.mxu0 0.0
      %3255 = vmatpush.msra.mxu0 0.0
      %3256 = vmatpush.msra.mxu0 0.0
      %3257 = vmatpush.msra.mxu0 %v3151
      %3258 = vmatpush.msra.mxu0 %v3116
      %3259 = vmatpush.msra.mxu0 %v3107
      %3260 = vmatpush.msra.mxu0 %v3098
      %3261 = vmatpush.msra.mxu0 %v3089
      %3262 = vmatmul.f32.gmra.mxu0 %v3133
      %v3263 = vpop.f32.mrf.mxu0
      %v3264 = vadd.f32 0.0, %v3263
      %3265 = vmatmul.f32.gmra.mxu0 %v3136
      %v3266 = vpop.f32.mrf.mxu0
      %v3267 = vadd.f32 0.0, %v3266
      %3268 = vmatmul.f32.gmra.mxu0 %v3139
      %v3269 = vpop.f32.mrf.mxu0
      %v3270 = vadd.f32 0.0, %v3269
      %3271 = vdwg.mxu0
      %3272 = vmatpush.msra.mxu0 0.0
      %3273 = vmatpush.msra.mxu0 0.0
      %3274 = vmatpush.msra.mxu0 0.0
      %3275 = vmatpush.msra.mxu0 0.0
      %3276 = vmatpush.msra.mxu0 0.0
      %3277 = vmatpush.msra.mxu0 0.0
      %3278 = vmatpush.msra.mxu0 0.0
      %3279 = vmatpush.msra.mxu0 0.0
      %3280 = vmatpush.msra.mxu0 0.0
      %3281 = vmatpush.msra.mxu0 0.0
      %3282 = vmatpush.msra.mxu0 0.0
      %3283 = vmatpush.msra.mxu0 %v3154
      %3284 = vmatpush.msra.mxu0 %v3117
      %3285 = vmatpush.msra.mxu0 %v3108
      %3286 = vmatpush.msra.mxu0 %v3099
      %3287 = vmatpush.msra.mxu0 %v3090
      %3288 = vmatmul.f32.gmra.mxu0 %v3133
      %v3289 = vpop.f32.mrf.mxu0
      %v3290 = vadd.f32 0.0, %v3289
      %3291 = vmatmul.f32.gmra.mxu0 %v3136
      %v3292 = vpop.f32.mrf.mxu0
      %v3293 = vadd.f32 0.0, %v3292
      %3294 = vmatmul.f32.gmra.mxu0 %v3139
      %v3295 = vpop.f32.mrf.mxu0
      %v3296 = vadd.f32 0.0, %v3295
      %3297 = vdwg.mxu0
      %3298 = vmatpush.msra.mxu0 0.0
      %3299 = vmatpush.msra.mxu0 0.0
      %3300 = vmatpush.msra.mxu0 0.0
      %3301 = vmatpush.msra.mxu0 0.0
      %3302 = vmatpush.msra.mxu0 0.0
      %3303 = vmatpush.msra.mxu0 0.0
      %3304 = vmatpush.msra.mxu0 0.0
      %3305 = vmatpush.msra.mxu0 0.0
      %3306 = vmatpush.msra.mxu0 0.0
      %3307 = vmatpush.msra.mxu0 0.0
      %3308 = vmatpush.msra.mxu0 0.0
      %3309 = vmatpush.msra.mxu0 %v3157
      %3310 = vmatpush.msra.mxu0 %v3118
      %3311 = vmatpush.msra.mxu0 %v3109
      %3312 = vmatpush.msra.mxu0 %v3100
      %3313 = vmatpush.msra.mxu0 %v3091
      %3314 = vmatmul.f32.gmra.mxu0 %v3133
      %v3315 = vpop.f32.mrf.mxu0
      %v3316 = vadd.f32 0.0, %v3315
      %3317 = vmatmul.f32.gmra.mxu0 %v3136
      %v3318 = vpop.f32.mrf.mxu0
      %v3319 = vadd.f32 0.0, %v3318
      %3320 = vmatmul.f32.gmra.mxu0 %v3139
      %v3321 = vpop.f32.mrf.mxu0
      %v3322 = vadd.f32 0.0, %v3321
      %3323 = vdwg.mxu0
      %3324 = vmatpush.msra.mxu0 0.0
      %3325 = vmatpush.msra.mxu0 0.0
      %3326 = vmatpush.msra.mxu0 0.0
      %3327 = vmatpush.msra.mxu0 0.0
      %3328 = vmatpush.msra.mxu0 0.0
      %3329 = vmatpush.msra.mxu0 0.0
      %3330 = vmatpush.msra.mxu0 0.0
      %3331 = vmatpush.msra.mxu0 0.0
      %3332 = vmatpush.msra.mxu0 0.0
      %3333 = vmatpush.msra.mxu0 0.0
      %3334 = vmatpush.msra.mxu0 0.0
      %3335 = vmatpush.msra.mxu0 %v3160
      %3336 = vmatpush.msra.mxu0 %v3119
      %3337 = vmatpush.msra.mxu0 %v3110
      %3338 = vmatpush.msra.mxu0 %v3101
      %3339 = vmatpush.msra.mxu0 %v3092
      %3340 = vmatmul.f32.gmra.mxu0 %v3133
      %v3341 = vpop.f32.mrf.mxu0
      %v3342 = vadd.f32 0.0, %v3341
      %3343 = vmatmul.f32.gmra.mxu0 %v3136
      %v3344 = vpop.f32.mrf.mxu0
      %v3345 = vadd.f32 0.0, %v3344
      %3346 = vmatmul.f32.gmra.mxu0 %v3139
      %v3347 = vpop.f32.mrf.mxu0
      %v3348 = vadd.f32 0.0, %v3347
      %3349 = vdwg.mxu0
      %3350 = vmatpush.msra.mxu0 0.0
      %3351 = vmatpush.msra.mxu0 0.0
      %3352 = vmatpush.msra.mxu0 0.0
      %3353 = vmatpush.msra.mxu0 0.0
      %3354 = vmatpush.msra.mxu0 0.0
      %3355 = vmatpush.msra.mxu0 0.0
      %3356 = vmatpush.msra.mxu0 0.0
      %3357 = vmatpush.msra.mxu0 0.0
      %3358 = vmatpush.msra.mxu0 0.0
      %3359 = vmatpush.msra.mxu0 0.0
      %3360 = vmatpush.msra.mxu0 0.0
      %3361 = vmatpush.msra.mxu0 %v3163
      %3362 = vmatpush.msra.mxu0 %v3120
      %3363 = vmatpush.msra.mxu0 %v3111
      %3364 = vmatpush.msra.mxu0 %v3102
      %3365 = vmatpush.msra.mxu0 %v3093
      %3366 = vmatmul.f32.gmra.mxu0 %v3133
      %v3367 = vpop.f32.mrf.mxu0
      %v3368 = vadd.f32 0.0, %v3367
      %3369 = vmatmul.f32.gmra.mxu0 %v3136
      %v3370 = vpop.f32.mrf.mxu0
      %v3371 = vadd.f32 0.0, %v3370
      %3372 = vmatmul.f32.gmra.mxu0 %v3139
      %v3373 = vpop.f32.mrf.mxu0
      %v3374 = vadd.f32 0.0, %v3373
      %3375 = vdwg.mxu0
      %3376 = vmatpush.msra.mxu0 0.0
      %3377 = vmatpush.msra.mxu0 0.0
      %3378 = vmatpush.msra.mxu0 0.0
      %3379 = vmatpush.msra.mxu0 0.0
      %3380 = vmatpush.msra.mxu0 0.0
      %3381 = vmatpush.msra.mxu0 0.0
      %3382 = vmatpush.msra.mxu0 0.0
      %3383 = vmatpush.msra.mxu0 0.0
      %3384 = vmatpush.msra.mxu0 0.0
      %3385 = vmatpush.msra.mxu0 0.0
      %3386 = vmatpush.msra.mxu0 0.0
      %3387 = vmatpush.msra.mxu0 %v3166
      %3388 = vmatpush.msra.mxu0 %v3121
      %3389 = vmatpush.msra.mxu0 %v3112
      %3390 = vmatpush.msra.mxu0 %v3103
      %3391 = vmatpush.msra.mxu0 %v3094
      %3392 = vmatmul.f32.gmra.mxu0 %v3133
      %v3393 = vpop.f32.mrf.mxu0
      %v3394 = vadd.f32 0.0, %v3393
      %3395 = vmatmul.f32.gmra.mxu0 %v3136
      %v3396 = vpop.f32.mrf.mxu0
      %v3397 = vadd.f32 0.0, %v3396
      %3398 = vmatmul.f32.gmra.mxu0 %v3139
      %v3399 = vpop.f32.mrf.mxu0
      %v3400 = vadd.f32 0.0, %v3399
      %3401 = vdwg.mxu0
      %v3420 = vrot.slane %v3186, 6
      %v3421 = vrot.slane %v3189, 6
      %v3422 = vsel %vm1851, %v3420, %v3421
      %v3423 = vrot.slane %v3212, 6
      %v3424 = vrot.slane %v3215, 6
      %v3425 = vsel %vm1851, %v3423, %v3424
      %v3426 = vrot.slane %v3238, 6
      %v3427 = vrot.slane %v3241, 6
      %v3428 = vsel %vm1851, %v3426, %v3427
      %v3429 = vrot.slane %v3264, 6
      %v3430 = vrot.slane %v3267, 6
      %v3431 = vsel %vm1851, %v3429, %v3430
      %v3432 = vrot.slane %v3290, 6
      %v3433 = vrot.slane %v3293, 6
      %v3434 = vsel %vm1851, %v3432, %v3433
      %v3435 = vrot.slane %v3316, 6
      %v3436 = vrot.slane %v3319, 6
      %v3437 = vsel %vm1851, %v3435, %v3436
      %v3438 = vrot.slane %v3342, 6
      %v3439 = vrot.slane %v3345, 6
      %v3440 = vsel %vm1851, %v3438, %v3439
      %v3441 = vrot.slane %v3368, 6
      %v3442 = vrot.slane %v3371, 6
      %v3443 = vsel %vm1851, %v3441, %v3442
      %v3444 = vrot.slane %v3394, 6
      %v3445 = vrot.slane %v3397, 6
      %v3446 = vsel %vm1851, %v3444, %v3445
      %v3456 = vmax.f32 %v3186, %v3422
      %v3457 = vmax.f32 %v3212, %v3425
      %v3458 = vmax.f32 %v3238, %v3428
      %v3459 = vmax.f32 %v3264, %v3431
      %v3460 = vmax.f32 %v3290, %v3434
      %v3461 = vmax.f32 %v3316, %v3437
      %v3462 = vmax.f32 %v3342, %v3440
      %v3463 = vmax.f32 %v3368, %v3443
      %v3464 = vmax.f32 %v3394, %v3446
      %3466 = vset.pattern.permute.xlu0 0
      %3467 = vperm.xlu0 %3466, %v2068
      %v3468 = vpop.permute.xlu0 %3467
      %v3470 = vadd.f32 %v3456, %v3468
      %v3471 = vadd.f32 %v3457, %v3468
      %v3472 = vadd.f32 %v3458, %v3468
      %v3473 = vadd.f32 %v3459, %v3468
      %v3474 = vadd.f32 %v3460, %v3468
      %v3475 = vadd.f32 %v3461, %v3468
      %v3476 = vadd.f32 %v3462, %v3468
      %v3477 = vadd.f32 %v3463, %v3468
      %v3478 = vadd.f32 %v3464, %v3468
      %v3479 = vmax.f32 %v3470, 0.0
      %v3480 = vmax.f32 %v3471, 0.0
      %v3481 = vmax.f32 %v3472, 0.0
      %v3482 = vmax.f32 %v3473, 0.0
      %v3483 = vmax.f32 %v3474, 0.0
      %v3484 = vmax.f32 %v3475, 0.0
      %v3485 = vmax.f32 %v3476, 0.0
      %v3486 = vmax.f32 %v3477, 0.0
      %v3487 = vmax.f32 %v3478, 0.0
      %v3497 = vrot.slane %v3192, 6
      %v3498 = vrot.slane %v3218, 6
      %v3499 = vrot.slane %v3244, 6
      %v3500 = vrot.slane %v3270, 6
      %v3501 = vrot.slane %v3296, 6
      %v3502 = vrot.slane %v3322, 6
      %v3503 = vrot.slane %v3348, 6
      %v3504 = vrot.slane %v3374, 6
      %v3505 = vrot.slane %v3400, 6
      %v3515 = vmax.f32 %v3189, %v3497
      %v3516 = vmax.f32 %v3215, %v3498
      %v3517 = vmax.f32 %v3241, %v3499
      %v3518 = vmax.f32 %v3267, %v3500
      %v3519 = vmax.f32 %v3293, %v3501
      %v3520 = vmax.f32 %v3319, %v3502
      %v3521 = vmax.f32 %v3345, %v3503
      %v3522 = vmax.f32 %v3371, %v3504
      %v3523 = vmax.f32 %v3397, %v3505
      %v3524 = vmax.f32 %v3192, %v3497
      %v3525 = vmax.f32 %v3218, %v3498
      %v3526 = vmax.f32 %v3244, %v3499
      %v3527 = vmax.f32 %v3270, %v3500
      %v3528 = vmax.f32 %v3296, %v3501
      %v3529 = vmax.f32 %v3322, %v3502
      %v3530 = vmax.f32 %v3348, %v3503
      %v3531 = vmax.f32 %v3374, %v3504
      %v3532 = vmax.f32 %v3400, %v3505
      %v3533 = vrot.slane %v3468, 4
      %v3535 = vadd.f32 %v3515, %v3533
      %v3536 = vadd.f32 %v3516, %v3533
      %v3537 = vadd.f32 %v3517, %v3533
      %v3538 = vadd.f32 %v3518, %v3533
      %v3539 = vadd.f32 %v3519, %v3533
      %v3540 = vadd.f32 %v3520, %v3533
      %v3541 = vadd.f32 %v3521, %v3533
      %v3542 = vadd.f32 %v3522, %v3533
      %v3543 = vadd.f32 %v3523, %v3533
      %v3544 = vadd.f32 %v3524, %v3533
      %v3545 = vadd.f32 %v3525, %v3533
      %v3546 = vadd.f32 %v3526, %v3533
      %v3547 = vadd.f32 %v3527, %v3533
      %v3548 = vadd.f32 %v3528, %v3533
      %v3549 = vadd.f32 %v3529, %v3533
      %v3550 = vadd.f32 %v3530, %v3533
      %v3551 = vadd.f32 %v3531, %v3533
      %v3552 = vadd.f32 %v3532, %v3533
      %v3553 = vmax.f32 %v3535, 0.0
      %v3554 = vmax.f32 %v3536, 0.0
      %v3555 = vmax.f32 %v3537, 0.0
      %v3556 = vmax.f32 %v3538, 0.0
      %v3557 = vmax.f32 %v3539, 0.0
      %v3558 = vmax.f32 %v3540, 0.0
      %v3559 = vmax.f32 %v3541, 0.0
      %v3560 = vmax.f32 %v3542, 0.0
      %v3561 = vmax.f32 %v3543, 0.0
      %v3562 = vmax.f32 %v3544, 0.0
      %v3563 = vmax.f32 %v3545, 0.0
      %v3564 = vmax.f32 %v3546, 0.0
      %v3565 = vmax.f32 %v3547, 0.0
      %v3566 = vmax.f32 %v3548, 0.0
      %v3567 = vmax.f32 %v3549, 0.0
      %v3568 = vmax.f32 %v3550, 0.0
      %v3569 = vmax.f32 %v3551, 0.0
      %v3570 = vmax.f32 %v3552, 0.0
      %vm3571 = vcmask 13312
      %3572 = vst.msk [vmem:[#allocation3] sm:$0x3f] %vm3571, 0.0
      %vm3573 = vcmp.lt.s32.totalorder %v520, 130
      %vm3574 = vcmp.lt.s32.totalorder %v521, 130
      %v3575 = vsel %vm3573, 1, 0
      %v3576 = vsel %vm3574, 1, 0
      %v3577 = vcvt.s32.f32 %v3575
      %v3578 = vcvt.s32.f32 %v3576
      %v3581 = vperm.slane %v3577, 0
      %v3582 = vperm.slane %v3577, 1
      %v3583 = vperm.slane %v3577, 2
      %v3584 = vperm.slane %v3577, 3
      %v3585 = vperm.slane %v3577, 4
      %v3586 = vperm.slane %v3577, 5
      %v3587 = vperm.slane %v3577, 6
      %v3588 = vperm.slane %v3577, 7
      %v3589 = vperm.slane %v3578, 0
      %v3599 = vmul.f32 %v3479, %v3581
      %v3600 = vmul.f32 %v3480, %v3582
      %v3601 = vmul.f32 %v3481, %v3583
      %v3602 = vmul.f32 %v3482, %v3584
      %v3603 = vmul.f32 %v3483, %v3585
      %v3604 = vmul.f32 %v3484, %v3586
      %v3605 = vmul.f32 %v3485, %v3587
      %v3606 = vmul.f32 %v3486, %v3588
      %v3607 = vmul.f32 %v3487, %v3589
      %3617 = vrot.lane.b32.xlu0 %v3599, 2
      %v3618 = vpop.permute.xlu0 %3617
      %3619 = vrot.lane.b32.xlu0 %v3600, 2
      %v3620 = vpop.permute.xlu0 %3619
      %3621 = vrot.lane.b32.xlu0 %v3601, 2
      %v3622 = vpop.permute.xlu0 %3621
      %3623 = vrot.lane.b32.xlu0 %v3602, 2
      %v3624 = vpop.permute.xlu0 %3623
      %3625 = vrot.lane.b32.xlu0 %v3603, 2
      %v3626 = vpop.permute.xlu0 %3625
      %3627 = vrot.lane.b32.xlu0 %v3604, 2
      %v3628 = vpop.permute.xlu0 %3627
      %3629 = vrot.lane.b32.xlu0 %v3605, 2
      %v3630 = vpop.permute.xlu0 %3629
      %3631 = vrot.lane.b32.xlu0 %v3606, 2
      %v3632 = vpop.permute.xlu0 %3631
      %3633 = vrot.lane.b32.xlu0 %v3607, 2
      %v3634 = vpop.permute.xlu0 %3633
      %vm3635 = vcmask 15360
      %v3636 = vsel %vm3635, %v3618, %v3620
      %v3637 = vsel %vm3635, %v3620, %v3622
      %v3638 = vsel %vm3635, %v3622, %v3624
      %v3639 = vsel %vm3635, %v3624, %v3626
      %v3640 = vsel %vm3635, %v3626, %v3628
      %v3641 = vsel %vm3635, %v3628, %v3630
      %v3642 = vsel %vm3635, %v3630, %v3632
      %v3643 = vsel %vm3635, %v3632, %v3634
      %vm3653 = vcmask 1045520
      %3654 = vst.msk [vmem:[#allocation3] sm:$0x3f] %vm3653, %v3618
      %3655 = vst [vmem:[#allocation3 + $0x8] sm:$0x3f] %v3636
      %3656 = vst [vmem:[#allocation3 + $0x10] sm:$0x3f] %v3637
      %3657 = vst [vmem:[#allocation3 + $0x18] sm:$0x3f] %v3638
      %3658 = vst [vmem:[#allocation3 + $0x20] sm:$0x3f] %v3639
      %3659 = vst [vmem:[#allocation3 + $0x28] sm:$0x3f] %v3640
      %3660 = vst [vmem:[#allocation3 + $0x30] sm:$0x3f] %v3641
      %3661 = vst [vmem:[#allocation3 + $0x38] sm:$0x3f] %v3642
      %vm3662 = vcmask 275456
      %3663 = vst.msk [vmem:[#allocation3 + $0x40] sm:$0x3f] %vm3662, %v3643
      %s3664 = scalar_lea.vmem [#allocation3], 72
      %3665 = vst.msk [vmem:[%s3664] sm:$0x3f] %vm3571, 0.0
      %vm3666 = vcmp.lt.s32.totalorder %v520, 129
      %vm3667 = vcmp.lt.s32.totalorder %v521, 129
      %v3668 = vsel %vm3666, 1, 0
      %v3669 = vsel %vm3667, 1, 0
      %v3670 = vcvt.s32.f32 %v3668
      %v3671 = vcvt.s32.f32 %v3669
      %v3674 = vperm.slane %v3670, 0
      %v3675 = vperm.slane %v3670, 1
      %v3676 = vperm.slane %v3670, 2
      %v3677 = vperm.slane %v3670, 3
      %v3678 = vperm.slane %v3670, 4
      %v3679 = vperm.slane %v3670, 5
      %v3680 = vperm.slane %v3670, 6
      %v3681 = vperm.slane %v3670, 7
      %v3682 = vperm.slane %v3671, 0
      %v3692 = vmul.f32 %v3553, %v3674
      %v3693 = vmul.f32 %v3554, %v3675
      %v3694 = vmul.f32 %v3555, %v3676
      %v3695 = vmul.f32 %v3556, %v3677
      %v3696 = vmul.f32 %v3557, %v3678
      %v3697 = vmul.f32 %v3558, %v3679
      %v3698 = vmul.f32 %v3559, %v3680
      %v3699 = vmul.f32 %v3560, %v3681
      %v3700 = vmul.f32 %v3561, %v3682
      %v3701 = vmul.f32 %v3562, %v3674
      %v3702 = vmul.f32 %v3563, %v3675
      %v3703 = vmul.f32 %v3564, %v3676
      %v3704 = vmul.f32 %v3565, %v3677
      %v3705 = vmul.f32 %v3566, %v3678
      %v3706 = vmul.f32 %v3567, %v3679
      %v3707 = vmul.f32 %v3568, %v3680
      %v3708 = vmul.f32 %v3569, %v3681
      %v3709 = vmul.f32 %v3570, %v3682
      %v3728 = vrot.slane %v3692, 4
      %v3729 = vrot.slane %v3701, 4
      %v3730 = vsel %vm1710, %v3728, %v3729
      %v3731 = vrot.slane %v3693, 4
      %v3732 = vrot.slane %v3702, 4
      %v3733 = vsel %vm1710, %v3731, %v3732
      %v3734 = vrot.slane %v3694, 4
      %v3735 = vrot.slane %v3703, 4
      %v3736 = vsel %vm1710, %v3734, %v3735
      %v3737 = vrot.slane %v3695, 4
      %v3738 = vrot.slane %v3704, 4
      %v3739 = vsel %vm1710, %v3737, %v3738
      %v3740 = vrot.slane %v3696, 4
      %v3741 = vrot.slane %v3705, 4
      %v3742 = vsel %vm1710, %v3740, %v3741
      %v3743 = vrot.slane %v3697, 4
      %v3744 = vrot.slane %v3706, 4
      %v3745 = vsel %vm1710, %v3743, %v3744
      %v3746 = vrot.slane %v3698, 4
      %v3747 = vrot.slane %v3707, 4
      %v3748 = vsel %vm1710, %v3746, %v3747
      %v3749 = vrot.slane %v3699, 4
      %v3750 = vrot.slane %v3708, 4
      %v3751 = vsel %vm1710, %v3749, %v3750
      %v3752 = vrot.slane %v3700, 4
      %v3753 = vrot.slane %v3709, 4
      %v3754 = vsel %vm1710, %v3752, %v3753
      %3755 = vrot.lane.b32.xlu0 %v3730, 2
      %v3756 = vpop.permute.xlu0 %3755
      %3757 = vrot.lane.b32.xlu0 %v3733, 2
      %v3758 = vpop.permute.xlu0 %3757
      %3759 = vrot.lane.b32.xlu0 %v3736, 2
      %v3760 = vpop.permute.xlu0 %3759
      %3761 = vrot.lane.b32.xlu0 %v3739, 2
      %v3762 = vpop.permute.xlu0 %3761
      %3763 = vrot.lane.b32.xlu0 %v3742, 2
      %v3764 = vpop.permute.xlu0 %3763
      %3765 = vrot.lane.b32.xlu0 %v3745, 2
      %v3766 = vpop.permute.xlu0 %3765
      %3767 = vrot.lane.b32.xlu0 %v3748, 2
      %v3768 = vpop.permute.xlu0 %3767
      %3769 = vrot.lane.b32.xlu0 %v3751, 2
      %v3770 = vpop.permute.xlu0 %3769
      %3771 = vrot.lane.b32.xlu0 %v3754, 2
      %v3772 = vpop.permute.xlu0 %3771
      %v3773 = vsel %vm3635, %v3756, %v3758
      %v3774 = vsel %vm3635, %v3758, %v3760
      %v3775 = vsel %vm3635, %v3760, %v3762
      %v3776 = vsel %vm3635, %v3762, %v3764
      %v3777 = vsel %vm3635, %v3764, %v3766
      %v3778 = vsel %vm3635, %v3766, %v3768
      %v3779 = vsel %vm3635, %v3768, %v3770
      %v3780 = vsel %vm3635, %v3770, %v3772
      %3790 = vst.msk [vmem:[%s3664] sm:$0x3f] %vm3653, %v3756
      %3791 = vst [vmem:[%s3664 + $0x8] sm:$0x3f] %v3773
      %3792 = vst [vmem:[%s3664 + $0x10] sm:$0x3f] %v3774
      %3793 = vst [vmem:[%s3664 + $0x18] sm:$0x3f] %v3775
      %3794 = vst [vmem:[%s3664 + $0x20] sm:$0x3f] %v3776
      %3795 = vst [vmem:[%s3664 + $0x28] sm:$0x3f] %v3777
      %3796 = vst [vmem:[%s3664 + $0x30] sm:$0x3f] %v3778
      %3797 = vst [vmem:[%s3664 + $0x38] sm:$0x3f] %v3779
      %3798 = vst.msk [vmem:[%s3664 + $0x40] sm:$0x3f] %vm3662, %v3780
      %v3799 = vld [vmem:[%s6] sm:$0xff]
      %v3800 = vld [vmem:[%s6 + $0x8] sm:$0xf]
      %v3801 = vld [vmem:[%s7] sm:$0x3f]
      %v3802 = vld [vmem:[#allocation3] sm:$0x3f]
      %v3803 = vld [vmem:[#allocation3 + $0x8] sm:$0x3f]
      %v3804 = vld [vmem:[#allocation3 + $0x10] sm:$0x3f]
      %v3805 = vld [vmem:[#allocation3 + $0x18] sm:$0x3f]
      %v3806 = vld [vmem:[#allocation3 + $0x20] sm:$0x3f]
      %v3807 = vld [vmem:[#allocation3 + $0x28] sm:$0x3f]
      %v3808 = vld [vmem:[#allocation3 + $0x30] sm:$0x3f]
      %v3809 = vld [vmem:[#allocation3 + $0x38] sm:$0x3f]
      %v3810 = vld [vmem:[#allocation3 + $0x40] sm:$0x3f]
      %3811 = vst [vmem:[#allocation4] sm:$0x3f] %v3802
      %3812 = vst [vmem:[#allocation4 + $0x8] sm:$0x3f] %v3803
      %3813 = vst [vmem:[#allocation4 + $0x10] sm:$0x3f] %v3804
      %3814 = vst [vmem:[#allocation4 + $0x18] sm:$0x3f] %v3805
      %3815 = vst [vmem:[#allocation4 + $0x20] sm:$0x3f] %v3806
      %3816 = vst [vmem:[#allocation4 + $0x28] sm:$0x3f] %v3807
      %3817 = vst [vmem:[#allocation4 + $0x30] sm:$0x3f] %v3808
      %3818 = vst [vmem:[#allocation4 + $0x38] sm:$0x3f] %v3809
      %vm3819 = vcmask 259072
      %3820 = vst.msk [vmem:[#allocation4 + $0x40] sm:$0x3f] %vm3819, %v3810
      %v3821 = vld [vmem:[%s3664] sm:$0x3f]
      %v3822 = vld [vmem:[%s3664 + $0x8] sm:$0x3f]
      %v3823 = vld [vmem:[%s3664 + $0x10] sm:$0x3f]
      %v3824 = vld [vmem:[%s3664 + $0x18] sm:$0x3f]
      %v3825 = vld [vmem:[%s3664 + $0x20] sm:$0x3f]
      %v3826 = vld [vmem:[%s3664 + $0x28] sm:$0x3f]
      %v3827 = vld [vmem:[%s3664 + $0x30] sm:$0x3f]
      %v3828 = vld [vmem:[%s3664 + $0x38] sm:$0x3f]
      %v3829 = vld [vmem:[%s3664 + $0x40] sm:$0x3f]
      %v3839 = vrot.slane %v3821, 2
      %v3840 = vrot.slane %v3822, 2
      %v3841 = vrot.slane %v3823, 2
      %v3842 = vrot.slane %v3824, 2
      %v3843 = vrot.slane %v3825, 2
      %v3844 = vrot.slane %v3826, 2
      %v3845 = vrot.slane %v3827, 2
      %v3846 = vrot.slane %v3828, 2
      %v3847 = vrot.slane %v3829, 2
      %3857 = vst [vmem:[#allocation4] sm:$0xc0] %v3839
      %3858 = vst [vmem:[#allocation4 + $0x8] sm:$0xc0] %v3840
      %3859 = vst [vmem:[#allocation4 + $0x10] sm:$0xc0] %v3841
      %3860 = vst [vmem:[#allocation4 + $0x18] sm:$0xc0] %v3842
      %3861 = vst [vmem:[#allocation4 + $0x20] sm:$0xc0] %v3843
      %3862 = vst [vmem:[#allocation4 + $0x28] sm:$0xc0] %v3844
      %3863 = vst [vmem:[#allocation4 + $0x30] sm:$0xc0] %v3845
      %3864 = vst [vmem:[#allocation4 + $0x38] sm:$0xc0] %v3846
      %3865 = vst.msk [vmem:[#allocation4 + $0x40] sm:$0xc0] %vm2275, %v3847
      %3866 = vst [vmem:[#allocation4 + $0x48] sm:$0xf] %v3839
      %3867 = vst [vmem:[#allocation4 + $0x50] sm:$0xf] %v3840
      %3868 = vst [vmem:[#allocation4 + $0x58] sm:$0xf] %v3841
      %3869 = vst [vmem:[#allocation4 + $0x60] sm:$0xf] %v3842
      %3870 = vst [vmem:[#allocation4 + $0x68] sm:$0xf] %v3843
      %3871 = vst [vmem:[#allocation4 + $0x70] sm:$0xf] %v3844
      %3872 = vst [vmem:[#allocation4 + $0x78] sm:$0xf] %v3845
      %3873 = vst [vmem:[#allocation4 + $0x80] sm:$0xf] %v3846
      %vm3874 = vcmask 257024
      %3875 = vst.msk [vmem:[#allocation4 + $0x88] sm:$0xf] %vm3874, %v3847
      %v3876 = vld [vmem:[#allocation3] sm:$0x3f]
      %v3877 = vld [vmem:[#allocation3 + $0x8] sm:$0x3f]
      %v3878 = vld [vmem:[#allocation3 + $0x10] sm:$0x3f]
      %v3879 = vld [vmem:[#allocation3 + $0x18] sm:$0x3f]
      %v3880 = vld [vmem:[#allocation3 + $0x20] sm:$0x3f]
      %v3881 = vld [vmem:[#allocation3 + $0x28] sm:$0x3f]
      %v3882 = vld [vmem:[#allocation3 + $0x30] sm:$0x3f]
      %v3883 = vld [vmem:[#allocation3 + $0x38] sm:$0x3f]
      %v3884 = vld [vmem:[#allocation3 + $0x40] sm:$0x3f]
      %v3894 = vrot.slane %v3876, 4
      %v3895 = vrot.slane %v3877, 4
      %v3896 = vrot.slane %v3878, 4
      %v3897 = vrot.slane %v3879, 4
      %v3898 = vrot.slane %v3880, 4
      %v3899 = vrot.slane %v3881, 4
      %v3900 = vrot.slane %v3882, 4
      %v3901 = vrot.slane %v3883, 4
      %v3902 = vrot.slane %v3884, 4
      %3903 = vrot.lane.b32.xlu0 %v3894, 127
      %v3904 = vpop.permute.xlu0 %3903
      %3905 = vrot.lane.b32.xlu0 %v3895, 127
      %v3906 = vpop.permute.xlu0 %3905
      %3907 = vrot.lane.b32.xlu0 %v3896, 127
      %v3908 = vpop.permute.xlu0 %3907
      %3909 = vrot.lane.b32.xlu0 %v3897, 127
      %v3910 = vpop.permute.xlu0 %3909
      %3911 = vrot.lane.b32.xlu0 %v3898, 127
      %v3912 = vpop.permute.xlu0 %3911
      %3913 = vrot.lane.b32.xlu0 %v3899, 127
      %v3914 = vpop.permute.xlu0 %3913
      %3915 = vrot.lane.b32.xlu0 %v3900, 127
      %v3916 = vpop.permute.xlu0 %3915
      %3917 = vrot.lane.b32.xlu0 %v3901, 127
      %v3918 = vpop.permute.xlu0 %3917
      %3919 = vrot.lane.b32.xlu0 %v3902, 127
      %v3920 = vpop.permute.xlu0 %3919
      %v3921 = vsel %vm580, %v3904, %v3906
      %v3922 = vsel %vm580, %v3906, %v3908
      %v3923 = vsel %vm580, %v3908, %v3910
      %v3924 = vsel %vm580, %v3910, %v3912
      %v3925 = vsel %vm580, %v3912, %v3914
      %v3926 = vsel %vm580, %v3914, %v3916
      %v3927 = vsel %vm580, %v3916, %v3918
      %v3928 = vsel %vm580, %v3918, %v3920
      %3938 = vst [vmem:[#allocation4 + $0x48] sm:$0xf0] %v3921
      %3939 = vst [vmem:[#allocation4 + $0x50] sm:$0xf0] %v3922
      %3940 = vst [vmem:[#allocation4 + $0x58] sm:$0xf0] %v3923
      %3941 = vst [vmem:[#allocation4 + $0x60] sm:$0xf0] %v3924
      %3942 = vst [vmem:[#allocation4 + $0x68] sm:$0xf0] %v3925
      %3943 = vst [vmem:[#allocation4 + $0x70] sm:$0xf0] %v3926
      %3944 = vst [vmem:[#allocation4 + $0x78] sm:$0xf0] %v3927
      %3945 = vst [vmem:[#allocation4 + $0x80] sm:$0xf0] %v3928
      %vm3946 = vcmask 261124
      %3947 = vst.msk [vmem:[#allocation4 + $0x88] sm:$0xf0] %vm3946, %v3920
      %3948 = vst [vmem:[#allocation4 + $0x90] sm:$0x3] %v3921
      %3949 = vst [vmem:[#allocation4 + $0x98] sm:$0x3] %v3922
      %3950 = vst [vmem:[#allocation4 + $0xa0] sm:$0x3] %v3923
      %3951 = vst [vmem:[#allocation4 + $0xa8] sm:$0x3] %v3924
      %3952 = vst [vmem:[#allocation4 + $0xb0] sm:$0x3] %v3925
      %3953 = vst [vmem:[#allocation4 + $0xb8] sm:$0x3] %v3926
      %3954 = vst [vmem:[#allocation4 + $0xc0] sm:$0x3] %v3927
      %3955 = vst [vmem:[#allocation4 + $0xc8] sm:$0x3] %v3928
      %3956 = vst.msk [vmem:[#allocation4 + $0xd0] sm:$0x3] %vm2530, %v3920
      %v3957 = vld [vmem:[%s3664] sm:$0x3f]
      %v3958 = vld [vmem:[%s3664 + $0x8] sm:$0x3f]
      %v3959 = vld [vmem:[%s3664 + $0x10] sm:$0x3f]
      %v3960 = vld [vmem:[%s3664 + $0x18] sm:$0x3f]
      %v3961 = vld [vmem:[%s3664 + $0x20] sm:$0x3f]
      %v3962 = vld [vmem:[%s3664 + $0x28] sm:$0x3f]
      %v3963 = vld [vmem:[%s3664 + $0x30] sm:$0x3f]
      %v3964 = vld [vmem:[%s3664 + $0x38] sm:$0x3f]
      %v3965 = vld [vmem:[%s3664 + $0x40] sm:$0x3f]
      %v3975 = vrot.slane %v3957, 6
      %v3976 = vrot.slane %v3958, 6
      %v3977 = vrot.slane %v3959, 6
      %v3978 = vrot.slane %v3960, 6
      %v3979 = vrot.slane %v3961, 6
      %v3980 = vrot.slane %v3962, 6
      %v3981 = vrot.slane %v3963, 6
      %v3982 = vrot.slane %v3964, 6
      %v3983 = vrot.slane %v3965, 6
      %3984 = vrot.lane.b32.xlu0 %v3975, 127
      %v3985 = vpop.permute.xlu0 %3984
      %3986 = vrot.lane.b32.xlu0 %v3976, 127
      %v3987 = vpop.permute.xlu0 %3986
      %3988 = vrot.lane.b32.xlu0 %v3977, 127
      %v3989 = vpop.permute.xlu0 %3988
      %3990 = vrot.lane.b32.xlu0 %v3978, 127
      %v3991 = vpop.permute.xlu0 %3990
      %3992 = vrot.lane.b32.xlu0 %v3979, 127
      %v3993 = vpop.permute.xlu0 %3992
      %3994 = vrot.lane.b32.xlu0 %v3980, 127
      %v3995 = vpop.permute.xlu0 %3994
      %3996 = vrot.lane.b32.xlu0 %v3981, 127
      %v3997 = vpop.permute.xlu0 %3996
      %3998 = vrot.lane.b32.xlu0 %v3982, 127
      %v3999 = vpop.permute.xlu0 %3998
      %4000 = vrot.lane.b32.xlu0 %v3983, 127
      %v4001 = vpop.permute.xlu0 %4000
      %v4002 = vsel %vm580, %v3985, %v3987
      %v4003 = vsel %vm580, %v3987, %v3989
      %v4004 = vsel %vm580, %v3989, %v3991
      %v4005 = vsel %vm580, %v3991, %v3993
      %v4006 = vsel %vm580, %v3993, %v3995
      %v4007 = vsel %vm580, %v3995, %v3997
      %v4008 = vsel %vm580, %v3997, %v3999
      %v4009 = vsel %vm580, %v3999, %v4001
      %4019 = vst [vmem:[#allocation4 + $0x90] sm:$0xfc] %v4002
      %4020 = vst [vmem:[#allocation4 + $0x98] sm:$0xfc] %v4003
      %4021 = vst [vmem:[#allocation4 + $0xa0] sm:$0xfc] %v4004
      %4022 = vst [vmem:[#allocation4 + $0xa8] sm:$0xfc] %v4005
      %4023 = vst [vmem:[#allocation4 + $0xb0] sm:$0xfc] %v4006
      %4024 = vst [vmem:[#allocation4 + $0xb8] sm:$0xfc] %v4007
      %4025 = vst [vmem:[#allocation4 + $0xc0] sm:$0xfc] %v4008
      %4026 = vst [vmem:[#allocation4 + $0xc8] sm:$0xfc] %v4009
      %vm4027 = vcmask 261122
      %4028 = vst.msk [vmem:[#allocation4 + $0xd0] sm:$0xfc] %vm4027, %v4001
      %v4029 = vld [vmem:[#allocation3] sm:$0x3f]
      %v4030 = vld [vmem:[#allocation3 + $0x8] sm:$0x3f]
      %v4031 = vld [vmem:[#allocation3 + $0x10] sm:$0x3f]
      %v4032 = vld [vmem:[#allocation3 + $0x18] sm:$0x3f]
      %v4033 = vld [vmem:[#allocation3 + $0x20] sm:$0x3f]
      %v4034 = vld [vmem:[#allocation3 + $0x28] sm:$0x3f]
      %v4035 = vld [vmem:[#allocation3 + $0x30] sm:$0x3f]
      %v4036 = vld [vmem:[#allocation3 + $0x38] sm:$0x3f]
      %v4037 = vld [vmem:[#allocation3 + $0x40] sm:$0x3f]
      %4047 = vrot.lane.b32.xlu0 %v4029, 126
      %v4048 = vpop.permute.xlu0 %4047
      %4049 = vrot.lane.b32.xlu0 %v4030, 126
      %v4050 = vpop.permute.xlu0 %4049
      %4051 = vrot.lane.b32.xlu0 %v4031, 126
      %v4052 = vpop.permute.xlu0 %4051
      %4053 = vrot.lane.b32.xlu0 %v4032, 126
      %v4054 = vpop.permute.xlu0 %4053
      %4055 = vrot.lane.b32.xlu0 %v4033, 126
      %v4056 = vpop.permute.xlu0 %4055
      %4057 = vrot.lane.b32.xlu0 %v4034, 126
      %v4058 = vpop.permute.xlu0 %4057
      %4059 = vrot.lane.b32.xlu0 %v4035, 126
      %v4060 = vpop.permute.xlu0 %4059
      %4061 = vrot.lane.b32.xlu0 %v4036, 126
      %v4062 = vpop.permute.xlu0 %4061
      %4063 = vrot.lane.b32.xlu0 %v4037, 126
      %v4064 = vpop.permute.xlu0 %4063
      %v4065 = vsel %vm765, %v4048, %v4050
      %v4066 = vsel %vm765, %v4050, %v4052
      %v4067 = vsel %vm765, %v4052, %v4054
      %v4068 = vsel %vm765, %v4054, %v4056
      %v4069 = vsel %vm765, %v4056, %v4058
      %v4070 = vsel %vm765, %v4058, %v4060
      %v4071 = vsel %vm765, %v4060, %v4062
      %v4072 = vsel %vm765, %v4062, %v4064
      %4082 = vst [vmem:[#allocation4 + $0xd8] sm:$0x3f] %v4065
      %4083 = vst [vmem:[#allocation4 + $0xe0] sm:$0x3f] %v4066
      %4084 = vst [vmem:[#allocation4 + $0xe8] sm:$0x3f] %v4067
      %4085 = vst [vmem:[#allocation4 + $0xf0] sm:$0x3f] %v4068
      %4086 = vst [vmem:[#allocation4 + $0xf8] sm:$0x3f] %v4069
      %4087 = vst [vmem:[#allocation4 + $0x100] sm:$0x3f] %v4070
      %4088 = vst [vmem:[#allocation4 + $0x108] sm:$0x3f] %v4071
      %4089 = vst [vmem:[#allocation4 + $0x110] sm:$0x3f] %v4072
      %4090 = vst.msk [vmem:[#allocation4 + $0x118] sm:$0x3f] %vm3819, %v4064
      %v4091 = vld [vmem:[%s3664] sm:$0x3f]
      %v4092 = vld [vmem:[%s3664 + $0x8] sm:$0x3f]
      %v4093 = vld [vmem:[%s3664 + $0x10] sm:$0x3f]
      %v4094 = vld [vmem:[%s3664 + $0x18] sm:$0x3f]
      %v4095 = vld [vmem:[%s3664 + $0x20] sm:$0x3f]
      %v4096 = vld [vmem:[%s3664 + $0x28] sm:$0x3f]
      %v4097 = vld [vmem:[%s3664 + $0x30] sm:$0x3f]
      %v4098 = vld [vmem:[%s3664 + $0x38] sm:$0x3f]
      %v4099 = vld [vmem:[%s3664 + $0x40] sm:$0x3f]
      %v4109 = vrot.slane %v4091, 2
      %v4110 = vrot.slane %v4092, 2
      %v4111 = vrot.slane %v4093, 2
      %v4112 = vrot.slane %v4094, 2
      %v4113 = vrot.slane %v4095, 2
      %v4114 = vrot.slane %v4096, 2
      %v4115 = vrot.slane %v4097, 2
      %v4116 = vrot.slane %v4098, 2
      %v4117 = vrot.slane %v4099, 2
      %4118 = vrot.lane.b32.xlu0 %v4109, 126
      %v4119 = vpop.permute.xlu0 %4118
      %4120 = vrot.lane.b32.xlu0 %v4110, 126
      %v4121 = vpop.permute.xlu0 %4120
      %4122 = vrot.lane.b32.xlu0 %v4111, 126
      %v4123 = vpop.permute.xlu0 %4122
      %4124 = vrot.lane.b32.xlu0 %v4112, 126
      %v4125 = vpop.permute.xlu0 %4124
      %4126 = vrot.lane.b32.xlu0 %v4113, 126
      %v4127 = vpop.permute.xlu0 %4126
      %4128 = vrot.lane.b32.xlu0 %v4114, 126
      %v4129 = vpop.permute.xlu0 %4128
      %4130 = vrot.lane.b32.xlu0 %v4115, 126
      %v4131 = vpop.permute.xlu0 %4130
      %4132 = vrot.lane.b32.xlu0 %v4116, 126
      %v4133 = vpop.permute.xlu0 %4132
      %4134 = vrot.lane.b32.xlu0 %v4117, 126
      %v4135 = vpop.permute.xlu0 %4134
      %v4136 = vsel %vm765, %v4119, %v4121
      %v4137 = vsel %vm765, %v4121, %v4123
      %v4138 = vsel %vm765, %v4123, %v4125
      %v4139 = vsel %vm765, %v4125, %v4127
      %v4140 = vsel %vm765, %v4127, %v4129
      %v4141 = vsel %vm765, %v4129, %v4131
      %v4142 = vsel %vm765, %v4131, %v4133
      %v4143 = vsel %vm765, %v4133, %v4135
      %4153 = vst [vmem:[#allocation4 + $0xd8] sm:$0xc0] %v4136
      %4154 = vst [vmem:[#allocation4 + $0xe0] sm:$0xc0] %v4137
      %4155 = vst [vmem:[#allocation4 + $0xe8] sm:$0xc0] %v4138
      %4156 = vst [vmem:[#allocation4 + $0xf0] sm:$0xc0] %v4139
      %4157 = vst [vmem:[#allocation4 + $0xf8] sm:$0xc0] %v4140
      %4158 = vst [vmem:[#allocation4 + $0x100] sm:$0xc0] %v4141
      %4159 = vst [vmem:[#allocation4 + $0x108] sm:$0xc0] %v4142
      %4160 = vst [vmem:[#allocation4 + $0x110] sm:$0xc0] %v4143
      %4161 = vst.msk [vmem:[#allocation4 + $0x118] sm:$0xc0] %vm2275, %v4135
      %4162 = vst [vmem:[#allocation4 + $0x120] sm:$0xf] %v4136
      %4163 = vst [vmem:[#allocation4 + $0x128] sm:$0xf] %v4137
      %4164 = vst [vmem:[#allocation4 + $0x130] sm:$0xf] %v4138
      %4165 = vst [vmem:[#allocation4 + $0x138] sm:$0xf] %v4139
      %4166 = vst [vmem:[#allocation4 + $0x140] sm:$0xf] %v4140
      %4167 = vst [vmem:[#allocation4 + $0x148] sm:$0xf] %v4141
      %4168 = vst [vmem:[#allocation4 + $0x150] sm:$0xf] %v4142
      %4169 = vst [vmem:[#allocation4 + $0x158] sm:$0xf] %v4143
      %4170 = vst.msk [vmem:[#allocation4 + $0x160] sm:$0xf] %vm3874, %v4135
      %v4171 = vld [vmem:[#allocation4] sm:$0xff]
      %v4172 = vld [vmem:[#allocation4 + $0x8] sm:$0xff]
      %v4173 = vld [vmem:[#allocation4 + $0x10] sm:$0xff]
      %v4174 = vld [vmem:[#allocation4 + $0x18] sm:$0xff]
      %v4175 = vld [vmem:[#allocation4 + $0x20] sm:$0xff]
      %v4176 = vld [vmem:[#allocation4 + $0x28] sm:$0xff]
      %v4177 = vld [vmem:[#allocation4 + $0x30] sm:$0xff]
      %v4178 = vld [vmem:[#allocation4 + $0x38] sm:$0xff]
      %v4179 = vld [vmem:[#allocation4 + $0x40] sm:$0xff]
      %v4180 = vld [vmem:[#allocation4 + $0x48] sm:$0xff]
      %v4181 = vld [vmem:[#allocation4 + $0x50] sm:$0xff]
      %v4182 = vld [vmem:[#allocation4 + $0x58] sm:$0xff]
      %v4183 = vld [vmem:[#allocation4 + $0x60] sm:$0xff]
      %v4184 = vld [vmem:[#allocation4 + $0x68] sm:$0xff]
      %v4185 = vld [vmem:[#allocation4 + $0x70] sm:$0xff]
      %v4186 = vld [vmem:[#allocation4 + $0x78] sm:$0xff]
      %v4187 = vld [vmem:[#allocation4 + $0x80] sm:$0xff]
      %v4188 = vld [vmem:[#allocation4 + $0x88] sm:$0xff]
      %v4189 = vld [vmem:[#allocation4 + $0x90] sm:$0xff]
      %v4190 = vld [vmem:[#allocation4 + $0x98] sm:$0xff]
      %v4191 = vld [vmem:[#allocation4 + $0xa0] sm:$0xff]
      %v4192 = vld [vmem:[#allocation4 + $0xa8] sm:$0xff]
      %v4193 = vld [vmem:[#allocation4 + $0xb0] sm:$0xff]
      %v4194 = vld [vmem:[#allocation4 + $0xb8] sm:$0xff]
      %v4195 = vld [vmem:[#allocation4 + $0xc0] sm:$0xff]
      %v4196 = vld [vmem:[#allocation4 + $0xc8] sm:$0xff]
      %v4197 = vld [vmem:[#allocation4 + $0xd0] sm:$0xff]
      %v4198 = vld [vmem:[#allocation4 + $0xd8] sm:$0xff]
      %v4199 = vld [vmem:[#allocation4 + $0xe0] sm:$0xff]
      %v4200 = vld [vmem:[#allocation4 + $0xe8] sm:$0xff]
      %v4201 = vld [vmem:[#allocation4 + $0xf0] sm:$0xff]
      %v4202 = vld [vmem:[#allocation4 + $0xf8] sm:$0xff]
      %v4203 = vld [vmem:[#allocation4 + $0x100] sm:$0xff]
      %v4204 = vld [vmem:[#allocation4 + $0x108] sm:$0xff]
      %v4205 = vld [vmem:[#allocation4 + $0x110] sm:$0xff]
      %v4206 = vld [vmem:[#allocation4 + $0x118] sm:$0xff]
      %v4207 = vld [vmem:[#allocation4 + $0x120] sm:$0xf]
      %v4208 = vld [vmem:[#allocation4 + $0x128] sm:$0xf]
      %v4209 = vld [vmem:[#allocation4 + $0x130] sm:$0xf]
      %v4210 = vld [vmem:[#allocation4 + $0x138] sm:$0xf]
      %v4211 = vld [vmem:[#allocation4 + $0x140] sm:$0xf]
      %v4212 = vld [vmem:[#allocation4 + $0x148] sm:$0xf]
      %v4213 = vld [vmem:[#allocation4 + $0x150] sm:$0xf]
      %v4214 = vld [vmem:[#allocation4 + $0x158] sm:$0xf]
      %v4215 = vld [vmem:[#allocation4 + $0x160] sm:$0xf]
      %vm4216 = vcmask 293888
      %v4218 = vsel %vm4216, %v3799, 0
      %v4221 = vsel %vm4216, %v3800, 0
      %v4224 = vsel %vm1710, %v4207, 0
      %v4227 = vsel %vm1710, %v4208, 0
      %v4230 = vsel %vm1710, %v4209, 0
      %v4233 = vsel %vm1710, %v4210, 0
      %v4236 = vsel %vm1710, %v4211, 0
      %v4239 = vsel %vm1710, %v4212, 0
      %v4242 = vsel %vm1710, %v4213, 0
      %v4245 = vsel %vm1710, %v4214, 0
      %v4248 = vsel %vm1710, %v4215, 0
      %4250 = vmatpush.msra.mxu0 0.0
      %4251 = vmatpush.msra.mxu0 0.0
      %4252 = vmatpush.msra.mxu0 0.0
      %4253 = vmatpush.msra.mxu0 0.0
      %4254 = vmatpush.msra.mxu0 0.0
      %4255 = vmatpush.msra.mxu0 0.0
      %4256 = vmatpush.msra.mxu0 0.0
      %4257 = vmatpush.msra.mxu0 0.0
      %4258 = vmatpush.msra.mxu0 0.0
      %4259 = vmatpush.msra.mxu0 0.0
      %4260 = vmatpush.msra.mxu0 0.0
      %4261 = vmatpush.msra.mxu0 %v4224
      %4262 = vmatpush.msra.mxu0 %v4198
      %4263 = vmatpush.msra.mxu0 %v4189
      %4264 = vmatpush.msra.mxu0 %v4180
      %4265 = vmatpush.msra.mxu0 %v4171
      %4266 = vmatmul.f32.gmra.mxu0 %v4218
      %v4267 = vpop.f32.mrf.mxu0
      %v4268 = vadd.f32 0.0, %v4267
      %4269 = vmatmul.f32.gmra.mxu0 %v4221
      %v4270 = vpop.f32.mrf.mxu0
      %v4271 = vadd.f32 0.0, %v4270
      %4272 = vdwg.mxu0
      %4273 = vmatpush.msra.mxu0 0.0
      %4274 = vmatpush.msra.mxu0 0.0
      %4275 = vmatpush.msra.mxu0 0.0
      %4276 = vmatpush.msra.mxu0 0.0
      %4277 = vmatpush.msra.mxu0 0.0
      %4278 = vmatpush.msra.mxu0 0.0
      %4279 = vmatpush.msra.mxu0 0.0
      %4280 = vmatpush.msra.mxu0 0.0
      %4281 = vmatpush.msra.mxu0 0.0
      %4282 = vmatpush.msra.mxu0 0.0
      %4283 = vmatpush.msra.mxu0 0.0
      %4284 = vmatpush.msra.mxu0 %v4227
      %4285 = vmatpush.msra.mxu0 %v4199
      %4286 = vmatpush.msra.mxu0 %v4190
      %4287 = vmatpush.msra.mxu0 %v4181
      %4288 = vmatpush.msra.mxu0 %v4172
      %4289 = vmatmul.f32.gmra.mxu0 %v4218
      %v4290 = vpop.f32.mrf.mxu0
      %v4291 = vadd.f32 0.0, %v4290
      %4292 = vmatmul.f32.gmra.mxu0 %v4221
      %v4293 = vpop.f32.mrf.mxu0
      %v4294 = vadd.f32 0.0, %v4293
      %4295 = vdwg.mxu0
      %4296 = vmatpush.msra.mxu0 0.0
      %4297 = vmatpush.msra.mxu0 0.0
      %4298 = vmatpush.msra.mxu0 0.0
      %4299 = vmatpush.msra.mxu0 0.0
      %4300 = vmatpush.msra.mxu0 0.0
      %4301 = vmatpush.msra.mxu0 0.0
      %4302 = vmatpush.msra.mxu0 0.0
      %4303 = vmatpush.msra.mxu0 0.0
      %4304 = vmatpush.msra.mxu0 0.0
      %4305 = vmatpush.msra.mxu0 0.0
      %4306 = vmatpush.msra.mxu0 0.0
      %4307 = vmatpush.msra.mxu0 %v4230
      %4308 = vmatpush.msra.mxu0 %v4200
      %4309 = vmatpush.msra.mxu0 %v4191
      %4310 = vmatpush.msra.mxu0 %v4182
      %4311 = vmatpush.msra.mxu0 %v4173
      %4312 = vmatmul.f32.gmra.mxu0 %v4218
      %v4313 = vpop.f32.mrf.mxu0
      %v4314 = vadd.f32 0.0, %v4313
      %4315 = vmatmul.f32.gmra.mxu0 %v4221
      %v4316 = vpop.f32.mrf.mxu0
      %v4317 = vadd.f32 0.0, %v4316
      %4318 = vdwg.mxu0
      %4319 = vmatpush.msra.mxu0 0.0
      %4320 = vmatpush.msra.mxu0 0.0
      %4321 = vmatpush.msra.mxu0 0.0
      %4322 = vmatpush.msra.mxu0 0.0
      %4323 = vmatpush.msra.mxu0 0.0
      %4324 = vmatpush.msra.mxu0 0.0
      %4325 = vmatpush.msra.mxu0 0.0
      %4326 = vmatpush.msra.mxu0 0.0
      %4327 = vmatpush.msra.mxu0 0.0
      %4328 = vmatpush.msra.mxu0 0.0
      %4329 = vmatpush.msra.mxu0 0.0
      %4330 = vmatpush.msra.mxu0 %v4233
      %4331 = vmatpush.msra.mxu0 %v4201
      %4332 = vmatpush.msra.mxu0 %v4192
      %4333 = vmatpush.msra.mxu0 %v4183
      %4334 = vmatpush.msra.mxu0 %v4174
      %4335 = vmatmul.f32.gmra.mxu0 %v4218
      %v4336 = vpop.f32.mrf.mxu0
      %v4337 = vadd.f32 0.0, %v4336
      %4338 = vmatmul.f32.gmra.mxu0 %v4221
      %v4339 = vpop.f32.mrf.mxu0
      %v4340 = vadd.f32 0.0, %v4339
      %4341 = vdwg.mxu0
      %4342 = vmatpush.msra.mxu0 0.0
      %4343 = vmatpush.msra.mxu0 0.0
      %4344 = vmatpush.msra.mxu0 0.0
      %4345 = vmatpush.msra.mxu0 0.0
      %4346 = vmatpush.msra.mxu0 0.0
      %4347 = vmatpush.msra.mxu0 0.0
      %4348 = vmatpush.msra.mxu0 0.0
      %4349 = vmatpush.msra.mxu0 0.0
      %4350 = vmatpush.msra.mxu0 0.0
      %4351 = vmatpush.msra.mxu0 0.0
      %4352 = vmatpush.msra.mxu0 0.0
      %4353 = vmatpush.msra.mxu0 %v4236
      %4354 = vmatpush.msra.mxu0 %v4202
      %4355 = vmatpush.msra.mxu0 %v4193
      %4356 = vmatpush.msra.mxu0 %v4184
      %4357 = vmatpush.msra.mxu0 %v4175
      %4358 = vmatmul.f32.gmra.mxu0 %v4218
      %v4359 = vpop.f32.mrf.mxu0
      %v4360 = vadd.f32 0.0, %v4359
      %4361 = vmatmul.f32.gmra.mxu0 %v4221
      %v4362 = vpop.f32.mrf.mxu0
      %v4363 = vadd.f32 0.0, %v4362
      %4364 = vdwg.mxu0
      %4365 = vmatpush.msra.mxu0 0.0
      %4366 = vmatpush.msra.mxu0 0.0
      %4367 = vmatpush.msra.mxu0 0.0
      %4368 = vmatpush.msra.mxu0 0.0
      %4369 = vmatpush.msra.mxu0 0.0
      %4370 = vmatpush.msra.mxu0 0.0
      %4371 = vmatpush.msra.mxu0 0.0
      %4372 = vmatpush.msra.mxu0 0.0
      %4373 = vmatpush.msra.mxu0 0.0
      %4374 = vmatpush.msra.mxu0 0.0
      %4375 = vmatpush.msra.mxu0 0.0
      %4376 = vmatpush.msra.mxu0 %v4239
      %4377 = vmatpush.msra.mxu0 %v4203
      %4378 = vmatpush.msra.mxu0 %v4194
      %4379 = vmatpush.msra.mxu0 %v4185
      %4380 = vmatpush.msra.mxu0 %v4176
      %4381 = vmatmul.f32.gmra.mxu0 %v4218
      %v4382 = vpop.f32.mrf.mxu0
      %v4383 = vadd.f32 0.0, %v4382
      %4384 = vmatmul.f32.gmra.mxu0 %v4221
      %v4385 = vpop.f32.mrf.mxu0
      %v4386 = vadd.f32 0.0, %v4385
      %4387 = vdwg.mxu0
      %4388 = vmatpush.msra.mxu0 0.0
      %4389 = vmatpush.msra.mxu0 0.0
      %4390 = vmatpush.msra.mxu0 0.0
      %4391 = vmatpush.msra.mxu0 0.0
      %4392 = vmatpush.msra.mxu0 0.0
      %4393 = vmatpush.msra.mxu0 0.0
      %4394 = vmatpush.msra.mxu0 0.0
      %4395 = vmatpush.msra.mxu0 0.0
      %4396 = vmatpush.msra.mxu0 0.0
      %4397 = vmatpush.msra.mxu0 0.0
      %4398 = vmatpush.msra.mxu0 0.0
      %4399 = vmatpush.msra.mxu0 %v4242
      %4400 = vmatpush.msra.mxu0 %v4204
      %4401 = vmatpush.msra.mxu0 %v4195
      %4402 = vmatpush.msra.mxu0 %v4186
      %4403 = vmatpush.msra.mxu0 %v4177
      %4404 = vmatmul.f32.gmra.mxu0 %v4218
      %v4405 = vpop.f32.mrf.mxu0
      %v4406 = vadd.f32 0.0, %v4405
      %4407 = vmatmul.f32.gmra.mxu0 %v4221
      %v4408 = vpop.f32.mrf.mxu0
      %v4409 = vadd.f32 0.0, %v4408
      %4410 = vdwg.mxu0
      %4411 = vmatpush.msra.mxu0 0.0
      %4412 = vmatpush.msra.mxu0 0.0
      %4413 = vmatpush.msra.mxu0 0.0
      %4414 = vmatpush.msra.mxu0 0.0
      %4415 = vmatpush.msra.mxu0 0.0
      %4416 = vmatpush.msra.mxu0 0.0
      %4417 = vmatpush.msra.mxu0 0.0
      %4418 = vmatpush.msra.mxu0 0.0
      %4419 = vmatpush.msra.mxu0 0.0
      %4420 = vmatpush.msra.mxu0 0.0
      %4421 = vmatpush.msra.mxu0 0.0
      %4422 = vmatpush.msra.mxu0 %v4245
      %4423 = vmatpush.msra.mxu0 %v4205
      %4424 = vmatpush.msra.mxu0 %v4196
      %4425 = vmatpush.msra.mxu0 %v4187
      %4426 = vmatpush.msra.mxu0 %v4178
      %4427 = vmatmul.f32.gmra.mxu0 %v4218
      %v4428 = vpop.f32.mrf.mxu0
      %v4429 = vadd.f32 0.0, %v4428
      %4430 = vmatmul.f32.gmra.mxu0 %v4221
      %v4431 = vpop.f32.mrf.mxu0
      %v4432 = vadd.f32 0.0, %v4431
      %4433 = vdwg.mxu0
      %4434 = vmatpush.msra.mxu0 0.0
      %4435 = vmatpush.msra.mxu0 0.0
      %4436 = vmatpush.msra.mxu0 0.0
      %4437 = vmatpush.msra.mxu0 0.0
      %4438 = vmatpush.msra.mxu0 0.0
      %4439 = vmatpush.msra.mxu0 0.0
      %4440 = vmatpush.msra.mxu0 0.0
      %4441 = vmatpush.msra.mxu0 0.0
      %4442 = vmatpush.msra.mxu0 0.0
      %4443 = vmatpush.msra.mxu0 0.0
      %4444 = vmatpush.msra.mxu0 0.0
      %4445 = vmatpush.msra.mxu0 %v4248
      %4446 = vmatpush.msra.mxu0 %v4206
      %4447 = vmatpush.msra.mxu0 %v4197
      %4448 = vmatpush.msra.mxu0 %v4188
      %4449 = vmatpush.msra.mxu0 %v4179
      %4450 = vmatmul.f32.gmra.mxu0 %v4218
      %v4451 = vpop.f32.mrf.mxu0
      %v4452 = vadd.f32 0.0, %v4451
      %4453 = vmatmul.f32.gmra.mxu0 %v4221
      %v4454 = vpop.f32.mrf.mxu0
      %v4455 = vadd.f32 0.0, %v4454
      %4456 = vdwg.mxu0
      %v4475 = vrot.slane %v4268, 6
      %v4476 = vrot.slane %v4271, 6
      %v4477 = vsel %vm1851, %v4475, %v4476
      %v4478 = vrot.slane %v4291, 6
      %v4479 = vrot.slane %v4294, 6
      %v4480 = vsel %vm1851, %v4478, %v4479
      %v4481 = vrot.slane %v4314, 6
      %v4482 = vrot.slane %v4317, 6
      %v4483 = vsel %vm1851, %v4481, %v4482
      %v4484 = vrot.slane %v4337, 6
      %v4485 = vrot.slane %v4340, 6
      %v4486 = vsel %vm1851, %v4484, %v4485
      %v4487 = vrot.slane %v4360, 6
      %v4488 = vrot.slane %v4363, 6
      %v4489 = vsel %vm1851, %v4487, %v4488
      %v4490 = vrot.slane %v4383, 6
      %v4491 = vrot.slane %v4386, 6
      %v4492 = vsel %vm1851, %v4490, %v4491
      %v4493 = vrot.slane %v4406, 6
      %v4494 = vrot.slane %v4409, 6
      %v4495 = vsel %vm1851, %v4493, %v4494
      %v4496 = vrot.slane %v4429, 6
      %v4497 = vrot.slane %v4432, 6
      %v4498 = vsel %vm1851, %v4496, %v4497
      %v4499 = vrot.slane %v4452, 6
      %v4500 = vrot.slane %v4455, 6
      %v4501 = vsel %vm1851, %v4499, %v4500
      %v4511 = vmax.f32 %v4268, %v4477
      %v4512 = vmax.f32 %v4291, %v4480
      %v4513 = vmax.f32 %v4314, %v4483
      %v4514 = vmax.f32 %v4337, %v4486
      %v4515 = vmax.f32 %v4360, %v4489
      %v4516 = vmax.f32 %v4383, %v4492
      %v4517 = vmax.f32 %v4406, %v4495
      %v4518 = vmax.f32 %v4429, %v4498
      %v4519 = vmax.f32 %v4452, %v4501
      %4521 = vset.pattern.permute.xlu0 0
      %4522 = vperm.xlu0 %4521, %v3801
      %v4523 = vpop.permute.xlu0 %4522
      %v4525 = vadd.f32 %v4511, %v4523
      %v4526 = vadd.f32 %v4512, %v4523
      %v4527 = vadd.f32 %v4513, %v4523
      %v4528 = vadd.f32 %v4514, %v4523
      %v4529 = vadd.f32 %v4515, %v4523
      %v4530 = vadd.f32 %v4516, %v4523
      %v4531 = vadd.f32 %v4517, %v4523
      %v4532 = vadd.f32 %v4518, %v4523
      %v4533 = vadd.f32 %v4519, %v4523
      %v4534 = vmax.f32 %v4525, 0.0
      %v4535 = vmax.f32 %v4526, 0.0
      %v4536 = vmax.f32 %v4527, 0.0
      %v4537 = vmax.f32 %v4528, 0.0
      %v4538 = vmax.f32 %v4529, 0.0
      %v4539 = vmax.f32 %v4530, 0.0
      %v4540 = vmax.f32 %v4531, 0.0
      %v4541 = vmax.f32 %v4532, 0.0
      %v4542 = vmax.f32 %v4533, 0.0
      %4543 = vst [vmem:[#allocation4] sm:$0x3f] %v4534
      %4544 = vst [vmem:[#allocation4 + $0x8] sm:$0x3f] %v4535
      %4545 = vst [vmem:[#allocation4 + $0x10] sm:$0x3f] %v4536
      %4546 = vst [vmem:[#allocation4 + $0x18] sm:$0x3f] %v4537
      %4547 = vst [vmem:[#allocation4 + $0x20] sm:$0x3f] %v4538
      %4548 = vst [vmem:[#allocation4 + $0x28] sm:$0x3f] %v4539
      %4549 = vst [vmem:[#allocation4 + $0x30] sm:$0x3f] %v4540
      %4550 = vst [vmem:[#allocation4 + $0x38] sm:$0x3f] %v4541
      %4551 = vst.msk [vmem:[#allocation4 + $0x40] sm:$0x3f] %vm3819, %v4542
      %v4552 = vld [vmem:[%s8] sm:$0xff]
      %v4553 = vld [vmem:[%s8 + $0x8] sm:$0xff]
      %v4554 = vld [vmem:[%s8 + $0x10] sm:$0xff]
      %v4555 = vld [vmem:[%s8 + $0x18] sm:$0xff]
      %v4556 = vld [vmem:[%s8 + $0x20] sm:$0xff]
      %v4557 = vld [vmem:[%s8 + $0x28] sm:$0xff]
      %v4558 = vld [vmem:[%s8 + $0x30] sm:$0xff]
      %v4559 = vld [vmem:[%s8 + $0x38] sm:$0xff]
      %v4560 = vld [vmem:[%s8 + $0x40] sm:$0xff]
      %v4561 = vld [vmem:[%s8 + $0x48] sm:$0xff]
      %v4562 = vld [vmem:[%s8 + $0x50] sm:$0xff]
      %v4563 = vld [vmem:[%s8 + $0x58] sm:$0xff]
      %v4564 = vld [vmem:[%s8 + $0x60] sm:$0xff]
      %v4565 = vld [vmem:[%s8 + $0x68] sm:$0xff]
      %v4566 = vld [vmem:[%s8 + $0x70] sm:$0xff]
      %v4567 = vld [vmem:[%s8 + $0x78] sm:$0xff]
      %v4568 = vld [vmem:[%s8 + $0x80] sm:$0x7]
      %v4569 = vld [vmem:[%s10] sm:$0x1]
      %v4570 = vld [vmem:[#allocation4] sm:$0x3f]
      %v4571 = vld [vmem:[#allocation4 + $0x8] sm:$0x3f]
      %v4573 = vperm.slane %v4569, 0
      %v4576 = vsel %vm1729, %v4571, 0
      %v4579 = vsel %vm1152, %v4568, 0
      %4581 = vmatpush.msra.mxu0 %v4567
      %4582 = vmatpush.msra.mxu0 %v4566
      %4583 = vmatpush.msra.mxu0 %v4565
      %4584 = vmatpush.msra.mxu0 %v4564
      %4585 = vmatpush.msra.mxu0 %v4563
      %4586 = vmatpush.msra.mxu0 %v4562
      %4587 = vmatpush.msra.mxu0 %v4561
      %4588 = vmatpush.msra.mxu0 %v4560
      %4589 = vmatpush.msra.mxu0 %v4559
      %4590 = vmatpush.msra.mxu0 %v4558
      %4591 = vmatpush.msra.mxu0 %v4557
      %4592 = vmatpush.msra.mxu0 %v4556
      %4593 = vmatpush.msra.mxu0 %v4555
      %4594 = vmatpush.msra.mxu0 %v4554
      %4595 = vmatpush.msra.mxu0 %v4553
      %4596 = vmatpush.msra.mxu0 %v4552
      %4597 = vmatmul.f32.gmra.mxu0 %v4570
      %v4598 = vpop.f32.mrf.mxu0
      %v4599 = vadd.f32 %v4573, %v4598
      %4600 = vdwg.mxu0
      %4601 = vmatpush.msra.mxu0 0.0
      %4602 = vmatpush.msra.mxu0 0.0
      %4603 = vmatpush.msra.mxu0 0.0
      %4604 = vmatpush.msra.mxu0 0.0
      %4605 = vmatpush.msra.mxu0 0.0
      %4606 = vmatpush.msra.mxu0 0.0
      %4607 = vmatpush.msra.mxu0 0.0
      %4608 = vmatpush.msra.mxu0 0.0
      %4609 = vmatpush.msra.mxu0 0.0
      %4610 = vmatpush.msra.mxu0 0.0
      %4611 = vmatpush.msra.mxu0 0.0
      %4612 = vmatpush.msra.mxu0 0.0
      %4613 = vmatpush.msra.mxu0 0.0
      %4614 = vmatpush.msra.mxu0 0.0
      %4615 = vmatpush.msra.mxu0 0.0
      %4616 = vmatpush.msra.mxu0 %v4579
      %4617 = vmatmul.f32.gmra.mxu0 %v4576
      %v4618 = vpop.f32.mrf.mxu0
      %v4619 = vadd.f32 %v4599, %v4618
      %4620 = vdwg.mxu0
      %vm4621 = vcmask 647168
      %4622 = vst.msk [vmem:[#allocation5] sm:$0x1] %vm4621, %v4619
      %s4623 = scalar_lea.vmem [#allocation5], 8
      %vm4624 = vcmask 648193
      %4625 = vst.msk [vmem:[%s4623 - $0x1] sm:$0x2] %vm4624, %v4619
      %s4626 = scalar_lea.vmem [#allocation5], 16
      %vm4627 = vcmask 649218
      %4628 = vst.msk [vmem:[%s4626 - $0x2] sm:$0x4] %vm4627, %v4619
      %s4629 = scalar_lea.vmem [#allocation5], 24
      %vm4630 = vcmask 650243
      %4631 = vst.msk [vmem:[%s4629 - $0x3] sm:$0x8] %vm4630, %v4619
      %s4632 = scalar_lea.vmem [#allocation5], 32
      %vm4633 = vcmask 651268
      %4634 = vst.msk [vmem:[%s4632 - $0x4] sm:$0x10] %vm4633, %v4619
      %s4635 = scalar_lea.vmem [#allocation5], 40
      %vm4636 = vcmask 652293
      %4637 = vst.msk [vmem:[%s4635 - $0x5] sm:$0x20] %vm4636, %v4619
      %v4638 = vld [vmem:[#allocation4 + $0x8] sm:$0x3f]
      %v4639 = vld [vmem:[#allocation4 + $0x10] sm:$0x3f]
      %4642 = vrot.lane.b32.xlu0 %v4638, 124
      %v4643 = vpop.permute.xlu0 %4642
      %4644 = vrot.lane.b32.xlu0 %v4639, 124
      %v4645 = vpop.permute.xlu0 %4644
      %vm4646 = vcmask 1014784
      %v4647 = vsel %vm4646, %v4643, %v4645
      %v4649 = vsel %vm1729, %v4645, 0
      %4651 = vmatpush.msra.mxu0 %v4567
      %4652 = vmatpush.msra.mxu0 %v4566
      %4653 = vmatpush.msra.mxu0 %v4565
      %4654 = vmatpush.msra.mxu0 %v4564
      %4655 = vmatpush.msra.mxu0 %v4563
      %4656 = vmatpush.msra.mxu0 %v4562
      %4657 = vmatpush.msra.mxu0 %v4561
      %4658 = vmatpush.msra.mxu0 %v4560
      %4659 = vmatpush.msra.mxu0 %v4559
      %4660 = vmatpush.msra.mxu0 %v4558
      %4661 = vmatpush.msra.mxu0 %v4557
      %4662 = vmatpush.msra.mxu0 %v4556
      %4663 = vmatpush.msra.mxu0 %v4555
      %4664 = vmatpush.msra.mxu0 %v4554
      %4665 = vmatpush.msra.mxu0 %v4553
      %4666 = vmatpush.msra.mxu0 %v4552
      %4667 = vmatmul.f32.gmra.mxu0 %v4647
      %v4668 = vpop.f32.mrf.mxu0
      %v4669 = vadd.f32 %v4573, %v4668
      %4670 = vdwg.mxu0
      %4671 = vmatpush.msra.mxu0 0.0
      %4672 = vmatpush.msra.mxu0 0.0
      %4673 = vmatpush.msra.mxu0 0.0
      %4674 = vmatpush.msra.mxu0 0.0
      %4675 = vmatpush.msra.mxu0 0.0
      %4676 = vmatpush.msra.mxu0 0.0
      %4677 = vmatpush.msra.mxu0 0.0
      %4678 = vmatpush.msra.mxu0 0.0
      %4679 = vmatpush.msra.mxu0 0.0
      %4680 = vmatpush.msra.mxu0 0.0
      %4681 = vmatpush.msra.mxu0 0.0
      %4682 = vmatpush.msra.mxu0 0.0
      %4683 = vmatpush.msra.mxu0 0.0
      %4684 = vmatpush.msra.mxu0 0.0
      %4685 = vmatpush.msra.mxu0 0.0
      %4686 = vmatpush.msra.mxu0 %v4579
      %4687 = vmatmul.f32.gmra.mxu0 %v4649
      %v4688 = vpop.f32.mrf.mxu0
      %v4689 = vadd.f32 %v4669, %v4688
      %4690 = vdwg.mxu0
      %4691 = vst.msk [vmem:[#allocation5 + $0x1] sm:$0x1] %vm4621, %v4689
      %4692 = vst.msk [vmem:[%s4623] sm:$0x2] %vm4624, %v4689
      %4693 = vst.msk [vmem:[%s4626 - $0x1] sm:$0x4] %vm4627, %v4689
      %4694 = vst.msk [vmem:[%s4629 - $0x2] sm:$0x8] %vm4630, %v4689
      %4695 = vst.msk [vmem:[%s4632 - $0x3] sm:$0x10] %vm4633, %v4689
      %4696 = vst.msk [vmem:[%s4635 - $0x4] sm:$0x20] %vm4636, %v4689
      %v4697 = vld [vmem:[#allocation4 + $0x10] sm:$0x3f]
      %v4698 = vld [vmem:[#allocation4 + $0x18] sm:$0x3f]
      %4701 = vrot.lane.b32.xlu0 %v4697, 120
      %v4702 = vpop.permute.xlu0 %4701
      %4703 = vrot.lane.b32.xlu0 %v4698, 120
      %v4704 = vpop.permute.xlu0 %4703
      %vm4705 = vcmask 982016
      %v4706 = vsel %vm4705, %v4702, %v4704
      %v4708 = vsel %vm1729, %v4704, 0
      %4710 = vmatpush.msra.mxu0 %v4567
      %4711 = vmatpush.msra.mxu0 %v4566
      %4712 = vmatpush.msra.mxu0 %v4565
      %4713 = vmatpush.msra.mxu0 %v4564
      %4714 = vmatpush.msra.mxu0 %v4563
      %4715 = vmatpush.msra.mxu0 %v4562
      %4716 = vmatpush.msra.mxu0 %v4561
      %4717 = vmatpush.msra.mxu0 %v4560
      %4718 = vmatpush.msra.mxu0 %v4559
      %4719 = vmatpush.msra.mxu0 %v4558
      %4720 = vmatpush.msra.mxu0 %v4557
      %4721 = vmatpush.msra.mxu0 %v4556
      %4722 = vmatpush.msra.mxu0 %v4555
      %4723 = vmatpush.msra.mxu0 %v4554
      %4724 = vmatpush.msra.mxu0 %v4553
      %4725 = vmatpush.msra.mxu0 %v4552
      %4726 = vmatmul.f32.gmra.mxu0 %v4706
      %v4727 = vpop.f32.mrf.mxu0
      %v4728 = vadd.f32 %v4573, %v4727
      %4729 = vdwg.mxu0
      %4730 = vmatpush.msra.mxu0 0.0
      %4731 = vmatpush.msra.mxu0 0.0
      %4732 = vmatpush.msra.mxu0 0.0
      %4733 = vmatpush.msra.mxu0 0.0
      %4734 = vmatpush.msra.mxu0 0.0
      %4735 = vmatpush.msra.mxu0 0.0
      %4736 = vmatpush.msra.mxu0 0.0
      %4737 = vmatpush.msra.mxu0 0.0
      %4738 = vmatpush.msra.mxu0 0.0
      %4739 = vmatpush.msra.mxu0 0.0
      %4740 = vmatpush.msra.mxu0 0.0
      %4741 = vmatpush.msra.mxu0 0.0
      %4742 = vmatpush.msra.mxu0 0.0
      %4743 = vmatpush.msra.mxu0 0.0
      %4744 = vmatpush.msra.mxu0 0.0
      %4745 = vmatpush.msra.mxu0 %v4579
      %4746 = vmatmul.f32.gmra.mxu0 %v4708
      %v4747 = vpop.f32.mrf.mxu0
      %v4748 = vadd.f32 %v4728, %v4747
      %4749 = vdwg.mxu0
      %4750 = vst.msk [vmem:[#allocation5 + $0x2] sm:$0x1] %vm4621, %v4748
      %4751 = vst.msk [vmem:[%s4623 + $0x1] sm:$0x2] %vm4624, %v4748
      %4752 = vst.msk [vmem:[%s4626] sm:$0x4] %vm4627, %v4748
      %4753 = vst.msk [vmem:[%s4629 - $0x1] sm:$0x8] %vm4630, %v4748
      %4754 = vst.msk [vmem:[%s4632 - $0x2] sm:$0x10] %vm4633, %v4748
      %4755 = vst.msk [vmem:[%s4635 - $0x3] sm:$0x20] %vm4636, %v4748
      %v4756 = vld [vmem:[#allocation4 + $0x18] sm:$0x3f]
      %v4757 = vld [vmem:[#allocation4 + $0x20] sm:$0x3f]
      %4760 = vrot.lane.b32.xlu0 %v4756, 116
      %v4761 = vpop.permute.xlu0 %4760
      %4762 = vrot.lane.b32.xlu0 %v4757, 116
      %v4763 = vpop.permute.xlu0 %4762
      %vm4764 = vcmask 949248
      %v4765 = vsel %vm4764, %v4761, %v4763
      %v4767 = vsel %vm1729, %v4763, 0
      %4769 = vmatpush.msra.mxu0 %v4567
      %4770 = vmatpush.msra.mxu0 %v4566
      %4771 = vmatpush.msra.mxu0 %v4565
      %4772 = vmatpush.msra.mxu0 %v4564
      %4773 = vmatpush.msra.mxu0 %v4563
      %4774 = vmatpush.msra.mxu0 %v4562
      %4775 = vmatpush.msra.mxu0 %v4561
      %4776 = vmatpush.msra.mxu0 %v4560
      %4777 = vmatpush.msra.mxu0 %v4559
      %4778 = vmatpush.msra.mxu0 %v4558
      %4779 = vmatpush.msra.mxu0 %v4557
      %4780 = vmatpush.msra.mxu0 %v4556
      %4781 = vmatpush.msra.mxu0 %v4555
      %4782 = vmatpush.msra.mxu0 %v4554
      %4783 = vmatpush.msra.mxu0 %v4553
      %4784 = vmatpush.msra.mxu0 %v4552
      %4785 = vmatmul.f32.gmra.mxu0 %v4765
      %v4786 = vpop.f32.mrf.mxu0
      %v4787 = vadd.f32 %v4573, %v4786
      %4788 = vdwg.mxu0
      %4789 = vmatpush.msra.mxu0 0.0
      %4790 = vmatpush.msra.mxu0 0.0
      %4791 = vmatpush.msra.mxu0 0.0
      %4792 = vmatpush.msra.mxu0 0.0
      %4793 = vmatpush.msra.mxu0 0.0
      %4794 = vmatpush.msra.mxu0 0.0
      %4795 = vmatpush.msra.mxu0 0.0
      %4796 = vmatpush.msra.mxu0 0.0
      %4797 = vmatpush.msra.mxu0 0.0
      %4798 = vmatpush.msra.mxu0 0.0
      %4799 = vmatpush.msra.mxu0 0.0
      %4800 = vmatpush.msra.mxu0 0.0
      %4801 = vmatpush.msra.mxu0 0.0
      %4802 = vmatpush.msra.mxu0 0.0
      %4803 = vmatpush.msra.mxu0 0.0
      %4804 = vmatpush.msra.mxu0 %v4579
      %4805 = vmatmul.f32.gmra.mxu0 %v4767
      %v4806 = vpop.f32.mrf.mxu0
      %v4807 = vadd.f32 %v4787, %v4806
      %4808 = vdwg.mxu0
      %4809 = vst.msk [vmem:[#allocation5 + $0x3] sm:$0x1] %vm4621, %v4807
      %4810 = vst.msk [vmem:[%s4623 + $0x2] sm:$0x2] %vm4624, %v4807
      %4811 = vst.msk [vmem:[%s4626 + $0x1] sm:$0x4] %vm4627, %v4807
      %4812 = vst.msk [vmem:[%s4629] sm:$0x8] %vm4630, %v4807
      %4813 = vst.msk [vmem:[%s4632 - $0x1] sm:$0x10] %vm4633, %v4807
      %4814 = vst.msk [vmem:[%s4635 - $0x2] sm:$0x20] %vm4636, %v4807
      %v4815 = vld [vmem:[#allocation4 + $0x20] sm:$0x3f]
      %v4816 = vld [vmem:[#allocation4 + $0x28] sm:$0x3f]
      %4819 = vrot.lane.b32.xlu0 %v4815, 112
      %v4820 = vpop.permute.xlu0 %4819
      %4821 = vrot.lane.b32.xlu0 %v4816, 112
      %v4822 = vpop.permute.xlu0 %4821
      %vm4823 = vcmask 916480
      %v4824 = vsel %vm4823, %v4820, %v4822
      %v4826 = vsel %vm1729, %v4822, 0
      %4828 = vmatpush.msra.mxu0 %v4567
      %4829 = vmatpush.msra.mxu0 %v4566
      %4830 = vmatpush.msra.mxu0 %v4565
      %4831 = vmatpush.msra.mxu0 %v4564
      %4832 = vmatpush.msra.mxu0 %v4563
      %4833 = vmatpush.msra.mxu0 %v4562
      %4834 = vmatpush.msra.mxu0 %v4561
      %4835 = vmatpush.msra.mxu0 %v4560
      %4836 = vmatpush.msra.mxu0 %v4559
      %4837 = vmatpush.msra.mxu0 %v4558
      %4838 = vmatpush.msra.mxu0 %v4557
      %4839 = vmatpush.msra.mxu0 %v4556
      %4840 = vmatpush.msra.mxu0 %v4555
      %4841 = vmatpush.msra.mxu0 %v4554
      %4842 = vmatpush.msra.mxu0 %v4553
      %4843 = vmatpush.msra.mxu0 %v4552
      %4844 = vmatmul.f32.gmra.mxu0 %v4824
      %v4845 = vpop.f32.mrf.mxu0
      %v4846 = vadd.f32 %v4573, %v4845
      %4847 = vdwg.mxu0
      %4848 = vmatpush.msra.mxu0 0.0
      %4849 = vmatpush.msra.mxu0 0.0
      %4850 = vmatpush.msra.mxu0 0.0
      %4851 = vmatpush.msra.mxu0 0.0
      %4852 = vmatpush.msra.mxu0 0.0
      %4853 = vmatpush.msra.mxu0 0.0
      %4854 = vmatpush.msra.mxu0 0.0
      %4855 = vmatpush.msra.mxu0 0.0
      %4856 = vmatpush.msra.mxu0 0.0
      %4857 = vmatpush.msra.mxu0 0.0
      %4858 = vmatpush.msra.mxu0 0.0
      %4859 = vmatpush.msra.mxu0 0.0
      %4860 = vmatpush.msra.mxu0 0.0
      %4861 = vmatpush.msra.mxu0 0.0
      %4862 = vmatpush.msra.mxu0 0.0
      %4863 = vmatpush.msra.mxu0 %v4579
      %4864 = vmatmul.f32.gmra.mxu0 %v4826
      %v4865 = vpop.f32.mrf.mxu0
      %v4866 = vadd.f32 %v4846, %v4865
      %4867 = vdwg.mxu0
      %4868 = vst.msk [vmem:[#allocation5 + $0x4] sm:$0x1] %vm4621, %v4866
      %4869 = vst.msk [vmem:[%s4623 + $0x3] sm:$0x2] %vm4624, %v4866
      %4870 = vst.msk [vmem:[%s4626 + $0x2] sm:$0x4] %vm4627, %v4866
      %4871 = vst.msk [vmem:[%s4629 + $0x1] sm:$0x8] %vm4630, %v4866
      %4872 = vst.msk [vmem:[%s4632] sm:$0x10] %vm4633, %v4866
      %4873 = vst.msk [vmem:[%s4635 - $0x1] sm:$0x20] %vm4636, %v4866
      %v4874 = vld [vmem:[#allocation4 + $0x28] sm:$0x3f]
      %v4875 = vld [vmem:[#allocation4 + $0x30] sm:$0x3f]
      %4878 = vrot.lane.b32.xlu0 %v4874, 108
      %v4879 = vpop.permute.xlu0 %4878
      %4880 = vrot.lane.b32.xlu0 %v4875, 108
      %v4881 = vpop.permute.xlu0 %4880
      %vm4882 = vcmask 883712
      %v4883 = vsel %vm4882, %v4879, %v4881
      %v4885 = vsel %vm1729, %v4881, 0
      %4887 = vmatpush.msra.mxu0 %v4567
      %4888 = vmatpush.msra.mxu0 %v4566
      %4889 = vmatpush.msra.mxu0 %v4565
      %4890 = vmatpush.msra.mxu0 %v4564
      %4891 = vmatpush.msra.mxu0 %v4563
      %4892 = vmatpush.msra.mxu0 %v4562
      %4893 = vmatpush.msra.mxu0 %v4561
      %4894 = vmatpush.msra.mxu0 %v4560
      %4895 = vmatpush.msra.mxu0 %v4559
      %4896 = vmatpush.msra.mxu0 %v4558
      %4897 = vmatpush.msra.mxu0 %v4557
      %4898 = vmatpush.msra.mxu0 %v4556
      %4899 = vmatpush.msra.mxu0 %v4555
      %4900 = vmatpush.msra.mxu0 %v4554
      %4901 = vmatpush.msra.mxu0 %v4553
      %4902 = vmatpush.msra.mxu0 %v4552
      %4903 = vmatmul.f32.gmra.mxu0 %v4883
      %v4904 = vpop.f32.mrf.mxu0
      %v4905 = vadd.f32 %v4573, %v4904
      %4906 = vdwg.mxu0
      %4907 = vmatpush.msra.mxu0 0.0
      %4908 = vmatpush.msra.mxu0 0.0
      %4909 = vmatpush.msra.mxu0 0.0
      %4910 = vmatpush.msra.mxu0 0.0
      %4911 = vmatpush.msra.mxu0 0.0
      %4912 = vmatpush.msra.mxu0 0.0
      %4913 = vmatpush.msra.mxu0 0.0
      %4914 = vmatpush.msra.mxu0 0.0
      %4915 = vmatpush.msra.mxu0 0.0
      %4916 = vmatpush.msra.mxu0 0.0
      %4917 = vmatpush.msra.mxu0 0.0
      %4918 = vmatpush.msra.mxu0 0.0
      %4919 = vmatpush.msra.mxu0 0.0
      %4920 = vmatpush.msra.mxu0 0.0
      %4921 = vmatpush.msra.mxu0 0.0
      %4922 = vmatpush.msra.mxu0 %v4579
      %4923 = vmatmul.f32.gmra.mxu0 %v4885
      %v4924 = vpop.f32.mrf.mxu0
      %v4925 = vadd.f32 %v4905, %v4924
      %4926 = vdwg.mxu0
      %4927 = vst.msk [vmem:[#allocation5 + $0x5] sm:$0x1] %vm4621, %v4925
      %4928 = vst.msk [vmem:[%s4623 + $0x4] sm:$0x2] %vm4624, %v4925
      %4929 = vst.msk [vmem:[%s4626 + $0x3] sm:$0x4] %vm4627, %v4925
      %4930 = vst.msk [vmem:[%s4629 + $0x2] sm:$0x8] %vm4630, %v4925
      %4931 = vst.msk [vmem:[%s4632 + $0x1] sm:$0x10] %vm4633, %v4925
      %4932 = vst.msk [vmem:[%s4635] sm:$0x20] %vm4636, %v4925
      %v4933 = vld [vmem:[#allocation4 + $0x30] sm:$0x3f]
      %v4934 = vld [vmem:[#allocation4 + $0x38] sm:$0x3f]
      %4937 = vrot.lane.b32.xlu0 %v4933, 104
      %v4938 = vpop.permute.xlu0 %4937
      %4939 = vrot.lane.b32.xlu0 %v4934, 104
      %v4940 = vpop.permute.xlu0 %4939
      %vm4941 = vcmask 850944
      %v4942 = vsel %vm4941, %v4938, %v4940
      %v4944 = vsel %vm1729, %v4940, 0
      %4946 = vmatpush.msra.mxu0 %v4567
      %4947 = vmatpush.msra.mxu0 %v4566
      %4948 = vmatpush.msra.mxu0 %v4565
      %4949 = vmatpush.msra.mxu0 %v4564
      %4950 = vmatpush.msra.mxu0 %v4563
      %4951 = vmatpush.msra.mxu0 %v4562
      %4952 = vmatpush.msra.mxu0 %v4561
      %4953 = vmatpush.msra.mxu0 %v4560
      %4954 = vmatpush.msra.mxu0 %v4559
      %4955 = vmatpush.msra.mxu0 %v4558
      %4956 = vmatpush.msra.mxu0 %v4557
      %4957 = vmatpush.msra.mxu0 %v4556
      %4958 = vmatpush.msra.mxu0 %v4555
      %4959 = vmatpush.msra.mxu0 %v4554
      %4960 = vmatpush.msra.mxu0 %v4553
      %4961 = vmatpush.msra.mxu0 %v4552
      %4962 = vmatmul.f32.gmra.mxu0 %v4942
      %v4963 = vpop.f32.mrf.mxu0
      %v4964 = vadd.f32 %v4573, %v4963
      %4965 = vdwg.mxu0
      %4966 = vmatpush.msra.mxu0 0.0
      %4967 = vmatpush.msra.mxu0 0.0
      %4968 = vmatpush.msra.mxu0 0.0
      %4969 = vmatpush.msra.mxu0 0.0
      %4970 = vmatpush.msra.mxu0 0.0
      %4971 = vmatpush.msra.mxu0 0.0
      %4972 = vmatpush.msra.mxu0 0.0
      %4973 = vmatpush.msra.mxu0 0.0
      %4974 = vmatpush.msra.mxu0 0.0
      %4975 = vmatpush.msra.mxu0 0.0
      %4976 = vmatpush.msra.mxu0 0.0
      %4977 = vmatpush.msra.mxu0 0.0
      %4978 = vmatpush.msra.mxu0 0.0
      %4979 = vmatpush.msra.mxu0 0.0
      %4980 = vmatpush.msra.mxu0 0.0
      %4981 = vmatpush.msra.mxu0 %v4579
      %4982 = vmatmul.f32.gmra.mxu0 %v4944
      %v4983 = vpop.f32.mrf.mxu0
      %v4984 = vadd.f32 %v4964, %v4983
      %4985 = vdwg.mxu0
      %4986 = vst.msk [vmem:[#allocation5 + $0x6] sm:$0x1] %vm4621, %v4984
      %4987 = vst.msk [vmem:[%s4623 + $0x5] sm:$0x2] %vm4624, %v4984
      %4988 = vst.msk [vmem:[%s4626 + $0x4] sm:$0x4] %vm4627, %v4984
      %4989 = vst.msk [vmem:[%s4629 + $0x3] sm:$0x8] %vm4630, %v4984
      %4990 = vst.msk [vmem:[%s4632 + $0x2] sm:$0x10] %vm4633, %v4984
      %4991 = vst.msk [vmem:[%s4635 + $0x1] sm:$0x20] %vm4636, %v4984
      %v4992 = vld [vmem:[#allocation4 + $0x38] sm:$0x3f]
      %v4993 = vld [vmem:[#allocation4 + $0x40] sm:$0x3f]
      %4996 = vrot.lane.b32.xlu0 %v4992, 100
      %v4997 = vpop.permute.xlu0 %4996
      %4998 = vrot.lane.b32.xlu0 %v4993, 100
      %v4999 = vpop.permute.xlu0 %4998
      %vm5000 = vcmask 818176
      %v5001 = vsel %vm5000, %v4997, %v4999
      %v5003 = vsel %vm1729, %v4999, 0
      %5005 = vmatpush.msra.mxu0 %v4567
      %5006 = vmatpush.msra.mxu0 %v4566
      %5007 = vmatpush.msra.mxu0 %v4565
      %5008 = vmatpush.msra.mxu0 %v4564
      %5009 = vmatpush.msra.mxu0 %v4563
      %5010 = vmatpush.msra.mxu0 %v4562
      %5011 = vmatpush.msra.mxu0 %v4561
      %5012 = vmatpush.msra.mxu0 %v4560
      %5013 = vmatpush.msra.mxu0 %v4559
      %5014 = vmatpush.msra.mxu0 %v4558
      %5015 = vmatpush.msra.mxu0 %v4557
      %5016 = vmatpush.msra.mxu0 %v4556
      %5017 = vmatpush.msra.mxu0 %v4555
      %5018 = vmatpush.msra.mxu0 %v4554
      %5019 = vmatpush.msra.mxu0 %v4553
      %5020 = vmatpush.msra.mxu0 %v4552
      %5021 = vmatmul.f32.gmra.mxu0 %v5001
      %v5022 = vpop.f32.mrf.mxu0
      %v5023 = vadd.f32 %v4573, %v5022
      %5024 = vdwg.mxu0
      %5025 = vmatpush.msra.mxu0 0.0
      %5026 = vmatpush.msra.mxu0 0.0
      %5027 = vmatpush.msra.mxu0 0.0
      %5028 = vmatpush.msra.mxu0 0.0
      %5029 = vmatpush.msra.mxu0 0.0
      %5030 = vmatpush.msra.mxu0 0.0
      %5031 = vmatpush.msra.mxu0 0.0
      %5032 = vmatpush.msra.mxu0 0.0
      %5033 = vmatpush.msra.mxu0 0.0
      %5034 = vmatpush.msra.mxu0 0.0
      %5035 = vmatpush.msra.mxu0 0.0
      %5036 = vmatpush.msra.mxu0 0.0
      %5037 = vmatpush.msra.mxu0 0.0
      %5038 = vmatpush.msra.mxu0 0.0
      %5039 = vmatpush.msra.mxu0 0.0
      %5040 = vmatpush.msra.mxu0 %v4579
      %5041 = vmatmul.f32.gmra.mxu0 %v5003
      %v5042 = vpop.f32.mrf.mxu0
      %v5043 = vadd.f32 %v5023, %v5042
      %5044 = vdwg.mxu0
      %5045 = vst.msk [vmem:[#allocation5 + $0x7] sm:$0x1] %vm4621, %v5043
      %5046 = vst.msk [vmem:[%s4623 + $0x6] sm:$0x2] %vm4624, %v5043
      %5047 = vst.msk [vmem:[%s4626 + $0x5] sm:$0x4] %vm4627, %v5043
      %5048 = vst.msk [vmem:[%s4629 + $0x4] sm:$0x8] %vm4630, %v5043
      %5049 = vst.msk [vmem:[%s4632 + $0x3] sm:$0x10] %vm4633, %v5043
      %5050 = vst.msk [vmem:[%s4635 + $0x2] sm:$0x20] %vm4636, %v5043
      %v5051 = vld [vmem:[%s9] sm:$0xff]
      %v5052 = vld [vmem:[%s9 + $0x8] sm:$0xff]
      %v5053 = vld [vmem:[%s9 + $0x10] sm:$0xf]
      %v5054 = vld [vmem:[%s11] sm:$0xff]
      %v5055 = vld [vmem:[%s11 + $0x8] sm:$0xff]
      %v5056 = vld [vmem:[%s11 + $0x10] sm:$0xf]
      %v5057 = vld [vmem:[%s12] sm:$0xff]
      %v5058 = vld [vmem:[%s12 + $0x8] sm:$0xff]
      %v5059 = vld [vmem:[%s12 + $0x10] sm:$0xf]
      %v5060 = vld [vmem:[%s13] sm:$0x1]
      %v5061 = vld [vmem:[#allocation5] sm:$0xff]
      %vm5062 = vcmask 162816
      %v5064 = vsel %vm5062, 0.0, 0
      %v5067 = vsel %vm1710, %v5053, 0
      %5069 = vmatpush.msra.mxu0 0.0
      %5070 = vmatpush.msra.mxu0 0.0
      %5071 = vmatpush.msra.mxu0 0.0
      %5072 = vmatpush.msra.mxu0 0.0
      %5073 = vmatpush.msra.mxu0 0.0
      %5074 = vmatpush.msra.mxu0 0.0
      %5075 = vmatpush.msra.mxu0 0.0
      %5076 = vmatpush.msra.mxu0 0.0
      %5077 = vmatpush.msra.mxu0 0.0
      %5078 = vmatpush.msra.mxu0 0.0
      %5079 = vmatpush.msra.mxu0 0.0
      %5080 = vmatpush.msra.mxu0 0.0
      %5081 = vmatpush.msra.mxu0 0.0
      %5082 = vmatpush.msra.mxu0 %v5067
      %5083 = vmatpush.msra.mxu0 %v5052
      %5084 = vmatpush.msra.mxu0 %v5051
      %5085 = vmatmul.f32.gmra.mxu0 %v5064
      %v5086 = vpop.f32.mrf.mxu0
      %v5087 = vadd.f32 0.0, %v5086
      %5088 = vdwg.mxu0
      %v5089 = vadd.f32 %v5061, %v5087
      %v5090 = vmul.f32 %v5089, 0.5
      %v5091 = vtanh.pop %v5090
      %v5092 = vmul.f32 %v5091, 0.5
      %v5093 = vadd.f32 %v5092, 0.5
      %v5094 = vtanh.pop %v5089
      %v5095 = vmul.f32 %v5093, 0.0
      %5097 = vrot.lane.b32.xlu0 %v5094, 88
      %v5098 = vpop.permute.xlu0 %5097
      %v5100 = vmul.f32 %v5093, %v5098
      %5102 = vrot.lane.b32.xlu0 %v5100, 20
      %v5103 = vpop.permute.xlu0 %5102
      %v5105 = vadd.f32 %v5095, %v5103
      %v5106 = vtanh.pop %v5105
      %5108 = vrot.lane.b32.xlu0 %v5106, 40
      %v5109 = vpop.permute.xlu0 %5108
      %v5111 = vmul.f32 %v5093, %v5109
      %v5113 = vsel %vm1710, %v5059, 0
      %5115 = vmatpush.msra.mxu0 0.0
      %5116 = vmatpush.msra.mxu0 0.0
      %5117 = vmatpush.msra.mxu0 0.0
      %5118 = vmatpush.msra.mxu0 0.0
      %5119 = vmatpush.msra.mxu0 0.0
      %5120 = vmatpush.msra.mxu0 0.0
      %5121 = vmatpush.msra.mxu0 0.0
      %5122 = vmatpush.msra.mxu0 0.0
      %5123 = vmatpush.msra.mxu0 0.0
      %5124 = vmatpush.msra.mxu0 0.0
      %5125 = vmatpush.msra.mxu0 0.0
      %5126 = vmatpush.msra.mxu0 0.0
      %5127 = vmatpush.msra.mxu0 0.0
      %5128 = vmatpush.msra.mxu0 %v5113
      %5129 = vmatpush.msra.mxu0 %v5058
      %5130 = vmatpush.msra.mxu0 %v5057
      %5131 = vmatmul.f32.gmra.mxu0 %v5064
      %v5132 = vpop.f32.mrf.mxu0
      %v5133 = vadd.f32 0.0, %v5132
      %5134 = vdwg.mxu0
      %5136 = vrot.lane.b32.xlu0 %v5111, 68
      %v5137 = vpop.permute.xlu0 %5136
      %v5138 = vsel %vm5062, %v5137, 0
      %v5141 = vsel %vm1710, %v5056, 0
      %5143 = vmatpush.msra.mxu0 0.0
      %5144 = vmatpush.msra.mxu0 0.0
      %5145 = vmatpush.msra.mxu0 0.0
      %5146 = vmatpush.msra.mxu0 0.0
      %5147 = vmatpush.msra.mxu0 0.0
      %5148 = vmatpush.msra.mxu0 0.0
      %5149 = vmatpush.msra.mxu0 0.0
      %5150 = vmatpush.msra.mxu0 0.0
      %5151 = vmatpush.msra.mxu0 0.0
      %5152 = vmatpush.msra.mxu0 0.0
      %5153 = vmatpush.msra.mxu0 0.0
      %5154 = vmatpush.msra.mxu0 0.0
      %5155 = vmatpush.msra.mxu0 0.0
      %5156 = vmatpush.msra.mxu0 %v5141
      %5157 = vmatpush.msra.mxu0 %v5055
      %5158 = vmatpush.msra.mxu0 %v5054
      %5159 = vmatmul.f32.gmra.mxu0 %v5138
      %v5160 = vpop.f32.mrf.mxu0
      %v5161 = vadd.f32 %v5133, %v5160
      %5162 = vdwg.mxu0
      %v5164 = vperm.slane %v5060, 0
      %v5166 = vadd.f32 %v5161, %v5164
      %v5167 = vmul.f32 %v5166, 0.5
      %v5168 = vtanh.pop %v5167
      %v5169 = vmul.f32 %v5168, 0.5
      %v5170 = vadd.f32 %v5169, 0.5
      %v5171 = vtanh.pop %v5166
      %v5172 = vmul.f32 %v5170, 0.0
      %5174 = vrot.lane.b32.xlu0 %v5171, 88
      %v5175 = vpop.permute.xlu0 %5174
      %v5177 = vmul.f32 %v5170, %v5175
      %5179 = vrot.lane.b32.xlu0 %v5177, 20
      %v5180 = vpop.permute.xlu0 %5179
      %v5182 = vadd.f32 %v5172, %v5180
      %v5183 = vtanh.pop %v5182
      %5185 = vrot.lane.b32.xlu0 %v5183, 40
      %v5186 = vpop.permute.xlu0 %5185
      %v5188 = vmul.f32 %v5170, %v5186
      %v5189 = vld [vmem:[%s4623] sm:$0xff]
      %5190 = vmatpush.msra.mxu0 0.0
      %5191 = vmatpush.msra.mxu0 0.0
      %5192 = vmatpush.msra.mxu0 0.0
      %5193 = vmatpush.msra.mxu0 0.0
      %5194 = vmatpush.msra.mxu0 0.0
      %5195 = vmatpush.msra.mxu0 0.0
      %5196 = vmatpush.msra.mxu0 0.0
      %5197 = vmatpush.msra.mxu0 0.0
      %5198 = vmatpush.msra.mxu0 0.0
      %5199 = vmatpush.msra.mxu0 0.0
      %5200 = vmatpush.msra.mxu0 0.0
      %5201 = vmatpush.msra.mxu0 0.0
      %5202 = vmatpush.msra.mxu0 0.0
      %5203 = vmatpush.msra.mxu0 %v5067
      %5204 = vmatpush.msra.mxu0 %v5052
      %5205 = vmatpush.msra.mxu0 %v5051
      %5206 = vmatmul.f32.gmra.mxu0 %v5138
      %v5207 = vpop.f32.mrf.mxu0
      %v5208 = vadd.f32 0.0, %v5207
      %5209 = vdwg.mxu0
      %v5210 = vadd.f32 %v5189, %v5208
      %v5211 = vmul.f32 %v5210, 0.5
      %v5212 = vtanh.pop %v5211
      %v5213 = vmul.f32 %v5212, 0.5
      %v5214 = vadd.f32 %v5213, 0.5
      %v5215 = vtanh.pop %v5210
      %v5216 = vmul.f32 %v5214, %v5105
      %5218 = vrot.lane.b32.xlu0 %v5215, 88
      %v5219 = vpop.permute.xlu0 %5218
      %v5221 = vmul.f32 %v5214, %v5219
      %5223 = vrot.lane.b32.xlu0 %v5221, 20
      %v5224 = vpop.permute.xlu0 %5223
      %v5226 = vadd.f32 %v5216, %v5224
      %v5227 = vtanh.pop %v5226
      %5229 = vrot.lane.b32.xlu0 %v5227, 40
      %v5230 = vpop.permute.xlu0 %5229
      %v5232 = vmul.f32 %v5214, %v5230
      %5234 = vrot.lane.b32.xlu0 %v5188, 68
      %v5235 = vpop.permute.xlu0 %5234
      %v5236 = vsel %vm5062, %v5235, 0
      %5238 = vmatpush.msra.mxu0 0.0
      %5239 = vmatpush.msra.mxu0 0.0
      %5240 = vmatpush.msra.mxu0 0.0
      %5241 = vmatpush.msra.mxu0 0.0
      %5242 = vmatpush.msra.mxu0 0.0
      %5243 = vmatpush.msra.mxu0 0.0
      %5244 = vmatpush.msra.mxu0 0.0
      %5245 = vmatpush.msra.mxu0 0.0
      %5246 = vmatpush.msra.mxu0 0.0
      %5247 = vmatpush.msra.mxu0 0.0
      %5248 = vmatpush.msra.mxu0 0.0
      %5249 = vmatpush.msra.mxu0 0.0
      %5250 = vmatpush.msra.mxu0 0.0
      %5251 = vmatpush.msra.mxu0 %v5113
      %5252 = vmatpush.msra.mxu0 %v5058
      %5253 = vmatpush.msra.mxu0 %v5057
      %5254 = vmatmul.f32.gmra.mxu0 %v5236
      %v5255 = vpop.f32.mrf.mxu0
      %v5256 = vadd.f32 0.0, %v5255
      %5257 = vdwg.mxu0
      %5259 = vrot.lane.b32.xlu0 %v5232, 68
      %v5260 = vpop.permute.xlu0 %5259
      %v5261 = vsel %vm5062, %v5260, 0
      %5263 = vmatpush.msra.mxu0 0.0
      %5264 = vmatpush.msra.mxu0 0.0
      %5265 = vmatpush.msra.mxu0 0.0
      %5266 = vmatpush.msra.mxu0 0.0
      %5267 = vmatpush.msra.mxu0 0.0
      %5268 = vmatpush.msra.mxu0 0.0
      %5269 = vmatpush.msra.mxu0 0.0
      %5270 = vmatpush.msra.mxu0 0.0
      %5271 = vmatpush.msra.mxu0 0.0
      %5272 = vmatpush.msra.mxu0 0.0
      %5273 = vmatpush.msra.mxu0 0.0
      %5274 = vmatpush.msra.mxu0 0.0
      %5275 = vmatpush.msra.mxu0 0.0
      %5276 = vmatpush.msra.mxu0 %v5141
      %5277 = vmatpush.msra.mxu0 %v5055
      %5278 = vmatpush.msra.mxu0 %v5054
      %5279 = vmatmul.f32.gmra.mxu0 %v5261
      %v5280 = vpop.f32.mrf.mxu0
      %v5281 = vadd.f32 %v5256, %v5280
      %5282 = vdwg.mxu0
      %v5283 = vadd.f32 %v5281, %v5164
      %v5284 = vmul.f32 %v5283, 0.5
      %v5285 = vtanh.pop %v5284
      %v5286 = vmul.f32 %v5285, 0.5
      %v5287 = vadd.f32 %v5286, 0.5
      %v5288 = vtanh.pop %v5283
      %v5289 = vmul.f32 %v5287, %v5182
      %5291 = vrot.lane.b32.xlu0 %v5288, 88
      %v5292 = vpop.permute.xlu0 %5291
      %v5294 = vmul.f32 %v5287, %v5292
      %5296 = vrot.lane.b32.xlu0 %v5294, 20
      %v5297 = vpop.permute.xlu0 %5296
      %v5299 = vadd.f32 %v5289, %v5297
      %v5300 = vtanh.pop %v5299
      %5302 = vrot.lane.b32.xlu0 %v5300, 40
      %v5303 = vpop.permute.xlu0 %5302
      %v5305 = vmul.f32 %v5287, %v5303
      %v5306 = vld [vmem:[%s4626] sm:$0xff]
      %5307 = vmatpush.msra.mxu0 0.0
      %5308 = vmatpush.msra.mxu0 0.0
      %5309 = vmatpush.msra.mxu0 0.0
      %5310 = vmatpush.msra.mxu0 0.0
      %5311 = vmatpush.msra.mxu0 0.0
      %5312 = vmatpush.msra.mxu0 0.0
      %5313 = vmatpush.msra.mxu0 0.0
      %5314 = vmatpush.msra.mxu0 0.0
      %5315 = vmatpush.msra.mxu0 0.0
      %5316 = vmatpush.msra.mxu0 0.0
      %5317 = vmatpush.msra.mxu0 0.0
      %5318 = vmatpush.msra.mxu0 0.0
      %5319 = vmatpush.msra.mxu0 0.0
      %5320 = vmatpush.msra.mxu0 %v5067
      %5321 = vmatpush.msra.mxu0 %v5052
      %5322 = vmatpush.msra.mxu0 %v5051
      %5323 = vmatmul.f32.gmra.mxu0 %v5261
      %v5324 = vpop.f32.mrf.mxu0
      %v5325 = vadd.f32 0.0, %v5324
      %5326 = vdwg.mxu0
      %v5327 = vadd.f32 %v5306, %v5325
      %v5328 = vmul.f32 %v5327, 0.5
      %v5329 = vtanh.pop %v5328
      %v5330 = vmul.f32 %v5329, 0.5
      %v5331 = vadd.f32 %v5330, 0.5
      %v5332 = vtanh.pop %v5327
      %v5333 = vmul.f32 %v5331, %v5226
      %5335 = vrot.lane.b32.xlu0 %v5332, 88
      %v5336 = vpop.permute.xlu0 %5335
      %v5338 = vmul.f32 %v5331, %v5336
      %5340 = vrot.lane.b32.xlu0 %v5338, 20
      %v5341 = vpop.permute.xlu0 %5340
      %v5343 = vadd.f32 %v5333, %v5341
      %v5344 = vtanh.pop %v5343
      %5346 = vrot.lane.b32.xlu0 %v5344, 40
      %v5347 = vpop.permute.xlu0 %5346
      %v5349 = vmul.f32 %v5331, %v5347
      %5351 = vrot.lane.b32.xlu0 %v5305, 68
      %v5352 = vpop.permute.xlu0 %5351
      %v5353 = vsel %vm5062, %v5352, 0
      %5355 = vmatpush.msra.mxu0 0.0
      %5356 = vmatpush.msra.mxu0 0.0
      %5357 = vmatpush.msra.mxu0 0.0
      %5358 = vmatpush.msra.mxu0 0.0
      %5359 = vmatpush.msra.mxu0 0.0
      %5360 = vmatpush.msra.mxu0 0.0
      %5361 = vmatpush.msra.mxu0 0.0
      %5362 = vmatpush.msra.mxu0 0.0
      %5363 = vmatpush.msra.mxu0 0.0
      %5364 = vmatpush.msra.mxu0 0.0
      %5365 = vmatpush.msra.mxu0 0.0
      %5366 = vmatpush.msra.mxu0 0.0
      %5367 = vmatpush.msra.mxu0 0.0
      %5368 = vmatpush.msra.mxu0 %v5113
      %5369 = vmatpush.msra.mxu0 %v5058
      %5370 = vmatpush.msra.mxu0 %v5057
      %5371 = vmatmul.f32.gmra.mxu0 %v5353
      %v5372 = vpop.f32.mrf.mxu0
      %v5373 = vadd.f32 0.0, %v5372
      %5374 = vdwg.mxu0
      %5376 = vrot.lane.b32.xlu0 %v5349, 68
      %v5377 = vpop.permute.xlu0 %5376
      %v5378 = vsel %vm5062, %v5377, 0
      %5380 = vmatpush.msra.mxu0 0.0
      %5381 = vmatpush.msra.mxu0 0.0
      %5382 = vmatpush.msra.mxu0 0.0
      %5383 = vmatpush.msra.mxu0 0.0
      %5384 = vmatpush.msra.mxu0 0.0
      %5385 = vmatpush.msra.mxu0 0.0
      %5386 = vmatpush.msra.mxu0 0.0
      %5387 = vmatpush.msra.mxu0 0.0
      %5388 = vmatpush.msra.mxu0 0.0
      %5389 = vmatpush.msra.mxu0 0.0
      %5390 = vmatpush.msra.mxu0 0.0
      %5391 = vmatpush.msra.mxu0 0.0
      %5392 = vmatpush.msra.mxu0 0.0
      %5393 = vmatpush.msra.mxu0 %v5141
      %5394 = vmatpush.msra.mxu0 %v5055
      %5395 = vmatpush.msra.mxu0 %v5054
      %5396 = vmatmul.f32.gmra.mxu0 %v5378
      %v5397 = vpop.f32.mrf.mxu0
      %v5398 = vadd.f32 %v5373, %v5397
      %5399 = vdwg.mxu0
      %v5400 = vadd.f32 %v5398, %v5164
      %v5401 = vmul.f32 %v5400, 0.5
      %v5402 = vtanh.pop %v5401
      %v5403 = vmul.f32 %v5402, 0.5
      %v5404 = vadd.f32 %v5403, 0.5
      %v5405 = vtanh.pop %v5400
      %v5406 = vmul.f32 %v5404, %v5299
      %5408 = vrot.lane.b32.xlu0 %v5405, 88
      %v5409 = vpop.permute.xlu0 %5408
      %v5411 = vmul.f32 %v5404, %v5409
      %5413 = vrot.lane.b32.xlu0 %v5411, 20
      %v5414 = vpop.permute.xlu0 %5413
      %v5416 = vadd.f32 %v5406, %v5414
      %v5417 = vtanh.pop %v5416
      %5419 = vrot.lane.b32.xlu0 %v5417, 40
      %v5420 = vpop.permute.xlu0 %5419
      %v5422 = vmul.f32 %v5404, %v5420
      %v5423 = vld [vmem:[%s4629] sm:$0xff]
      %5424 = vmatpush.msra.mxu0 0.0
      %5425 = vmatpush.msra.mxu0 0.0
      %5426 = vmatpush.msra.mxu0 0.0
      %5427 = vmatpush.msra.mxu0 0.0
      %5428 = vmatpush.msra.mxu0 0.0
      %5429 = vmatpush.msra.mxu0 0.0
      %5430 = vmatpush.msra.mxu0 0.0
      %5431 = vmatpush.msra.mxu0 0.0
      %5432 = vmatpush.msra.mxu0 0.0
      %5433 = vmatpush.msra.mxu0 0.0
      %5434 = vmatpush.msra.mxu0 0.0
      %5435 = vmatpush.msra.mxu0 0.0
      %5436 = vmatpush.msra.mxu0 0.0
      %5437 = vmatpush.msra.mxu0 %v5067
      %5438 = vmatpush.msra.mxu0 %v5052
      %5439 = vmatpush.msra.mxu0 %v5051
      %5440 = vmatmul.f32.gmra.mxu0 %v5378
      %v5441 = vpop.f32.mrf.mxu0
      %v5442 = vadd.f32 0.0, %v5441
      %5443 = vdwg.mxu0
      %v5444 = vadd.f32 %v5423, %v5442
      %v5445 = vmul.f32 %v5444, 0.5
      %v5446 = vtanh.pop %v5445
      %v5447 = vmul.f32 %v5446, 0.5
      %v5448 = vadd.f32 %v5447, 0.5
      %v5449 = vtanh.pop %v5444
      %v5450 = vmul.f32 %v5448, %v5343
      %5452 = vrot.lane.b32.xlu0 %v5449, 88
      %v5453 = vpop.permute.xlu0 %5452
      %v5455 = vmul.f32 %v5448, %v5453
      %5457 = vrot.lane.b32.xlu0 %v5455, 20
      %v5458 = vpop.permute.xlu0 %5457
      %v5460 = vadd.f32 %v5450, %v5458
      %v5461 = vtanh.pop %v5460
      %5463 = vrot.lane.b32.xlu0 %v5461, 40
      %v5464 = vpop.permute.xlu0 %5463
      %v5466 = vmul.f32 %v5448, %v5464
      %5468 = vrot.lane.b32.xlu0 %v5422, 68
      %v5469 = vpop.permute.xlu0 %5468
      %v5470 = vsel %vm5062, %v5469, 0
      %5472 = vmatpush.msra.mxu0 0.0
      %5473 = vmatpush.msra.mxu0 0.0
      %5474 = vmatpush.msra.mxu0 0.0
      %5475 = vmatpush.msra.mxu0 0.0
      %5476 = vmatpush.msra.mxu0 0.0
      %5477 = vmatpush.msra.mxu0 0.0
      %5478 = vmatpush.msra.mxu0 0.0
      %5479 = vmatpush.msra.mxu0 0.0
      %5480 = vmatpush.msra.mxu0 0.0
      %5481 = vmatpush.msra.mxu0 0.0
      %5482 = vmatpush.msra.mxu0 0.0
      %5483 = vmatpush.msra.mxu0 0.0
      %5484 = vmatpush.msra.mxu0 0.0
      %5485 = vmatpush.msra.mxu0 %v5113
      %5486 = vmatpush.msra.mxu0 %v5058
      %5487 = vmatpush.msra.mxu0 %v5057
      %5488 = vmatmul.f32.gmra.mxu0 %v5470
      %v5489 = vpop.f32.mrf.mxu0
      %v5490 = vadd.f32 0.0, %v5489
      %5491 = vdwg.mxu0
      %5493 = vrot.lane.b32.xlu0 %v5466, 68
      %v5494 = vpop.permute.xlu0 %5493
      %v5495 = vsel %vm5062, %v5494, 0
      %5497 = vmatpush.msra.mxu0 0.0
      %5498 = vmatpush.msra.mxu0 0.0
      %5499 = vmatpush.msra.mxu0 0.0
      %5500 = vmatpush.msra.mxu0 0.0
      %5501 = vmatpush.msra.mxu0 0.0
      %5502 = vmatpush.msra.mxu0 0.0
      %5503 = vmatpush.msra.mxu0 0.0
      %5504 = vmatpush.msra.mxu0 0.0
      %5505 = vmatpush.msra.mxu0 0.0
      %5506 = vmatpush.msra.mxu0 0.0
      %5507 = vmatpush.msra.mxu0 0.0
      %5508 = vmatpush.msra.mxu0 0.0
      %5509 = vmatpush.msra.mxu0 0.0
      %5510 = vmatpush.msra.mxu0 %v5141
      %5511 = vmatpush.msra.mxu0 %v5055
      %5512 = vmatpush.msra.mxu0 %v5054
      %5513 = vmatmul.f32.gmra.mxu0 %v5495
      %v5514 = vpop.f32.mrf.mxu0
      %v5515 = vadd.f32 %v5490, %v5514
      %5516 = vdwg.mxu0
      %v5517 = vadd.f32 %v5515, %v5164
      %v5518 = vmul.f32 %v5517, 0.5
      %v5519 = vtanh.pop %v5518
      %v5520 = vmul.f32 %v5519, 0.5
      %v5521 = vadd.f32 %v5520, 0.5
      %v5522 = vtanh.pop %v5517
      %v5523 = vmul.f32 %v5521, %v5416
      %5525 = vrot.lane.b32.xlu0 %v5522, 88
      %v5526 = vpop.permute.xlu0 %5525
      %v5528 = vmul.f32 %v5521, %v5526
      %5530 = vrot.lane.b32.xlu0 %v5528, 20
      %v5531 = vpop.permute.xlu0 %5530
      %v5533 = vadd.f32 %v5523, %v5531
      %v5534 = vtanh.pop %v5533
      %5536 = vrot.lane.b32.xlu0 %v5534, 40
      %v5537 = vpop.permute.xlu0 %5536
      %v5539 = vmul.f32 %v5521, %v5537
      %v5540 = vld [vmem:[%s4632] sm:$0xff]
      %5541 = vmatpush.msra.mxu0 0.0
      %5542 = vmatpush.msra.mxu0 0.0
      %5543 = vmatpush.msra.mxu0 0.0
      %5544 = vmatpush.msra.mxu0 0.0
      %5545 = vmatpush.msra.mxu0 0.0
      %5546 = vmatpush.msra.mxu0 0.0
      %5547 = vmatpush.msra.mxu0 0.0
      %5548 = vmatpush.msra.mxu0 0.0
      %5549 = vmatpush.msra.mxu0 0.0
      %5550 = vmatpush.msra.mxu0 0.0
      %5551 = vmatpush.msra.mxu0 0.0
      %5552 = vmatpush.msra.mxu0 0.0
      %5553 = vmatpush.msra.mxu0 0.0
      %5554 = vmatpush.msra.mxu0 %v5067
      %5555 = vmatpush.msra.mxu0 %v5052
      %5556 = vmatpush.msra.mxu0 %v5051
      %5557 = vmatmul.f32.gmra.mxu0 %v5495
      %v5558 = vpop.f32.mrf.mxu0
      %v5559 = vadd.f32 0.0, %v5558
      %5560 = vdwg.mxu0
      %v5561 = vadd.f32 %v5540, %v5559
      %v5562 = vmul.f32 %v5561, 0.5
      %v5563 = vtanh.pop %v5562
      %v5564 = vmul.f32 %v5563, 0.5
      %v5565 = vadd.f32 %v5564, 0.5
      %v5566 = vtanh.pop %v5561
      %v5567 = vmul.f32 %v5565, %v5460
      %5569 = vrot.lane.b32.xlu0 %v5566, 88
      %v5570 = vpop.permute.xlu0 %5569
      %v5572 = vmul.f32 %v5565, %v5570
      %5574 = vrot.lane.b32.xlu0 %v5572, 20
      %v5575 = vpop.permute.xlu0 %5574
      %v5577 = vadd.f32 %v5567, %v5575
      %v5578 = vtanh.pop %v5577
      %5580 = vrot.lane.b32.xlu0 %v5578, 40
      %v5581 = vpop.permute.xlu0 %5580
      %v5583 = vmul.f32 %v5565, %v5581
      %5585 = vrot.lane.b32.xlu0 %v5539, 68
      %v5586 = vpop.permute.xlu0 %5585
      %v5587 = vsel %vm5062, %v5586, 0
      %5589 = vmatpush.msra.mxu0 0.0
      %5590 = vmatpush.msra.mxu0 0.0
      %5591 = vmatpush.msra.mxu0 0.0
      %5592 = vmatpush.msra.mxu0 0.0
      %5593 = vmatpush.msra.mxu0 0.0
      %5594 = vmatpush.msra.mxu0 0.0
      %5595 = vmatpush.msra.mxu0 0.0
      %5596 = vmatpush.msra.mxu0 0.0
      %5597 = vmatpush.msra.mxu0 0.0
      %5598 = vmatpush.msra.mxu0 0.0
      %5599 = vmatpush.msra.mxu0 0.0
      %5600 = vmatpush.msra.mxu0 0.0
      %5601 = vmatpush.msra.mxu0 0.0
      %5602 = vmatpush.msra.mxu0 %v5113
      %5603 = vmatpush.msra.mxu0 %v5058
      %5604 = vmatpush.msra.mxu0 %v5057
      %5605 = vmatmul.f32.gmra.mxu0 %v5587
      %v5606 = vpop.f32.mrf.mxu0
      %v5607 = vadd.f32 0.0, %v5606
      %5608 = vdwg.mxu0
      %5610 = vrot.lane.b32.xlu0 %v5583, 68
      %v5611 = vpop.permute.xlu0 %5610
      %v5612 = vsel %vm5062, %v5611, 0
      %5614 = vmatpush.msra.mxu0 0.0
      %5615 = vmatpush.msra.mxu0 0.0
      %5616 = vmatpush.msra.mxu0 0.0
      %5617 = vmatpush.msra.mxu0 0.0
      %5618 = vmatpush.msra.mxu0 0.0
      %5619 = vmatpush.msra.mxu0 0.0
      %5620 = vmatpush.msra.mxu0 0.0
      %5621 = vmatpush.msra.mxu0 0.0
      %5622 = vmatpush.msra.mxu0 0.0
      %5623 = vmatpush.msra.mxu0 0.0
      %5624 = vmatpush.msra.mxu0 0.0
      %5625 = vmatpush.msra.mxu0 0.0
      %5626 = vmatpush.msra.mxu0 0.0
      %5627 = vmatpush.msra.mxu0 %v5141
      %5628 = vmatpush.msra.mxu0 %v5055
      %5629 = vmatpush.msra.mxu0 %v5054
      %5630 = vmatmul.f32.gmra.mxu0 %v5612
      %v5631 = vpop.f32.mrf.mxu0
      %v5632 = vadd.f32 %v5607, %v5631
      %5633 = vdwg.mxu0
      %v5634 = vadd.f32 %v5632, %v5164
      %v5635 = vmul.f32 %v5634, 0.5
      %v5636 = vtanh.pop %v5635
      %v5637 = vmul.f32 %v5636, 0.5
      %v5638 = vadd.f32 %v5637, 0.5
      %v5639 = vtanh.pop %v5634
      %v5640 = vmul.f32 %v5638, %v5533
      %5642 = vrot.lane.b32.xlu0 %v5639, 88
      %v5643 = vpop.permute.xlu0 %5642
      %v5645 = vmul.f32 %v5638, %v5643
      %5647 = vrot.lane.b32.xlu0 %v5645, 20
      %v5648 = vpop.permute.xlu0 %5647
      %v5650 = vadd.f32 %v5640, %v5648
      %v5651 = vtanh.pop %v5650
      %5653 = vrot.lane.b32.xlu0 %v5651, 40
      %v5654 = vpop.permute.xlu0 %5653
      %v5656 = vmul.f32 %v5638, %v5654
      %v5657 = vld [vmem:[%s4635] sm:$0xff]
      %5658 = vmatpush.msra.mxu0 0.0
      %5659 = vmatpush.msra.mxu0 0.0
      %5660 = vmatpush.msra.mxu0 0.0
      %5661 = vmatpush.msra.mxu0 0.0
      %5662 = vmatpush.msra.mxu0 0.0
      %5663 = vmatpush.msra.mxu0 0.0
      %5664 = vmatpush.msra.mxu0 0.0
      %5665 = vmatpush.msra.mxu0 0.0
      %5666 = vmatpush.msra.mxu0 0.0
      %5667 = vmatpush.msra.mxu0 0.0
      %5668 = vmatpush.msra.mxu0 0.0
      %5669 = vmatpush.msra.mxu0 0.0
      %5670 = vmatpush.msra.mxu0 0.0
      %5671 = vmatpush.msra.mxu0 %v5067
      %5672 = vmatpush.msra.mxu0 %v5052
      %5673 = vmatpush.msra.mxu0 %v5051
      %5674 = vmatmul.f32.gmra.mxu0 %v5612
      %v5675 = vpop.f32.mrf.mxu0
      %v5676 = vadd.f32 0.0, %v5675
      %5677 = vdwg.mxu0
      %v5678 = vadd.f32 %v5657, %v5676
      %v5679 = vmul.f32 %v5678, 0.5
      %v5680 = vtanh.pop %v5679
      %v5681 = vmul.f32 %v5680, 0.5
      %v5682 = vadd.f32 %v5681, 0.5
      %v5683 = vtanh.pop %v5678
      %v5684 = vmul.f32 %v5682, %v5577
      %5686 = vrot.lane.b32.xlu0 %v5683, 88
      %v5687 = vpop.permute.xlu0 %5686
      %v5689 = vmul.f32 %v5682, %v5687
      %5691 = vrot.lane.b32.xlu0 %v5689, 20
      %v5692 = vpop.permute.xlu0 %5691
      %v5694 = vadd.f32 %v5684, %v5692
      %v5695 = vtanh.pop %v5694
      %5697 = vrot.lane.b32.xlu0 %v5695, 40
      %v5698 = vpop.permute.xlu0 %5697
      %v5700 = vmul.f32 %v5682, %v5698
      %5702 = vrot.lane.b32.xlu0 %v5656, 68
      %v5703 = vpop.permute.xlu0 %5702
      %v5704 = vsel %vm5062, %v5703, 0
      %5706 = vmatpush.msra.mxu0 0.0
      %5707 = vmatpush.msra.mxu0 0.0
      %5708 = vmatpush.msra.mxu0 0.0
      %5709 = vmatpush.msra.mxu0 0.0
      %5710 = vmatpush.msra.mxu0 0.0
      %5711 = vmatpush.msra.mxu0 0.0
      %5712 = vmatpush.msra.mxu0 0.0
      %5713 = vmatpush.msra.mxu0 0.0
      %5714 = vmatpush.msra.mxu0 0.0
      %5715 = vmatpush.msra.mxu0 0.0
      %5716 = vmatpush.msra.mxu0 0.0
      %5717 = vmatpush.msra.mxu0 0.0
      %5718 = vmatpush.msra.mxu0 0.0
      %5719 = vmatpush.msra.mxu0 %v5113
      %5720 = vmatpush.msra.mxu0 %v5058
      %5721 = vmatpush.msra.mxu0 %v5057
      %5722 = vmatmul.f32.gmra.mxu0 %v5704
      %v5723 = vpop.f32.mrf.mxu0
      %v5724 = vadd.f32 0.0, %v5723
      %5725 = vdwg.mxu0
      %5727 = vrot.lane.b32.xlu0 %v5700, 68
      %v5728 = vpop.permute.xlu0 %5727
      %v5729 = vsel %vm5062, %v5728, 0
      %5731 = vmatpush.msra.mxu0 0.0
      %5732 = vmatpush.msra.mxu0 0.0
      %5733 = vmatpush.msra.mxu0 0.0
      %5734 = vmatpush.msra.mxu0 0.0
      %5735 = vmatpush.msra.mxu0 0.0
      %5736 = vmatpush.msra.mxu0 0.0
      %5737 = vmatpush.msra.mxu0 0.0
      %5738 = vmatpush.msra.mxu0 0.0
      %5739 = vmatpush.msra.mxu0 0.0
      %5740 = vmatpush.msra.mxu0 0.0
      %5741 = vmatpush.msra.mxu0 0.0
      %5742 = vmatpush.msra.mxu0 0.0
      %5743 = vmatpush.msra.mxu0 0.0
      %5744 = vmatpush.msra.mxu0 %v5141
      %5745 = vmatpush.msra.mxu0 %v5055
      %5746 = vmatpush.msra.mxu0 %v5054
      %5747 = vmatmul.f32.gmra.mxu0 %v5729
      %v5748 = vpop.f32.mrf.mxu0
      %v5749 = vadd.f32 %v5724, %v5748
      %5750 = vdwg.mxu0
      %v5751 = vadd.f32 %v5749, %v5164
      %v5752 = vmul.f32 %v5751, 0.5
      %v5753 = vtanh.pop %v5752
      %v5754 = vmul.f32 %v5753, 0.5
      %v5755 = vadd.f32 %v5754, 0.5
      %v5756 = vtanh.pop %v5751
      %v5757 = vmul.f32 %v5755, %v5650
      %5759 = vrot.lane.b32.xlu0 %v5756, 88
      %v5760 = vpop.permute.xlu0 %5759
      %v5762 = vmul.f32 %v5755, %v5760
      %5764 = vrot.lane.b32.xlu0 %v5762, 20
      %v5765 = vpop.permute.xlu0 %5764
      %v5767 = vadd.f32 %v5757, %v5765
      %v5768 = vtanh.pop %v5767
      %5770 = vrot.lane.b32.xlu0 %v5768, 40
      %v5771 = vpop.permute.xlu0 %5770
      %v5773 = vmul.f32 %v5755, %v5771
      %v5774 = vld [vmem:[%s14] sm:$0xff]
      %v5775 = vld [vmem:[%s14 + $0x8] sm:$0xff]
      %v5776 = vld [vmem:[%s14 + $0x10] sm:$0xf]
      %v5777 = vld [vmem:[%s15] sm:$0x1]
      %v5779 = vperm.slane %v5777, 0
      %5782 = vrot.lane.b32.xlu0 %v5773, 68
      %v5783 = vpop.permute.xlu0 %5782
      %v5784 = vsel %vm5062, %v5783, 0
      %v5787 = vsel %vm1710, %v5776, 0
      %5789 = vmatpush.msra.mxu0 0.0
      %5790 = vmatpush.msra.mxu0 0.0
      %5791 = vmatpush.msra.mxu0 0.0
      %5792 = vmatpush.msra.mxu0 0.0
      %5793 = vmatpush.msra.mxu0 0.0
      %5794 = vmatpush.msra.mxu0 0.0
      %5795 = vmatpush.msra.mxu0 0.0
      %5796 = vmatpush.msra.mxu0 0.0
      %5797 = vmatpush.msra.mxu0 0.0
      %5798 = vmatpush.msra.mxu0 0.0
      %5799 = vmatpush.msra.mxu0 0.0
      %5800 = vmatpush.msra.mxu0 0.0
      %5801 = vmatpush.msra.mxu0 0.0
      %5802 = vmatpush.msra.mxu0 %v5787
      %5803 = vmatpush.msra.mxu0 %v5775
      %5804 = vmatpush.msra.mxu0 %v5774
      %5805 = vmatmul.f32.gmra.mxu0 %v5784
      %v5806 = vpop.f32.mrf.mxu0
      %v5807 = vadd.f32 %v5779, %v5806
      %5808 = vdwg.mxu0
      %vm5809 = vcmask 48128
      %5810 = vst.msk [vmem:[%s519] sm:$0xff] %vm5809, %v5807
      %p5811 = scmp.lt.s32.totalorder %s27, 1
      %s5812 = scalar_select %p5811, %s27, 1
      %s5813 = smul.addr %s5812, 8
      %s5814 = scalar_lea.vmem %s16, %s5813
      // Predicated region
      $region85: #{cnn_lstm_forward.1} parent=83 // pred_check
        %p5815 = pneg %p386
      $region86: #{cnn_lstm_forward.1} parent=83 // pred_check_branch
        %5817 = sbr.rel (%p5815) target = $region88
      $region87: #{cnn_lstm_forward.1} parent=83 // pred_region
        _
      $region88: #{cnn_lstm_forward.1} parent=83 // pred_fallthru
        _
    $region84: #{cnn_lstm_forward.1} parent=5 // pred_fallthru
      _
    %p5818 = scmp.le.s32.totalorder 2, %s22
    // Predicated region
    $region89: #{cnn_lstm_forward.1} parent=5 // pred_check
      %p5819 = pneg %p5818
    $region90: #{cnn_lstm_forward.1} parent=5 // pred_check_branch
      %5821 = sbr.rel (%p5819) target = $region92
    $region91: #{cnn_lstm_forward.1} parent=5 // pred_region
      %s5822 = ssub.s32 %s22, 2
      // Predicated region
      $region93: #{cnn_lstm_forward.1} parent=91 // pred_check
        %p5823 = pneg %p392
      $region94: #{cnn_lstm_forward.1} parent=91 // pred_check_branch
        %5825 = sbr.rel (%p5823) target = $region96
      $region95: #{cnn_lstm_forward.1} parent=91 // pred_region
        %p5826 = scmp.lt.s32.totalorder %s28, 1
        %s5827 = scalar_select %p5826, %s28, 1
        %s5828 = smul.addr %s5827, 8
        %s5829 = scalar_lea.vmem %s16, %s5828
      $region96: #{cnn_lstm_forward.1} parent=91 // pred_fallthru
        _
    $region92: #{cnn_lstm_forward.1} parent=5 // pred_fallthru
      _
  $region6: #{cnn_lstm_forward.1} parent=0 // loop_footer
    %s26 = sadd.s32 1, %s22
  $region7: #{cnn_lstm_forward.1} parent=0 // loop_footer_branch
    %21 = sbr.rel target = $region3
  $region8: #{cnn_lstm_forward.1} parent=0 // loop_exit
    _

</llo_original>
